<compile_context>
chip_gen: v7x
topology: tpu7x:2x2x1
jax: 0.10.0
libtpu: 0.0.40
codegen_flags: <defaults>
</compile_context>

<pallas_src>
import functools

import jax
import jax.numpy as jnp
from jax import lax
from jax.experimental import pallas as pl
from jax.experimental.pallas import tpu as pltpu

# ---------------- synthetic config (small, deterministic) -------------------
config = dict(
    filter_size1=3, filter_size2=3, filter_size3=3,
    input_chans=4, n_note=8,
    num_features1=8, num_features2=16, num_features3=32, num_features4=32,
    pooling_size=2,
)
padding1 = config["filter_size1"] // 2
padding2 = config["filter_size2"] // 2
BN_EPS = 1e-5

# Matmul operand dtype.  jnp.bfloat16 is the v6e/v7x knob (2x MXU rate,
# f32 accumulation kept via preferred_element_type); f32 default keeps the
# kernel numerically tight against the f32 reference and safe on v5e.
MATMUL_DTYPE = jnp.float32


def _elu(v):
    # ELU(alpha=1): x if x > 0 else exp(x) - 1.
    # exp(x)-1 (not expm1) is kept for maximally safe Mosaic lowering; the
    # precision difference near 0 is ~1e-8, far below the 1e-3 tolerance.
    return jnp.where(v > 0, v, jnp.exp(v) - 1.0)


# ------------------------------ fused kernel --------------------------------
def _net_kernel(x_ref,
                w1_ref, b1_ref, w2_ref, b2_ref, w3_ref, b3_ref,
                w4_ref, b4_ref, w5_ref, b5_ref,
                o_ref,
                pad1_ref, pad2_ref,
                *, pool_size, ksizes):
    """One batch-block per grid step; every intermediate stays in VMEM/vregs."""
    f32 = jnp.float32
    P = pool_size
    K1, K2, K3 = ksizes
    B, H, W, Cin = x_ref.shape
    nf1, nf2 = w1_ref.shape[1], w2_ref.shape[1]

    def conv_im2col(xp, ws_ref, b_ref, ksz):
        """Valid conv, stride 1, as ONE (B*Ho*Wo, ksz*ksz*Cin) x (K, Cout) dot.
        xp: (B, Hi, Wi, Cin) ref or value.  Returns ((B*Ho*Wo, Cout) f32, (Ho, Wo))."""
        _, Hi, Wi, cin = xp.shape
        Ho, Wo = Hi - ksz + 1, Wi - ksz + 1
        # im2col slab: tap-major (kh, kw, ci) along lanes, matching the
        # (ksz*ksz*cin, cout) weight reshape done in the wrapper.
        slab = jnp.concatenate(
            [xp[:, kh:kh + Ho, kw:kw + Wo, :]
             for kh in range(ksz) for kw in range(ksz)], axis=-1)
        slab = slab.reshape(B * Ho * Wo, ksz * ksz * cin)
        acc = jnp.dot(slab.astype(MATMUL_DTYPE),
                      ws_ref[...].astype(MATMUL_DTYPE),
                      preferred_element_type=f32)
        return acc + b_ref[...], (Ho, Wo)

    def maxpool(y2d, Hi, Wi, C):
        """Vectorized PxP max pool over (B*Hi*Wi, C) row-major ->
        (B, Hi//P, Wi//P, C)."""
        t = y2d.reshape(B * Hi * (Wi // P), P, C)            # pool along W
        m = t[:, 0, :]
        for j in range(1, P):
            m = jnp.maximum(m, t[:, j, :])
        t = m.reshape(B * (Hi // P), P, Wi // P, C)          # pool along H
        m = t[:, 0]
        for j in range(1, P):
            m = jnp.maximum(m, t[:, j])
        return m.reshape(B, Hi // P, Wi // P, C)

    def write_padded(pad_ref, x_val, p, Hi, Wi, C):
        """'same'-padding staging buffer: zero ONLY the four border slabs (the
        interior is fully overwritten every step).  Done every grid step and
        never gated on program_id (scratch is per-core)."""
        Wp = Wi + 2 * p
        if p > 0:
            zrow = jnp.zeros((B, p, Wp, C), f32)
            pad_ref[:, :p, :, :] = zrow                      # top rows
            pad_ref[:, p + Hi:, :, :] = zrow                 # bottom rows
            zcol = jnp.zeros((B, Hi, p, C), f32)
            pad_ref[:, p:p + Hi, :p, :] = zcol               # left cols
            pad_ref[:, p:p + Hi, p + Wi:, :] = zcol          # right cols
        pad_ref[:, p:p + Hi, p:p + Wi, :] = x_val

    # ----- stage 1: pad -> conv1 (BN folded) + ELU -> maxpool -----
    p1 = (pad1_ref.shape[1] - H) // 2
    write_padded(pad1_ref, x_ref[...], p1, H, W, Cin)
    y, (h, w) = conv_im2col(pad1_ref, w1_ref, b1_ref, K1)
    y = maxpool(_elu(y), h, w, nf1)                          # (B, H/P, W/P, nf1)

    # ----- stage 2: pad -> conv2 (BN folded) + ELU -> maxpool -----
    _, H1, W1, _ = y.shape
    p2 = (pad2_ref.shape[1] - H1) // 2
    write_padded(pad2_ref, y, p2, H1, W1, nf1)
    y, (h, w) = conv_im2col(pad2_ref, w2_ref, b2_ref, K2)
    y = maxpool(_elu(y), h, w, nf2)                          # (B, H/P^2, W/P^2, nf2)

    # ----- stage 3: conv3 (valid) + ELU -----
    y, _ = conv_im2col(y, w3_ref, b3_ref, K3)
    y = _elu(y)                                              # (B*Ho*Wo, nf3)

    # ----- stages 4-5: 1x1 convs == plain matmuls over fused B*Ho*Wo rows -----
    y = _elu(jnp.dot(y.astype(MATMUL_DTYPE), w4_ref[...].astype(MATMUL_DTYPE),
                     preferred_element_type=f32) + b4_ref[...])
    y = jnp.dot(y.astype(MATMUL_DTYPE), w5_ref[...].astype(MATMUL_DTYPE),
                preferred_element_type=f32) + b5_ref[...]

    o_ref[...] = y.astype(o_ref.dtype)                       # (B*Ho*Wo, n_note)


# ------------------------------ wrapper --------------------------------------
def _fold_bn(w, b, bn):
    """Fold eval-mode BatchNorm into a conv weight/bias.  w: (KH,KW,Cin,Cout)."""
    scale = bn["gamma"] * lax.rsqrt(bn["var"] + BN_EPS)            # (Cout,)
    return w * scale, (b - bn["mean"]) * scale + bn["beta"]


def _batch_block(n):
    """Images per grid step.  Small batches run in one step (per-step overhead
    and tiny tail-matmul M dominate); large batches are split into blocks of 8
    so the grid keeps >= 2 steps (keeps both v7x TensorCores busy)."""
    if n <= 8:
        return n
    for b in (8, 4, 2):
        if n % b == 0:
            return b
    return 1


@jax.jit
def net_forward(x_nchw, params):
    c = config
    P = c["pooling_size"]
    K1, K2, K3 = c["filter_size1"], c["filter_size2"], c["filter_size3"]
    N, Cin, H, W = x_nchw.shape

    # Shape guards: the 'same'-padding / pooling arithmetic assumes these.
    assert K1 % 2 == 1 and K2 % 2 == 1, "'same' padding path assumes odd filters"
    assert H % P == 0 and W % P == 0 and (H // P) % P == 0 and (W // P) % P == 0, \
        "H, W must be divisible by pooling_size at every stage"

    x = jnp.transpose(x_nchw, (0, 2, 3, 1))                        # NCHW -> NHWC

    w1, b1 = _fold_bn(params["conv1"]["w"], params["conv1"]["b"], params["bn1"])
    w2, b2 = _fold_bn(params["conv2"]["w"], params["conv2"]["b"], params["bn2"])
    w3, b3 = params["conv3"]["w"], params["conv3"]["b"]
    nf1, nf2, nf3 = w1.shape[3], w2.shape[3], w3.shape[3]
    nf4 = params["conv4"]["w"].shape[3]

    # im2col weight layout: row index = (kh*KW + kw)*Cin + ci  (matches kernel).
    w1s = w1.reshape(K1 * K1 * Cin, nf1)
    w2s = w2.reshape(K2 * K2 * nf1, nf2)
    w3s = w3.reshape(K3 * K3 * nf2, nf3)
    w4 = params["conv4"]["w"].reshape(nf3, nf4)
    b4 = params["conv4"]["b"]
    w5 = params["conv5"]["w"].reshape(nf4, c["n_note"])
    b5 = params["conv5"]["b"]
    n_note = w5.shape[1]

    p1, p2 = K1 // 2, K2 // 2
    H1, W1 = H // P, W // P                     # after pool1 ('same' conv1)
    H2, W2 = H1 // P, W1 // P                   # after pool2
    Ho, Wo = H2 - K3 + 1, W2 - K3 + 1           # conv3 valid; conv4/5 are 1x1
    assert Ho >= 1 and Wo >= 1, "spatial dims too small for conv3"

    B = _batch_block(N)
    G = N // B
    assert B * G == N

    kernel = functools.partial(_net_kernel, pool_size=P, ksizes=(K1, K2, K3))
    out = pl.pallas_call(
        kernel,
        out_shape=jax.ShapeDtypeStruct((N * Ho * Wo, n_note), jnp.float32),
        grid=(G,),
        in_specs=[
            pl.BlockSpec((B, H, W, Cin), lambda n: (n, 0, 0, 0)),
            pl.BlockSpec(w1s.shape, lambda n: (0, 0)),
            pl.BlockSpec((1, nf1), lambda n: (0, 0)),
            pl.BlockSpec(w2s.shape, lambda n: (0, 0)),
            pl.BlockSpec((1, nf2), lambda n: (0, 0)),
            pl.BlockSpec(w3s.shape, lambda n: (0, 0)),
            pl.BlockSpec((1, nf3), lambda n: (0, 0)),
            pl.BlockSpec(w4.shape, lambda n: (0, 0)),
            pl.BlockSpec((1, nf4), lambda n: (0, 0)),
            pl.BlockSpec(w5.shape, lambda n: (0, 0)),
            pl.BlockSpec((1, n_note), lambda n: (0, 0)),
        ],
        out_specs=pl.BlockSpec((B * Ho * Wo, n_note), lambda n: (n, 0)),
        scratch_shapes=[
            pltpu.VMEM((B, H + 2 * p1, W + 2 * p1, Cin), jnp.float32),   # pad1
            pltpu.VMEM((B, H1 + 2 * p2, W1 + 2 * p2, nf1), jnp.float32), # pad2
        ],
        compiler_params=pltpu.CompilerParams(
            dimension_semantics=("parallel",),   # batch blocks are independent
        ),
    )(x, w1s, b1.reshape(1, -1), w2s, b2.reshape(1, -1), w3s, b3.reshape(1, -1),
      w4, b4.reshape(1, -1), w5, b5.reshape(1, -1))

    out = out.reshape(N, Ho, Wo, n_note)
    return jnp.transpose(out, (0, 3, 1, 2))                        # NHWC -> NCHW


# ------------------------------ parameters ------------------------------------
def init_params(key):
    c = config
    ks = jax.random.split(key, 7)

    def conv_init(k, ksz, cin, cout):
        # Kaiming-uniform-style init (like torch Conv2d default), HWIO layout.
        k1, k2 = jax.random.split(k)
        bound = 1.0 / ((ksz * ksz * cin) ** 0.5)
        return {
            "w": jax.random.uniform(k1, (ksz, ksz, cin, cout), jnp.float32,
                                    -bound, bound),
            "b": jax.random.uniform(k2, (cout,), jnp.float32, -bound, bound),
        }

    def bn_init(k, nf):
        # Non-trivial eval-mode running stats so the folding path is exercised.
        k1, k2, k3, k4 = jax.random.split(k, 4)
        return {
            "gamma": 1.0 + 0.1 * jax.random.normal(k1, (nf,), jnp.float32),
            "beta": 0.1 * jax.random.normal(k2, (nf,), jnp.float32),
            "mean": 0.1 * jax.random.normal(k3, (nf,), jnp.float32),
            "var": 1.0 + 0.1 * jax.random.uniform(k4, (nf,), jnp.float32),
        }

    return {
        "conv1": conv_init(ks[0], c["filter_size1"], c["input_chans"], c["num_features1"]),
        "bn1": bn_init(ks[1], c["num_features1"]),
        "conv2": conv_init(ks[2], c["filter_size2"], c["num_features1"], c["num_features2"]),
        "bn2": bn_init(ks[3], c["num_features2"]),
        "conv3": conv_init(ks[4], c["filter_size3"], c["num_features2"], c["num_features3"]),
        "conv4": conv_init(ks[5], 1, c["num_features3"], c["num_features4"]),
        "conv5": conv_init(ks[6], 1, c["num_features4"], c["n_note"]),
    }


# ---------------------- pure-JAX reference (correctness) ----------------------
@jax.jit
def ref_forward(x_nchw, params):
    P = config["pooling_size"]

    def conv(x, layer, pad):
        y = lax.conv_general_dilated(
            x, layer["w"], window_strides=(1, 1),
            padding=[(pad, pad), (pad, pad)],
            dimension_numbers=("NHWC", "HWIO", "NHWC"))
        return y + layer["b"]

    def bn(x, p):
        return (x - p["mean"]) * lax.rsqrt(p["var"] + BN_EPS) * p["gamma"] + p["beta"]

    def pool(x):
        return lax.reduce_window(x, -jnp.inf, lax.max,
                                 (1, P, P, 1), (1, P, P, 1), "VALID")

    x = jnp.transpose(x_nchw, (0, 2, 3, 1))
    x = pool(_elu(bn(conv(x, params["conv1"], padding1), params["bn1"])))
    x = pool(_elu(bn(conv(x, params["conv2"], padding2), params["bn2"])))
    x = _elu(conv(x, params["conv3"], 0))
    x = _elu(conv(x, params["conv4"], 0))
    x = conv(x, params["conv5"], 0)
    return jnp.transpose(x, (0, 3, 1, 2))


if __name__ == "__main__":
    key = jax.random.PRNGKey(0)
    kx, kp = jax.random.split(key)
    x = jax.random.normal(kx, (2, config["input_chans"], 16, 16), jnp.float32)
    params = init_params(kp)

    out = jax.block_until_ready(net_forward(x, params))
    assert out.shape == (2, config["n_note"], 2, 2), out.shape

    ref = jax.block_until_ready(ref_forward(x, params))
    max_err = float(jnp.max(jnp.abs(out - ref)))
    assert jnp.allclose(out, ref, atol=1e-3, rtol=1e-3), max_err
    print("KERNEL_OK")
</pallas_src>

<mosaic_0001>
module attributes {stable_mosaic.version = 11 : i64} {
  func.func @_net_kernel(%arg0: i32, %arg1: memref<2x16x16x4xf32, #tpu.memory_space<vmem>>, %arg2: memref<36x8xf32, #tpu.memory_space<vmem>>, %arg3: memref<1x8xf32, #tpu.memory_space<vmem>>, %arg4: memref<72x16xf32, #tpu.memory_space<vmem>>, %arg5: memref<1x16xf32, #tpu.memory_space<vmem>>, %arg6: memref<144x32xf32, #tpu.memory_space<vmem>>, %arg7: memref<1x32xf32, #tpu.memory_space<vmem>>, %arg8: memref<32x32xf32, #tpu.memory_space<vmem>>, %arg9: memref<1x32xf32, #tpu.memory_space<vmem>>, %arg10: memref<32x8xf32, #tpu.memory_space<vmem>>, %arg11: memref<1x8xf32, #tpu.memory_space<vmem>>, %arg12: memref<8x8xf32, #tpu.memory_space<vmem>>, %arg13: memref<2x18x18x4xf32, #tpu.memory_space<vmem>>, %arg14: memref<2x10x10x8xf32, #tpu.memory_space<vmem>>) attributes {dimension_semantics = [#tpu.dimension_semantics<parallel>], iteration_bounds = array<i64: 1>, scalar_prefetch = 0 : i64, scratch_operands = 2 : i64, tpu.core_type = #tpu.core_type<tc>, window_params = [{transform_indices = @transform_0, window_bounds = array<i64: 2, 16, 16, 4>}, {pipeline_mode = #tpu.pipeline_mode<synchronous>, transform_indices = @transform_1, window_bounds = array<i64: 36, 8>}, {pipeline_mode = #tpu.pipeline_mode<synchronous>, transform_indices = @transform_2, window_bounds = array<i64: 1, 8>}, {pipeline_mode = #tpu.pipeline_mode<synchronous>, transform_indices = @transform_3, window_bounds = array<i64: 72, 16>}, {pipeline_mode = #tpu.pipeline_mode<synchronous>, transform_indices = @transform_4, window_bounds = array<i64: 1, 16>}, {pipeline_mode = #tpu.pipeline_mode<synchronous>, transform_indices = @transform_5, window_bounds = array<i64: 144, 32>}, {pipeline_mode = #tpu.pipeline_mode<synchronous>, transform_indices = @transform_6, window_bounds = array<i64: 1, 32>}, {pipeline_mode = #tpu.pipeline_mode<synchronous>, transform_indices = @transform_7, window_bounds = array<i64: 32, 32>}, {pipeline_mode = #tpu.pipeline_mode<synchronous>, transform_indices = @transform_8, window_bounds = array<i64: 1, 32>}, {pipeline_mode = #tpu.pipeline_mode<synchronous>, transform_indices = @transform_9, window_bounds = array<i64: 32, 8>}, {pipeline_mode = #tpu.pipeline_mode<synchronous>, transform_indices = @transform_10, window_bounds = array<i64: 1, 8>}, {transform_indices = @transform_11, window_bounds = array<i64: 8, 8>}]} {
    %c0 = arith.constant 0 : index
    %c0_0 = arith.constant 0 : index
    %c0_1 = arith.constant 0 : index
    %c0_2 = arith.constant 0 : index
    %0 = vector.load %arg1[%c0, %c0_0, %c0_1, %c0_2] : memref<2x16x16x4xf32, #tpu.memory_space<vmem>>, vector<2x16x16x4xf32>
    %cst = arith.constant 0.000000e+00 : f32
    %1 = vector.broadcast %cst : f32 to vector<2x1x18x4xf32>
    %c0_3 = arith.constant 0 : index
    %c0_4 = arith.constant 0 : index
    %c0_5 = arith.constant 0 : index
    %c0_6 = arith.constant 0 : index
    %2 = vector.load %arg13[%c0_3, %c0_4, %c0_5, %c0_6] : memref<2x18x18x4xf32, #tpu.memory_space<vmem>>, vector<2x1x18x4xf32>
    tpu.vector_store %arg13[%c0_3, %c0_4, %c0_5, %c0_6], %1 {strides = array<i32>} : memref<2x18x18x4xf32, #tpu.memory_space<vmem>>, vector<2x1x18x4xf32>,
    %c0_7 = arith.constant 0 : index
    %c17 = arith.constant 17 : index
    %c0_8 = arith.constant 0 : index
    %c0_9 = arith.constant 0 : index
    %3 = vector.load %arg13[%c0_7, %c17, %c0_8, %c0_9] : memref<2x18x18x4xf32, #tpu.memory_space<vmem>>, vector<2x1x18x4xf32>
    tpu.vector_store %arg13[%c0_7, %c17, %c0_8, %c0_9], %1 {strides = array<i32>} : memref<2x18x18x4xf32, #tpu.memory_space<vmem>>, vector<2x1x18x4xf32>,
    %cst_10 = arith.constant 0.000000e+00 : f32
    %4 = vector.broadcast %cst_10 : f32 to vector<2x16x1x4xf32>
    %c0_11 = arith.constant 0 : index
    %c1 = arith.constant 1 : index
    %c0_12 = arith.constant 0 : index
    %c0_13 = arith.constant 0 : index
    %5 = vector.load %arg13[%c0_11, %c1, %c0_12, %c0_13] : memref<2x18x18x4xf32, #tpu.memory_space<vmem>>, vector<2x16x1x4xf32>
    tpu.vector_store %arg13[%c0_11, %c1, %c0_12, %c0_13], %4 {strides = array<i32>} : memref<2x18x18x4xf32, #tpu.memory_space<vmem>>, vector<2x16x1x4xf32>,
    %c0_14 = arith.constant 0 : index
    %c1_15 = arith.constant 1 : index
    %c17_16 = arith.constant 17 : index
    %c0_17 = arith.constant 0 : index
    %6 = vector.load %arg13[%c0_14, %c1_15, %c17_16, %c0_17] : memref<2x18x18x4xf32, #tpu.memory_space<vmem>>, vector<2x16x1x4xf32>
    tpu.vector_store %arg13[%c0_14, %c1_15, %c17_16, %c0_17], %4 {strides = array<i32>} : memref<2x18x18x4xf32, #tpu.memory_space<vmem>>, vector<2x16x1x4xf32>,
    %c0_18 = arith.constant 0 : index
    %c1_19 = arith.constant 1 : index
    %c1_20 = arith.constant 1 : index
    %c0_21 = arith.constant 0 : index
    %7 = vector.load %arg13[%c0_18, %c1_19, %c1_20, %c0_21] : memref<2x18x18x4xf32, #tpu.memory_space<vmem>>, vector<2x16x16x4xf32>
    tpu.vector_store %arg13[%c0_18, %c1_19, %c1_20, %c0_21], %0 {strides = array<i32>} : memref<2x18x18x4xf32, #tpu.memory_space<vmem>>, vector<2x16x16x4xf32>,
    %c0_22 = arith.constant 0 : index
    %c0_23 = arith.constant 0 : index
    %c0_24 = arith.constant 0 : index
    %c0_25 = arith.constant 0 : index
    %8 = vector.load %arg13[%c0_22, %c0_23, %c0_24, %c0_25] : memref<2x18x18x4xf32, #tpu.memory_space<vmem>>, vector<2x16x16x4xf32>
    %c0_26 = arith.constant 0 : index
    %c0_27 = arith.constant 0 : index
    %c1_28 = arith.constant 1 : index
    %c0_29 = arith.constant 0 : index
    %9 = vector.load %arg13[%c0_26, %c0_27, %c1_28, %c0_29] : memref<2x18x18x4xf32, #tpu.memory_space<vmem>>, vector<2x16x16x4xf32>
    %c0_30 = arith.constant 0 : index
    %c0_31 = arith.constant 0 : index
    %c2 = arith.constant 2 : index
    %c0_32 = arith.constant 0 : index
    %10 = vector.load %arg13[%c0_30, %c0_31, %c2, %c0_32] : memref<2x18x18x4xf32, #tpu.memory_space<vmem>>, vector<2x16x16x4xf32>
    %c0_33 = arith.constant 0 : index
    %c1_34 = arith.constant 1 : index
    %c0_35 = arith.constant 0 : index
    %c0_36 = arith.constant 0 : index
    %11 = vector.load %arg13[%c0_33, %c1_34, %c0_35, %c0_36] : memref<2x18x18x4xf32, #tpu.memory_space<vmem>>, vector<2x16x16x4xf32>
    %c0_37 = arith.constant 0 : index
    %c1_38 = arith.constant 1 : index
    %c1_39 = arith.constant 1 : index
    %c0_40 = arith.constant 0 : index
    %12 = vector.load %arg13[%c0_37, %c1_38, %c1_39, %c0_40] : memref<2x18x18x4xf32, #tpu.memory_space<vmem>>, vector<2x16x16x4xf32>
    %c0_41 = arith.constant 0 : index
    %c1_42 = arith.constant 1 : index
    %c2_43 = arith.constant 2 : index
    %c0_44 = arith.constant 0 : index
    %13 = vector.load %arg13[%c0_41, %c1_42, %c2_43, %c0_44] : memref<2x18x18x4xf32, #tpu.memory_space<vmem>>, vector<2x16x16x4xf32>
    %c0_45 = arith.constant 0 : index
    %c2_46 = arith.constant 2 : index
    %c0_47 = arith.constant 0 : index
    %c0_48 = arith.constant 0 : index
    %14 = vector.load %arg13[%c0_45, %c2_46, %c0_47, %c0_48] : memref<2x18x18x4xf32, #tpu.memory_space<vmem>>, vector<2x16x16x4xf32>
    %c0_49 = arith.constant 0 : index
    %c2_50 = arith.constant 2 : index
    %c1_51 = arith.constant 1 : index
    %c0_52 = arith.constant 0 : index
    %15 = vector.load %arg13[%c0_49, %c2_50, %c1_51, %c0_52] : memref<2x18x18x4xf32, #tpu.memory_space<vmem>>, vector<2x16x16x4xf32>
    %c0_53 = arith.constant 0 : index
    %c2_54 = arith.constant 2 : index
    %c2_55 = arith.constant 2 : index
    %c0_56 = arith.constant 0 : index
    %16 = vector.load %arg13[%c0_53, %c2_54, %c2_55, %c0_56] : memref<2x18x18x4xf32, #tpu.memory_space<vmem>>, vector<2x16x16x4xf32>
    %17 = tpu.concatenate %8, %9, %10, %11, %12, %13, %14, %15, %16 in 3 : vector<2x16x16x4xf32>, vector<2x16x16x4xf32>, vector<2x16x16x4xf32>, vector<2x16x16x4xf32>, vector<2x16x16x4xf32>, vector<2x16x16x4xf32>, vector<2x16x16x4xf32>, vector<2x16x16x4xf32>, vector<2x16x16x4xf32> -> vector<2x16x16x36xf32>
    %18 = vector.shape_cast %17 : vector<2x16x16x36xf32> to vector<512x36xf32>
    %c0_57 = arith.constant 0 : index
    %c0_58 = arith.constant 0 : index
    %19 = vector.load %arg2[%c0_57, %c0_58] : memref<36x8xf32, #tpu.memory_space<vmem>>, vector<36x8xf32>
    %cst_59 = arith.constant dense<0.000000e+00> : vector<512x8xf32>
    %20 = tpu.matmul %18, %19, %cst_59 {dimension_numbers = #tpu.dot_dimension_numbers<[1], [0], [0], [1], [0, 0, 1, 1], [], []>} : vector<512x36xf32>, vector<36x8xf32>, vector<512x8xf32> -> vector<512x8xf32>
    %c0_60 = arith.constant 0 : index
    %c0_61 = arith.constant 0 : index
    %21 = vector.load %arg3[%c0_60, %c0_61] : memref<1x8xf32, #tpu.memory_space<vmem>>, vector<1x8xf32>
    %22 = vector.broadcast %21 : vector<1x8xf32> to vector<512x8xf32>
    %23 = arith.addf %20, %22 : vector<512x8xf32>
    %cst_62 = arith.constant 0.000000e+00 : f32
    %24 = vector.broadcast %cst_62 : f32 to vector<512x8xf32>
    %25 = arith.cmpf ogt, %23, %24 : vector<512x8xf32>
    %26 = math.exp %23 : vector<512x8xf32>
    %cst_63 = arith.constant 1.000000e+00 : f32
    %27 = vector.broadcast %cst_63 : f32 to vector<512x8xf32>
    %28 = arith.subf %26, %27 : vector<512x8xf32>
    %29 = arith.select %25, %23, %28 : vector<512x8xi1>, vector<512x8xf32>
    %30 = vector.shape_cast %29 : vector<512x8xf32> to vector<256x2x8xf32>
    %31 = vector.extract_strided_slice %30 {offsets = [0, 0, 0], sizes = [256, 1, 8], strides = [1, 1, 1]} : vector<256x2x8xf32> to vector<256x1x8xf32>
    %32 = vector.shape_cast %31 : vector<256x1x8xf32> to vector<256x8xf32>
    %33 = vector.extract_strided_slice %30 {offsets = [0, 1, 0], sizes = [256, 1, 8], strides = [1, 1, 1]} : vector<256x2x8xf32> to vector<256x1x8xf32>
    %34 = vector.shape_cast %33 : vector<256x1x8xf32> to vector<256x8xf32>
    %35 = arith.maximumf %32, %34 : vector<256x8xf32>
    %36 = vector.shape_cast %35 : vector<256x8xf32> to vector<16x2x8x8xf32>
    %37 = vector.extract_strided_slice %36 {offsets = [0, 0, 0, 0], sizes = [16, 1, 8, 8], strides = [1, 1, 1, 1]} : vector<16x2x8x8xf32> to vector<16x1x8x8xf32>
    %38 = vector.shape_cast %37 : vector<16x1x8x8xf32> to vector<16x8x8xf32>
    %39 = vector.extract_strided_slice %36 {offsets = [0, 1, 0, 0], sizes = [16, 1, 8, 8], strides = [1, 1, 1, 1]} : vector<16x2x8x8xf32> to vector<16x1x8x8xf32>
    %40 = vector.shape_cast %39 : vector<16x1x8x8xf32> to vector<16x8x8xf32>
    %41 = arith.maximumf %38, %40 : vector<16x8x8xf32>
    %42 = vector.shape_cast %41 : vector<16x8x8xf32> to vector<2x8x8x8xf32>
    %cst_64 = arith.constant 0.000000e+00 : f32
    %43 = vector.broadcast %cst_64 : f32 to vector<2x1x10x8xf32>
    %c0_65 = arith.constant 0 : index
    %c0_66 = arith.constant 0 : index
    %c0_67 = arith.constant 0 : index
    %c0_68 = arith.constant 0 : index
    %44 = vector.load %arg14[%c0_65, %c0_66, %c0_67, %c0_68] : memref<2x10x10x8xf32, #tpu.memory_space<vmem>>, vector<2x1x10x8xf32>
    tpu.vector_store %arg14[%c0_65, %c0_66, %c0_67, %c0_68], %43 {strides = array<i32>} : memref<2x10x10x8xf32, #tpu.memory_space<vmem>>, vector<2x1x10x8xf32>,
    %c0_69 = arith.constant 0 : index
    %c9 = arith.constant 9 : index
    %c0_70 = arith.constant 0 : index
    %c0_71 = arith.constant 0 : index
    %45 = vector.load %arg14[%c0_69, %c9, %c0_70, %c0_71] : memref<2x10x10x8xf32, #tpu.memory_space<vmem>>, vector<2x1x10x8xf32>
    tpu.vector_store %arg14[%c0_69, %c9, %c0_70, %c0_71], %43 {strides = array<i32>} : memref<2x10x10x8xf32, #tpu.memory_space<vmem>>, vector<2x1x10x8xf32>,
    %cst_72 = arith.constant 0.000000e+00 : f32
    %46 = vector.broadcast %cst_72 : f32 to vector<2x8x1x8xf32>
    %c0_73 = arith.constant 0 : index
    %c1_74 = arith.constant 1 : index
    %c0_75 = arith.constant 0 : index
    %c0_76 = arith.constant 0 : index
    %47 = vector.load %arg14[%c0_73, %c1_74, %c0_75, %c0_76] : memref<2x10x10x8xf32, #tpu.memory_space<vmem>>, vector<2x8x1x8xf32>
    tpu.vector_store %arg14[%c0_73, %c1_74, %c0_75, %c0_76], %46 {strides = array<i32>} : memref<2x10x10x8xf32, #tpu.memory_space<vmem>>, vector<2x8x1x8xf32>,
    %c0_77 = arith.constant 0 : index
    %c1_78 = arith.constant 1 : index
    %c9_79 = arith.constant 9 : index
    %c0_80 = arith.constant 0 : index
    %48 = vector.load %arg14[%c0_77, %c1_78, %c9_79, %c0_80] : memref<2x10x10x8xf32, #tpu.memory_space<vmem>>, vector<2x8x1x8xf32>
    tpu.vector_store %arg14[%c0_77, %c1_78, %c9_79, %c0_80], %46 {strides = array<i32>} : memref<2x10x10x8xf32, #tpu.memory_space<vmem>>, vector<2x8x1x8xf32>,
    %c0_81 = arith.constant 0 : index
    %c1_82 = arith.constant 1 : index
    %c1_83 = arith.constant 1 : index
    %c0_84 = arith.constant 0 : index
    %49 = vector.load %arg14[%c0_81, %c1_82, %c1_83, %c0_84] : memref<2x10x10x8xf32, #tpu.memory_space<vmem>>, vector<2x8x8x8xf32>
    tpu.vector_store %arg14[%c0_81, %c1_82, %c1_83, %c0_84], %42 {strides = array<i32>} : memref<2x10x10x8xf32, #tpu.memory_space<vmem>>, vector<2x8x8x8xf32>,
    %c0_85 = arith.constant 0 : index
    %c0_86 = arith.constant 0 : index
    %c0_87 = arith.constant 0 : index
    %c0_88 = arith.constant 0 : index
    %50 = vector.load %arg14[%c0_85, %c0_86, %c0_87, %c0_88] : memref<2x10x10x8xf32, #tpu.memory_space<vmem>>, vector<2x8x8x8xf32>
    %c0_89 = arith.constant 0 : index
    %c0_90 = arith.constant 0 : index
    %c1_91 = arith.constant 1 : index
    %c0_92 = arith.constant 0 : index
    %51 = vector.load %arg14[%c0_89, %c0_90, %c1_91, %c0_92] : memref<2x10x10x8xf32, #tpu.memory_space<vmem>>, vector<2x8x8x8xf32>
    %c0_93 = arith.constant 0 : index
    %c0_94 = arith.constant 0 : index
    %c2_95 = arith.constant 2 : index
    %c0_96 = arith.constant 0 : index
    %52 = vector.load %arg14[%c0_93, %c0_94, %c2_95, %c0_96] : memref<2x10x10x8xf32, #tpu.memory_space<vmem>>, vector<2x8x8x8xf32>
    %c0_97 = arith.constant 0 : index
    %c1_98 = arith.constant 1 : index
    %c0_99 = arith.constant 0 : index
    %c0_100 = arith.constant 0 : index
    %53 = vector.load %arg14[%c0_97, %c1_98, %c0_99, %c0_100] : memref<2x10x10x8xf32, #tpu.memory_space<vmem>>, vector<2x8x8x8xf32>
    %c0_101 = arith.constant 0 : index
    %c1_102 = arith.constant 1 : index
    %c1_103 = arith.constant 1 : index
    %c0_104 = arith.constant 0 : index
    %54 = vector.load %arg14[%c0_101, %c1_102, %c1_103, %c0_104] : memref<2x10x10x8xf32, #tpu.memory_space<vmem>>, vector<2x8x8x8xf32>
    %c0_105 = arith.constant 0 : index
    %c1_106 = arith.constant 1 : index
    %c2_107 = arith.constant 2 : index
    %c0_108 = arith.constant 0 : index
    %55 = vector.load %arg14[%c0_105, %c1_106, %c2_107, %c0_108] : memref<2x10x10x8xf32, #tpu.memory_space<vmem>>, vector<2x8x8x8xf32>
    %c0_109 = arith.constant 0 : index
    %c2_110 = arith.constant 2 : index
    %c0_111 = arith.constant 0 : index
    %c0_112 = arith.constant 0 : index
    %56 = vector.load %arg14[%c0_109, %c2_110, %c0_111, %c0_112] : memref<2x10x10x8xf32, #tpu.memory_space<vmem>>, vector<2x8x8x8xf32>
    %c0_113 = arith.constant 0 : index
    %c2_114 = arith.constant 2 : index
    %c1_115 = arith.constant 1 : index
    %c0_116 = arith.constant 0 : index
    %57 = vector.load %arg14[%c0_113, %c2_114, %c1_115, %c0_116] : memref<2x10x10x8xf32, #tpu.memory_space<vmem>>, vector<2x8x8x8xf32>
    %c0_117 = arith.constant 0 : index
    %c2_118 = arith.constant 2 : index
    %c2_119 = arith.constant 2 : index
    %c0_120 = arith.constant 0 : index
    %58 = vector.load %arg14[%c0_117, %c2_118, %c2_119, %c0_120] : memref<2x10x10x8xf32, #tpu.memory_space<vmem>>, vector<2x8x8x8xf32>
    %59 = tpu.concatenate %50, %51, %52, %53, %54, %55, %56, %57, %58 in 3 : vector<2x8x8x8xf32>, vector<2x8x8x8xf32>, vector<2x8x8x8xf32>, vector<2x8x8x8xf32>, vector<2x8x8x8xf32>, vector<2x8x8x8xf32>, vector<2x8x8x8xf32>, vector<2x8x8x8xf32>, vector<2x8x8x8xf32> -> vector<2x8x8x72xf32>
    %60 = vector.shape_cast %59 : vector<2x8x8x72xf32> to vector<128x72xf32>
    %c0_121 = arith.constant 0 : index
    %c0_122 = arith.constant 0 : index
    %61 = vector.load %arg4[%c0_121, %c0_122] : memref<72x16xf32, #tpu.memory_space<vmem>>, vector<72x16xf32>
    %cst_123 = arith.constant dense<0.000000e+00> : vector<128x16xf32>
    %62 = tpu.matmul %60, %61, %cst_123 {dimension_numbers = #tpu.dot_dimension_numbers<[1], [0], [0], [1], [0, 0, 1, 1], [], []>} : vector<128x72xf32>, vector<72x16xf32>, vector<128x16xf32> -> vector<128x16xf32>
    %c0_124 = arith.constant 0 : index
    %c0_125 = arith.constant 0 : index
    %63 = vector.load %arg5[%c0_124, %c0_125] : memref<1x16xf32, #tpu.memory_space<vmem>>, vector<1x16xf32>
    %64 = vector.broadcast %63 : vector<1x16xf32> to vector<128x16xf32>
    %65 = arith.addf %62, %64 : vector<128x16xf32>
    %cst_126 = arith.constant 0.000000e+00 : f32
    %66 = vector.broadcast %cst_126 : f32 to vector<128x16xf32>
    %67 = arith.cmpf ogt, %65, %66 : vector<128x16xf32>
    %68 = math.exp %65 : vector<128x16xf32>
    %cst_127 = arith.constant 1.000000e+00 : f32
    %69 = vector.broadcast %cst_127 : f32 to vector<128x16xf32>
    %70 = arith.subf %68, %69 : vector<128x16xf32>
    %71 = arith.select %67, %65, %70 : vector<128x16xi1>, vector<128x16xf32>
    %72 = vector.shape_cast %71 : vector<128x16xf32> to vector<64x2x16xf32>
    %73 = vector.extract_strided_slice %72 {offsets = [0, 0, 0], sizes = [64, 1, 16], strides = [1, 1, 1]} : vector<64x2x16xf32> to vector<64x1x16xf32>
    %74 = vector.shape_cast %73 : vector<64x1x16xf32> to vector<64x16xf32>
    %75 = vector.extract_strided_slice %72 {offsets = [0, 1, 0], sizes = [64, 1, 16], strides = [1, 1, 1]} : vector<64x2x16xf32> to vector<64x1x16xf32>
    %76 = vector.shape_cast %75 : vector<64x1x16xf32> to vector<64x16xf32>
    %77 = arith.maximumf %74, %76 : vector<64x16xf32>
    %78 = vector.shape_cast %77 : vector<64x16xf32> to vector<8x2x4x16xf32>
    %79 = vector.extract_strided_slice %78 {offsets = [0, 0, 0, 0], sizes = [8, 1, 4, 16], strides = [1, 1, 1, 1]} : vector<8x2x4x16xf32> to vector<8x1x4x16xf32>
    %80 = vector.shape_cast %79 : vector<8x1x4x16xf32> to vector<8x4x16xf32>
    %81 = vector.extract_strided_slice %78 {offsets = [0, 1, 0, 0], sizes = [8, 1, 4, 16], strides = [1, 1, 1, 1]} : vector<8x2x4x16xf32> to vector<8x1x4x16xf32>
    %82 = vector.shape_cast %81 : vector<8x1x4x16xf32> to vector<8x4x16xf32>
    %83 = arith.maximumf %80, %82 : vector<8x4x16xf32>
    %84 = vector.shape_cast %83 : vector<8x4x16xf32> to vector<2x4x4x16xf32>
    %85 = vector.extract_strided_slice %84 {offsets = [0, 0, 0, 0], sizes = [2, 2, 2, 16], strides = [1, 1, 1, 1]} : vector<2x4x4x16xf32> to vector<2x2x2x16xf32>
    %86 = vector.extract_strided_slice %84 {offsets = [0, 0, 1, 0], sizes = [2, 2, 2, 16], strides = [1, 1, 1, 1]} : vector<2x4x4x16xf32> to vector<2x2x2x16xf32>
    %87 = vector.extract_strided_slice %84 {offsets = [0, 0, 2, 0], sizes = [2, 2, 2, 16], strides = [1, 1, 1, 1]} : vector<2x4x4x16xf32> to vector<2x2x2x16xf32>
    %88 = vector.extract_strided_slice %84 {offsets = [0, 1, 0, 0], sizes = [2, 2, 2, 16], strides = [1, 1, 1, 1]} : vector<2x4x4x16xf32> to vector<2x2x2x16xf32>
    %89 = vector.extract_strided_slice %84 {offsets = [0, 1, 1, 0], sizes = [2, 2, 2, 16], strides = [1, 1, 1, 1]} : vector<2x4x4x16xf32> to vector<2x2x2x16xf32>
    %90 = vector.extract_strided_slice %84 {offsets = [0, 1, 2, 0], sizes = [2, 2, 2, 16], strides = [1, 1, 1, 1]} : vector<2x4x4x16xf32> to vector<2x2x2x16xf32>
    %91 = vector.extract_strided_slice %84 {offsets = [0, 2, 0, 0], sizes = [2, 2, 2, 16], strides = [1, 1, 1, 1]} : vector<2x4x4x16xf32> to vector<2x2x2x16xf32>
    %92 = vector.extract_strided_slice %84 {offsets = [0, 2, 1, 0], sizes = [2, 2, 2, 16], strides = [1, 1, 1, 1]} : vector<2x4x4x16xf32> to vector<2x2x2x16xf32>
    %93 = vector.extract_strided_slice %84 {offsets = [0, 2, 2, 0], sizes = [2, 2, 2, 16], strides = [1, 1, 1, 1]} : vector<2x4x4x16xf32> to vector<2x2x2x16xf32>
    %94 = tpu.concatenate %85, %86, %87, %88, %89, %90, %91, %92, %93 in 3 : vector<2x2x2x16xf32>, vector<2x2x2x16xf32>, vector<2x2x2x16xf32>, vector<2x2x2x16xf32>, vector<2x2x2x16xf32>, vector<2x2x2x16xf32>, vector<2x2x2x16xf32>, vector<2x2x2x16xf32>, vector<2x2x2x16xf32> -> vector<2x2x2x144xf32>
    %95 = vector.shape_cast %94 : vector<2x2x2x144xf32> to vector<8x144xf32>
    %c0_128 = arith.constant 0 : index
    %c0_129 = arith.constant 0 : index
    %96 = vector.load %arg6[%c0_128, %c0_129] : memref<144x32xf32, #tpu.memory_space<vmem>>, vector<144x32xf32>
    %cst_130 = arith.constant dense<0.000000e+00> : vector<8x32xf32>
    %97 = tpu.matmul %95, %96, %cst_130 {dimension_numbers = #tpu.dot_dimension_numbers<[1], [0], [0], [1], [0, 0, 1, 1], [], []>} : vector<8x144xf32>, vector<144x32xf32>, vector<8x32xf32> -> vector<8x32xf32>
    %c0_131 = arith.constant 0 : index
    %c0_132 = arith.constant 0 : index
    %98 = vector.load %arg7[%c0_131, %c0_132] : memref<1x32xf32, #tpu.memory_space<vmem>>, vector<1x32xf32>
    %99 = vector.broadcast %98 : vector<1x32xf32> to vector<8x32xf32>
    %100 = arith.addf %97, %99 : vector<8x32xf32>
    %cst_133 = arith.constant 0.000000e+00 : f32
    %101 = vector.broadcast %cst_133 : f32 to vector<8x32xf32>
    %102 = arith.cmpf ogt, %100, %101 : vector<8x32xf32>
    %103 = math.exp %100 : vector<8x32xf32>
    %cst_134 = arith.constant 1.000000e+00 : f32
    %104 = vector.broadcast %cst_134 : f32 to vector<8x32xf32>
    %105 = arith.subf %103, %104 : vector<8x32xf32>
    %106 = arith.select %102, %100, %105 : vector<8x32xi1>, vector<8x32xf32>
    %c0_135 = arith.constant 0 : index
    %c0_136 = arith.constant 0 : index
    %107 = vector.load %arg8[%c0_135, %c0_136] : memref<32x32xf32, #tpu.memory_space<vmem>>, vector<32x32xf32>
    %cst_137 = arith.constant dense<0.000000e+00> : vector<8x32xf32>
    %108 = tpu.matmul %106, %107, %cst_137 {dimension_numbers = #tpu.dot_dimension_numbers<[1], [0], [0], [1], [0, 0, 1, 1], [], []>} : vector<8x32xf32>, vector<32x32xf32>, vector<8x32xf32> -> vector<8x32xf32>
    %c0_138 = arith.constant 0 : index
    %c0_139 = arith.constant 0 : index
    %109 = vector.load %arg9[%c0_138, %c0_139] : memref<1x32xf32, #tpu.memory_space<vmem>>, vector<1x32xf32>
    %110 = vector.broadcast %109 : vector<1x32xf32> to vector<8x32xf32>
    %111 = arith.addf %108, %110 : vector<8x32xf32>
    %cst_140 = arith.constant 0.000000e+00 : f32
    %112 = vector.broadcast %cst_140 : f32 to vector<8x32xf32>
    %113 = arith.cmpf ogt, %111, %112 : vector<8x32xf32>
    %114 = math.exp %111 : vector<8x32xf32>
    %cst_141 = arith.constant 1.000000e+00 : f32
    %115 = vector.broadcast %cst_141 : f32 to vector<8x32xf32>
    %116 = arith.subf %114, %115 : vector<8x32xf32>
    %117 = arith.select %113, %111, %116 : vector<8x32xi1>, vector<8x32xf32>
    %c0_142 = arith.constant 0 : index
    %c0_143 = arith.constant 0 : index
    %118 = vector.load %arg10[%c0_142, %c0_143] : memref<32x8xf32, #tpu.memory_space<vmem>>, vector<32x8xf32>
    %cst_144 = arith.constant dense<0.000000e+00> : vector<8x8xf32>
    %119 = tpu.matmul %117, %118, %cst_144 {dimension_numbers = #tpu.dot_dimension_numbers<[1], [0], [0], [1], [0, 0, 1, 1], [], []>} : vector<8x32xf32>, vector<32x8xf32>, vector<8x8xf32> -> vector<8x8xf32>
    %c0_145 = arith.constant 0 : index
    %c0_146 = arith.constant 0 : index
    %120 = vector.load %arg11[%c0_145, %c0_146] : memref<1x8xf32, #tpu.memory_space<vmem>>, vector<1x8xf32>
    %121 = vector.broadcast %120 : vector<1x8xf32> to vector<8x8xf32>
    %122 = arith.addf %119, %121 : vector<8x8xf32>
    %c0_147 = arith.constant 0 : index
    %c0_148 = arith.constant 0 : index
    %123 = vector.load %arg12[%c0_147, %c0_148] : memref<8x8xf32, #tpu.memory_space<vmem>>, vector<8x8xf32>
    tpu.vector_store %arg12[%c0_147, %c0_148], %122 {strides = array<i32>} : memref<8x8xf32, #tpu.memory_space<vmem>>, vector<8x8xf32>,
    return
  }
  func.func @transform_0(%arg0: i32) -> (i32, i32, i32, i32) {
    %c0_i32 = arith.constant 0 : i32
    %c0_i32_0 = arith.constant 0 : i32
    %c0_i32_1 = arith.constant 0 : i32
    %c0_i32_2 = arith.constant 0 : i32
    return %arg0, %c0_i32, %c0_i32_0, %c0_i32_1 : i32, i32, i32, i32
  }
  func.func @transform_1(%arg0: i32) -> (i32, i32) {
    %c0_i32 = arith.constant 0 : i32
    %c0_i32_0 = arith.constant 0 : i32
    %c0_i32_1 = arith.constant 0 : i32
    return %c0_i32, %c0_i32_0 : i32, i32
  }
  func.func @transform_2(%arg0: i32) -> (i32, i32) {
    %c0_i32 = arith.constant 0 : i32
    %c0_i32_0 = arith.constant 0 : i32
    %c0_i32_1 = arith.constant 0 : i32
    return %c0_i32, %c0_i32_0 : i32, i32
  }
  func.func @transform_3(%arg0: i32) -> (i32, i32) {
    %c0_i32 = arith.constant 0 : i32
    %c0_i32_0 = arith.constant 0 : i32
    %c0_i32_1 = arith.constant 0 : i32
    return %c0_i32, %c0_i32_0 : i32, i32
  }
  func.func @transform_4(%arg0: i32) -> (i32, i32) {
    %c0_i32 = arith.constant 0 : i32
    %c0_i32_0 = arith.constant 0 : i32
    %c0_i32_1 = arith.constant 0 : i32
    return %c0_i32, %c0_i32_0 : i32, i32
  }
  func.func @transform_5(%arg0: i32) -> (i32, i32) {
    %c0_i32 = arith.constant 0 : i32
    %c0_i32_0 = arith.constant 0 : i32
    %c0_i32_1 = arith.constant 0 : i32
    return %c0_i32, %c0_i32_0 : i32, i32
  }
  func.func @transform_6(%arg0: i32) -> (i32, i32) {
    %c0_i32 = arith.constant 0 : i32
    %c0_i32_0 = arith.constant 0 : i32
    %c0_i32_1 = arith.constant 0 : i32
    return %c0_i32, %c0_i32_0 : i32, i32
  }
  func.func @transform_7(%arg0: i32) -> (i32, i32) {
    %c0_i32 = arith.constant 0 : i32
    %c0_i32_0 = arith.constant 0 : i32
    %c0_i32_1 = arith.constant 0 : i32
    return %c0_i32, %c0_i32_0 : i32, i32
  }
  func.func @transform_8(%arg0: i32) -> (i32, i32) {
    %c0_i32 = arith.constant 0 : i32
    %c0_i32_0 = arith.constant 0 : i32
    %c0_i32_1 = arith.constant 0 : i32
    return %c0_i32, %c0_i32_0 : i32, i32
  }
  func.func @transform_9(%arg0: i32) -> (i32, i32) {
    %c0_i32 = arith.constant 0 : i32
    %c0_i32_0 = arith.constant 0 : i32
    %c0_i32_1 = arith.constant 0 : i32
    return %c0_i32, %c0_i32_0 : i32, i32
  }
  func.func @transform_10(%arg0: i32) -> (i32, i32) {
    %c0_i32 = arith.constant 0 : i32
    %c0_i32_0 = arith.constant 0 : i32
    %c0_i32_1 = arith.constant 0 : i32
    return %c0_i32, %c0_i32_0 : i32, i32
  }
  func.func @transform_11(%arg0: i32) -> (i32, i32) {
    %c0_i32 = arith.constant 0 : i32
    %c0_i32_0 = arith.constant 0 : i32
    return %arg0, %c0_i32 : i32, i32
  }
}

</mosaic_0001>

<llo_original>
// kernel: net_forward.1
$region0: #{net_forward.1}
  #allocation0 [shape = 'u32[]', space=smem, size = 0x4, offset = 0x4, fixed_abs, tag = 'smem constant byte address 0x4 - core index']
  #allocation1 [shape = 'u32[144,128]{1,0:T(1,128)}', space=vmem, size = 0x12000, scoped, tag = 'internal scratch']
  #allocation2 [shape = 'f32[2,18,18,4]{3,2,1,0:T(8,128)}', space=vmem, size = 0x6c000, scoped, tag = 'scratch operand']
  #allocation3 [shape = 'f32[2,10,10,8]{3,2,1,0:T(8,128)}', space=vmem, size = 0x28000, scoped, tag = 'scratch operand']
  %s0 = inlined_call_operand.vmem [shape: f32[2,16,16,4], index: 0, kind: input, shape index: {}]
  %s1 = inlined_call_operand.vmem [shape: f32[36,8], index: 1, kind: input, shape index: {}]
  %s2 = inlined_call_operand.vmem [shape: f32[1,8], index: 2, kind: input, shape index: {}]
  %s3 = inlined_call_operand.vmem [shape: f32[72,16], index: 3, kind: input, shape index: {}]
  %s4 = inlined_call_operand.vmem [shape: f32[1,16], index: 4, kind: input, shape index: {}]
  %s5 = inlined_call_operand.vmem [shape: f32[144,32], index: 5, kind: input, shape index: {}]
  %s6 = inlined_call_operand.vmem [shape: f32[1,32], index: 6, kind: input, shape index: {}]
  %s7 = inlined_call_operand.vmem [shape: f32[32,32], index: 7, kind: input, shape index: {}]
  %s8 = inlined_call_operand.vmem [shape: f32[1,32], index: 8, kind: input, shape index: {}]
  %s9 = inlined_call_operand.vmem [shape: f32[32,8], index: 9, kind: input, shape index: {}]
  %s10 = inlined_call_operand.vmem [shape: f32[1,8], index: 10, kind: input, shape index: {}]
  %s11 = inlined_call_operand.hbm [shape: f32[8,8], index: 11, kind: output, shape index: {}]
  %s12 = sld [smem:[#allocation0]]
  $region54: #{net_forward.1} parent=0
    _
  %s14 = ssub.s32 1, %s12
  %s15 = scalar_select 0, %s14, %s12
  $region1: #{net_forward.1} parent=0
    #allocation4 [shape = 'u8[4096]{0}', space=vmem, size = 0x1000, scoped, tag = 'output window, operand 0, single buffered']
    #allocation5 [shape = 's32[1]{0}', space=sflag, size = 0x4, scoped, tag = 'scoped memory for net_forward.1']
    %16 = vsyncpa [#allocation5], 0
    // Predicated region
    $region2: #{net_forward.1} parent=1 // pred_check
      _
    $region3: #{net_forward.1} parent=1 // pred_check_branch
      %18 = sbr.rel (0) target = $region5
    $region4: #{net_forward.1} parent=1 // pred_region
      _
    $region5: #{net_forward.1} parent=1 // pred_fallthru
      _
    // Predicated region
    $region6: #{net_forward.1} parent=1 // pred_check
      _
    $region7: #{net_forward.1} parent=1 // pred_check_branch
      %20 = sbr.rel (0) target = $region9
    $region8: #{net_forward.1} parent=1 // pred_region
      _
    $region9: #{net_forward.1} parent=1 // pred_fallthru
      _
    // Predicated region
    $region10: #{net_forward.1} parent=1 // pred_check
      _
    $region11: #{net_forward.1} parent=1 // pred_check_branch
      %22 = sbr.rel (0) target = $region13
    $region12: #{net_forward.1} parent=1 // pred_region
      _
    $region13: #{net_forward.1} parent=1 // pred_fallthru
      _
    // Predicated region
    $region14: #{net_forward.1} parent=1 // pred_check
      _
    $region15: #{net_forward.1} parent=1 // pred_check_branch
      %24 = sbr.rel (0) target = $region17
    $region16: #{net_forward.1} parent=1 // pred_region
      _
    $region17: #{net_forward.1} parent=1 // pred_fallthru
      _
    // Predicated region
    $region18: #{net_forward.1} parent=1 // pred_check
      _
    $region19: #{net_forward.1} parent=1 // pred_check_branch
      %26 = sbr.rel (0) target = $region21
    $region20: #{net_forward.1} parent=1 // pred_region
      _
    $region21: #{net_forward.1} parent=1 // pred_fallthru
      _
    // Predicated region
    $region22: #{net_forward.1} parent=1 // pred_check
      _
    $region23: #{net_forward.1} parent=1 // pred_check_branch
      %28 = sbr.rel (0) target = $region25
    $region24: #{net_forward.1} parent=1 // pred_region
      _
    $region25: #{net_forward.1} parent=1 // pred_fallthru
      _
    // Predicated region
    $region26: #{net_forward.1} parent=1 // pred_check
      _
    $region27: #{net_forward.1} parent=1 // pred_check_branch
      %30 = sbr.rel (0) target = $region29
    $region28: #{net_forward.1} parent=1 // pred_region
      _
    $region29: #{net_forward.1} parent=1 // pred_fallthru
      _
    // Predicated region
    $region30: #{net_forward.1} parent=1 // pred_check
      _
    $region31: #{net_forward.1} parent=1 // pred_check_branch
      %32 = sbr.rel (0) target = $region33
    $region32: #{net_forward.1} parent=1 // pred_region
      _
    $region33: #{net_forward.1} parent=1 // pred_fallthru
      _
    // Predicated region
    $region34: #{net_forward.1} parent=1 // pred_check
      _
    $region35: #{net_forward.1} parent=1 // pred_check_branch
      %34 = sbr.rel (0) target = $region37
    $region36: #{net_forward.1} parent=1 // pred_region
      _
    $region37: #{net_forward.1} parent=1 // pred_fallthru
      _
    // Predicated region
    $region38: #{net_forward.1} parent=1 // pred_check
      _
    $region39: #{net_forward.1} parent=1 // pred_check_branch
      %36 = sbr.rel (0) target = $region41
    $region40: #{net_forward.1} parent=1 // pred_region
      _
    $region41: #{net_forward.1} parent=1 // pred_fallthru
      _
    // Predicated region
    $region42: #{net_forward.1} parent=1 // pred_check
      _
    $region43: #{net_forward.1} parent=1 // pred_check_branch
      %38 = sbr.rel (0) target = $region45
    $region44: #{net_forward.1} parent=1 // pred_region
      _
    $region45: #{net_forward.1} parent=1 // pred_fallthru
      _
    %v39 = vld [vmem:[%s0] sm:$0xff]
    %v40 = vld [vmem:[%s0 + $0x8] sm:$0xff]
    %v41 = vld [vmem:[%s0 + $0x10] sm:$0xff]
    %v42 = vld [vmem:[%s0 + $0x18] sm:$0xff]
    %v43 = vld [vmem:[%s0 + $0x20] sm:$0xff]
    %v44 = vld [vmem:[%s0 + $0x28] sm:$0xff]
    %v45 = vld [vmem:[%s0 + $0x30] sm:$0xff]
    %v46 = vld [vmem:[%s0 + $0x38] sm:$0xff]
    %v47 = vld [vmem:[%s0 + $0x40] sm:$0xff]
    %v48 = vld [vmem:[%s0 + $0x48] sm:$0xff]
    %v49 = vld [vmem:[%s0 + $0x50] sm:$0xff]
    %v50 = vld [vmem:[%s0 + $0x58] sm:$0xff]
    %v51 = vld [vmem:[%s0 + $0x60] sm:$0xff]
    %v52 = vld [vmem:[%s0 + $0x68] sm:$0xff]
    %v53 = vld [vmem:[%s0 + $0x70] sm:$0xff]
    %v54 = vld [vmem:[%s0 + $0x78] sm:$0xff]
    %v55 = vld [vmem:[%s0 + $0x80] sm:$0xff]
    %v56 = vld [vmem:[%s0 + $0x88] sm:$0xff]
    %v57 = vld [vmem:[%s0 + $0x90] sm:$0xff]
    %v58 = vld [vmem:[%s0 + $0x98] sm:$0xff]
    %v59 = vld [vmem:[%s0 + $0xa0] sm:$0xff]
    %v60 = vld [vmem:[%s0 + $0xa8] sm:$0xff]
    %v61 = vld [vmem:[%s0 + $0xb0] sm:$0xff]
    %v62 = vld [vmem:[%s0 + $0xb8] sm:$0xff]
    %v63 = vld [vmem:[%s0 + $0xc0] sm:$0xff]
    %v64 = vld [vmem:[%s0 + $0xc8] sm:$0xff]
    %v65 = vld [vmem:[%s0 + $0xd0] sm:$0xff]
    %v66 = vld [vmem:[%s0 + $0xd8] sm:$0xff]
    %v67 = vld [vmem:[%s0 + $0xe0] sm:$0xff]
    %v68 = vld [vmem:[%s0 + $0xe8] sm:$0xff]
    %v69 = vld [vmem:[%s0 + $0xf0] sm:$0xff]
    %v70 = vld [vmem:[%s0 + $0xf8] sm:$0xff]
    %v71 = vld [vmem:[%s0 + $0x100] sm:$0xff]
    %v72 = vld [vmem:[%s0 + $0x108] sm:$0xff]
    %v73 = vld [vmem:[%s0 + $0x110] sm:$0xff]
    %v74 = vld [vmem:[%s0 + $0x118] sm:$0xff]
    %v75 = vld [vmem:[%s0 + $0x120] sm:$0xff]
    %v76 = vld [vmem:[%s0 + $0x128] sm:$0xff]
    %v77 = vld [vmem:[%s0 + $0x130] sm:$0xff]
    %v78 = vld [vmem:[%s0 + $0x138] sm:$0xff]
    %v79 = vld [vmem:[%s0 + $0x140] sm:$0xff]
    %v80 = vld [vmem:[%s0 + $0x148] sm:$0xff]
    %v81 = vld [vmem:[%s0 + $0x150] sm:$0xff]
    %v82 = vld [vmem:[%s0 + $0x158] sm:$0xff]
    %v83 = vld [vmem:[%s0 + $0x160] sm:$0xff]
    %v84 = vld [vmem:[%s0 + $0x168] sm:$0xff]
    %v85 = vld [vmem:[%s0 + $0x170] sm:$0xff]
    %v86 = vld [vmem:[%s0 + $0x178] sm:$0xff]
    %v87 = vld [vmem:[%s0 + $0x180] sm:$0xff]
    %v88 = vld [vmem:[%s0 + $0x188] sm:$0xff]
    %v89 = vld [vmem:[%s0 + $0x190] sm:$0xff]
    %v90 = vld [vmem:[%s0 + $0x198] sm:$0xff]
    %v91 = vld [vmem:[%s0 + $0x1a0] sm:$0xff]
    %v92 = vld [vmem:[%s0 + $0x1a8] sm:$0xff]
    %v93 = vld [vmem:[%s0 + $0x1b0] sm:$0xff]
    %v94 = vld [vmem:[%s0 + $0x1b8] sm:$0xff]
    %v95 = vld [vmem:[%s0 + $0x1c0] sm:$0xff]
    %v96 = vld [vmem:[%s0 + $0x1c8] sm:$0xff]
    %v97 = vld [vmem:[%s0 + $0x1d0] sm:$0xff]
    %v98 = vld [vmem:[%s0 + $0x1d8] sm:$0xff]
    %v99 = vld [vmem:[%s0 + $0x1e0] sm:$0xff]
    %v100 = vld [vmem:[%s0 + $0x1e8] sm:$0xff]
    %v101 = vld [vmem:[%s0 + $0x1f0] sm:$0xff]
    %v102 = vld [vmem:[%s0 + $0x1f8] sm:$0xff]
    %vm103 = vcmask 31744
    %104 = vst.msk [vmem:[#allocation2] sm:$0xff] %vm103, 0.0
    %105 = vst.msk [vmem:[#allocation2 + $0x8] sm:$0xff] %vm103, 0.0
    %vm106 = vcmask 25600
    %107 = vst.msk [vmem:[#allocation2 + $0x10] sm:$0x3] %vm106, 0.0
    %108 = vst.msk [vmem:[#allocation2 + $0x1b0] sm:$0xff] %vm103, 0.0
    %109 = vst.msk [vmem:[#allocation2 + $0x1b8] sm:$0xff] %vm103, 0.0
    %110 = vst.msk [vmem:[#allocation2 + $0x1c0] sm:$0x3] %vm106, 0.0
    %s111 = scalar_lea.vmem [#allocation2], 408
    %112 = vst.msk [vmem:[%s111] sm:$0xff] %vm103, 0.0
    %113 = vst.msk [vmem:[%s111 + $0x8] sm:$0xff] %vm103, 0.0
    %114 = vst.msk [vmem:[%s111 + $0x10] sm:$0x3] %vm106, 0.0
    %115 = vst.msk [vmem:[%s111 + $0x1b0] sm:$0xff] %vm103, 0.0
    %116 = vst.msk [vmem:[%s111 + $0x1b8] sm:$0xff] %vm103, 0.0
    %117 = vst.msk [vmem:[%s111 + $0x1c0] sm:$0x3] %vm106, 0.0
    %s118 = scalar_lea.vmem [#allocation2], 24
    %vm119 = vcmask 24576
    %120 = vst.msk [vmem:[%s118] sm:$0x1] %vm119, 0.0
    %121 = vst.msk [vmem:[%s118 + $0x18] sm:$0x1] %vm119, 0.0
    %122 = vst.msk [vmem:[%s118 + $0x30] sm:$0x1] %vm119, 0.0
    %123 = vst.msk [vmem:[%s118 + $0x48] sm:$0x1] %vm119, 0.0
    %124 = vst.msk [vmem:[%s118 + $0x60] sm:$0x1] %vm119, 0.0
    %125 = vst.msk [vmem:[%s118 + $0x78] sm:$0x1] %vm119, 0.0
    %126 = vst.msk [vmem:[%s118 + $0x90] sm:$0x1] %vm119, 0.0
    %127 = vst.msk [vmem:[%s118 + $0xa8] sm:$0x1] %vm119, 0.0
    %128 = vst.msk [vmem:[%s118 + $0xc0] sm:$0x1] %vm119, 0.0
    %129 = vst.msk [vmem:[%s118 + $0xd8] sm:$0x1] %vm119, 0.0
    %130 = vst.msk [vmem:[%s118 + $0xf0] sm:$0x1] %vm119, 0.0
    %131 = vst.msk [vmem:[%s118 + $0x108] sm:$0x1] %vm119, 0.0
    %132 = vst.msk [vmem:[%s118 + $0x120] sm:$0x1] %vm119, 0.0
    %133 = vst.msk [vmem:[%s118 + $0x138] sm:$0x1] %vm119, 0.0
    %134 = vst.msk [vmem:[%s118 + $0x150] sm:$0x1] %vm119, 0.0
    %135 = vst.msk [vmem:[%s118 + $0x168] sm:$0x1] %vm119, 0.0
    %136 = vst.msk [vmem:[%s118 + $0x1b0] sm:$0x1] %vm119, 0.0
    %137 = vst.msk [vmem:[%s118 + $0x1c8] sm:$0x1] %vm119, 0.0
    %138 = vst.msk [vmem:[%s118 + $0x1e0] sm:$0x1] %vm119, 0.0
    %139 = vst.msk [vmem:[%s118 + $0x1f8] sm:$0x1] %vm119, 0.0
    %140 = vst.msk [vmem:[%s118 + $0x210] sm:$0x1] %vm119, 0.0
    %141 = vst.msk [vmem:[%s118 + $0x228] sm:$0x1] %vm119, 0.0
    %142 = vst.msk [vmem:[%s118 + $0x240] sm:$0x1] %vm119, 0.0
    %143 = vst.msk [vmem:[%s118 + $0x258] sm:$0x1] %vm119, 0.0
    %144 = vst.msk [vmem:[%s118 + $0x270] sm:$0x1] %vm119, 0.0
    %145 = vst.msk [vmem:[%s118 + $0x288] sm:$0x1] %vm119, 0.0
    %146 = vst.msk [vmem:[%s118 + $0x2a0] sm:$0x1] %vm119, 0.0
    %147 = vst.msk [vmem:[%s118 + $0x2b8] sm:$0x1] %vm119, 0.0
    %148 = vst.msk [vmem:[%s118 + $0x2d0] sm:$0x1] %vm119, 0.0
    %149 = vst.msk [vmem:[%s118 + $0x2e8] sm:$0x1] %vm119, 0.0
    %150 = vst.msk [vmem:[%s118 + $0x300] sm:$0x1] %vm119, 0.0
    %151 = vst.msk [vmem:[%s118 + $0x318] sm:$0x1] %vm119, 0.0
    %152 = vst.msk [vmem:[%s118 + $0x11] sm:$0x1] %vm119, 0.0
    %153 = vst.msk [vmem:[%s118 + $0x29] sm:$0x1] %vm119, 0.0
    %154 = vst.msk [vmem:[%s118 + $0x41] sm:$0x1] %vm119, 0.0
    %155 = vst.msk [vmem:[%s118 + $0x59] sm:$0x1] %vm119, 0.0
    %156 = vst.msk [vmem:[%s118 + $0x71] sm:$0x1] %vm119, 0.0
    %157 = vst.msk [vmem:[%s118 + $0x89] sm:$0x1] %vm119, 0.0
    %158 = vst.msk [vmem:[%s118 + $0xa1] sm:$0x1] %vm119, 0.0
    %159 = vst.msk [vmem:[%s118 + $0xb9] sm:$0x1] %vm119, 0.0
    %160 = vst.msk [vmem:[%s118 + $0xd1] sm:$0x1] %vm119, 0.0
    %161 = vst.msk [vmem:[%s118 + $0xe9] sm:$0x1] %vm119, 0.0
    %162 = vst.msk [vmem:[%s118 + $0x101] sm:$0x1] %vm119, 0.0
    %163 = vst.msk [vmem:[%s118 + $0x119] sm:$0x1] %vm119, 0.0
    %164 = vst.msk [vmem:[%s118 + $0x131] sm:$0x1] %vm119, 0.0
    %165 = vst.msk [vmem:[%s118 + $0x149] sm:$0x1] %vm119, 0.0
    %166 = vst.msk [vmem:[%s118 + $0x161] sm:$0x1] %vm119, 0.0
    %167 = vst.msk [vmem:[%s118 + $0x179] sm:$0x1] %vm119, 0.0
    %168 = vst.msk [vmem:[%s118 + $0x1c1] sm:$0x1] %vm119, 0.0
    %169 = vst.msk [vmem:[%s118 + $0x1d9] sm:$0x1] %vm119, 0.0
    %170 = vst.msk [vmem:[%s118 + $0x1f1] sm:$0x1] %vm119, 0.0
    %171 = vst.msk [vmem:[%s118 + $0x209] sm:$0x1] %vm119, 0.0
    %172 = vst.msk [vmem:[%s118 + $0x221] sm:$0x1] %vm119, 0.0
    %173 = vst.msk [vmem:[%s118 + $0x239] sm:$0x1] %vm119, 0.0
    %174 = vst.msk [vmem:[%s118 + $0x251] sm:$0x1] %vm119, 0.0
    %175 = vst.msk [vmem:[%s118 + $0x269] sm:$0x1] %vm119, 0.0
    %176 = vst.msk [vmem:[%s118 + $0x281] sm:$0x1] %vm119, 0.0
    %177 = vst.msk [vmem:[%s118 + $0x299] sm:$0x1] %vm119, 0.0
    %178 = vst.msk [vmem:[%s118 + $0x2b1] sm:$0x1] %vm119, 0.0
    %179 = vst.msk [vmem:[%s118 + $0x2c9] sm:$0x1] %vm119, 0.0
    %180 = vst.msk [vmem:[%s118 + $0x2e1] sm:$0x1] %vm119, 0.0
    %181 = vst.msk [vmem:[%s118 + $0x2f9] sm:$0x1] %vm119, 0.0
    %182 = vst.msk [vmem:[%s118 + $0x311] sm:$0x1] %vm119, 0.0
    %183 = vst.msk [vmem:[%s118 + $0x329] sm:$0x1] %vm119, 0.0
    %184 = vst.msk [vmem:[%s118 + $0x1] sm:$0xff] %vm103, %v39
    %185 = vst.msk [vmem:[%s118 + $0x9] sm:$0xff] %vm103, %v40
    %186 = vst.msk [vmem:[%s118 + $0x19] sm:$0xff] %vm103, %v41
    %187 = vst.msk [vmem:[%s118 + $0x21] sm:$0xff] %vm103, %v42
    %188 = vst.msk [vmem:[%s118 + $0x31] sm:$0xff] %vm103, %v43
    %189 = vst.msk [vmem:[%s118 + $0x39] sm:$0xff] %vm103, %v44
    %190 = vst.msk [vmem:[%s118 + $0x49] sm:$0xff] %vm103, %v45
    %191 = vst.msk [vmem:[%s118 + $0x51] sm:$0xff] %vm103, %v46
    %192 = vst.msk [vmem:[%s118 + $0x61] sm:$0xff] %vm103, %v47
    %193 = vst.msk [vmem:[%s118 + $0x69] sm:$0xff] %vm103, %v48
    %194 = vst.msk [vmem:[%s118 + $0x79] sm:$0xff] %vm103, %v49
    %195 = vst.msk [vmem:[%s118 + $0x81] sm:$0xff] %vm103, %v50
    %196 = vst.msk [vmem:[%s118 + $0x91] sm:$0xff] %vm103, %v51
    %197 = vst.msk [vmem:[%s118 + $0x99] sm:$0xff] %vm103, %v52
    %198 = vst.msk [vmem:[%s118 + $0xa9] sm:$0xff] %vm103, %v53
    %199 = vst.msk [vmem:[%s118 + $0xb1] sm:$0xff] %vm103, %v54
    %200 = vst.msk [vmem:[%s118 + $0xc1] sm:$0xff] %vm103, %v55
    %201 = vst.msk [vmem:[%s118 + $0xc9] sm:$0xff] %vm103, %v56
    %202 = vst.msk [vmem:[%s118 + $0xd9] sm:$0xff] %vm103, %v57
    %203 = vst.msk [vmem:[%s118 + $0xe1] sm:$0xff] %vm103, %v58
    %204 = vst.msk [vmem:[%s118 + $0xf1] sm:$0xff] %vm103, %v59
    %205 = vst.msk [vmem:[%s118 + $0xf9] sm:$0xff] %vm103, %v60
    %206 = vst.msk [vmem:[%s118 + $0x109] sm:$0xff] %vm103, %v61
    %207 = vst.msk [vmem:[%s118 + $0x111] sm:$0xff] %vm103, %v62
    %208 = vst.msk [vmem:[%s118 + $0x121] sm:$0xff] %vm103, %v63
    %209 = vst.msk [vmem:[%s118 + $0x129] sm:$0xff] %vm103, %v64
    %210 = vst.msk [vmem:[%s118 + $0x139] sm:$0xff] %vm103, %v65
    %211 = vst.msk [vmem:[%s118 + $0x141] sm:$0xff] %vm103, %v66
    %212 = vst.msk [vmem:[%s118 + $0x151] sm:$0xff] %vm103, %v67
    %213 = vst.msk [vmem:[%s118 + $0x159] sm:$0xff] %vm103, %v68
    %214 = vst.msk [vmem:[%s118 + $0x169] sm:$0xff] %vm103, %v69
    %215 = vst.msk [vmem:[%s118 + $0x171] sm:$0xff] %vm103, %v70
    %216 = vst.msk [vmem:[%s118 + $0x1b1] sm:$0xff] %vm103, %v71
    %217 = vst.msk [vmem:[%s118 + $0x1b9] sm:$0xff] %vm103, %v72
    %218 = vst.msk [vmem:[%s118 + $0x1c9] sm:$0xff] %vm103, %v73
    %219 = vst.msk [vmem:[%s118 + $0x1d1] sm:$0xff] %vm103, %v74
    %220 = vst.msk [vmem:[%s118 + $0x1e1] sm:$0xff] %vm103, %v75
    %221 = vst.msk [vmem:[%s118 + $0x1e9] sm:$0xff] %vm103, %v76
    %222 = vst.msk [vmem:[%s118 + $0x1f9] sm:$0xff] %vm103, %v77
    %223 = vst.msk [vmem:[%s118 + $0x201] sm:$0xff] %vm103, %v78
    %224 = vst.msk [vmem:[%s118 + $0x211] sm:$0xff] %vm103, %v79
    %225 = vst.msk [vmem:[%s118 + $0x219] sm:$0xff] %vm103, %v80
    %226 = vst.msk [vmem:[%s118 + $0x229] sm:$0xff] %vm103, %v81
    %227 = vst.msk [vmem:[%s118 + $0x231] sm:$0xff] %vm103, %v82
    %228 = vst.msk [vmem:[%s118 + $0x241] sm:$0xff] %vm103, %v83
    %229 = vst.msk [vmem:[%s118 + $0x249] sm:$0xff] %vm103, %v84
    %230 = vst.msk [vmem:[%s118 + $0x259] sm:$0xff] %vm103, %v85
    %231 = vst.msk [vmem:[%s118 + $0x261] sm:$0xff] %vm103, %v86
    %232 = vst.msk [vmem:[%s118 + $0x271] sm:$0xff] %vm103, %v87
    %233 = vst.msk [vmem:[%s118 + $0x279] sm:$0xff] %vm103, %v88
    %234 = vst.msk [vmem:[%s118 + $0x289] sm:$0xff] %vm103, %v89
    %235 = vst.msk [vmem:[%s118 + $0x291] sm:$0xff] %vm103, %v90
    %236 = vst.msk [vmem:[%s118 + $0x2a1] sm:$0xff] %vm103, %v91
    %237 = vst.msk [vmem:[%s118 + $0x2a9] sm:$0xff] %vm103, %v92
    %238 = vst.msk [vmem:[%s118 + $0x2b9] sm:$0xff] %vm103, %v93
    %239 = vst.msk [vmem:[%s118 + $0x2c1] sm:$0xff] %vm103, %v94
    %240 = vst.msk [vmem:[%s118 + $0x2d1] sm:$0xff] %vm103, %v95
    %241 = vst.msk [vmem:[%s118 + $0x2d9] sm:$0xff] %vm103, %v96
    %242 = vst.msk [vmem:[%s118 + $0x2e9] sm:$0xff] %vm103, %v97
    %243 = vst.msk [vmem:[%s118 + $0x2f1] sm:$0xff] %vm103, %v98
    %244 = vst.msk [vmem:[%s118 + $0x301] sm:$0xff] %vm103, %v99
    %245 = vst.msk [vmem:[%s118 + $0x309] sm:$0xff] %vm103, %v100
    %246 = vst.msk [vmem:[%s118 + $0x319] sm:$0xff] %vm103, %v101
    %247 = vst.msk [vmem:[%s118 + $0x321] sm:$0xff] %vm103, %v102
    %v248 = vld [vmem:[#allocation2] sm:$0xff]
    %v249 = vld [vmem:[#allocation2 + $0x8] sm:$0xff]
    %v250 = vld [vmem:[#allocation2 + $0x18] sm:$0xff]
    %v251 = vld [vmem:[#allocation2 + $0x20] sm:$0xff]
    %v252 = vld [vmem:[#allocation2 + $0x30] sm:$0xff]
    %v253 = vld [vmem:[#allocation2 + $0x38] sm:$0xff]
    %v254 = vld [vmem:[#allocation2 + $0x48] sm:$0xff]
    %v255 = vld [vmem:[#allocation2 + $0x50] sm:$0xff]
    %v256 = vld [vmem:[#allocation2 + $0x60] sm:$0xff]
    %v257 = vld [vmem:[#allocation2 + $0x68] sm:$0xff]
    %v258 = vld [vmem:[#allocation2 + $0x78] sm:$0xff]
    %v259 = vld [vmem:[#allocation2 + $0x80] sm:$0xff]
    %v260 = vld [vmem:[#allocation2 + $0x90] sm:$0xff]
    %v261 = vld [vmem:[#allocation2 + $0x98] sm:$0xff]
    %v262 = vld [vmem:[#allocation2 + $0xa8] sm:$0xff]
    %v263 = vld [vmem:[#allocation2 + $0xb0] sm:$0xff]
    %v264 = vld [vmem:[#allocation2 + $0xc0] sm:$0xff]
    %v265 = vld [vmem:[#allocation2 + $0xc8] sm:$0xff]
    %v266 = vld [vmem:[#allocation2 + $0xd8] sm:$0xff]
    %v267 = vld [vmem:[#allocation2 + $0xe0] sm:$0xff]
    %v268 = vld [vmem:[#allocation2 + $0xf0] sm:$0xff]
    %v269 = vld [vmem:[#allocation2 + $0xf8] sm:$0xff]
    %v270 = vld [vmem:[#allocation2 + $0x108] sm:$0xff]
    %v271 = vld [vmem:[#allocation2 + $0x110] sm:$0xff]
    %v272 = vld [vmem:[#allocation2 + $0x120] sm:$0xff]
    %v273 = vld [vmem:[#allocation2 + $0x128] sm:$0xff]
    %v274 = vld [vmem:[#allocation2 + $0x138] sm:$0xff]
    %v275 = vld [vmem:[#allocation2 + $0x140] sm:$0xff]
    %v276 = vld [vmem:[#allocation2 + $0x150] sm:$0xff]
    %v277 = vld [vmem:[#allocation2 + $0x158] sm:$0xff]
    %v278 = vld [vmem:[#allocation2 + $0x168] sm:$0xff]
    %v279 = vld [vmem:[#allocation2 + $0x170] sm:$0xff]
    %v280 = vld [vmem:[#allocation2 + $0x1b0] sm:$0xff]
    %v281 = vld [vmem:[#allocation2 + $0x1b8] sm:$0xff]
    %v282 = vld [vmem:[#allocation2 + $0x1c8] sm:$0xff]
    %v283 = vld [vmem:[#allocation2 + $0x1d0] sm:$0xff]
    %v284 = vld [vmem:[#allocation2 + $0x1e0] sm:$0xff]
    %v285 = vld [vmem:[#allocation2 + $0x1e8] sm:$0xff]
    %v286 = vld [vmem:[#allocation2 + $0x1f8] sm:$0xff]
    %v287 = vld [vmem:[#allocation2 + $0x200] sm:$0xff]
    %v288 = vld [vmem:[#allocation2 + $0x210] sm:$0xff]
    %v289 = vld [vmem:[#allocation2 + $0x218] sm:$0xff]
    %v290 = vld [vmem:[#allocation2 + $0x228] sm:$0xff]
    %v291 = vld [vmem:[#allocation2 + $0x230] sm:$0xff]
    %v292 = vld [vmem:[#allocation2 + $0x240] sm:$0xff]
    %v293 = vld [vmem:[#allocation2 + $0x248] sm:$0xff]
    %v294 = vld [vmem:[#allocation2 + $0x258] sm:$0xff]
    %v295 = vld [vmem:[#allocation2 + $0x260] sm:$0xff]
    %v296 = vld [vmem:[#allocation2 + $0x270] sm:$0xff]
    %v297 = vld [vmem:[#allocation2 + $0x278] sm:$0xff]
    %v298 = vld [vmem:[#allocation2 + $0x288] sm:$0xff]
    %v299 = vld [vmem:[#allocation2 + $0x290] sm:$0xff]
    %v300 = vld [vmem:[#allocation2 + $0x2a0] sm:$0xff]
    %v301 = vld [vmem:[#allocation2 + $0x2a8] sm:$0xff]
    %v302 = vld [vmem:[#allocation2 + $0x2b8] sm:$0xff]
    %v303 = vld [vmem:[#allocation2 + $0x2c0] sm:$0xff]
    %v304 = vld [vmem:[#allocation2 + $0x2d0] sm:$0xff]
    %v305 = vld [vmem:[#allocation2 + $0x2d8] sm:$0xff]
    %v306 = vld [vmem:[#allocation2 + $0x2e8] sm:$0xff]
    %v307 = vld [vmem:[#allocation2 + $0x2f0] sm:$0xff]
    %v308 = vld [vmem:[#allocation2 + $0x300] sm:$0xff]
    %v309 = vld [vmem:[#allocation2 + $0x308] sm:$0xff]
    %v310 = vld [vmem:[#allocation2 + $0x318] sm:$0xff]
    %v311 = vld [vmem:[#allocation2 + $0x320] sm:$0xff]
    %v312 = vld [vmem:[#allocation2 + $0x1] sm:$0xff]
    %v313 = vld [vmem:[#allocation2 + $0x9] sm:$0xff]
    %v314 = vld [vmem:[#allocation2 + $0x19] sm:$0xff]
    %v315 = vld [vmem:[#allocation2 + $0x21] sm:$0xff]
    %v316 = vld [vmem:[#allocation2 + $0x31] sm:$0xff]
    %v317 = vld [vmem:[#allocation2 + $0x39] sm:$0xff]
    %v318 = vld [vmem:[#allocation2 + $0x49] sm:$0xff]
    %v319 = vld [vmem:[#allocation2 + $0x51] sm:$0xff]
    %v320 = vld [vmem:[#allocation2 + $0x61] sm:$0xff]
    %v321 = vld [vmem:[#allocation2 + $0x69] sm:$0xff]
    %v322 = vld [vmem:[#allocation2 + $0x79] sm:$0xff]
    %v323 = vld [vmem:[#allocation2 + $0x81] sm:$0xff]
    %v324 = vld [vmem:[#allocation2 + $0x91] sm:$0xff]
    %v325 = vld [vmem:[#allocation2 + $0x99] sm:$0xff]
    %v326 = vld [vmem:[#allocation2 + $0xa9] sm:$0xff]
    %v327 = vld [vmem:[#allocation2 + $0xb1] sm:$0xff]
    %v328 = vld [vmem:[#allocation2 + $0xc1] sm:$0xff]
    %v329 = vld [vmem:[#allocation2 + $0xc9] sm:$0xff]
    %v330 = vld [vmem:[#allocation2 + $0xd9] sm:$0xff]
    %v331 = vld [vmem:[#allocation2 + $0xe1] sm:$0xff]
    %v332 = vld [vmem:[#allocation2 + $0xf1] sm:$0xff]
    %v333 = vld [vmem:[#allocation2 + $0xf9] sm:$0xff]
    %v334 = vld [vmem:[#allocation2 + $0x109] sm:$0xff]
    %v335 = vld [vmem:[#allocation2 + $0x111] sm:$0xff]
    %v336 = vld [vmem:[#allocation2 + $0x121] sm:$0xff]
    %v337 = vld [vmem:[#allocation2 + $0x129] sm:$0xff]
    %v338 = vld [vmem:[#allocation2 + $0x139] sm:$0xff]
    %v339 = vld [vmem:[#allocation2 + $0x141] sm:$0xff]
    %v340 = vld [vmem:[#allocation2 + $0x151] sm:$0xff]
    %v341 = vld [vmem:[#allocation2 + $0x159] sm:$0xff]
    %v342 = vld [vmem:[#allocation2 + $0x169] sm:$0xff]
    %v343 = vld [vmem:[#allocation2 + $0x171] sm:$0xff]
    %v344 = vld [vmem:[#allocation2 + $0x1b1] sm:$0xff]
    %v345 = vld [vmem:[#allocation2 + $0x1b9] sm:$0xff]
    %v346 = vld [vmem:[#allocation2 + $0x1c9] sm:$0xff]
    %v347 = vld [vmem:[#allocation2 + $0x1d1] sm:$0xff]
    %v348 = vld [vmem:[#allocation2 + $0x1e1] sm:$0xff]
    %v349 = vld [vmem:[#allocation2 + $0x1e9] sm:$0xff]
    %v350 = vld [vmem:[#allocation2 + $0x1f9] sm:$0xff]
    %v351 = vld [vmem:[#allocation2 + $0x201] sm:$0xff]
    %v352 = vld [vmem:[#allocation2 + $0x211] sm:$0xff]
    %v353 = vld [vmem:[#allocation2 + $0x219] sm:$0xff]
    %v354 = vld [vmem:[#allocation2 + $0x229] sm:$0xff]
    %v355 = vld [vmem:[#allocation2 + $0x231] sm:$0xff]
    %v356 = vld [vmem:[#allocation2 + $0x241] sm:$0xff]
    %v357 = vld [vmem:[#allocation2 + $0x249] sm:$0xff]
    %v358 = vld [vmem:[#allocation2 + $0x259] sm:$0xff]
    %v359 = vld [vmem:[#allocation2 + $0x261] sm:$0xff]
    %v360 = vld [vmem:[#allocation2 + $0x271] sm:$0xff]
    %v361 = vld [vmem:[#allocation2 + $0x279] sm:$0xff]
    %v362 = vld [vmem:[#allocation2 + $0x289] sm:$0xff]
    %v363 = vld [vmem:[#allocation2 + $0x291] sm:$0xff]
    %v364 = vld [vmem:[#allocation2 + $0x2a1] sm:$0xff]
    %v365 = vld [vmem:[#allocation2 + $0x2a9] sm:$0xff]
    %v366 = vld [vmem:[#allocation2 + $0x2b9] sm:$0xff]
    %v367 = vld [vmem:[#allocation2 + $0x2c1] sm:$0xff]
    %v368 = vld [vmem:[#allocation2 + $0x2d1] sm:$0xff]
    %v369 = vld [vmem:[#allocation2 + $0x2d9] sm:$0xff]
    %v370 = vld [vmem:[#allocation2 + $0x2e9] sm:$0xff]
    %v371 = vld [vmem:[#allocation2 + $0x2f1] sm:$0xff]
    %v372 = vld [vmem:[#allocation2 + $0x301] sm:$0xff]
    %v373 = vld [vmem:[#allocation2 + $0x309] sm:$0xff]
    %v374 = vld [vmem:[#allocation2 + $0x319] sm:$0xff]
    %v375 = vld [vmem:[#allocation2 + $0x321] sm:$0xff]
    %v376 = vld [vmem:[#allocation2 + $0x2] sm:$0xff]
    %v377 = vld [vmem:[#allocation2 + $0xa] sm:$0xff]
    %v378 = vld [vmem:[#allocation2 + $0x1a] sm:$0xff]
    %v379 = vld [vmem:[#allocation2 + $0x22] sm:$0xff]
    %v380 = vld [vmem:[#allocation2 + $0x32] sm:$0xff]
    %v381 = vld [vmem:[#allocation2 + $0x3a] sm:$0xff]
    %v382 = vld [vmem:[#allocation2 + $0x4a] sm:$0xff]
    %v383 = vld [vmem:[#allocation2 + $0x52] sm:$0xff]
    %v384 = vld [vmem:[#allocation2 + $0x62] sm:$0xff]
    %v385 = vld [vmem:[#allocation2 + $0x6a] sm:$0xff]
    %v386 = vld [vmem:[#allocation2 + $0x7a] sm:$0xff]
    %v387 = vld [vmem:[#allocation2 + $0x82] sm:$0xff]
    %v388 = vld [vmem:[#allocation2 + $0x92] sm:$0xff]
    %v389 = vld [vmem:[#allocation2 + $0x9a] sm:$0xff]
    %v390 = vld [vmem:[#allocation2 + $0xaa] sm:$0xff]
    %v391 = vld [vmem:[#allocation2 + $0xb2] sm:$0xff]
    %v392 = vld [vmem:[#allocation2 + $0xc2] sm:$0xff]
    %v393 = vld [vmem:[#allocation2 + $0xca] sm:$0xff]
    %v394 = vld [vmem:[#allocation2 + $0xda] sm:$0xff]
    %v395 = vld [vmem:[#allocation2 + $0xe2] sm:$0xff]
    %v396 = vld [vmem:[#allocation2 + $0xf2] sm:$0xff]
    %v397 = vld [vmem:[#allocation2 + $0xfa] sm:$0xff]
    %v398 = vld [vmem:[#allocation2 + $0x10a] sm:$0xff]
    %v399 = vld [vmem:[#allocation2 + $0x112] sm:$0xff]
    %v400 = vld [vmem:[#allocation2 + $0x122] sm:$0xff]
    %v401 = vld [vmem:[#allocation2 + $0x12a] sm:$0xff]
    %v402 = vld [vmem:[#allocation2 + $0x13a] sm:$0xff]
    %v403 = vld [vmem:[#allocation2 + $0x142] sm:$0xff]
    %v404 = vld [vmem:[#allocation2 + $0x152] sm:$0xff]
    %v405 = vld [vmem:[#allocation2 + $0x15a] sm:$0xff]
    %v406 = vld [vmem:[#allocation2 + $0x16a] sm:$0xff]
    %v407 = vld [vmem:[#allocation2 + $0x172] sm:$0xff]
    %v408 = vld [vmem:[#allocation2 + $0x1b2] sm:$0xff]
    %v409 = vld [vmem:[#allocation2 + $0x1ba] sm:$0xff]
    %v410 = vld [vmem:[#allocation2 + $0x1ca] sm:$0xff]
    %v411 = vld [vmem:[#allocation2 + $0x1d2] sm:$0xff]
    %v412 = vld [vmem:[#allocation2 + $0x1e2] sm:$0xff]
    %v413 = vld [vmem:[#allocation2 + $0x1ea] sm:$0xff]
    %v414 = vld [vmem:[#allocation2 + $0x1fa] sm:$0xff]
    %v415 = vld [vmem:[#allocation2 + $0x202] sm:$0xff]
    %v416 = vld [vmem:[#allocation2 + $0x212] sm:$0xff]
    %v417 = vld [vmem:[#allocation2 + $0x21a] sm:$0xff]
    %v418 = vld [vmem:[#allocation2 + $0x22a] sm:$0xff]
    %v419 = vld [vmem:[#allocation2 + $0x232] sm:$0xff]
    %v420 = vld [vmem:[#allocation2 + $0x242] sm:$0xff]
    %v421 = vld [vmem:[#allocation2 + $0x24a] sm:$0xff]
    %v422 = vld [vmem:[#allocation2 + $0x25a] sm:$0xff]
    %v423 = vld [vmem:[#allocation2 + $0x262] sm:$0xff]
    %v424 = vld [vmem:[#allocation2 + $0x272] sm:$0xff]
    %v425 = vld [vmem:[#allocation2 + $0x27a] sm:$0xff]
    %v426 = vld [vmem:[#allocation2 + $0x28a] sm:$0xff]
    %v427 = vld [vmem:[#allocation2 + $0x292] sm:$0xff]
    %v428 = vld [vmem:[#allocation2 + $0x2a2] sm:$0xff]
    %v429 = vld [vmem:[#allocation2 + $0x2aa] sm:$0xff]
    %v430 = vld [vmem:[#allocation2 + $0x2ba] sm:$0xff]
    %v431 = vld [vmem:[#allocation2 + $0x2c2] sm:$0xff]
    %v432 = vld [vmem:[#allocation2 + $0x2d2] sm:$0xff]
    %v433 = vld [vmem:[#allocation2 + $0x2da] sm:$0xff]
    %v434 = vld [vmem:[#allocation2 + $0x2ea] sm:$0xff]
    %v435 = vld [vmem:[#allocation2 + $0x2f2] sm:$0xff]
    %v436 = vld [vmem:[#allocation2 + $0x302] sm:$0xff]
    %v437 = vld [vmem:[#allocation2 + $0x30a] sm:$0xff]
    %v438 = vld [vmem:[#allocation2 + $0x31a] sm:$0xff]
    %v439 = vld [vmem:[#allocation2 + $0x322] sm:$0xff]
    %v440 = vld [vmem:[%s118] sm:$0xff]
    %v441 = vld [vmem:[%s118 + $0x8] sm:$0xff]
    %v442 = vld [vmem:[%s118 + $0x18] sm:$0xff]
    %v443 = vld [vmem:[%s118 + $0x20] sm:$0xff]
    %v444 = vld [vmem:[%s118 + $0x30] sm:$0xff]
    %v445 = vld [vmem:[%s118 + $0x38] sm:$0xff]
    %v446 = vld [vmem:[%s118 + $0x48] sm:$0xff]
    %v447 = vld [vmem:[%s118 + $0x50] sm:$0xff]
    %v448 = vld [vmem:[%s118 + $0x60] sm:$0xff]
    %v449 = vld [vmem:[%s118 + $0x68] sm:$0xff]
    %v450 = vld [vmem:[%s118 + $0x78] sm:$0xff]
    %v451 = vld [vmem:[%s118 + $0x80] sm:$0xff]
    %v452 = vld [vmem:[%s118 + $0x90] sm:$0xff]
    %v453 = vld [vmem:[%s118 + $0x98] sm:$0xff]
    %v454 = vld [vmem:[%s118 + $0xa8] sm:$0xff]
    %v455 = vld [vmem:[%s118 + $0xb0] sm:$0xff]
    %v456 = vld [vmem:[%s118 + $0xc0] sm:$0xff]
    %v457 = vld [vmem:[%s118 + $0xc8] sm:$0xff]
    %v458 = vld [vmem:[%s118 + $0xd8] sm:$0xff]
    %v459 = vld [vmem:[%s118 + $0xe0] sm:$0xff]
    %v460 = vld [vmem:[%s118 + $0xf0] sm:$0xff]
    %v461 = vld [vmem:[%s118 + $0xf8] sm:$0xff]
    %v462 = vld [vmem:[%s118 + $0x108] sm:$0xff]
    %v463 = vld [vmem:[%s118 + $0x110] sm:$0xff]
    %v464 = vld [vmem:[%s118 + $0x120] sm:$0xff]
    %v465 = vld [vmem:[%s118 + $0x128] sm:$0xff]
    %v466 = vld [vmem:[%s118 + $0x138] sm:$0xff]
    %v467 = vld [vmem:[%s118 + $0x140] sm:$0xff]
    %v468 = vld [vmem:[%s118 + $0x150] sm:$0xff]
    %v469 = vld [vmem:[%s118 + $0x158] sm:$0xff]
    %v470 = vld [vmem:[%s118 + $0x168] sm:$0xff]
    %v471 = vld [vmem:[%s118 + $0x170] sm:$0xff]
    %v472 = vld [vmem:[%s118 + $0x1b0] sm:$0xff]
    %v473 = vld [vmem:[%s118 + $0x1b8] sm:$0xff]
    %v474 = vld [vmem:[%s118 + $0x1c8] sm:$0xff]
    %v475 = vld [vmem:[%s118 + $0x1d0] sm:$0xff]
    %v476 = vld [vmem:[%s118 + $0x1e0] sm:$0xff]
    %v477 = vld [vmem:[%s118 + $0x1e8] sm:$0xff]
    %v478 = vld [vmem:[%s118 + $0x1f8] sm:$0xff]
    %v479 = vld [vmem:[%s118 + $0x200] sm:$0xff]
    %v480 = vld [vmem:[%s118 + $0x210] sm:$0xff]
    %v481 = vld [vmem:[%s118 + $0x218] sm:$0xff]
    %v482 = vld [vmem:[%s118 + $0x228] sm:$0xff]
    %v483 = vld [vmem:[%s118 + $0x230] sm:$0xff]
    %v484 = vld [vmem:[%s118 + $0x240] sm:$0xff]
    %v485 = vld [vmem:[%s118 + $0x248] sm:$0xff]
    %v486 = vld [vmem:[%s118 + $0x258] sm:$0xff]
    %v487 = vld [vmem:[%s118 + $0x260] sm:$0xff]
    %v488 = vld [vmem:[%s118 + $0x270] sm:$0xff]
    %v489 = vld [vmem:[%s118 + $0x278] sm:$0xff]
    %v490 = vld [vmem:[%s118 + $0x288] sm:$0xff]
    %v491 = vld [vmem:[%s118 + $0x290] sm:$0xff]
    %v492 = vld [vmem:[%s118 + $0x2a0] sm:$0xff]
    %v493 = vld [vmem:[%s118 + $0x2a8] sm:$0xff]
    %v494 = vld [vmem:[%s118 + $0x2b8] sm:$0xff]
    %v495 = vld [vmem:[%s118 + $0x2c0] sm:$0xff]
    %v496 = vld [vmem:[%s118 + $0x2d0] sm:$0xff]
    %v497 = vld [vmem:[%s118 + $0x2d8] sm:$0xff]
    %v498 = vld [vmem:[%s118 + $0x2e8] sm:$0xff]
    %v499 = vld [vmem:[%s118 + $0x2f0] sm:$0xff]
    %v500 = vld [vmem:[%s118 + $0x300] sm:$0xff]
    %v501 = vld [vmem:[%s118 + $0x308] sm:$0xff]
    %v502 = vld [vmem:[%s118 + $0x318] sm:$0xff]
    %v503 = vld [vmem:[%s118 + $0x320] sm:$0xff]
    %v504 = vld [vmem:[%s118 + $0x1] sm:$0xff]
    %v505 = vld [vmem:[%s118 + $0x9] sm:$0xff]
    %v506 = vld [vmem:[%s118 + $0x19] sm:$0xff]
    %v507 = vld [vmem:[%s118 + $0x21] sm:$0xff]
    %v508 = vld [vmem:[%s118 + $0x31] sm:$0xff]
    %v509 = vld [vmem:[%s118 + $0x39] sm:$0xff]
    %v510 = vld [vmem:[%s118 + $0x49] sm:$0xff]
    %v511 = vld [vmem:[%s118 + $0x51] sm:$0xff]
    %v512 = vld [vmem:[%s118 + $0x61] sm:$0xff]
    %v513 = vld [vmem:[%s118 + $0x69] sm:$0xff]
    %v514 = vld [vmem:[%s118 + $0x79] sm:$0xff]
    %v515 = vld [vmem:[%s118 + $0x81] sm:$0xff]
    %v516 = vld [vmem:[%s118 + $0x91] sm:$0xff]
    %v517 = vld [vmem:[%s118 + $0x99] sm:$0xff]
    %v518 = vld [vmem:[%s118 + $0xa9] sm:$0xff]
    %v519 = vld [vmem:[%s118 + $0xb1] sm:$0xff]
    %v520 = vld [vmem:[%s118 + $0xc1] sm:$0xff]
    %v521 = vld [vmem:[%s118 + $0xc9] sm:$0xff]
    %v522 = vld [vmem:[%s118 + $0xd9] sm:$0xff]
    %v523 = vld [vmem:[%s118 + $0xe1] sm:$0xff]
    %v524 = vld [vmem:[%s118 + $0xf1] sm:$0xff]
    %v525 = vld [vmem:[%s118 + $0xf9] sm:$0xff]
    %v526 = vld [vmem:[%s118 + $0x109] sm:$0xff]
    %v527 = vld [vmem:[%s118 + $0x111] sm:$0xff]
    %v528 = vld [vmem:[%s118 + $0x121] sm:$0xff]
    %v529 = vld [vmem:[%s118 + $0x129] sm:$0xff]
    %v530 = vld [vmem:[%s118 + $0x139] sm:$0xff]
    %v531 = vld [vmem:[%s118 + $0x141] sm:$0xff]
    %v532 = vld [vmem:[%s118 + $0x151] sm:$0xff]
    %v533 = vld [vmem:[%s118 + $0x159] sm:$0xff]
    %v534 = vld [vmem:[%s118 + $0x169] sm:$0xff]
    %v535 = vld [vmem:[%s118 + $0x171] sm:$0xff]
    %v536 = vld [vmem:[%s118 + $0x1b1] sm:$0xff]
    %v537 = vld [vmem:[%s118 + $0x1b9] sm:$0xff]
    %v538 = vld [vmem:[%s118 + $0x1c9] sm:$0xff]
    %v539 = vld [vmem:[%s118 + $0x1d1] sm:$0xff]
    %v540 = vld [vmem:[%s118 + $0x1e1] sm:$0xff]
    %v541 = vld [vmem:[%s118 + $0x1e9] sm:$0xff]
    %v542 = vld [vmem:[%s118 + $0x1f9] sm:$0xff]
    %v543 = vld [vmem:[%s118 + $0x201] sm:$0xff]
    %v544 = vld [vmem:[%s118 + $0x211] sm:$0xff]
    %v545 = vld [vmem:[%s118 + $0x219] sm:$0xff]
    %v546 = vld [vmem:[%s118 + $0x229] sm:$0xff]
    %v547 = vld [vmem:[%s118 + $0x231] sm:$0xff]
    %v548 = vld [vmem:[%s118 + $0x241] sm:$0xff]
    %v549 = vld [vmem:[%s118 + $0x249] sm:$0xff]
    %v550 = vld [vmem:[%s118 + $0x259] sm:$0xff]
    %v551 = vld [vmem:[%s118 + $0x261] sm:$0xff]
    %v552 = vld [vmem:[%s118 + $0x271] sm:$0xff]
    %v553 = vld [vmem:[%s118 + $0x279] sm:$0xff]
    %v554 = vld [vmem:[%s118 + $0x289] sm:$0xff]
    %v555 = vld [vmem:[%s118 + $0x291] sm:$0xff]
    %v556 = vld [vmem:[%s118 + $0x2a1] sm:$0xff]
    %v557 = vld [vmem:[%s118 + $0x2a9] sm:$0xff]
    %v558 = vld [vmem:[%s118 + $0x2b9] sm:$0xff]
    %v559 = vld [vmem:[%s118 + $0x2c1] sm:$0xff]
    %v560 = vld [vmem:[%s118 + $0x2d1] sm:$0xff]
    %v561 = vld [vmem:[%s118 + $0x2d9] sm:$0xff]
    %v562 = vld [vmem:[%s118 + $0x2e9] sm:$0xff]
    %v563 = vld [vmem:[%s118 + $0x2f1] sm:$0xff]
    %v564 = vld [vmem:[%s118 + $0x301] sm:$0xff]
    %v565 = vld [vmem:[%s118 + $0x309] sm:$0xff]
    %v566 = vld [vmem:[%s118 + $0x319] sm:$0xff]
    %v567 = vld [vmem:[%s118 + $0x321] sm:$0xff]
    %v568 = vld [vmem:[%s118 + $0x2] sm:$0xff]
    %v569 = vld [vmem:[%s118 + $0xa] sm:$0xff]
    %v570 = vld [vmem:[%s118 + $0x1a] sm:$0xff]
    %v571 = vld [vmem:[%s118 + $0x22] sm:$0xff]
    %v572 = vld [vmem:[%s118 + $0x32] sm:$0xff]
    %v573 = vld [vmem:[%s118 + $0x3a] sm:$0xff]
    %v574 = vld [vmem:[%s118 + $0x4a] sm:$0xff]
    %v575 = vld [vmem:[%s118 + $0x52] sm:$0xff]
    %v576 = vld [vmem:[%s118 + $0x62] sm:$0xff]
    %v577 = vld [vmem:[%s118 + $0x6a] sm:$0xff]
    %v578 = vld [vmem:[%s118 + $0x7a] sm:$0xff]
    %v579 = vld [vmem:[%s118 + $0x82] sm:$0xff]
    %v580 = vld [vmem:[%s118 + $0x92] sm:$0xff]
    %v581 = vld [vmem:[%s118 + $0x9a] sm:$0xff]
    %v582 = vld [vmem:[%s118 + $0xaa] sm:$0xff]
    %v583 = vld [vmem:[%s118 + $0xb2] sm:$0xff]
    %v584 = vld [vmem:[%s118 + $0xc2] sm:$0xff]
    %v585 = vld [vmem:[%s118 + $0xca] sm:$0xff]
    %v586 = vld [vmem:[%s118 + $0xda] sm:$0xff]
    %v587 = vld [vmem:[%s118 + $0xe2] sm:$0xff]
    %v588 = vld [vmem:[%s118 + $0xf2] sm:$0xff]
    %v589 = vld [vmem:[%s118 + $0xfa] sm:$0xff]
    %v590 = vld [vmem:[%s118 + $0x10a] sm:$0xff]
    %v591 = vld [vmem:[%s118 + $0x112] sm:$0xff]
    %v592 = vld [vmem:[%s118 + $0x122] sm:$0xff]
    %v593 = vld [vmem:[%s118 + $0x12a] sm:$0xff]
    %v594 = vld [vmem:[%s118 + $0x13a] sm:$0xff]
    %v595 = vld [vmem:[%s118 + $0x142] sm:$0xff]
    %v596 = vld [vmem:[%s118 + $0x152] sm:$0xff]
    %v597 = vld [vmem:[%s118 + $0x15a] sm:$0xff]
    %v598 = vld [vmem:[%s118 + $0x16a] sm:$0xff]
    %v599 = vld [vmem:[%s118 + $0x172] sm:$0xff]
    %v600 = vld [vmem:[%s118 + $0x1b2] sm:$0xff]
    %v601 = vld [vmem:[%s118 + $0x1ba] sm:$0xff]
    %v602 = vld [vmem:[%s118 + $0x1ca] sm:$0xff]
    %v603 = vld [vmem:[%s118 + $0x1d2] sm:$0xff]
    %v604 = vld [vmem:[%s118 + $0x1e2] sm:$0xff]
    %v605 = vld [vmem:[%s118 + $0x1ea] sm:$0xff]
    %v606 = vld [vmem:[%s118 + $0x1fa] sm:$0xff]
    %v607 = vld [vmem:[%s118 + $0x202] sm:$0xff]
    %v608 = vld [vmem:[%s118 + $0x212] sm:$0xff]
    %v609 = vld [vmem:[%s118 + $0x21a] sm:$0xff]
    %v610 = vld [vmem:[%s118 + $0x22a] sm:$0xff]
    %v611 = vld [vmem:[%s118 + $0x232] sm:$0xff]
    %v612 = vld [vmem:[%s118 + $0x242] sm:$0xff]
    %v613 = vld [vmem:[%s118 + $0x24a] sm:$0xff]
    %v614 = vld [vmem:[%s118 + $0x25a] sm:$0xff]
    %v615 = vld [vmem:[%s118 + $0x262] sm:$0xff]
    %v616 = vld [vmem:[%s118 + $0x272] sm:$0xff]
    %v617 = vld [vmem:[%s118 + $0x27a] sm:$0xff]
    %v618 = vld [vmem:[%s118 + $0x28a] sm:$0xff]
    %v619 = vld [vmem:[%s118 + $0x292] sm:$0xff]
    %v620 = vld [vmem:[%s118 + $0x2a2] sm:$0xff]
    %v621 = vld [vmem:[%s118 + $0x2aa] sm:$0xff]
    %v622 = vld [vmem:[%s118 + $0x2ba] sm:$0xff]
    %v623 = vld [vmem:[%s118 + $0x2c2] sm:$0xff]
    %v624 = vld [vmem:[%s118 + $0x2d2] sm:$0xff]
    %v625 = vld [vmem:[%s118 + $0x2da] sm:$0xff]
    %v626 = vld [vmem:[%s118 + $0x2ea] sm:$0xff]
    %v627 = vld [vmem:[%s118 + $0x2f2] sm:$0xff]
    %v628 = vld [vmem:[%s118 + $0x302] sm:$0xff]
    %v629 = vld [vmem:[%s118 + $0x30a] sm:$0xff]
    %v630 = vld [vmem:[%s118 + $0x31a] sm:$0xff]
    %v631 = vld [vmem:[%s118 + $0x322] sm:$0xff]
    %s632 = scalar_lea.vmem [#allocation2], 48
    %v633 = vld [vmem:[%s632] sm:$0xff]
    %v634 = vld [vmem:[%s632 + $0x8] sm:$0xff]
    %v635 = vld [vmem:[%s632 + $0x18] sm:$0xff]
    %v636 = vld [vmem:[%s632 + $0x20] sm:$0xff]
    %v637 = vld [vmem:[%s632 + $0x30] sm:$0xff]
    %v638 = vld [vmem:[%s632 + $0x38] sm:$0xff]
    %v639 = vld [vmem:[%s632 + $0x48] sm:$0xff]
    %v640 = vld [vmem:[%s632 + $0x50] sm:$0xff]
    %v641 = vld [vmem:[%s632 + $0x60] sm:$0xff]
    %v642 = vld [vmem:[%s632 + $0x68] sm:$0xff]
    %v643 = vld [vmem:[%s632 + $0x78] sm:$0xff]
    %v644 = vld [vmem:[%s632 + $0x80] sm:$0xff]
    %v645 = vld [vmem:[%s632 + $0x90] sm:$0xff]
    %v646 = vld [vmem:[%s632 + $0x98] sm:$0xff]
    %v647 = vld [vmem:[%s632 + $0xa8] sm:$0xff]
    %v648 = vld [vmem:[%s632 + $0xb0] sm:$0xff]
    %v649 = vld [vmem:[%s632 + $0xc0] sm:$0xff]
    %v650 = vld [vmem:[%s632 + $0xc8] sm:$0xff]
    %v651 = vld [vmem:[%s632 + $0xd8] sm:$0xff]
    %v652 = vld [vmem:[%s632 + $0xe0] sm:$0xff]
    %v653 = vld [vmem:[%s632 + $0xf0] sm:$0xff]
    %v654 = vld [vmem:[%s632 + $0xf8] sm:$0xff]
    %v655 = vld [vmem:[%s632 + $0x108] sm:$0xff]
    %v656 = vld [vmem:[%s632 + $0x110] sm:$0xff]
    %v657 = vld [vmem:[%s632 + $0x120] sm:$0xff]
    %v658 = vld [vmem:[%s632 + $0x128] sm:$0xff]
    %v659 = vld [vmem:[%s632 + $0x138] sm:$0xff]
    %v660 = vld [vmem:[%s632 + $0x140] sm:$0xff]
    %v661 = vld [vmem:[%s632 + $0x150] sm:$0xff]
    %v662 = vld [vmem:[%s632 + $0x158] sm:$0xff]
    %v663 = vld [vmem:[%s632 + $0x168] sm:$0xff]
    %v664 = vld [vmem:[%s632 + $0x170] sm:$0xff]
    %v665 = vld [vmem:[%s632 + $0x1b0] sm:$0xff]
    %v666 = vld [vmem:[%s632 + $0x1b8] sm:$0xff]
    %v667 = vld [vmem:[%s632 + $0x1c8] sm:$0xff]
    %v668 = vld [vmem:[%s632 + $0x1d0] sm:$0xff]
    %v669 = vld [vmem:[%s632 + $0x1e0] sm:$0xff]
    %v670 = vld [vmem:[%s632 + $0x1e8] sm:$0xff]
    %v671 = vld [vmem:[%s632 + $0x1f8] sm:$0xff]
    %v672 = vld [vmem:[%s632 + $0x200] sm:$0xff]
    %v673 = vld [vmem:[%s632 + $0x210] sm:$0xff]
    %v674 = vld [vmem:[%s632 + $0x218] sm:$0xff]
    %v675 = vld [vmem:[%s632 + $0x228] sm:$0xff]
    %v676 = vld [vmem:[%s632 + $0x230] sm:$0xff]
    %v677 = vld [vmem:[%s632 + $0x240] sm:$0xff]
    %v678 = vld [vmem:[%s632 + $0x248] sm:$0xff]
    %v679 = vld [vmem:[%s632 + $0x258] sm:$0xff]
    %v680 = vld [vmem:[%s632 + $0x260] sm:$0xff]
    %v681 = vld [vmem:[%s632 + $0x270] sm:$0xff]
    %v682 = vld [vmem:[%s632 + $0x278] sm:$0xff]
    %v683 = vld [vmem:[%s632 + $0x288] sm:$0xff]
    %v684 = vld [vmem:[%s632 + $0x290] sm:$0xff]
    %v685 = vld [vmem:[%s632 + $0x2a0] sm:$0xff]
    %v686 = vld [vmem:[%s632 + $0x2a8] sm:$0xff]
    %v687 = vld [vmem:[%s632 + $0x2b8] sm:$0xff]
    %v688 = vld [vmem:[%s632 + $0x2c0] sm:$0xff]
    %v689 = vld [vmem:[%s632 + $0x2d0] sm:$0xff]
    %v690 = vld [vmem:[%s632 + $0x2d8] sm:$0xff]
    %v691 = vld [vmem:[%s632 + $0x2e8] sm:$0xff]
    %v692 = vld [vmem:[%s632 + $0x2f0] sm:$0xff]
    %v693 = vld [vmem:[%s632 + $0x300] sm:$0xff]
    %v694 = vld [vmem:[%s632 + $0x308] sm:$0xff]
    %v695 = vld [vmem:[%s632 + $0x318] sm:$0xff]
    %v696 = vld [vmem:[%s632 + $0x320] sm:$0xff]
    %v697 = vld [vmem:[%s632 + $0x1] sm:$0xff]
    %v698 = vld [vmem:[%s632 + $0x9] sm:$0xff]
    %v699 = vld [vmem:[%s632 + $0x19] sm:$0xff]
    %v700 = vld [vmem:[%s632 + $0x21] sm:$0xff]
    %v701 = vld [vmem:[%s632 + $0x31] sm:$0xff]
    %v702 = vld [vmem:[%s632 + $0x39] sm:$0xff]
    %v703 = vld [vmem:[%s632 + $0x49] sm:$0xff]
    %v704 = vld [vmem:[%s632 + $0x51] sm:$0xff]
    %v705 = vld [vmem:[%s632 + $0x61] sm:$0xff]
    %v706 = vld [vmem:[%s632 + $0x69] sm:$0xff]
    %v707 = vld [vmem:[%s632 + $0x79] sm:$0xff]
    %v708 = vld [vmem:[%s632 + $0x81] sm:$0xff]
    %v709 = vld [vmem:[%s632 + $0x91] sm:$0xff]
    %v710 = vld [vmem:[%s632 + $0x99] sm:$0xff]
    %v711 = vld [vmem:[%s632 + $0xa9] sm:$0xff]
    %v712 = vld [vmem:[%s632 + $0xb1] sm:$0xff]
    %v713 = vld [vmem:[%s632 + $0xc1] sm:$0xff]
    %v714 = vld [vmem:[%s632 + $0xc9] sm:$0xff]
    %v715 = vld [vmem:[%s632 + $0xd9] sm:$0xff]
    %v716 = vld [vmem:[%s632 + $0xe1] sm:$0xff]
    %v717 = vld [vmem:[%s632 + $0xf1] sm:$0xff]
    %v718 = vld [vmem:[%s632 + $0xf9] sm:$0xff]
    %v719 = vld [vmem:[%s632 + $0x109] sm:$0xff]
    %v720 = vld [vmem:[%s632 + $0x111] sm:$0xff]
    %v721 = vld [vmem:[%s632 + $0x121] sm:$0xff]
    %v722 = vld [vmem:[%s632 + $0x129] sm:$0xff]
    %v723 = vld [vmem:[%s632 + $0x139] sm:$0xff]
    %v724 = vld [vmem:[%s632 + $0x141] sm:$0xff]
    %v725 = vld [vmem:[%s632 + $0x151] sm:$0xff]
    %v726 = vld [vmem:[%s632 + $0x159] sm:$0xff]
    %v727 = vld [vmem:[%s632 + $0x169] sm:$0xff]
    %v728 = vld [vmem:[%s632 + $0x171] sm:$0xff]
    %v729 = vld [vmem:[%s632 + $0x1b1] sm:$0xff]
    %v730 = vld [vmem:[%s632 + $0x1b9] sm:$0xff]
    %v731 = vld [vmem:[%s632 + $0x1c9] sm:$0xff]
    %v732 = vld [vmem:[%s632 + $0x1d1] sm:$0xff]
    %v733 = vld [vmem:[%s632 + $0x1e1] sm:$0xff]
    %v734 = vld [vmem:[%s632 + $0x1e9] sm:$0xff]
    %v735 = vld [vmem:[%s632 + $0x1f9] sm:$0xff]
    %v736 = vld [vmem:[%s632 + $0x201] sm:$0xff]
    %v737 = vld [vmem:[%s632 + $0x211] sm:$0xff]
    %v738 = vld [vmem:[%s632 + $0x219] sm:$0xff]
    %v739 = vld [vmem:[%s632 + $0x229] sm:$0xff]
    %v740 = vld [vmem:[%s632 + $0x231] sm:$0xff]
    %v741 = vld [vmem:[%s632 + $0x241] sm:$0xff]
    %v742 = vld [vmem:[%s632 + $0x249] sm:$0xff]
    %v743 = vld [vmem:[%s632 + $0x259] sm:$0xff]
    %v744 = vld [vmem:[%s632 + $0x261] sm:$0xff]
    %v745 = vld [vmem:[%s632 + $0x271] sm:$0xff]
    %v746 = vld [vmem:[%s632 + $0x279] sm:$0xff]
    %v747 = vld [vmem:[%s632 + $0x289] sm:$0xff]
    %v748 = vld [vmem:[%s632 + $0x291] sm:$0xff]
    %v749 = vld [vmem:[%s632 + $0x2a1] sm:$0xff]
    %v750 = vld [vmem:[%s632 + $0x2a9] sm:$0xff]
    %v751 = vld [vmem:[%s632 + $0x2b9] sm:$0xff]
    %v752 = vld [vmem:[%s632 + $0x2c1] sm:$0xff]
    %v753 = vld [vmem:[%s632 + $0x2d1] sm:$0xff]
    %v754 = vld [vmem:[%s632 + $0x2d9] sm:$0xff]
    %v755 = vld [vmem:[%s632 + $0x2e9] sm:$0xff]
    %v756 = vld [vmem:[%s632 + $0x2f1] sm:$0xff]
    %v757 = vld [vmem:[%s632 + $0x301] sm:$0xff]
    %v758 = vld [vmem:[%s632 + $0x309] sm:$0xff]
    %v759 = vld [vmem:[%s632 + $0x319] sm:$0xff]
    %v760 = vld [vmem:[%s632 + $0x321] sm:$0xff]
    %v761 = vld [vmem:[%s632 + $0x2] sm:$0xff]
    %v762 = vld [vmem:[%s632 + $0xa] sm:$0xff]
    %v763 = vld [vmem:[%s632 + $0x1a] sm:$0xff]
    %v764 = vld [vmem:[%s632 + $0x22] sm:$0xff]
    %v765 = vld [vmem:[%s632 + $0x32] sm:$0xff]
    %v766 = vld [vmem:[%s632 + $0x3a] sm:$0xff]
    %v767 = vld [vmem:[%s632 + $0x4a] sm:$0xff]
    %v768 = vld [vmem:[%s632 + $0x52] sm:$0xff]
    %v769 = vld [vmem:[%s632 + $0x62] sm:$0xff]
    %v770 = vld [vmem:[%s632 + $0x6a] sm:$0xff]
    %v771 = vld [vmem:[%s632 + $0x7a] sm:$0xff]
    %v772 = vld [vmem:[%s632 + $0x82] sm:$0xff]
    %v773 = vld [vmem:[%s632 + $0x92] sm:$0xff]
    %v774 = vld [vmem:[%s632 + $0x9a] sm:$0xff]
    %v775 = vld [vmem:[%s632 + $0xaa] sm:$0xff]
    %v776 = vld [vmem:[%s632 + $0xb2] sm:$0xff]
    %v777 = vld [vmem:[%s632 + $0xc2] sm:$0xff]
    %v778 = vld [vmem:[%s632 + $0xca] sm:$0xff]
    %v779 = vld [vmem:[%s632 + $0xda] sm:$0xff]
    %v780 = vld [vmem:[%s632 + $0xe2] sm:$0xff]
    %v781 = vld [vmem:[%s632 + $0xf2] sm:$0xff]
    %v782 = vld [vmem:[%s632 + $0xfa] sm:$0xff]
    %v783 = vld [vmem:[%s632 + $0x10a] sm:$0xff]
    %v784 = vld [vmem:[%s632 + $0x112] sm:$0xff]
    %v785 = vld [vmem:[%s632 + $0x122] sm:$0xff]
    %v786 = vld [vmem:[%s632 + $0x12a] sm:$0xff]
    %v787 = vld [vmem:[%s632 + $0x13a] sm:$0xff]
    %v788 = vld [vmem:[%s632 + $0x142] sm:$0xff]
    %v789 = vld [vmem:[%s632 + $0x152] sm:$0xff]
    %v790 = vld [vmem:[%s632 + $0x15a] sm:$0xff]
    %v791 = vld [vmem:[%s632 + $0x16a] sm:$0xff]
    %v792 = vld [vmem:[%s632 + $0x172] sm:$0xff]
    %v793 = vld [vmem:[%s632 + $0x1b2] sm:$0xff]
    %v794 = vld [vmem:[%s632 + $0x1ba] sm:$0xff]
    %v795 = vld [vmem:[%s632 + $0x1ca] sm:$0xff]
    %v796 = vld [vmem:[%s632 + $0x1d2] sm:$0xff]
    %v797 = vld [vmem:[%s632 + $0x1e2] sm:$0xff]
    %v798 = vld [vmem:[%s632 + $0x1ea] sm:$0xff]
    %v799 = vld [vmem:[%s632 + $0x1fa] sm:$0xff]
    %v800 = vld [vmem:[%s632 + $0x202] sm:$0xff]
    %v801 = vld [vmem:[%s632 + $0x212] sm:$0xff]
    %v802 = vld [vmem:[%s632 + $0x21a] sm:$0xff]
    %v803 = vld [vmem:[%s632 + $0x22a] sm:$0xff]
    %v804 = vld [vmem:[%s632 + $0x232] sm:$0xff]
    %v805 = vld [vmem:[%s632 + $0x242] sm:$0xff]
    %v806 = vld [vmem:[%s632 + $0x24a] sm:$0xff]
    %v807 = vld [vmem:[%s632 + $0x25a] sm:$0xff]
    %v808 = vld [vmem:[%s632 + $0x262] sm:$0xff]
    %v809 = vld [vmem:[%s632 + $0x272] sm:$0xff]
    %v810 = vld [vmem:[%s632 + $0x27a] sm:$0xff]
    %v811 = vld [vmem:[%s632 + $0x28a] sm:$0xff]
    %v812 = vld [vmem:[%s632 + $0x292] sm:$0xff]
    %v813 = vld [vmem:[%s632 + $0x2a2] sm:$0xff]
    %v814 = vld [vmem:[%s632 + $0x2aa] sm:$0xff]
    %v815 = vld [vmem:[%s632 + $0x2ba] sm:$0xff]
    %v816 = vld [vmem:[%s632 + $0x2c2] sm:$0xff]
    %v817 = vld [vmem:[%s632 + $0x2d2] sm:$0xff]
    %v818 = vld [vmem:[%s632 + $0x2da] sm:$0xff]
    %v819 = vld [vmem:[%s632 + $0x2ea] sm:$0xff]
    %v820 = vld [vmem:[%s632 + $0x2f2] sm:$0xff]
    %v821 = vld [vmem:[%s632 + $0x302] sm:$0xff]
    %v822 = vld [vmem:[%s632 + $0x30a] sm:$0xff]
    %v823 = vld [vmem:[%s632 + $0x31a] sm:$0xff]
    %v824 = vld [vmem:[%s632 + $0x322] sm:$0xff]
    %889 = vrot.lane.b32.xlu0 %v312, 4
    %v890 = vpop.permute.xlu0 %889
    %891 = vrot.lane.b32.xlu0 %v313, 4
    %v892 = vpop.permute.xlu0 %891
    %893 = vrot.lane.b32.xlu0 %v314, 4
    %v894 = vpop.permute.xlu0 %893
    %895 = vrot.lane.b32.xlu0 %v315, 4
    %v896 = vpop.permute.xlu0 %895
    %897 = vrot.lane.b32.xlu0 %v316, 4
    %v898 = vpop.permute.xlu0 %897
    %899 = vrot.lane.b32.xlu0 %v317, 4
    %v900 = vpop.permute.xlu0 %899
    %901 = vrot.lane.b32.xlu0 %v318, 4
    %v902 = vpop.permute.xlu0 %901
    %903 = vrot.lane.b32.xlu0 %v319, 4
    %v904 = vpop.permute.xlu0 %903
    %905 = vrot.lane.b32.xlu0 %v320, 4
    %v906 = vpop.permute.xlu0 %905
    %907 = vrot.lane.b32.xlu0 %v321, 4
    %v908 = vpop.permute.xlu0 %907
    %909 = vrot.lane.b32.xlu0 %v322, 4
    %v910 = vpop.permute.xlu0 %909
    %911 = vrot.lane.b32.xlu0 %v323, 4
    %v912 = vpop.permute.xlu0 %911
    %913 = vrot.lane.b32.xlu0 %v324, 4
    %v914 = vpop.permute.xlu0 %913
    %915 = vrot.lane.b32.xlu0 %v325, 4
    %v916 = vpop.permute.xlu0 %915
    %917 = vrot.lane.b32.xlu0 %v326, 4
    %v918 = vpop.permute.xlu0 %917
    %919 = vrot.lane.b32.xlu0 %v327, 4
    %v920 = vpop.permute.xlu0 %919
    %921 = vrot.lane.b32.xlu0 %v328, 4
    %v922 = vpop.permute.xlu0 %921
    %923 = vrot.lane.b32.xlu0 %v329, 4
    %v924 = vpop.permute.xlu0 %923
    %925 = vrot.lane.b32.xlu0 %v330, 4
    %v926 = vpop.permute.xlu0 %925
    %927 = vrot.lane.b32.xlu0 %v331, 4
    %v928 = vpop.permute.xlu0 %927
    %929 = vrot.lane.b32.xlu0 %v332, 4
    %v930 = vpop.permute.xlu0 %929
    %931 = vrot.lane.b32.xlu0 %v333, 4
    %v932 = vpop.permute.xlu0 %931
    %933 = vrot.lane.b32.xlu0 %v334, 4
    %v934 = vpop.permute.xlu0 %933
    %935 = vrot.lane.b32.xlu0 %v335, 4
    %v936 = vpop.permute.xlu0 %935
    %937 = vrot.lane.b32.xlu0 %v336, 4
    %v938 = vpop.permute.xlu0 %937
    %939 = vrot.lane.b32.xlu0 %v337, 4
    %v940 = vpop.permute.xlu0 %939
    %941 = vrot.lane.b32.xlu0 %v338, 4
    %v942 = vpop.permute.xlu0 %941
    %943 = vrot.lane.b32.xlu0 %v339, 4
    %v944 = vpop.permute.xlu0 %943
    %945 = vrot.lane.b32.xlu0 %v340, 4
    %v946 = vpop.permute.xlu0 %945
    %947 = vrot.lane.b32.xlu0 %v341, 4
    %v948 = vpop.permute.xlu0 %947
    %949 = vrot.lane.b32.xlu0 %v342, 4
    %v950 = vpop.permute.xlu0 %949
    %951 = vrot.lane.b32.xlu0 %v343, 4
    %v952 = vpop.permute.xlu0 %951
    %953 = vrot.lane.b32.xlu0 %v344, 4
    %v954 = vpop.permute.xlu0 %953
    %955 = vrot.lane.b32.xlu0 %v345, 4
    %v956 = vpop.permute.xlu0 %955
    %957 = vrot.lane.b32.xlu0 %v346, 4
    %v958 = vpop.permute.xlu0 %957
    %959 = vrot.lane.b32.xlu0 %v347, 4
    %v960 = vpop.permute.xlu0 %959
    %961 = vrot.lane.b32.xlu0 %v348, 4
    %v962 = vpop.permute.xlu0 %961
    %963 = vrot.lane.b32.xlu0 %v349, 4
    %v964 = vpop.permute.xlu0 %963
    %965 = vrot.lane.b32.xlu0 %v350, 4
    %v966 = vpop.permute.xlu0 %965
    %967 = vrot.lane.b32.xlu0 %v351, 4
    %v968 = vpop.permute.xlu0 %967
    %969 = vrot.lane.b32.xlu0 %v352, 4
    %v970 = vpop.permute.xlu0 %969
    %971 = vrot.lane.b32.xlu0 %v353, 4
    %v972 = vpop.permute.xlu0 %971
    %973 = vrot.lane.b32.xlu0 %v354, 4
    %v974 = vpop.permute.xlu0 %973
    %975 = vrot.lane.b32.xlu0 %v355, 4
    %v976 = vpop.permute.xlu0 %975
    %977 = vrot.lane.b32.xlu0 %v356, 4
    %v978 = vpop.permute.xlu0 %977
    %979 = vrot.lane.b32.xlu0 %v357, 4
    %v980 = vpop.permute.xlu0 %979
    %981 = vrot.lane.b32.xlu0 %v358, 4
    %v982 = vpop.permute.xlu0 %981
    %983 = vrot.lane.b32.xlu0 %v359, 4
    %v984 = vpop.permute.xlu0 %983
    %985 = vrot.lane.b32.xlu0 %v360, 4
    %v986 = vpop.permute.xlu0 %985
    %987 = vrot.lane.b32.xlu0 %v361, 4
    %v988 = vpop.permute.xlu0 %987
    %989 = vrot.lane.b32.xlu0 %v362, 4
    %v990 = vpop.permute.xlu0 %989
    %991 = vrot.lane.b32.xlu0 %v363, 4
    %v992 = vpop.permute.xlu0 %991
    %993 = vrot.lane.b32.xlu0 %v364, 4
    %v994 = vpop.permute.xlu0 %993
    %995 = vrot.lane.b32.xlu0 %v365, 4
    %v996 = vpop.permute.xlu0 %995
    %997 = vrot.lane.b32.xlu0 %v366, 4
    %v998 = vpop.permute.xlu0 %997
    %999 = vrot.lane.b32.xlu0 %v367, 4
    %v1000 = vpop.permute.xlu0 %999
    %1001 = vrot.lane.b32.xlu0 %v368, 4
    %v1002 = vpop.permute.xlu0 %1001
    %1003 = vrot.lane.b32.xlu0 %v369, 4
    %v1004 = vpop.permute.xlu0 %1003
    %1005 = vrot.lane.b32.xlu0 %v370, 4
    %v1006 = vpop.permute.xlu0 %1005
    %1007 = vrot.lane.b32.xlu0 %v371, 4
    %v1008 = vpop.permute.xlu0 %1007
    %1009 = vrot.lane.b32.xlu0 %v372, 4
    %v1010 = vpop.permute.xlu0 %1009
    %1011 = vrot.lane.b32.xlu0 %v373, 4
    %v1012 = vpop.permute.xlu0 %1011
    %1013 = vrot.lane.b32.xlu0 %v374, 4
    %v1014 = vpop.permute.xlu0 %1013
    %1015 = vrot.lane.b32.xlu0 %v375, 4
    %v1016 = vpop.permute.xlu0 %1015
    %1145 = vrot.lane.b32.xlu0 %v376, 8
    %v1146 = vpop.permute.xlu0 %1145
    %1147 = vrot.lane.b32.xlu0 %v377, 8
    %v1148 = vpop.permute.xlu0 %1147
    %1149 = vrot.lane.b32.xlu0 %v378, 8
    %v1150 = vpop.permute.xlu0 %1149
    %1151 = vrot.lane.b32.xlu0 %v379, 8
    %v1152 = vpop.permute.xlu0 %1151
    %1153 = vrot.lane.b32.xlu0 %v380, 8
    %v1154 = vpop.permute.xlu0 %1153
    %1155 = vrot.lane.b32.xlu0 %v381, 8
    %v1156 = vpop.permute.xlu0 %1155
    %1157 = vrot.lane.b32.xlu0 %v382, 8
    %v1158 = vpop.permute.xlu0 %1157
    %1159 = vrot.lane.b32.xlu0 %v383, 8
    %v1160 = vpop.permute.xlu0 %1159
    %1161 = vrot.lane.b32.xlu0 %v384, 8
    %v1162 = vpop.permute.xlu0 %1161
    %1163 = vrot.lane.b32.xlu0 %v385, 8
    %v1164 = vpop.permute.xlu0 %1163
    %1165 = vrot.lane.b32.xlu0 %v386, 8
    %v1166 = vpop.permute.xlu0 %1165
    %1167 = vrot.lane.b32.xlu0 %v387, 8
    %v1168 = vpop.permute.xlu0 %1167
    %1169 = vrot.lane.b32.xlu0 %v388, 8
    %v1170 = vpop.permute.xlu0 %1169
    %1171 = vrot.lane.b32.xlu0 %v389, 8
    %v1172 = vpop.permute.xlu0 %1171
    %1173 = vrot.lane.b32.xlu0 %v390, 8
    %v1174 = vpop.permute.xlu0 %1173
    %1175 = vrot.lane.b32.xlu0 %v391, 8
    %v1176 = vpop.permute.xlu0 %1175
    %1177 = vrot.lane.b32.xlu0 %v392, 8
    %v1178 = vpop.permute.xlu0 %1177
    %1179 = vrot.lane.b32.xlu0 %v393, 8
    %v1180 = vpop.permute.xlu0 %1179
    %1181 = vrot.lane.b32.xlu0 %v394, 8
    %v1182 = vpop.permute.xlu0 %1181
    %1183 = vrot.lane.b32.xlu0 %v395, 8
    %v1184 = vpop.permute.xlu0 %1183
    %1185 = vrot.lane.b32.xlu0 %v396, 8
    %v1186 = vpop.permute.xlu0 %1185
    %1187 = vrot.lane.b32.xlu0 %v397, 8
    %v1188 = vpop.permute.xlu0 %1187
    %1189 = vrot.lane.b32.xlu0 %v398, 8
    %v1190 = vpop.permute.xlu0 %1189
    %1191 = vrot.lane.b32.xlu0 %v399, 8
    %v1192 = vpop.permute.xlu0 %1191
    %1193 = vrot.lane.b32.xlu0 %v400, 8
    %v1194 = vpop.permute.xlu0 %1193
    %1195 = vrot.lane.b32.xlu0 %v401, 8
    %v1196 = vpop.permute.xlu0 %1195
    %1197 = vrot.lane.b32.xlu0 %v402, 8
    %v1198 = vpop.permute.xlu0 %1197
    %1199 = vrot.lane.b32.xlu0 %v403, 8
    %v1200 = vpop.permute.xlu0 %1199
    %1201 = vrot.lane.b32.xlu0 %v404, 8
    %v1202 = vpop.permute.xlu0 %1201
    %1203 = vrot.lane.b32.xlu0 %v405, 8
    %v1204 = vpop.permute.xlu0 %1203
    %1205 = vrot.lane.b32.xlu0 %v406, 8
    %v1206 = vpop.permute.xlu0 %1205
    %1207 = vrot.lane.b32.xlu0 %v407, 8
    %v1208 = vpop.permute.xlu0 %1207
    %1209 = vrot.lane.b32.xlu0 %v408, 8
    %v1210 = vpop.permute.xlu0 %1209
    %1211 = vrot.lane.b32.xlu0 %v409, 8
    %v1212 = vpop.permute.xlu0 %1211
    %1213 = vrot.lane.b32.xlu0 %v410, 8
    %v1214 = vpop.permute.xlu0 %1213
    %1215 = vrot.lane.b32.xlu0 %v411, 8
    %v1216 = vpop.permute.xlu0 %1215
    %1217 = vrot.lane.b32.xlu0 %v412, 8
    %v1218 = vpop.permute.xlu0 %1217
    %1219 = vrot.lane.b32.xlu0 %v413, 8
    %v1220 = vpop.permute.xlu0 %1219
    %1221 = vrot.lane.b32.xlu0 %v414, 8
    %v1222 = vpop.permute.xlu0 %1221
    %1223 = vrot.lane.b32.xlu0 %v415, 8
    %v1224 = vpop.permute.xlu0 %1223
    %1225 = vrot.lane.b32.xlu0 %v416, 8
    %v1226 = vpop.permute.xlu0 %1225
    %1227 = vrot.lane.b32.xlu0 %v417, 8
    %v1228 = vpop.permute.xlu0 %1227
    %1229 = vrot.lane.b32.xlu0 %v418, 8
    %v1230 = vpop.permute.xlu0 %1229
    %1231 = vrot.lane.b32.xlu0 %v419, 8
    %v1232 = vpop.permute.xlu0 %1231
    %1233 = vrot.lane.b32.xlu0 %v420, 8
    %v1234 = vpop.permute.xlu0 %1233
    %1235 = vrot.lane.b32.xlu0 %v421, 8
    %v1236 = vpop.permute.xlu0 %1235
    %1237 = vrot.lane.b32.xlu0 %v422, 8
    %v1238 = vpop.permute.xlu0 %1237
    %1239 = vrot.lane.b32.xlu0 %v423, 8
    %v1240 = vpop.permute.xlu0 %1239
    %1241 = vrot.lane.b32.xlu0 %v424, 8
    %v1242 = vpop.permute.xlu0 %1241
    %1243 = vrot.lane.b32.xlu0 %v425, 8
    %v1244 = vpop.permute.xlu0 %1243
    %1245 = vrot.lane.b32.xlu0 %v426, 8
    %v1246 = vpop.permute.xlu0 %1245
    %1247 = vrot.lane.b32.xlu0 %v427, 8
    %v1248 = vpop.permute.xlu0 %1247
    %1249 = vrot.lane.b32.xlu0 %v428, 8
    %v1250 = vpop.permute.xlu0 %1249
    %1251 = vrot.lane.b32.xlu0 %v429, 8
    %v1252 = vpop.permute.xlu0 %1251
    %1253 = vrot.lane.b32.xlu0 %v430, 8
    %v1254 = vpop.permute.xlu0 %1253
    %1255 = vrot.lane.b32.xlu0 %v431, 8
    %v1256 = vpop.permute.xlu0 %1255
    %1257 = vrot.lane.b32.xlu0 %v432, 8
    %v1258 = vpop.permute.xlu0 %1257
    %1259 = vrot.lane.b32.xlu0 %v433, 8
    %v1260 = vpop.permute.xlu0 %1259
    %1261 = vrot.lane.b32.xlu0 %v434, 8
    %v1262 = vpop.permute.xlu0 %1261
    %1263 = vrot.lane.b32.xlu0 %v435, 8
    %v1264 = vpop.permute.xlu0 %1263
    %1265 = vrot.lane.b32.xlu0 %v436, 8
    %v1266 = vpop.permute.xlu0 %1265
    %1267 = vrot.lane.b32.xlu0 %v437, 8
    %v1268 = vpop.permute.xlu0 %1267
    %1269 = vrot.lane.b32.xlu0 %v438, 8
    %v1270 = vpop.permute.xlu0 %1269
    %1271 = vrot.lane.b32.xlu0 %v439, 8
    %v1272 = vpop.permute.xlu0 %1271
    %1401 = vrot.lane.b32.xlu0 %v440, 12
    %v1402 = vpop.permute.xlu0 %1401
    %1403 = vrot.lane.b32.xlu0 %v441, 12
    %v1404 = vpop.permute.xlu0 %1403
    %1405 = vrot.lane.b32.xlu0 %v442, 12
    %v1406 = vpop.permute.xlu0 %1405
    %1407 = vrot.lane.b32.xlu0 %v443, 12
    %v1408 = vpop.permute.xlu0 %1407
    %1409 = vrot.lane.b32.xlu0 %v444, 12
    %v1410 = vpop.permute.xlu0 %1409
    %1411 = vrot.lane.b32.xlu0 %v445, 12
    %v1412 = vpop.permute.xlu0 %1411
    %1413 = vrot.lane.b32.xlu0 %v446, 12
    %v1414 = vpop.permute.xlu0 %1413
    %1415 = vrot.lane.b32.xlu0 %v447, 12
    %v1416 = vpop.permute.xlu0 %1415
    %1417 = vrot.lane.b32.xlu0 %v448, 12
    %v1418 = vpop.permute.xlu0 %1417
    %1419 = vrot.lane.b32.xlu0 %v449, 12
    %v1420 = vpop.permute.xlu0 %1419
    %1421 = vrot.lane.b32.xlu0 %v450, 12
    %v1422 = vpop.permute.xlu0 %1421
    %1423 = vrot.lane.b32.xlu0 %v451, 12
    %v1424 = vpop.permute.xlu0 %1423
    %1425 = vrot.lane.b32.xlu0 %v452, 12
    %v1426 = vpop.permute.xlu0 %1425
    %1427 = vrot.lane.b32.xlu0 %v453, 12
    %v1428 = vpop.permute.xlu0 %1427
    %1429 = vrot.lane.b32.xlu0 %v454, 12
    %v1430 = vpop.permute.xlu0 %1429
    %1431 = vrot.lane.b32.xlu0 %v455, 12
    %v1432 = vpop.permute.xlu0 %1431
    %1433 = vrot.lane.b32.xlu0 %v456, 12
    %v1434 = vpop.permute.xlu0 %1433
    %1435 = vrot.lane.b32.xlu0 %v457, 12
    %v1436 = vpop.permute.xlu0 %1435
    %1437 = vrot.lane.b32.xlu0 %v458, 12
    %v1438 = vpop.permute.xlu0 %1437
    %1439 = vrot.lane.b32.xlu0 %v459, 12
    %v1440 = vpop.permute.xlu0 %1439
    %1441 = vrot.lane.b32.xlu0 %v460, 12
    %v1442 = vpop.permute.xlu0 %1441
    %1443 = vrot.lane.b32.xlu0 %v461, 12
    %v1444 = vpop.permute.xlu0 %1443
    %1445 = vrot.lane.b32.xlu0 %v462, 12
    %v1446 = vpop.permute.xlu0 %1445
    %1447 = vrot.lane.b32.xlu0 %v463, 12
    %v1448 = vpop.permute.xlu0 %1447
    %1449 = vrot.lane.b32.xlu0 %v464, 12
    %v1450 = vpop.permute.xlu0 %1449
    %1451 = vrot.lane.b32.xlu0 %v465, 12
    %v1452 = vpop.permute.xlu0 %1451
    %1453 = vrot.lane.b32.xlu0 %v466, 12
    %v1454 = vpop.permute.xlu0 %1453
    %1455 = vrot.lane.b32.xlu0 %v467, 12
    %v1456 = vpop.permute.xlu0 %1455
    %1457 = vrot.lane.b32.xlu0 %v468, 12
    %v1458 = vpop.permute.xlu0 %1457
    %1459 = vrot.lane.b32.xlu0 %v469, 12
    %v1460 = vpop.permute.xlu0 %1459
    %1461 = vrot.lane.b32.xlu0 %v470, 12
    %v1462 = vpop.permute.xlu0 %1461
    %1463 = vrot.lane.b32.xlu0 %v471, 12
    %v1464 = vpop.permute.xlu0 %1463
    %1465 = vrot.lane.b32.xlu0 %v472, 12
    %v1466 = vpop.permute.xlu0 %1465
    %1467 = vrot.lane.b32.xlu0 %v473, 12
    %v1468 = vpop.permute.xlu0 %1467
    %1469 = vrot.lane.b32.xlu0 %v474, 12
    %v1470 = vpop.permute.xlu0 %1469
    %1471 = vrot.lane.b32.xlu0 %v475, 12
    %v1472 = vpop.permute.xlu0 %1471
    %1473 = vrot.lane.b32.xlu0 %v476, 12
    %v1474 = vpop.permute.xlu0 %1473
    %1475 = vrot.lane.b32.xlu0 %v477, 12
    %v1476 = vpop.permute.xlu0 %1475
    %1477 = vrot.lane.b32.xlu0 %v478, 12
    %v1478 = vpop.permute.xlu0 %1477
    %1479 = vrot.lane.b32.xlu0 %v479, 12
    %v1480 = vpop.permute.xlu0 %1479
    %1481 = vrot.lane.b32.xlu0 %v480, 12
    %v1482 = vpop.permute.xlu0 %1481
    %1483 = vrot.lane.b32.xlu0 %v481, 12
    %v1484 = vpop.permute.xlu0 %1483
    %1485 = vrot.lane.b32.xlu0 %v482, 12
    %v1486 = vpop.permute.xlu0 %1485
    %1487 = vrot.lane.b32.xlu0 %v483, 12
    %v1488 = vpop.permute.xlu0 %1487
    %1489 = vrot.lane.b32.xlu0 %v484, 12
    %v1490 = vpop.permute.xlu0 %1489
    %1491 = vrot.lane.b32.xlu0 %v485, 12
    %v1492 = vpop.permute.xlu0 %1491
    %1493 = vrot.lane.b32.xlu0 %v486, 12
    %v1494 = vpop.permute.xlu0 %1493
    %1495 = vrot.lane.b32.xlu0 %v487, 12
    %v1496 = vpop.permute.xlu0 %1495
    %1497 = vrot.lane.b32.xlu0 %v488, 12
    %v1498 = vpop.permute.xlu0 %1497
    %1499 = vrot.lane.b32.xlu0 %v489, 12
    %v1500 = vpop.permute.xlu0 %1499
    %1501 = vrot.lane.b32.xlu0 %v490, 12
    %v1502 = vpop.permute.xlu0 %1501
    %1503 = vrot.lane.b32.xlu0 %v491, 12
    %v1504 = vpop.permute.xlu0 %1503
    %1505 = vrot.lane.b32.xlu0 %v492, 12
    %v1506 = vpop.permute.xlu0 %1505
    %1507 = vrot.lane.b32.xlu0 %v493, 12
    %v1508 = vpop.permute.xlu0 %1507
    %1509 = vrot.lane.b32.xlu0 %v494, 12
    %v1510 = vpop.permute.xlu0 %1509
    %1511 = vrot.lane.b32.xlu0 %v495, 12
    %v1512 = vpop.permute.xlu0 %1511
    %1513 = vrot.lane.b32.xlu0 %v496, 12
    %v1514 = vpop.permute.xlu0 %1513
    %1515 = vrot.lane.b32.xlu0 %v497, 12
    %v1516 = vpop.permute.xlu0 %1515
    %1517 = vrot.lane.b32.xlu0 %v498, 12
    %v1518 = vpop.permute.xlu0 %1517
    %1519 = vrot.lane.b32.xlu0 %v499, 12
    %v1520 = vpop.permute.xlu0 %1519
    %1521 = vrot.lane.b32.xlu0 %v500, 12
    %v1522 = vpop.permute.xlu0 %1521
    %1523 = vrot.lane.b32.xlu0 %v501, 12
    %v1524 = vpop.permute.xlu0 %1523
    %1525 = vrot.lane.b32.xlu0 %v502, 12
    %v1526 = vpop.permute.xlu0 %1525
    %1527 = vrot.lane.b32.xlu0 %v503, 12
    %v1528 = vpop.permute.xlu0 %1527
    %1657 = vrot.lane.b32.xlu0 %v504, 16
    %v1658 = vpop.permute.xlu0 %1657
    %1659 = vrot.lane.b32.xlu0 %v505, 16
    %v1660 = vpop.permute.xlu0 %1659
    %1661 = vrot.lane.b32.xlu0 %v506, 16
    %v1662 = vpop.permute.xlu0 %1661
    %1663 = vrot.lane.b32.xlu0 %v507, 16
    %v1664 = vpop.permute.xlu0 %1663
    %1665 = vrot.lane.b32.xlu0 %v508, 16
    %v1666 = vpop.permute.xlu0 %1665
    %1667 = vrot.lane.b32.xlu0 %v509, 16
    %v1668 = vpop.permute.xlu0 %1667
    %1669 = vrot.lane.b32.xlu0 %v510, 16
    %v1670 = vpop.permute.xlu0 %1669
    %1671 = vrot.lane.b32.xlu0 %v511, 16
    %v1672 = vpop.permute.xlu0 %1671
    %1673 = vrot.lane.b32.xlu0 %v512, 16
    %v1674 = vpop.permute.xlu0 %1673
    %1675 = vrot.lane.b32.xlu0 %v513, 16
    %v1676 = vpop.permute.xlu0 %1675
    %1677 = vrot.lane.b32.xlu0 %v514, 16
    %v1678 = vpop.permute.xlu0 %1677
    %1679 = vrot.lane.b32.xlu0 %v515, 16
    %v1680 = vpop.permute.xlu0 %1679
    %1681 = vrot.lane.b32.xlu0 %v516, 16
    %v1682 = vpop.permute.xlu0 %1681
    %1683 = vrot.lane.b32.xlu0 %v517, 16
    %v1684 = vpop.permute.xlu0 %1683
    %1685 = vrot.lane.b32.xlu0 %v518, 16
    %v1686 = vpop.permute.xlu0 %1685
    %1687 = vrot.lane.b32.xlu0 %v519, 16
    %v1688 = vpop.permute.xlu0 %1687
    %1689 = vrot.lane.b32.xlu0 %v520, 16
    %v1690 = vpop.permute.xlu0 %1689
    %1691 = vrot.lane.b32.xlu0 %v521, 16
    %v1692 = vpop.permute.xlu0 %1691
    %1693 = vrot.lane.b32.xlu0 %v522, 16
    %v1694 = vpop.permute.xlu0 %1693
    %1695 = vrot.lane.b32.xlu0 %v523, 16
    %v1696 = vpop.permute.xlu0 %1695
    %1697 = vrot.lane.b32.xlu0 %v524, 16
    %v1698 = vpop.permute.xlu0 %1697
    %1699 = vrot.lane.b32.xlu0 %v525, 16
    %v1700 = vpop.permute.xlu0 %1699
    %1701 = vrot.lane.b32.xlu0 %v526, 16
    %v1702 = vpop.permute.xlu0 %1701
    %1703 = vrot.lane.b32.xlu0 %v527, 16
    %v1704 = vpop.permute.xlu0 %1703
    %1705 = vrot.lane.b32.xlu0 %v528, 16
    %v1706 = vpop.permute.xlu0 %1705
    %1707 = vrot.lane.b32.xlu0 %v529, 16
    %v1708 = vpop.permute.xlu0 %1707
    %1709 = vrot.lane.b32.xlu0 %v530, 16
    %v1710 = vpop.permute.xlu0 %1709
    %1711 = vrot.lane.b32.xlu0 %v531, 16
    %v1712 = vpop.permute.xlu0 %1711
    %1713 = vrot.lane.b32.xlu0 %v532, 16
    %v1714 = vpop.permute.xlu0 %1713
    %1715 = vrot.lane.b32.xlu0 %v533, 16
    %v1716 = vpop.permute.xlu0 %1715
    %1717 = vrot.lane.b32.xlu0 %v534, 16
    %v1718 = vpop.permute.xlu0 %1717
    %1719 = vrot.lane.b32.xlu0 %v535, 16
    %v1720 = vpop.permute.xlu0 %1719
    %1721 = vrot.lane.b32.xlu0 %v536, 16
    %v1722 = vpop.permute.xlu0 %1721
    %1723 = vrot.lane.b32.xlu0 %v537, 16
    %v1724 = vpop.permute.xlu0 %1723
    %1725 = vrot.lane.b32.xlu0 %v538, 16
    %v1726 = vpop.permute.xlu0 %1725
    %1727 = vrot.lane.b32.xlu0 %v539, 16
    %v1728 = vpop.permute.xlu0 %1727
    %1729 = vrot.lane.b32.xlu0 %v540, 16
    %v1730 = vpop.permute.xlu0 %1729
    %1731 = vrot.lane.b32.xlu0 %v541, 16
    %v1732 = vpop.permute.xlu0 %1731
    %1733 = vrot.lane.b32.xlu0 %v542, 16
    %v1734 = vpop.permute.xlu0 %1733
    %1735 = vrot.lane.b32.xlu0 %v543, 16
    %v1736 = vpop.permute.xlu0 %1735
    %1737 = vrot.lane.b32.xlu0 %v544, 16
    %v1738 = vpop.permute.xlu0 %1737
    %1739 = vrot.lane.b32.xlu0 %v545, 16
    %v1740 = vpop.permute.xlu0 %1739
    %1741 = vrot.lane.b32.xlu0 %v546, 16
    %v1742 = vpop.permute.xlu0 %1741
    %1743 = vrot.lane.b32.xlu0 %v547, 16
    %v1744 = vpop.permute.xlu0 %1743
    %1745 = vrot.lane.b32.xlu0 %v548, 16
    %v1746 = vpop.permute.xlu0 %1745
    %1747 = vrot.lane.b32.xlu0 %v549, 16
    %v1748 = vpop.permute.xlu0 %1747
    %1749 = vrot.lane.b32.xlu0 %v550, 16
    %v1750 = vpop.permute.xlu0 %1749
    %1751 = vrot.lane.b32.xlu0 %v551, 16
    %v1752 = vpop.permute.xlu0 %1751
    %1753 = vrot.lane.b32.xlu0 %v552, 16
    %v1754 = vpop.permute.xlu0 %1753
    %1755 = vrot.lane.b32.xlu0 %v553, 16
    %v1756 = vpop.permute.xlu0 %1755
    %1757 = vrot.lane.b32.xlu0 %v554, 16
    %v1758 = vpop.permute.xlu0 %1757
    %1759 = vrot.lane.b32.xlu0 %v555, 16
    %v1760 = vpop.permute.xlu0 %1759
    %1761 = vrot.lane.b32.xlu0 %v556, 16
    %v1762 = vpop.permute.xlu0 %1761
    %1763 = vrot.lane.b32.xlu0 %v557, 16
    %v1764 = vpop.permute.xlu0 %1763
    %1765 = vrot.lane.b32.xlu0 %v558, 16
    %v1766 = vpop.permute.xlu0 %1765
    %1767 = vrot.lane.b32.xlu0 %v559, 16
    %v1768 = vpop.permute.xlu0 %1767
    %1769 = vrot.lane.b32.xlu0 %v560, 16
    %v1770 = vpop.permute.xlu0 %1769
    %1771 = vrot.lane.b32.xlu0 %v561, 16
    %v1772 = vpop.permute.xlu0 %1771
    %1773 = vrot.lane.b32.xlu0 %v562, 16
    %v1774 = vpop.permute.xlu0 %1773
    %1775 = vrot.lane.b32.xlu0 %v563, 16
    %v1776 = vpop.permute.xlu0 %1775
    %1777 = vrot.lane.b32.xlu0 %v564, 16
    %v1778 = vpop.permute.xlu0 %1777
    %1779 = vrot.lane.b32.xlu0 %v565, 16
    %v1780 = vpop.permute.xlu0 %1779
    %1781 = vrot.lane.b32.xlu0 %v566, 16
    %v1782 = vpop.permute.xlu0 %1781
    %1783 = vrot.lane.b32.xlu0 %v567, 16
    %v1784 = vpop.permute.xlu0 %1783
    %1913 = vrot.lane.b32.xlu0 %v568, 20
    %v1914 = vpop.permute.xlu0 %1913
    %1915 = vrot.lane.b32.xlu0 %v569, 20
    %v1916 = vpop.permute.xlu0 %1915
    %1917 = vrot.lane.b32.xlu0 %v570, 20
    %v1918 = vpop.permute.xlu0 %1917
    %1919 = vrot.lane.b32.xlu0 %v571, 20
    %v1920 = vpop.permute.xlu0 %1919
    %1921 = vrot.lane.b32.xlu0 %v572, 20
    %v1922 = vpop.permute.xlu0 %1921
    %1923 = vrot.lane.b32.xlu0 %v573, 20
    %v1924 = vpop.permute.xlu0 %1923
    %1925 = vrot.lane.b32.xlu0 %v574, 20
    %v1926 = vpop.permute.xlu0 %1925
    %1927 = vrot.lane.b32.xlu0 %v575, 20
    %v1928 = vpop.permute.xlu0 %1927
    %1929 = vrot.lane.b32.xlu0 %v576, 20
    %v1930 = vpop.permute.xlu0 %1929
    %1931 = vrot.lane.b32.xlu0 %v577, 20
    %v1932 = vpop.permute.xlu0 %1931
    %1933 = vrot.lane.b32.xlu0 %v578, 20
    %v1934 = vpop.permute.xlu0 %1933
    %1935 = vrot.lane.b32.xlu0 %v579, 20
    %v1936 = vpop.permute.xlu0 %1935
    %1937 = vrot.lane.b32.xlu0 %v580, 20
    %v1938 = vpop.permute.xlu0 %1937
    %1939 = vrot.lane.b32.xlu0 %v581, 20
    %v1940 = vpop.permute.xlu0 %1939
    %1941 = vrot.lane.b32.xlu0 %v582, 20
    %v1942 = vpop.permute.xlu0 %1941
    %1943 = vrot.lane.b32.xlu0 %v583, 20
    %v1944 = vpop.permute.xlu0 %1943
    %1945 = vrot.lane.b32.xlu0 %v584, 20
    %v1946 = vpop.permute.xlu0 %1945
    %1947 = vrot.lane.b32.xlu0 %v585, 20
    %v1948 = vpop.permute.xlu0 %1947
    %1949 = vrot.lane.b32.xlu0 %v586, 20
    %v1950 = vpop.permute.xlu0 %1949
    %1951 = vrot.lane.b32.xlu0 %v587, 20
    %v1952 = vpop.permute.xlu0 %1951
    %1953 = vrot.lane.b32.xlu0 %v588, 20
    %v1954 = vpop.permute.xlu0 %1953
    %1955 = vrot.lane.b32.xlu0 %v589, 20
    %v1956 = vpop.permute.xlu0 %1955
    %1957 = vrot.lane.b32.xlu0 %v590, 20
    %v1958 = vpop.permute.xlu0 %1957
    %1959 = vrot.lane.b32.xlu0 %v591, 20
    %v1960 = vpop.permute.xlu0 %1959
    %1961 = vrot.lane.b32.xlu0 %v592, 20
    %v1962 = vpop.permute.xlu0 %1961
    %1963 = vrot.lane.b32.xlu0 %v593, 20
    %v1964 = vpop.permute.xlu0 %1963
    %1965 = vrot.lane.b32.xlu0 %v594, 20
    %v1966 = vpop.permute.xlu0 %1965
    %1967 = vrot.lane.b32.xlu0 %v595, 20
    %v1968 = vpop.permute.xlu0 %1967
    %1969 = vrot.lane.b32.xlu0 %v596, 20
    %v1970 = vpop.permute.xlu0 %1969
    %1971 = vrot.lane.b32.xlu0 %v597, 20
    %v1972 = vpop.permute.xlu0 %1971
    %1973 = vrot.lane.b32.xlu0 %v598, 20
    %v1974 = vpop.permute.xlu0 %1973
    %1975 = vrot.lane.b32.xlu0 %v599, 20
    %v1976 = vpop.permute.xlu0 %1975
    %1977 = vrot.lane.b32.xlu0 %v600, 20
    %v1978 = vpop.permute.xlu0 %1977
    %1979 = vrot.lane.b32.xlu0 %v601, 20
    %v1980 = vpop.permute.xlu0 %1979
    %1981 = vrot.lane.b32.xlu0 %v602, 20
    %v1982 = vpop.permute.xlu0 %1981
    %1983 = vrot.lane.b32.xlu0 %v603, 20
    %v1984 = vpop.permute.xlu0 %1983
    %1985 = vrot.lane.b32.xlu0 %v604, 20
    %v1986 = vpop.permute.xlu0 %1985
    %1987 = vrot.lane.b32.xlu0 %v605, 20
    %v1988 = vpop.permute.xlu0 %1987
    %1989 = vrot.lane.b32.xlu0 %v606, 20
    %v1990 = vpop.permute.xlu0 %1989
    %1991 = vrot.lane.b32.xlu0 %v607, 20
    %v1992 = vpop.permute.xlu0 %1991
    %1993 = vrot.lane.b32.xlu0 %v608, 20
    %v1994 = vpop.permute.xlu0 %1993
    %1995 = vrot.lane.b32.xlu0 %v609, 20
    %v1996 = vpop.permute.xlu0 %1995
    %1997 = vrot.lane.b32.xlu0 %v610, 20
    %v1998 = vpop.permute.xlu0 %1997
    %1999 = vrot.lane.b32.xlu0 %v611, 20
    %v2000 = vpop.permute.xlu0 %1999
    %2001 = vrot.lane.b32.xlu0 %v612, 20
    %v2002 = vpop.permute.xlu0 %2001
    %2003 = vrot.lane.b32.xlu0 %v613, 20
    %v2004 = vpop.permute.xlu0 %2003
    %2005 = vrot.lane.b32.xlu0 %v614, 20
    %v2006 = vpop.permute.xlu0 %2005
    %2007 = vrot.lane.b32.xlu0 %v615, 20
    %v2008 = vpop.permute.xlu0 %2007
    %2009 = vrot.lane.b32.xlu0 %v616, 20
    %v2010 = vpop.permute.xlu0 %2009
    %2011 = vrot.lane.b32.xlu0 %v617, 20
    %v2012 = vpop.permute.xlu0 %2011
    %2013 = vrot.lane.b32.xlu0 %v618, 20
    %v2014 = vpop.permute.xlu0 %2013
    %2015 = vrot.lane.b32.xlu0 %v619, 20
    %v2016 = vpop.permute.xlu0 %2015
    %2017 = vrot.lane.b32.xlu0 %v620, 20
    %v2018 = vpop.permute.xlu0 %2017
    %2019 = vrot.lane.b32.xlu0 %v621, 20
    %v2020 = vpop.permute.xlu0 %2019
    %2021 = vrot.lane.b32.xlu0 %v622, 20
    %v2022 = vpop.permute.xlu0 %2021
    %2023 = vrot.lane.b32.xlu0 %v623, 20
    %v2024 = vpop.permute.xlu0 %2023
    %2025 = vrot.lane.b32.xlu0 %v624, 20
    %v2026 = vpop.permute.xlu0 %2025
    %2027 = vrot.lane.b32.xlu0 %v625, 20
    %v2028 = vpop.permute.xlu0 %2027
    %2029 = vrot.lane.b32.xlu0 %v626, 20
    %v2030 = vpop.permute.xlu0 %2029
    %2031 = vrot.lane.b32.xlu0 %v627, 20
    %v2032 = vpop.permute.xlu0 %2031
    %2033 = vrot.lane.b32.xlu0 %v628, 20
    %v2034 = vpop.permute.xlu0 %2033
    %2035 = vrot.lane.b32.xlu0 %v629, 20
    %v2036 = vpop.permute.xlu0 %2035
    %2037 = vrot.lane.b32.xlu0 %v630, 20
    %v2038 = vpop.permute.xlu0 %2037
    %2039 = vrot.lane.b32.xlu0 %v631, 20
    %v2040 = vpop.permute.xlu0 %2039
    %2169 = vrot.lane.b32.xlu0 %v633, 24
    %v2170 = vpop.permute.xlu0 %2169
    %2171 = vrot.lane.b32.xlu0 %v634, 24
    %v2172 = vpop.permute.xlu0 %2171
    %2173 = vrot.lane.b32.xlu0 %v635, 24
    %v2174 = vpop.permute.xlu0 %2173
    %2175 = vrot.lane.b32.xlu0 %v636, 24
    %v2176 = vpop.permute.xlu0 %2175
    %2177 = vrot.lane.b32.xlu0 %v637, 24
    %v2178 = vpop.permute.xlu0 %2177
    %2179 = vrot.lane.b32.xlu0 %v638, 24
    %v2180 = vpop.permute.xlu0 %2179
    %2181 = vrot.lane.b32.xlu0 %v639, 24
    %v2182 = vpop.permute.xlu0 %2181
    %2183 = vrot.lane.b32.xlu0 %v640, 24
    %v2184 = vpop.permute.xlu0 %2183
    %2185 = vrot.lane.b32.xlu0 %v641, 24
    %v2186 = vpop.permute.xlu0 %2185
    %2187 = vrot.lane.b32.xlu0 %v642, 24
    %v2188 = vpop.permute.xlu0 %2187
    %2189 = vrot.lane.b32.xlu0 %v643, 24
    %v2190 = vpop.permute.xlu0 %2189
    %2191 = vrot.lane.b32.xlu0 %v644, 24
    %v2192 = vpop.permute.xlu0 %2191
    %2193 = vrot.lane.b32.xlu0 %v645, 24
    %v2194 = vpop.permute.xlu0 %2193
    %2195 = vrot.lane.b32.xlu0 %v646, 24
    %v2196 = vpop.permute.xlu0 %2195
    %2197 = vrot.lane.b32.xlu0 %v647, 24
    %v2198 = vpop.permute.xlu0 %2197
    %2199 = vrot.lane.b32.xlu0 %v648, 24
    %v2200 = vpop.permute.xlu0 %2199
    %2201 = vrot.lane.b32.xlu0 %v649, 24
    %v2202 = vpop.permute.xlu0 %2201
    %2203 = vrot.lane.b32.xlu0 %v650, 24
    %v2204 = vpop.permute.xlu0 %2203
    %2205 = vrot.lane.b32.xlu0 %v651, 24
    %v2206 = vpop.permute.xlu0 %2205
    %2207 = vrot.lane.b32.xlu0 %v652, 24
    %v2208 = vpop.permute.xlu0 %2207
    %2209 = vrot.lane.b32.xlu0 %v653, 24
    %v2210 = vpop.permute.xlu0 %2209
    %2211 = vrot.lane.b32.xlu0 %v654, 24
    %v2212 = vpop.permute.xlu0 %2211
    %2213 = vrot.lane.b32.xlu0 %v655, 24
    %v2214 = vpop.permute.xlu0 %2213
    %2215 = vrot.lane.b32.xlu0 %v656, 24
    %v2216 = vpop.permute.xlu0 %2215
    %2217 = vrot.lane.b32.xlu0 %v657, 24
    %v2218 = vpop.permute.xlu0 %2217
    %2219 = vrot.lane.b32.xlu0 %v658, 24
    %v2220 = vpop.permute.xlu0 %2219
    %2221 = vrot.lane.b32.xlu0 %v659, 24
    %v2222 = vpop.permute.xlu0 %2221
    %2223 = vrot.lane.b32.xlu0 %v660, 24
    %v2224 = vpop.permute.xlu0 %2223
    %2225 = vrot.lane.b32.xlu0 %v661, 24
    %v2226 = vpop.permute.xlu0 %2225
    %2227 = vrot.lane.b32.xlu0 %v662, 24
    %v2228 = vpop.permute.xlu0 %2227
    %2229 = vrot.lane.b32.xlu0 %v663, 24
    %v2230 = vpop.permute.xlu0 %2229
    %2231 = vrot.lane.b32.xlu0 %v664, 24
    %v2232 = vpop.permute.xlu0 %2231
    %2233 = vrot.lane.b32.xlu0 %v665, 24
    %v2234 = vpop.permute.xlu0 %2233
    %2235 = vrot.lane.b32.xlu0 %v666, 24
    %v2236 = vpop.permute.xlu0 %2235
    %2237 = vrot.lane.b32.xlu0 %v667, 24
    %v2238 = vpop.permute.xlu0 %2237
    %2239 = vrot.lane.b32.xlu0 %v668, 24
    %v2240 = vpop.permute.xlu0 %2239
    %2241 = vrot.lane.b32.xlu0 %v669, 24
    %v2242 = vpop.permute.xlu0 %2241
    %2243 = vrot.lane.b32.xlu0 %v670, 24
    %v2244 = vpop.permute.xlu0 %2243
    %2245 = vrot.lane.b32.xlu0 %v671, 24
    %v2246 = vpop.permute.xlu0 %2245
    %2247 = vrot.lane.b32.xlu0 %v672, 24
    %v2248 = vpop.permute.xlu0 %2247
    %2249 = vrot.lane.b32.xlu0 %v673, 24
    %v2250 = vpop.permute.xlu0 %2249
    %2251 = vrot.lane.b32.xlu0 %v674, 24
    %v2252 = vpop.permute.xlu0 %2251
    %2253 = vrot.lane.b32.xlu0 %v675, 24
    %v2254 = vpop.permute.xlu0 %2253
    %2255 = vrot.lane.b32.xlu0 %v676, 24
    %v2256 = vpop.permute.xlu0 %2255
    %2257 = vrot.lane.b32.xlu0 %v677, 24
    %v2258 = vpop.permute.xlu0 %2257
    %2259 = vrot.lane.b32.xlu0 %v678, 24
    %v2260 = vpop.permute.xlu0 %2259
    %2261 = vrot.lane.b32.xlu0 %v679, 24
    %v2262 = vpop.permute.xlu0 %2261
    %2263 = vrot.lane.b32.xlu0 %v680, 24
    %v2264 = vpop.permute.xlu0 %2263
    %2265 = vrot.lane.b32.xlu0 %v681, 24
    %v2266 = vpop.permute.xlu0 %2265
    %2267 = vrot.lane.b32.xlu0 %v682, 24
    %v2268 = vpop.permute.xlu0 %2267
    %2269 = vrot.lane.b32.xlu0 %v683, 24
    %v2270 = vpop.permute.xlu0 %2269
    %2271 = vrot.lane.b32.xlu0 %v684, 24
    %v2272 = vpop.permute.xlu0 %2271
    %2273 = vrot.lane.b32.xlu0 %v685, 24
    %v2274 = vpop.permute.xlu0 %2273
    %2275 = vrot.lane.b32.xlu0 %v686, 24
    %v2276 = vpop.permute.xlu0 %2275
    %2277 = vrot.lane.b32.xlu0 %v687, 24
    %v2278 = vpop.permute.xlu0 %2277
    %2279 = vrot.lane.b32.xlu0 %v688, 24
    %v2280 = vpop.permute.xlu0 %2279
    %2281 = vrot.lane.b32.xlu0 %v689, 24
    %v2282 = vpop.permute.xlu0 %2281
    %2283 = vrot.lane.b32.xlu0 %v690, 24
    %v2284 = vpop.permute.xlu0 %2283
    %2285 = vrot.lane.b32.xlu0 %v691, 24
    %v2286 = vpop.permute.xlu0 %2285
    %2287 = vrot.lane.b32.xlu0 %v692, 24
    %v2288 = vpop.permute.xlu0 %2287
    %2289 = vrot.lane.b32.xlu0 %v693, 24
    %v2290 = vpop.permute.xlu0 %2289
    %2291 = vrot.lane.b32.xlu0 %v694, 24
    %v2292 = vpop.permute.xlu0 %2291
    %2293 = vrot.lane.b32.xlu0 %v695, 24
    %v2294 = vpop.permute.xlu0 %2293
    %2295 = vrot.lane.b32.xlu0 %v696, 24
    %v2296 = vpop.permute.xlu0 %2295
    %2425 = vrot.lane.b32.xlu0 %v697, 28
    %v2426 = vpop.permute.xlu0 %2425
    %2427 = vrot.lane.b32.xlu0 %v698, 28
    %v2428 = vpop.permute.xlu0 %2427
    %2429 = vrot.lane.b32.xlu0 %v699, 28
    %v2430 = vpop.permute.xlu0 %2429
    %2431 = vrot.lane.b32.xlu0 %v700, 28
    %v2432 = vpop.permute.xlu0 %2431
    %2433 = vrot.lane.b32.xlu0 %v701, 28
    %v2434 = vpop.permute.xlu0 %2433
    %2435 = vrot.lane.b32.xlu0 %v702, 28
    %v2436 = vpop.permute.xlu0 %2435
    %2437 = vrot.lane.b32.xlu0 %v703, 28
    %v2438 = vpop.permute.xlu0 %2437
    %2439 = vrot.lane.b32.xlu0 %v704, 28
    %v2440 = vpop.permute.xlu0 %2439
    %2441 = vrot.lane.b32.xlu0 %v705, 28
    %v2442 = vpop.permute.xlu0 %2441
    %2443 = vrot.lane.b32.xlu0 %v706, 28
    %v2444 = vpop.permute.xlu0 %2443
    %2445 = vrot.lane.b32.xlu0 %v707, 28
    %v2446 = vpop.permute.xlu0 %2445
    %2447 = vrot.lane.b32.xlu0 %v708, 28
    %v2448 = vpop.permute.xlu0 %2447
    %2449 = vrot.lane.b32.xlu0 %v709, 28
    %v2450 = vpop.permute.xlu0 %2449
    %2451 = vrot.lane.b32.xlu0 %v710, 28
    %v2452 = vpop.permute.xlu0 %2451
    %2453 = vrot.lane.b32.xlu0 %v711, 28
    %v2454 = vpop.permute.xlu0 %2453
    %2455 = vrot.lane.b32.xlu0 %v712, 28
    %v2456 = vpop.permute.xlu0 %2455
    %2457 = vrot.lane.b32.xlu0 %v713, 28
    %v2458 = vpop.permute.xlu0 %2457
    %2459 = vrot.lane.b32.xlu0 %v714, 28
    %v2460 = vpop.permute.xlu0 %2459
    %2461 = vrot.lane.b32.xlu0 %v715, 28
    %v2462 = vpop.permute.xlu0 %2461
    %2463 = vrot.lane.b32.xlu0 %v716, 28
    %v2464 = vpop.permute.xlu0 %2463
    %2465 = vrot.lane.b32.xlu0 %v717, 28
    %v2466 = vpop.permute.xlu0 %2465
    %2467 = vrot.lane.b32.xlu0 %v718, 28
    %v2468 = vpop.permute.xlu0 %2467
    %2469 = vrot.lane.b32.xlu0 %v719, 28
    %v2470 = vpop.permute.xlu0 %2469
    %2471 = vrot.lane.b32.xlu0 %v720, 28
    %v2472 = vpop.permute.xlu0 %2471
    %2473 = vrot.lane.b32.xlu0 %v721, 28
    %v2474 = vpop.permute.xlu0 %2473
    %2475 = vrot.lane.b32.xlu0 %v722, 28
    %v2476 = vpop.permute.xlu0 %2475
    %2477 = vrot.lane.b32.xlu0 %v723, 28
    %v2478 = vpop.permute.xlu0 %2477
    %2479 = vrot.lane.b32.xlu0 %v724, 28
    %v2480 = vpop.permute.xlu0 %2479
    %2481 = vrot.lane.b32.xlu0 %v725, 28
    %v2482 = vpop.permute.xlu0 %2481
    %2483 = vrot.lane.b32.xlu0 %v726, 28
    %v2484 = vpop.permute.xlu0 %2483
    %2485 = vrot.lane.b32.xlu0 %v727, 28
    %v2486 = vpop.permute.xlu0 %2485
    %2487 = vrot.lane.b32.xlu0 %v728, 28
    %v2488 = vpop.permute.xlu0 %2487
    %2489 = vrot.lane.b32.xlu0 %v729, 28
    %v2490 = vpop.permute.xlu0 %2489
    %2491 = vrot.lane.b32.xlu0 %v730, 28
    %v2492 = vpop.permute.xlu0 %2491
    %2493 = vrot.lane.b32.xlu0 %v731, 28
    %v2494 = vpop.permute.xlu0 %2493
    %2495 = vrot.lane.b32.xlu0 %v732, 28
    %v2496 = vpop.permute.xlu0 %2495
    %2497 = vrot.lane.b32.xlu0 %v733, 28
    %v2498 = vpop.permute.xlu0 %2497
    %2499 = vrot.lane.b32.xlu0 %v734, 28
    %v2500 = vpop.permute.xlu0 %2499
    %2501 = vrot.lane.b32.xlu0 %v735, 28
    %v2502 = vpop.permute.xlu0 %2501
    %2503 = vrot.lane.b32.xlu0 %v736, 28
    %v2504 = vpop.permute.xlu0 %2503
    %2505 = vrot.lane.b32.xlu0 %v737, 28
    %v2506 = vpop.permute.xlu0 %2505
    %2507 = vrot.lane.b32.xlu0 %v738, 28
    %v2508 = vpop.permute.xlu0 %2507
    %2509 = vrot.lane.b32.xlu0 %v739, 28
    %v2510 = vpop.permute.xlu0 %2509
    %2511 = vrot.lane.b32.xlu0 %v740, 28
    %v2512 = vpop.permute.xlu0 %2511
    %2513 = vrot.lane.b32.xlu0 %v741, 28
    %v2514 = vpop.permute.xlu0 %2513
    %2515 = vrot.lane.b32.xlu0 %v742, 28
    %v2516 = vpop.permute.xlu0 %2515
    %2517 = vrot.lane.b32.xlu0 %v743, 28
    %v2518 = vpop.permute.xlu0 %2517
    %2519 = vrot.lane.b32.xlu0 %v744, 28
    %v2520 = vpop.permute.xlu0 %2519
    %2521 = vrot.lane.b32.xlu0 %v745, 28
    %v2522 = vpop.permute.xlu0 %2521
    %2523 = vrot.lane.b32.xlu0 %v746, 28
    %v2524 = vpop.permute.xlu0 %2523
    %2525 = vrot.lane.b32.xlu0 %v747, 28
    %v2526 = vpop.permute.xlu0 %2525
    %2527 = vrot.lane.b32.xlu0 %v748, 28
    %v2528 = vpop.permute.xlu0 %2527
    %2529 = vrot.lane.b32.xlu0 %v749, 28
    %v2530 = vpop.permute.xlu0 %2529
    %2531 = vrot.lane.b32.xlu0 %v750, 28
    %v2532 = vpop.permute.xlu0 %2531
    %2533 = vrot.lane.b32.xlu0 %v751, 28
    %v2534 = vpop.permute.xlu0 %2533
    %2535 = vrot.lane.b32.xlu0 %v752, 28
    %v2536 = vpop.permute.xlu0 %2535
    %2537 = vrot.lane.b32.xlu0 %v753, 28
    %v2538 = vpop.permute.xlu0 %2537
    %2539 = vrot.lane.b32.xlu0 %v754, 28
    %v2540 = vpop.permute.xlu0 %2539
    %2541 = vrot.lane.b32.xlu0 %v755, 28
    %v2542 = vpop.permute.xlu0 %2541
    %2543 = vrot.lane.b32.xlu0 %v756, 28
    %v2544 = vpop.permute.xlu0 %2543
    %2545 = vrot.lane.b32.xlu0 %v757, 28
    %v2546 = vpop.permute.xlu0 %2545
    %2547 = vrot.lane.b32.xlu0 %v758, 28
    %v2548 = vpop.permute.xlu0 %2547
    %2549 = vrot.lane.b32.xlu0 %v759, 28
    %v2550 = vpop.permute.xlu0 %2549
    %2551 = vrot.lane.b32.xlu0 %v760, 28
    %v2552 = vpop.permute.xlu0 %2551
    %2681 = vrot.lane.b32.xlu0 %v761, 32
    %v2682 = vpop.permute.xlu0 %2681
    %2683 = vrot.lane.b32.xlu0 %v762, 32
    %v2684 = vpop.permute.xlu0 %2683
    %2685 = vrot.lane.b32.xlu0 %v763, 32
    %v2686 = vpop.permute.xlu0 %2685
    %2687 = vrot.lane.b32.xlu0 %v764, 32
    %v2688 = vpop.permute.xlu0 %2687
    %2689 = vrot.lane.b32.xlu0 %v765, 32
    %v2690 = vpop.permute.xlu0 %2689
    %2691 = vrot.lane.b32.xlu0 %v766, 32
    %v2692 = vpop.permute.xlu0 %2691
    %2693 = vrot.lane.b32.xlu0 %v767, 32
    %v2694 = vpop.permute.xlu0 %2693
    %2695 = vrot.lane.b32.xlu0 %v768, 32
    %v2696 = vpop.permute.xlu0 %2695
    %2697 = vrot.lane.b32.xlu0 %v769, 32
    %v2698 = vpop.permute.xlu0 %2697
    %2699 = vrot.lane.b32.xlu0 %v770, 32
    %v2700 = vpop.permute.xlu0 %2699
    %2701 = vrot.lane.b32.xlu0 %v771, 32
    %v2702 = vpop.permute.xlu0 %2701
    %2703 = vrot.lane.b32.xlu0 %v772, 32
    %v2704 = vpop.permute.xlu0 %2703
    %2705 = vrot.lane.b32.xlu0 %v773, 32
    %v2706 = vpop.permute.xlu0 %2705
    %2707 = vrot.lane.b32.xlu0 %v774, 32
    %v2708 = vpop.permute.xlu0 %2707
    %2709 = vrot.lane.b32.xlu0 %v775, 32
    %v2710 = vpop.permute.xlu0 %2709
    %2711 = vrot.lane.b32.xlu0 %v776, 32
    %v2712 = vpop.permute.xlu0 %2711
    %2713 = vrot.lane.b32.xlu0 %v777, 32
    %v2714 = vpop.permute.xlu0 %2713
    %2715 = vrot.lane.b32.xlu0 %v778, 32
    %v2716 = vpop.permute.xlu0 %2715
    %2717 = vrot.lane.b32.xlu0 %v779, 32
    %v2718 = vpop.permute.xlu0 %2717
    %2719 = vrot.lane.b32.xlu0 %v780, 32
    %v2720 = vpop.permute.xlu0 %2719
    %2721 = vrot.lane.b32.xlu0 %v781, 32
    %v2722 = vpop.permute.xlu0 %2721
    %2723 = vrot.lane.b32.xlu0 %v782, 32
    %v2724 = vpop.permute.xlu0 %2723
    %2725 = vrot.lane.b32.xlu0 %v783, 32
    %v2726 = vpop.permute.xlu0 %2725
    %2727 = vrot.lane.b32.xlu0 %v784, 32
    %v2728 = vpop.permute.xlu0 %2727
    %2729 = vrot.lane.b32.xlu0 %v785, 32
    %v2730 = vpop.permute.xlu0 %2729
    %2731 = vrot.lane.b32.xlu0 %v786, 32
    %v2732 = vpop.permute.xlu0 %2731
    %2733 = vrot.lane.b32.xlu0 %v787, 32
    %v2734 = vpop.permute.xlu0 %2733
    %2735 = vrot.lane.b32.xlu0 %v788, 32
    %v2736 = vpop.permute.xlu0 %2735
    %2737 = vrot.lane.b32.xlu0 %v789, 32
    %v2738 = vpop.permute.xlu0 %2737
    %2739 = vrot.lane.b32.xlu0 %v790, 32
    %v2740 = vpop.permute.xlu0 %2739
    %2741 = vrot.lane.b32.xlu0 %v791, 32
    %v2742 = vpop.permute.xlu0 %2741
    %2743 = vrot.lane.b32.xlu0 %v792, 32
    %v2744 = vpop.permute.xlu0 %2743
    %2745 = vrot.lane.b32.xlu0 %v793, 32
    %v2746 = vpop.permute.xlu0 %2745
    %2747 = vrot.lane.b32.xlu0 %v794, 32
    %v2748 = vpop.permute.xlu0 %2747
    %2749 = vrot.lane.b32.xlu0 %v795, 32
    %v2750 = vpop.permute.xlu0 %2749
    %2751 = vrot.lane.b32.xlu0 %v796, 32
    %v2752 = vpop.permute.xlu0 %2751
    %2753 = vrot.lane.b32.xlu0 %v797, 32
    %v2754 = vpop.permute.xlu0 %2753
    %2755 = vrot.lane.b32.xlu0 %v798, 32
    %v2756 = vpop.permute.xlu0 %2755
    %2757 = vrot.lane.b32.xlu0 %v799, 32
    %v2758 = vpop.permute.xlu0 %2757
    %2759 = vrot.lane.b32.xlu0 %v800, 32
    %v2760 = vpop.permute.xlu0 %2759
    %2761 = vrot.lane.b32.xlu0 %v801, 32
    %v2762 = vpop.permute.xlu0 %2761
    %2763 = vrot.lane.b32.xlu0 %v802, 32
    %v2764 = vpop.permute.xlu0 %2763
    %2765 = vrot.lane.b32.xlu0 %v803, 32
    %v2766 = vpop.permute.xlu0 %2765
    %2767 = vrot.lane.b32.xlu0 %v804, 32
    %v2768 = vpop.permute.xlu0 %2767
    %2769 = vrot.lane.b32.xlu0 %v805, 32
    %v2770 = vpop.permute.xlu0 %2769
    %2771 = vrot.lane.b32.xlu0 %v806, 32
    %v2772 = vpop.permute.xlu0 %2771
    %2773 = vrot.lane.b32.xlu0 %v807, 32
    %v2774 = vpop.permute.xlu0 %2773
    %2775 = vrot.lane.b32.xlu0 %v808, 32
    %v2776 = vpop.permute.xlu0 %2775
    %2777 = vrot.lane.b32.xlu0 %v809, 32
    %v2778 = vpop.permute.xlu0 %2777
    %2779 = vrot.lane.b32.xlu0 %v810, 32
    %v2780 = vpop.permute.xlu0 %2779
    %2781 = vrot.lane.b32.xlu0 %v811, 32
    %v2782 = vpop.permute.xlu0 %2781
    %2783 = vrot.lane.b32.xlu0 %v812, 32
    %v2784 = vpop.permute.xlu0 %2783
    %2785 = vrot.lane.b32.xlu0 %v813, 32
    %v2786 = vpop.permute.xlu0 %2785
    %2787 = vrot.lane.b32.xlu0 %v814, 32
    %v2788 = vpop.permute.xlu0 %2787
    %2789 = vrot.lane.b32.xlu0 %v815, 32
    %v2790 = vpop.permute.xlu0 %2789
    %2791 = vrot.lane.b32.xlu0 %v816, 32
    %v2792 = vpop.permute.xlu0 %2791
    %2793 = vrot.lane.b32.xlu0 %v817, 32
    %v2794 = vpop.permute.xlu0 %2793
    %2795 = vrot.lane.b32.xlu0 %v818, 32
    %v2796 = vpop.permute.xlu0 %2795
    %2797 = vrot.lane.b32.xlu0 %v819, 32
    %v2798 = vpop.permute.xlu0 %2797
    %2799 = vrot.lane.b32.xlu0 %v820, 32
    %v2800 = vpop.permute.xlu0 %2799
    %2801 = vrot.lane.b32.xlu0 %v821, 32
    %v2802 = vpop.permute.xlu0 %2801
    %2803 = vrot.lane.b32.xlu0 %v822, 32
    %v2804 = vpop.permute.xlu0 %2803
    %2805 = vrot.lane.b32.xlu0 %v823, 32
    %v2806 = vpop.permute.xlu0 %2805
    %2807 = vrot.lane.b32.xlu0 %v824, 32
    %v2808 = vpop.permute.xlu0 %2807
    %v2873 = vsel %vm103, %v248, %v890
    %v2874 = vsel %vm103, %v249, %v892
    %v2875 = vsel %vm103, %v250, %v894
    %v2876 = vsel %vm103, %v251, %v896
    %v2877 = vsel %vm103, %v252, %v898
    %v2878 = vsel %vm103, %v253, %v900
    %v2879 = vsel %vm103, %v254, %v902
    %v2880 = vsel %vm103, %v255, %v904
    %v2881 = vsel %vm103, %v256, %v906
    %v2882 = vsel %vm103, %v257, %v908
    %v2883 = vsel %vm103, %v258, %v910
    %v2884 = vsel %vm103, %v259, %v912
    %v2885 = vsel %vm103, %v260, %v914
    %v2886 = vsel %vm103, %v261, %v916
    %v2887 = vsel %vm103, %v262, %v918
    %v2888 = vsel %vm103, %v263, %v920
    %v2889 = vsel %vm103, %v264, %v922
    %v2890 = vsel %vm103, %v265, %v924
    %v2891 = vsel %vm103, %v266, %v926
    %v2892 = vsel %vm103, %v267, %v928
    %v2893 = vsel %vm103, %v268, %v930
    %v2894 = vsel %vm103, %v269, %v932
    %v2895 = vsel %vm103, %v270, %v934
    %v2896 = vsel %vm103, %v271, %v936
    %v2897 = vsel %vm103, %v272, %v938
    %v2898 = vsel %vm103, %v273, %v940
    %v2899 = vsel %vm103, %v274, %v942
    %v2900 = vsel %vm103, %v275, %v944
    %v2901 = vsel %vm103, %v276, %v946
    %v2902 = vsel %vm103, %v277, %v948
    %v2903 = vsel %vm103, %v278, %v950
    %v2904 = vsel %vm103, %v279, %v952
    %v2905 = vsel %vm103, %v280, %v954
    %v2906 = vsel %vm103, %v281, %v956
    %v2907 = vsel %vm103, %v282, %v958
    %v2908 = vsel %vm103, %v283, %v960
    %v2909 = vsel %vm103, %v284, %v962
    %v2910 = vsel %vm103, %v285, %v964
    %v2911 = vsel %vm103, %v286, %v966
    %v2912 = vsel %vm103, %v287, %v968
    %v2913 = vsel %vm103, %v288, %v970
    %v2914 = vsel %vm103, %v289, %v972
    %v2915 = vsel %vm103, %v290, %v974
    %v2916 = vsel %vm103, %v291, %v976
    %v2917 = vsel %vm103, %v292, %v978
    %v2918 = vsel %vm103, %v293, %v980
    %v2919 = vsel %vm103, %v294, %v982
    %v2920 = vsel %vm103, %v295, %v984
    %v2921 = vsel %vm103, %v296, %v986
    %v2922 = vsel %vm103, %v297, %v988
    %v2923 = vsel %vm103, %v298, %v990
    %v2924 = vsel %vm103, %v299, %v992
    %v2925 = vsel %vm103, %v300, %v994
    %v2926 = vsel %vm103, %v301, %v996
    %v2927 = vsel %vm103, %v302, %v998
    %v2928 = vsel %vm103, %v303, %v1000
    %v2929 = vsel %vm103, %v304, %v1002
    %v2930 = vsel %vm103, %v305, %v1004
    %v2931 = vsel %vm103, %v306, %v1006
    %v2932 = vsel %vm103, %v307, %v1008
    %v2933 = vsel %vm103, %v308, %v1010
    %v2934 = vsel %vm103, %v309, %v1012
    %v2935 = vsel %vm103, %v310, %v1014
    %v2936 = vsel %vm103, %v311, %v1016
    %vm2937 = vcmask 64512
    %v2938 = vsel %vm2937, %v2873, %v1146
    %v2939 = vsel %vm2937, %v2874, %v1148
    %v2940 = vsel %vm2937, %v2875, %v1150
    %v2941 = vsel %vm2937, %v2876, %v1152
    %v2942 = vsel %vm2937, %v2877, %v1154
    %v2943 = vsel %vm2937, %v2878, %v1156
    %v2944 = vsel %vm2937, %v2879, %v1158
    %v2945 = vsel %vm2937, %v2880, %v1160
    %v2946 = vsel %vm2937, %v2881, %v1162
    %v2947 = vsel %vm2937, %v2882, %v1164
    %v2948 = vsel %vm2937, %v2883, %v1166
    %v2949 = vsel %vm2937, %v2884, %v1168
    %v2950 = vsel %vm2937, %v2885, %v1170
    %v2951 = vsel %vm2937, %v2886, %v1172
    %v2952 = vsel %vm2937, %v2887, %v1174
    %v2953 = vsel %vm2937, %v2888, %v1176
    %v2954 = vsel %vm2937, %v2889, %v1178
    %v2955 = vsel %vm2937, %v2890, %v1180
    %v2956 = vsel %vm2937, %v2891, %v1182
    %v2957 = vsel %vm2937, %v2892, %v1184
    %v2958 = vsel %vm2937, %v2893, %v1186
    %v2959 = vsel %vm2937, %v2894, %v1188
    %v2960 = vsel %vm2937, %v2895, %v1190
    %v2961 = vsel %vm2937, %v2896, %v1192
    %v2962 = vsel %vm2937, %v2897, %v1194
    %v2963 = vsel %vm2937, %v2898, %v1196
    %v2964 = vsel %vm2937, %v2899, %v1198
    %v2965 = vsel %vm2937, %v2900, %v1200
    %v2966 = vsel %vm2937, %v2901, %v1202
    %v2967 = vsel %vm2937, %v2902, %v1204
    %v2968 = vsel %vm2937, %v2903, %v1206
    %v2969 = vsel %vm2937, %v2904, %v1208
    %v2970 = vsel %vm2937, %v2905, %v1210
    %v2971 = vsel %vm2937, %v2906, %v1212
    %v2972 = vsel %vm2937, %v2907, %v1214
    %v2973 = vsel %vm2937, %v2908, %v1216
    %v2974 = vsel %vm2937, %v2909, %v1218
    %v2975 = vsel %vm2937, %v2910, %v1220
    %v2976 = vsel %vm2937, %v2911, %v1222
    %v2977 = vsel %vm2937, %v2912, %v1224
    %v2978 = vsel %vm2937, %v2913, %v1226
    %v2979 = vsel %vm2937, %v2914, %v1228
    %v2980 = vsel %vm2937, %v2915, %v1230
    %v2981 = vsel %vm2937, %v2916, %v1232
    %v2982 = vsel %vm2937, %v2917, %v1234
    %v2983 = vsel %vm2937, %v2918, %v1236
    %v2984 = vsel %vm2937, %v2919, %v1238
    %v2985 = vsel %vm2937, %v2920, %v1240
    %v2986 = vsel %vm2937, %v2921, %v1242
    %v2987 = vsel %vm2937, %v2922, %v1244
    %v2988 = vsel %vm2937, %v2923, %v1246
    %v2989 = vsel %vm2937, %v2924, %v1248
    %v2990 = vsel %vm2937, %v2925, %v1250
    %v2991 = vsel %vm2937, %v2926, %v1252
    %v2992 = vsel %vm2937, %v2927, %v1254
    %v2993 = vsel %vm2937, %v2928, %v1256
    %v2994 = vsel %vm2937, %v2929, %v1258
    %v2995 = vsel %vm2937, %v2930, %v1260
    %v2996 = vsel %vm2937, %v2931, %v1262
    %v2997 = vsel %vm2937, %v2932, %v1264
    %v2998 = vsel %vm2937, %v2933, %v1266
    %v2999 = vsel %vm2937, %v2934, %v1268
    %v3000 = vsel %vm2937, %v2935, %v1270
    %v3001 = vsel %vm2937, %v2936, %v1272
    %vm3002 = vcmask 97280
    %v3003 = vsel %vm3002, %v2938, %v1402
    %v3004 = vsel %vm3002, %v2939, %v1404
    %v3005 = vsel %vm3002, %v2940, %v1406
    %v3006 = vsel %vm3002, %v2941, %v1408
    %v3007 = vsel %vm3002, %v2942, %v1410
    %v3008 = vsel %vm3002, %v2943, %v1412
    %v3009 = vsel %vm3002, %v2944, %v1414
    %v3010 = vsel %vm3002, %v2945, %v1416
    %v3011 = vsel %vm3002, %v2946, %v1418
    %v3012 = vsel %vm3002, %v2947, %v1420
    %v3013 = vsel %vm3002, %v2948, %v1422
    %v3014 = vsel %vm3002, %v2949, %v1424
    %v3015 = vsel %vm3002, %v2950, %v1426
    %v3016 = vsel %vm3002, %v2951, %v1428
    %v3017 = vsel %vm3002, %v2952, %v1430
    %v3018 = vsel %vm3002, %v2953, %v1432
    %v3019 = vsel %vm3002, %v2954, %v1434
    %v3020 = vsel %vm3002, %v2955, %v1436
    %v3021 = vsel %vm3002, %v2956, %v1438
    %v3022 = vsel %vm3002, %v2957, %v1440
    %v3023 = vsel %vm3002, %v2958, %v1442
    %v3024 = vsel %vm3002, %v2959, %v1444
    %v3025 = vsel %vm3002, %v2960, %v1446
    %v3026 = vsel %vm3002, %v2961, %v1448
    %v3027 = vsel %vm3002, %v2962, %v1450
    %v3028 = vsel %vm3002, %v2963, %v1452
    %v3029 = vsel %vm3002, %v2964, %v1454
    %v3030 = vsel %vm3002, %v2965, %v1456
    %v3031 = vsel %vm3002, %v2966, %v1458
    %v3032 = vsel %vm3002, %v2967, %v1460
    %v3033 = vsel %vm3002, %v2968, %v1462
    %v3034 = vsel %vm3002, %v2969, %v1464
    %v3035 = vsel %vm3002, %v2970, %v1466
    %v3036 = vsel %vm3002, %v2971, %v1468
    %v3037 = vsel %vm3002, %v2972, %v1470
    %v3038 = vsel %vm3002, %v2973, %v1472
    %v3039 = vsel %vm3002, %v2974, %v1474
    %v3040 = vsel %vm3002, %v2975, %v1476
    %v3041 = vsel %vm3002, %v2976, %v1478
    %v3042 = vsel %vm3002, %v2977, %v1480
    %v3043 = vsel %vm3002, %v2978, %v1482
    %v3044 = vsel %vm3002, %v2979, %v1484
    %v3045 = vsel %vm3002, %v2980, %v1486
    %v3046 = vsel %vm3002, %v2981, %v1488
    %v3047 = vsel %vm3002, %v2982, %v1490
    %v3048 = vsel %vm3002, %v2983, %v1492
    %v3049 = vsel %vm3002, %v2984, %v1494
    %v3050 = vsel %vm3002, %v2985, %v1496
    %v3051 = vsel %vm3002, %v2986, %v1498
    %v3052 = vsel %vm3002, %v2987, %v1500
    %v3053 = vsel %vm3002, %v2988, %v1502
    %v3054 = vsel %vm3002, %v2989, %v1504
    %v3055 = vsel %vm3002, %v2990, %v1506
    %v3056 = vsel %vm3002, %v2991, %v1508
    %v3057 = vsel %vm3002, %v2992, %v1510
    %v3058 = vsel %vm3002, %v2993, %v1512
    %v3059 = vsel %vm3002, %v2994, %v1514
    %v3060 = vsel %vm3002, %v2995, %v1516
    %v3061 = vsel %vm3002, %v2996, %v1518
    %v3062 = vsel %vm3002, %v2997, %v1520
    %v3063 = vsel %vm3002, %v2998, %v1522
    %v3064 = vsel %vm3002, %v2999, %v1524
    %v3065 = vsel %vm3002, %v3000, %v1526
    %v3066 = vsel %vm3002, %v3001, %v1528
    %vm3067 = vcmask 130048
    %v3068 = vsel %vm3067, %v3003, %v1658
    %v3069 = vsel %vm3067, %v3004, %v1660
    %v3070 = vsel %vm3067, %v3005, %v1662
    %v3071 = vsel %vm3067, %v3006, %v1664
    %v3072 = vsel %vm3067, %v3007, %v1666
    %v3073 = vsel %vm3067, %v3008, %v1668
    %v3074 = vsel %vm3067, %v3009, %v1670
    %v3075 = vsel %vm3067, %v3010, %v1672
    %v3076 = vsel %vm3067, %v3011, %v1674
    %v3077 = vsel %vm3067, %v3012, %v1676
    %v3078 = vsel %vm3067, %v3013, %v1678
    %v3079 = vsel %vm3067, %v3014, %v1680
    %v3080 = vsel %vm3067, %v3015, %v1682
    %v3081 = vsel %vm3067, %v3016, %v1684
    %v3082 = vsel %vm3067, %v3017, %v1686
    %v3083 = vsel %vm3067, %v3018, %v1688
    %v3084 = vsel %vm3067, %v3019, %v1690
    %v3085 = vsel %vm3067, %v3020, %v1692
    %v3086 = vsel %vm3067, %v3021, %v1694
    %v3087 = vsel %vm3067, %v3022, %v1696
    %v3088 = vsel %vm3067, %v3023, %v1698
    %v3089 = vsel %vm3067, %v3024, %v1700
    %v3090 = vsel %vm3067, %v3025, %v1702
    %v3091 = vsel %vm3067, %v3026, %v1704
    %v3092 = vsel %vm3067, %v3027, %v1706
    %v3093 = vsel %vm3067, %v3028, %v1708
    %v3094 = vsel %vm3067, %v3029, %v1710
    %v3095 = vsel %vm3067, %v3030, %v1712
    %v3096 = vsel %vm3067, %v3031, %v1714
    %v3097 = vsel %vm3067, %v3032, %v1716
    %v3098 = vsel %vm3067, %v3033, %v1718
    %v3099 = vsel %vm3067, %v3034, %v1720
    %v3100 = vsel %vm3067, %v3035, %v1722
    %v3101 = vsel %vm3067, %v3036, %v1724
    %v3102 = vsel %vm3067, %v3037, %v1726
    %v3103 = vsel %vm3067, %v3038, %v1728
    %v3104 = vsel %vm3067, %v3039, %v1730
    %v3105 = vsel %vm3067, %v3040, %v1732
    %v3106 = vsel %vm3067, %v3041, %v1734
    %v3107 = vsel %vm3067, %v3042, %v1736
    %v3108 = vsel %vm3067, %v3043, %v1738
    %v3109 = vsel %vm3067, %v3044, %v1740
    %v3110 = vsel %vm3067, %v3045, %v1742
    %v3111 = vsel %vm3067, %v3046, %v1744
    %v3112 = vsel %vm3067, %v3047, %v1746
    %v3113 = vsel %vm3067, %v3048, %v1748
    %v3114 = vsel %vm3067, %v3049, %v1750
    %v3115 = vsel %vm3067, %v3050, %v1752
    %v3116 = vsel %vm3067, %v3051, %v1754
    %v3117 = vsel %vm3067, %v3052, %v1756
    %v3118 = vsel %vm3067, %v3053, %v1758
    %v3119 = vsel %vm3067, %v3054, %v1760
    %v3120 = vsel %vm3067, %v3055, %v1762
    %v3121 = vsel %vm3067, %v3056, %v1764
    %v3122 = vsel %vm3067, %v3057, %v1766
    %v3123 = vsel %vm3067, %v3058, %v1768
    %v3124 = vsel %vm3067, %v3059, %v1770
    %v3125 = vsel %vm3067, %v3060, %v1772
    %v3126 = vsel %vm3067, %v3061, %v1774
    %v3127 = vsel %vm3067, %v3062, %v1776
    %v3128 = vsel %vm3067, %v3063, %v1778
    %v3129 = vsel %vm3067, %v3064, %v1780
    %v3130 = vsel %vm3067, %v3065, %v1782
    %v3131 = vsel %vm3067, %v3066, %v1784
    %vm3132 = vcmask 162816
    %v3133 = vsel %vm3132, %v3068, %v1914
    %v3134 = vsel %vm3132, %v3069, %v1916
    %v3135 = vsel %vm3132, %v3070, %v1918
    %v3136 = vsel %vm3132, %v3071, %v1920
    %v3137 = vsel %vm3132, %v3072, %v1922
    %v3138 = vsel %vm3132, %v3073, %v1924
    %v3139 = vsel %vm3132, %v3074, %v1926
    %v3140 = vsel %vm3132, %v3075, %v1928
    %v3141 = vsel %vm3132, %v3076, %v1930
    %v3142 = vsel %vm3132, %v3077, %v1932
    %v3143 = vsel %vm3132, %v3078, %v1934
    %v3144 = vsel %vm3132, %v3079, %v1936
    %v3145 = vsel %vm3132, %v3080, %v1938
    %v3146 = vsel %vm3132, %v3081, %v1940
    %v3147 = vsel %vm3132, %v3082, %v1942
    %v3148 = vsel %vm3132, %v3083, %v1944
    %v3149 = vsel %vm3132, %v3084, %v1946
    %v3150 = vsel %vm3132, %v3085, %v1948
    %v3151 = vsel %vm3132, %v3086, %v1950
    %v3152 = vsel %vm3132, %v3087, %v1952
    %v3153 = vsel %vm3132, %v3088, %v1954
    %v3154 = vsel %vm3132, %v3089, %v1956
    %v3155 = vsel %vm3132, %v3090, %v1958
    %v3156 = vsel %vm3132, %v3091, %v1960
    %v3157 = vsel %vm3132, %v3092, %v1962
    %v3158 = vsel %vm3132, %v3093, %v1964
    %v3159 = vsel %vm3132, %v3094, %v1966
    %v3160 = vsel %vm3132, %v3095, %v1968
    %v3161 = vsel %vm3132, %v3096, %v1970
    %v3162 = vsel %vm3132, %v3097, %v1972
    %v3163 = vsel %vm3132, %v3098, %v1974
    %v3164 = vsel %vm3132, %v3099, %v1976
    %v3165 = vsel %vm3132, %v3100, %v1978
    %v3166 = vsel %vm3132, %v3101, %v1980
    %v3167 = vsel %vm3132, %v3102, %v1982
    %v3168 = vsel %vm3132, %v3103, %v1984
    %v3169 = vsel %vm3132, %v3104, %v1986
    %v3170 = vsel %vm3132, %v3105, %v1988
    %v3171 = vsel %vm3132, %v3106, %v1990
    %v3172 = vsel %vm3132, %v3107, %v1992
    %v3173 = vsel %vm3132, %v3108, %v1994
    %v3174 = vsel %vm3132, %v3109, %v1996
    %v3175 = vsel %vm3132, %v3110, %v1998
    %v3176 = vsel %vm3132, %v3111, %v2000
    %v3177 = vsel %vm3132, %v3112, %v2002
    %v3178 = vsel %vm3132, %v3113, %v2004
    %v3179 = vsel %vm3132, %v3114, %v2006
    %v3180 = vsel %vm3132, %v3115, %v2008
    %v3181 = vsel %vm3132, %v3116, %v2010
    %v3182 = vsel %vm3132, %v3117, %v2012
    %v3183 = vsel %vm3132, %v3118, %v2014
    %v3184 = vsel %vm3132, %v3119, %v2016
    %v3185 = vsel %vm3132, %v3120, %v2018
    %v3186 = vsel %vm3132, %v3121, %v2020
    %v3187 = vsel %vm3132, %v3122, %v2022
    %v3188 = vsel %vm3132, %v3123, %v2024
    %v3189 = vsel %vm3132, %v3124, %v2026
    %v3190 = vsel %vm3132, %v3125, %v2028
    %v3191 = vsel %vm3132, %v3126, %v2030
    %v3192 = vsel %vm3132, %v3127, %v2032
    %v3193 = vsel %vm3132, %v3128, %v2034
    %v3194 = vsel %vm3132, %v3129, %v2036
    %v3195 = vsel %vm3132, %v3130, %v2038
    %v3196 = vsel %vm3132, %v3131, %v2040
    %vm3197 = vcmask 195584
    %v3198 = vsel %vm3197, %v3133, %v2170
    %v3199 = vsel %vm3197, %v3134, %v2172
    %v3200 = vsel %vm3197, %v3135, %v2174
    %v3201 = vsel %vm3197, %v3136, %v2176
    %v3202 = vsel %vm3197, %v3137, %v2178
    %v3203 = vsel %vm3197, %v3138, %v2180
    %v3204 = vsel %vm3197, %v3139, %v2182
    %v3205 = vsel %vm3197, %v3140, %v2184
    %v3206 = vsel %vm3197, %v3141, %v2186
    %v3207 = vsel %vm3197, %v3142, %v2188
    %v3208 = vsel %vm3197, %v3143, %v2190
    %v3209 = vsel %vm3197, %v3144, %v2192
    %v3210 = vsel %vm3197, %v3145, %v2194
    %v3211 = vsel %vm3197, %v3146, %v2196
    %v3212 = vsel %vm3197, %v3147, %v2198
    %v3213 = vsel %vm3197, %v3148, %v2200
    %v3214 = vsel %vm3197, %v3149, %v2202
    %v3215 = vsel %vm3197, %v3150, %v2204
    %v3216 = vsel %vm3197, %v3151, %v2206
    %v3217 = vsel %vm3197, %v3152, %v2208
    %v3218 = vsel %vm3197, %v3153, %v2210
    %v3219 = vsel %vm3197, %v3154, %v2212
    %v3220 = vsel %vm3197, %v3155, %v2214
    %v3221 = vsel %vm3197, %v3156, %v2216
    %v3222 = vsel %vm3197, %v3157, %v2218
    %v3223 = vsel %vm3197, %v3158, %v2220
    %v3224 = vsel %vm3197, %v3159, %v2222
    %v3225 = vsel %vm3197, %v3160, %v2224
    %v3226 = vsel %vm3197, %v3161, %v2226
    %v3227 = vsel %vm3197, %v3162, %v2228
    %v3228 = vsel %vm3197, %v3163, %v2230
    %v3229 = vsel %vm3197, %v3164, %v2232
    %v3230 = vsel %vm3197, %v3165, %v2234
    %v3231 = vsel %vm3197, %v3166, %v2236
    %v3232 = vsel %vm3197, %v3167, %v2238
    %v3233 = vsel %vm3197, %v3168, %v2240
    %v3234 = vsel %vm3197, %v3169, %v2242
    %v3235 = vsel %vm3197, %v3170, %v2244
    %v3236 = vsel %vm3197, %v3171, %v2246
    %v3237 = vsel %vm3197, %v3172, %v2248
    %v3238 = vsel %vm3197, %v3173, %v2250
    %v3239 = vsel %vm3197, %v3174, %v2252
    %v3240 = vsel %vm3197, %v3175, %v2254
    %v3241 = vsel %vm3197, %v3176, %v2256
    %v3242 = vsel %vm3197, %v3177, %v2258
    %v3243 = vsel %vm3197, %v3178, %v2260
    %v3244 = vsel %vm3197, %v3179, %v2262
    %v3245 = vsel %vm3197, %v3180, %v2264
    %v3246 = vsel %vm3197, %v3181, %v2266
    %v3247 = vsel %vm3197, %v3182, %v2268
    %v3248 = vsel %vm3197, %v3183, %v2270
    %v3249 = vsel %vm3197, %v3184, %v2272
    %v3250 = vsel %vm3197, %v3185, %v2274
    %v3251 = vsel %vm3197, %v3186, %v2276
    %v3252 = vsel %vm3197, %v3187, %v2278
    %v3253 = vsel %vm3197, %v3188, %v2280
    %v3254 = vsel %vm3197, %v3189, %v2282
    %v3255 = vsel %vm3197, %v3190, %v2284
    %v3256 = vsel %vm3197, %v3191, %v2286
    %v3257 = vsel %vm3197, %v3192, %v2288
    %v3258 = vsel %vm3197, %v3193, %v2290
    %v3259 = vsel %vm3197, %v3194, %v2292
    %v3260 = vsel %vm3197, %v3195, %v2294
    %v3261 = vsel %vm3197, %v3196, %v2296
    %vm3262 = vcmask 228352
    %v3263 = vsel %vm3262, %v3198, %v2426
    %v3264 = vsel %vm3262, %v3199, %v2428
    %v3265 = vsel %vm3262, %v3200, %v2430
    %v3266 = vsel %vm3262, %v3201, %v2432
    %v3267 = vsel %vm3262, %v3202, %v2434
    %v3268 = vsel %vm3262, %v3203, %v2436
    %v3269 = vsel %vm3262, %v3204, %v2438
    %v3270 = vsel %vm3262, %v3205, %v2440
    %v3271 = vsel %vm3262, %v3206, %v2442
    %v3272 = vsel %vm3262, %v3207, %v2444
    %v3273 = vsel %vm3262, %v3208, %v2446
    %v3274 = vsel %vm3262, %v3209, %v2448
    %v3275 = vsel %vm3262, %v3210, %v2450
    %v3276 = vsel %vm3262, %v3211, %v2452
    %v3277 = vsel %vm3262, %v3212, %v2454
    %v3278 = vsel %vm3262, %v3213, %v2456
    %v3279 = vsel %vm3262, %v3214, %v2458
    %v3280 = vsel %vm3262, %v3215, %v2460
    %v3281 = vsel %vm3262, %v3216, %v2462
    %v3282 = vsel %vm3262, %v3217, %v2464
    %v3283 = vsel %vm3262, %v3218, %v2466
    %v3284 = vsel %vm3262, %v3219, %v2468
    %v3285 = vsel %vm3262, %v3220, %v2470
    %v3286 = vsel %vm3262, %v3221, %v2472
    %v3287 = vsel %vm3262, %v3222, %v2474
    %v3288 = vsel %vm3262, %v3223, %v2476
    %v3289 = vsel %vm3262, %v3224, %v2478
    %v3290 = vsel %vm3262, %v3225, %v2480
    %v3291 = vsel %vm3262, %v3226, %v2482
    %v3292 = vsel %vm3262, %v3227, %v2484
    %v3293 = vsel %vm3262, %v3228, %v2486
    %v3294 = vsel %vm3262, %v3229, %v2488
    %v3295 = vsel %vm3262, %v3230, %v2490
    %v3296 = vsel %vm3262, %v3231, %v2492
    %v3297 = vsel %vm3262, %v3232, %v2494
    %v3298 = vsel %vm3262, %v3233, %v2496
    %v3299 = vsel %vm3262, %v3234, %v2498
    %v3300 = vsel %vm3262, %v3235, %v2500
    %v3301 = vsel %vm3262, %v3236, %v2502
    %v3302 = vsel %vm3262, %v3237, %v2504
    %v3303 = vsel %vm3262, %v3238, %v2506
    %v3304 = vsel %vm3262, %v3239, %v2508
    %v3305 = vsel %vm3262, %v3240, %v2510
    %v3306 = vsel %vm3262, %v3241, %v2512
    %v3307 = vsel %vm3262, %v3242, %v2514
    %v3308 = vsel %vm3262, %v3243, %v2516
    %v3309 = vsel %vm3262, %v3244, %v2518
    %v3310 = vsel %vm3262, %v3245, %v2520
    %v3311 = vsel %vm3262, %v3246, %v2522
    %v3312 = vsel %vm3262, %v3247, %v2524
    %v3313 = vsel %vm3262, %v3248, %v2526
    %v3314 = vsel %vm3262, %v3249, %v2528
    %v3315 = vsel %vm3262, %v3250, %v2530
    %v3316 = vsel %vm3262, %v3251, %v2532
    %v3317 = vsel %vm3262, %v3252, %v2534
    %v3318 = vsel %vm3262, %v3253, %v2536
    %v3319 = vsel %vm3262, %v3254, %v2538
    %v3320 = vsel %vm3262, %v3255, %v2540
    %v3321 = vsel %vm3262, %v3256, %v2542
    %v3322 = vsel %vm3262, %v3257, %v2544
    %v3323 = vsel %vm3262, %v3258, %v2546
    %v3324 = vsel %vm3262, %v3259, %v2548
    %v3325 = vsel %vm3262, %v3260, %v2550
    %v3326 = vsel %vm3262, %v3261, %v2552
    %vm3327 = vcmask 261120
    %v3328 = vsel %vm3327, %v3263, %v2682
    %v3329 = vsel %vm3327, %v3264, %v2684
    %v3330 = vsel %vm3327, %v3265, %v2686
    %v3331 = vsel %vm3327, %v3266, %v2688
    %v3332 = vsel %vm3327, %v3267, %v2690
    %v3333 = vsel %vm3327, %v3268, %v2692
    %v3334 = vsel %vm3327, %v3269, %v2694
    %v3335 = vsel %vm3327, %v3270, %v2696
    %v3336 = vsel %vm3327, %v3271, %v2698
    %v3337 = vsel %vm3327, %v3272, %v2700
    %v3338 = vsel %vm3327, %v3273, %v2702
    %v3339 = vsel %vm3327, %v3274, %v2704
    %v3340 = vsel %vm3327, %v3275, %v2706
    %v3341 = vsel %vm3327, %v3276, %v2708
    %v3342 = vsel %vm3327, %v3277, %v2710
    %v3343 = vsel %vm3327, %v3278, %v2712
    %v3344 = vsel %vm3327, %v3279, %v2714
    %v3345 = vsel %vm3327, %v3280, %v2716
    %v3346 = vsel %vm3327, %v3281, %v2718
    %v3347 = vsel %vm3327, %v3282, %v2720
    %v3348 = vsel %vm3327, %v3283, %v2722
    %v3349 = vsel %vm3327, %v3284, %v2724
    %v3350 = vsel %vm3327, %v3285, %v2726
    %v3351 = vsel %vm3327, %v3286, %v2728
    %v3352 = vsel %vm3327, %v3287, %v2730
    %v3353 = vsel %vm3327, %v3288, %v2732
    %v3354 = vsel %vm3327, %v3289, %v2734
    %v3355 = vsel %vm3327, %v3290, %v2736
    %v3356 = vsel %vm3327, %v3291, %v2738
    %v3357 = vsel %vm3327, %v3292, %v2740
    %v3358 = vsel %vm3327, %v3293, %v2742
    %v3359 = vsel %vm3327, %v3294, %v2744
    %v3360 = vsel %vm3327, %v3295, %v2746
    %v3361 = vsel %vm3327, %v3296, %v2748
    %v3362 = vsel %vm3327, %v3297, %v2750
    %v3363 = vsel %vm3327, %v3298, %v2752
    %v3364 = vsel %vm3327, %v3299, %v2754
    %v3365 = vsel %vm3327, %v3300, %v2756
    %v3366 = vsel %vm3327, %v3301, %v2758
    %v3367 = vsel %vm3327, %v3302, %v2760
    %v3368 = vsel %vm3327, %v3303, %v2762
    %v3369 = vsel %vm3327, %v3304, %v2764
    %v3370 = vsel %vm3327, %v3305, %v2766
    %v3371 = vsel %vm3327, %v3306, %v2768
    %v3372 = vsel %vm3327, %v3307, %v2770
    %v3373 = vsel %vm3327, %v3308, %v2772
    %v3374 = vsel %vm3327, %v3309, %v2774
    %v3375 = vsel %vm3327, %v3310, %v2776
    %v3376 = vsel %vm3327, %v3311, %v2778
    %v3377 = vsel %vm3327, %v3312, %v2780
    %v3378 = vsel %vm3327, %v3313, %v2782
    %v3379 = vsel %vm3327, %v3314, %v2784
    %v3380 = vsel %vm3327, %v3315, %v2786
    %v3381 = vsel %vm3327, %v3316, %v2788
    %v3382 = vsel %vm3327, %v3317, %v2790
    %v3383 = vsel %vm3327, %v3318, %v2792
    %v3384 = vsel %vm3327, %v3319, %v2794
    %v3385 = vsel %vm3327, %v3320, %v2796
    %v3386 = vsel %vm3327, %v3321, %v2798
    %v3387 = vsel %vm3327, %v3322, %v2800
    %v3388 = vsel %vm3327, %v3323, %v2802
    %v3389 = vsel %vm3327, %v3324, %v2804
    %v3390 = vsel %vm3327, %v3325, %v2806
    %v3391 = vsel %vm3327, %v3326, %v2808
    %v3392 = vld [vmem:[%s1] sm:$0xff]
    %v3393 = vld [vmem:[%s1 + $0x8] sm:$0xff]
    %v3394 = vld [vmem:[%s1 + $0x10] sm:$0xff]
    %v3395 = vld [vmem:[%s1 + $0x18] sm:$0xff]
    %v3396 = vld [vmem:[%s1 + $0x20] sm:$0xf]
    %v3397 = vld [vmem:[%s2] sm:$0x1]
    %v3399 = vlaneseq
    %v3400 = vshrl.u32 %v3399, 7
    %v3401 = vsub.s32 0, %v3400
    %v3402 = vrot.slane %v3397, %v3401
    %vm3404 = vcmask 293888
    %v3406 = vsel %vm3404, %v3328, 0
    %v3409 = vsel %vm3404, %v3329, 0
    %v3412 = vsel %vm3404, %v3330, 0
    %v3415 = vsel %vm3404, %v3331, 0
    %v3418 = vsel %vm3404, %v3332, 0
    %v3421 = vsel %vm3404, %v3333, 0
    %v3424 = vsel %vm3404, %v3334, 0
    %v3427 = vsel %vm3404, %v3335, 0
    %v3430 = vsel %vm3404, %v3336, 0
    %v3433 = vsel %vm3404, %v3337, 0
    %v3436 = vsel %vm3404, %v3338, 0
    %v3439 = vsel %vm3404, %v3339, 0
    %v3442 = vsel %vm3404, %v3340, 0
    %v3445 = vsel %vm3404, %v3341, 0
    %v3448 = vsel %vm3404, %v3342, 0
    %v3451 = vsel %vm3404, %v3343, 0
    %v3454 = vsel %vm3404, %v3344, 0
    %v3457 = vsel %vm3404, %v3345, 0
    %v3460 = vsel %vm3404, %v3346, 0
    %v3463 = vsel %vm3404, %v3347, 0
    %v3466 = vsel %vm3404, %v3348, 0
    %v3469 = vsel %vm3404, %v3349, 0
    %v3472 = vsel %vm3404, %v3350, 0
    %v3475 = vsel %vm3404, %v3351, 0
    %v3478 = vsel %vm3404, %v3352, 0
    %v3481 = vsel %vm3404, %v3353, 0
    %v3484 = vsel %vm3404, %v3354, 0
    %v3487 = vsel %vm3404, %v3355, 0
    %v3490 = vsel %vm3404, %v3356, 0
    %v3493 = vsel %vm3404, %v3357, 0
    %v3496 = vsel %vm3404, %v3358, 0
    %v3499 = vsel %vm3404, %v3359, 0
    %v3502 = vsel %vm3404, %v3360, 0
    %v3505 = vsel %vm3404, %v3361, 0
    %v3508 = vsel %vm3404, %v3362, 0
    %v3511 = vsel %vm3404, %v3363, 0
    %v3514 = vsel %vm3404, %v3364, 0
    %v3517 = vsel %vm3404, %v3365, 0
    %v3520 = vsel %vm3404, %v3366, 0
    %v3523 = vsel %vm3404, %v3367, 0
    %v3526 = vsel %vm3404, %v3368, 0
    %v3529 = vsel %vm3404, %v3369, 0
    %v3532 = vsel %vm3404, %v3370, 0
    %v3535 = vsel %vm3404, %v3371, 0
    %v3538 = vsel %vm3404, %v3372, 0
    %v3541 = vsel %vm3404, %v3373, 0
    %v3544 = vsel %vm3404, %v3374, 0
    %v3547 = vsel %vm3404, %v3375, 0
    %v3550 = vsel %vm3404, %v3376, 0
    %v3553 = vsel %vm3404, %v3377, 0
    %v3556 = vsel %vm3404, %v3378, 0
    %v3559 = vsel %vm3404, %v3379, 0
    %v3562 = vsel %vm3404, %v3380, 0
    %v3565 = vsel %vm3404, %v3381, 0
    %v3568 = vsel %vm3404, %v3382, 0
    %v3571 = vsel %vm3404, %v3383, 0
    %v3574 = vsel %vm3404, %v3384, 0
    %v3577 = vsel %vm3404, %v3385, 0
    %v3580 = vsel %vm3404, %v3386, 0
    %v3583 = vsel %vm3404, %v3387, 0
    %v3586 = vsel %vm3404, %v3388, 0
    %v3589 = vsel %vm3404, %v3389, 0
    %v3592 = vsel %vm3404, %v3390, 0
    %v3595 = vsel %vm3404, %v3391, 0
    %vm3597 = vcmask 1043456
    %v3599 = vsel %vm3597, %v3396, 0
    %3601 = vmatprep.subr.mxu0 0.0
    %3602 = vmatpush1.msra.mxu0 %v3392
    %3603 = vmatprep.subr.mxu0 0.0
    %3604 = vmatpush1.msra.mxu0 %v3393
    %3605 = vmatprep.subr.mxu0 0.0
    %3606 = vmatpush1.msra.mxu0 %v3394
    %3607 = vmatprep.subr.mxu0 0.0
    %3608 = vmatpush1.msra.mxu0 %v3395
    %3609 = vmatprep.subr.mxu0 0.0
    %3610 = vmatpush1.msra.mxu0 %v3599
    %3611 = vmatprep.subr.mxu0 0.0
    %3612 = vmatpush1.msra.mxu0 0.0
    %3613 = vmatprep.subr.mxu0 0.0
    %3614 = vmatpush1.msra.mxu0 0.0
    %3615 = vmatprep.subr.mxu0 0.0
    %3616 = vmatpush1.msra.mxu0 0.0
    %3617 = vmatprep.subr.mxu0 0.0
    %3618 = vmatpush1.msra.mxu0 0.0
    %3619 = vmatprep.subr.mxu0 0.0
    %3620 = vmatpush1.msra.mxu0 0.0
    %3621 = vmatprep.subr.mxu0 0.0
    %3622 = vmatpush1.msra.mxu0 0.0
    %3623 = vmatprep.subr.mxu0 0.0
    %3624 = vmatpush1.msra.mxu0 0.0
    %3625 = vmatprep.subr.mxu0 0.0
    %3626 = vmatpush1.msra.mxu0 0.0
    %3627 = vmatprep.subr.mxu0 0.0
    %3628 = vmatpush1.msra.mxu0 0.0
    %3629 = vmatprep.subr.mxu0 0.0
    %3630 = vmatpush1.msra.mxu0 0.0
    %3631 = vmatprep.subr.mxu0 0.0
    %3632 = vmatpush1.msra.mxu0 0.0
    %3633 = vmatprep.subr.mxu0 0.0
    %3634 = vmatpush1.msra.mxu0 0.0
    %3635 = vmatprep.subr.mxu0 0.0
    %3636 = vmatpush1.msra.mxu0 0.0
    %3637 = vmatprep.subr.mxu0 0.0
    %3638 = vmatpush1.msra.mxu0 0.0
    %3639 = vmatprep.subr.mxu0 0.0
    %3640 = vmatpush1.msra.mxu0 0.0
    %3641 = vmatprep.subr.mxu0 0.0
    %3642 = vmatpush1.msra.mxu0 0.0
    %3643 = vmatprep.subr.mxu0 0.0
    %3644 = vmatpush1.msra.mxu0 0.0
    %3645 = vmatprep.subr.mxu0 0.0
    %3646 = vmatpush1.msra.mxu0 0.0
    %3647 = vmatprep.subr.mxu0 0.0
    %3648 = vmatpush1.msra.mxu0 0.0
    %3649 = vmatprep.subr.mxu0 0.0
    %3650 = vmatpush1.msra.mxu0 0.0
    %3651 = vmatprep.subr.mxu0 0.0
    %3652 = vmatpush1.msra.mxu0 0.0
    %3653 = vmatprep.subr.mxu0 0.0
    %3654 = vmatpush1.msra.mxu0 0.0
    %3655 = vmatprep.subr.mxu0 0.0
    %3656 = vmatpush1.msra.mxu0 0.0
    %3657 = vmatprep.subr.mxu0 0.0
    %3658 = vmatpush1.msra.mxu0 0.0
    %3659 = vmatprep.subr.mxu0 0.0
    %3660 = vmatpush1.msra.mxu0 0.0
    %3661 = vmatprep.subr.mxu0 0.0
    %3662 = vmatpush1.msra.mxu0 0.0
    %3663 = vmatprep.subr.mxu0 0.0
    %3664 = vmatpush1.msra.mxu0 0.0
    %3665 = vmatprep.mubr.f32.mxu0 0.0
    %3666 = vmatmul.mubr.f32.gmra.mrb[0].mxu0 %v3406
    %v3667 = vpop.f32.mrb[0].mxu0
    %v3668 = vadd.f32 %v3402, %v3667
    %v3669 = vpop.f32.mrb[0].mxu0
    %3670 = vmatprep.mubr.f32.mxu0 0.0
    %3671 = vmatmul.mubr.f32.gmra.mrb[0].mxu0 %v3409
    %v3672 = vpop.f32.mrb[0].mxu0
    %v3673 = vadd.f32 %v3402, %v3672
    %v3674 = vpop.f32.mrb[0].mxu0
    %3675 = vmatprep.mubr.f32.mxu0 0.0
    %3676 = vmatmul.mubr.f32.gmra.mrb[0].mxu0 %v3412
    %v3677 = vpop.f32.mrb[0].mxu0
    %v3678 = vadd.f32 %v3402, %v3677
    %v3679 = vpop.f32.mrb[0].mxu0
    %3680 = vmatprep.mubr.f32.mxu0 0.0
    %3681 = vmatmul.mubr.f32.gmra.mrb[0].mxu0 %v3415
    %v3682 = vpop.f32.mrb[0].mxu0
    %v3683 = vadd.f32 %v3402, %v3682
    %v3684 = vpop.f32.mrb[0].mxu0
    %3685 = vmatprep.mubr.f32.mxu0 0.0
    %3686 = vmatmul.mubr.f32.gmra.mrb[0].mxu0 %v3418
    %v3687 = vpop.f32.mrb[0].mxu0
    %v3688 = vadd.f32 %v3402, %v3687
    %v3689 = vpop.f32.mrb[0].mxu0
    %3690 = vmatprep.mubr.f32.mxu0 0.0
    %3691 = vmatmul.mubr.f32.gmra.mrb[0].mxu0 %v3421
    %v3692 = vpop.f32.mrb[0].mxu0
    %v3693 = vadd.f32 %v3402, %v3692
    %v3694 = vpop.f32.mrb[0].mxu0
    %3695 = vmatprep.mubr.f32.mxu0 0.0
    %3696 = vmatmul.mubr.f32.gmra.mrb[0].mxu0 %v3424
    %v3697 = vpop.f32.mrb[0].mxu0
    %v3698 = vadd.f32 %v3402, %v3697
    %v3699 = vpop.f32.mrb[0].mxu0
    %3700 = vmatprep.mubr.f32.mxu0 0.0
    %3701 = vmatmul.mubr.f32.gmra.mrb[0].mxu0 %v3427
    %v3702 = vpop.f32.mrb[0].mxu0
    %v3703 = vadd.f32 %v3402, %v3702
    %v3704 = vpop.f32.mrb[0].mxu0
    %3705 = vmatprep.mubr.f32.mxu0 0.0
    %3706 = vmatmul.mubr.f32.gmra.mrb[0].mxu0 %v3430
    %v3707 = vpop.f32.mrb[0].mxu0
    %v3708 = vadd.f32 %v3402, %v3707
    %v3709 = vpop.f32.mrb[0].mxu0
    %3710 = vmatprep.mubr.f32.mxu0 0.0
    %3711 = vmatmul.mubr.f32.gmra.mrb[0].mxu0 %v3433
    %v3712 = vpop.f32.mrb[0].mxu0
    %v3713 = vadd.f32 %v3402, %v3712
    %v3714 = vpop.f32.mrb[0].mxu0
    %3715 = vmatprep.mubr.f32.mxu0 0.0
    %3716 = vmatmul.mubr.f32.gmra.mrb[0].mxu0 %v3436
    %v3717 = vpop.f32.mrb[0].mxu0
    %v3718 = vadd.f32 %v3402, %v3717
    %v3719 = vpop.f32.mrb[0].mxu0
    %3720 = vmatprep.mubr.f32.mxu0 0.0
    %3721 = vmatmul.mubr.f32.gmra.mrb[0].mxu0 %v3439
    %v3722 = vpop.f32.mrb[0].mxu0
    %v3723 = vadd.f32 %v3402, %v3722
    %v3724 = vpop.f32.mrb[0].mxu0
    %3725 = vmatprep.mubr.f32.mxu0 0.0
    %3726 = vmatmul.mubr.f32.gmra.mrb[0].mxu0 %v3442
    %v3727 = vpop.f32.mrb[0].mxu0
    %v3728 = vadd.f32 %v3402, %v3727
    %v3729 = vpop.f32.mrb[0].mxu0
    %3730 = vmatprep.mubr.f32.mxu0 0.0
    %3731 = vmatmul.mubr.f32.gmra.mrb[0].mxu0 %v3445
    %v3732 = vpop.f32.mrb[0].mxu0
    %v3733 = vadd.f32 %v3402, %v3732
    %v3734 = vpop.f32.mrb[0].mxu0
    %3735 = vmatprep.mubr.f32.mxu0 0.0
    %3736 = vmatmul.mubr.f32.gmra.mrb[0].mxu0 %v3448
    %v3737 = vpop.f32.mrb[0].mxu0
    %v3738 = vadd.f32 %v3402, %v3737
    %v3739 = vpop.f32.mrb[0].mxu0
    %3740 = vmatprep.mubr.f32.mxu0 0.0
    %3741 = vmatmul.mubr.f32.gmra.mrb[0].mxu0 %v3451
    %v3742 = vpop.f32.mrb[0].mxu0
    %v3743 = vadd.f32 %v3402, %v3742
    %v3744 = vpop.f32.mrb[0].mxu0
    %3745 = vmatprep.mubr.f32.mxu0 0.0
    %3746 = vmatmul.mubr.f32.gmra.mrb[0].mxu0 %v3454
    %v3747 = vpop.f32.mrb[0].mxu0
    %v3748 = vadd.f32 %v3402, %v3747
    %v3749 = vpop.f32.mrb[0].mxu0
    %3750 = vmatprep.mubr.f32.mxu0 0.0
    %3751 = vmatmul.mubr.f32.gmra.mrb[0].mxu0 %v3457
    %v3752 = vpop.f32.mrb[0].mxu0
    %v3753 = vadd.f32 %v3402, %v3752
    %v3754 = vpop.f32.mrb[0].mxu0
    %3755 = vmatprep.mubr.f32.mxu0 0.0
    %3756 = vmatmul.mubr.f32.gmra.mrb[0].mxu0 %v3460
    %v3757 = vpop.f32.mrb[0].mxu0
    %v3758 = vadd.f32 %v3402, %v3757
    %v3759 = vpop.f32.mrb[0].mxu0
    %3760 = vmatprep.mubr.f32.mxu0 0.0
    %3761 = vmatmul.mubr.f32.gmra.mrb[0].mxu0 %v3463
    %v3762 = vpop.f32.mrb[0].mxu0
    %v3763 = vadd.f32 %v3402, %v3762
    %v3764 = vpop.f32.mrb[0].mxu0
    %3765 = vmatprep.mubr.f32.mxu0 0.0
    %3766 = vmatmul.mubr.f32.gmra.mrb[0].mxu0 %v3466
    %v3767 = vpop.f32.mrb[0].mxu0
    %v3768 = vadd.f32 %v3402, %v3767
    %v3769 = vpop.f32.mrb[0].mxu0
    %3770 = vmatprep.mubr.f32.mxu0 0.0
    %3771 = vmatmul.mubr.f32.gmra.mrb[0].mxu0 %v3469
    %v3772 = vpop.f32.mrb[0].mxu0
    %v3773 = vadd.f32 %v3402, %v3772
    %v3774 = vpop.f32.mrb[0].mxu0
    %3775 = vmatprep.mubr.f32.mxu0 0.0
    %3776 = vmatmul.mubr.f32.gmra.mrb[0].mxu0 %v3472
    %v3777 = vpop.f32.mrb[0].mxu0
    %v3778 = vadd.f32 %v3402, %v3777
    %v3779 = vpop.f32.mrb[0].mxu0
    %3780 = vmatprep.mubr.f32.mxu0 0.0
    %3781 = vmatmul.mubr.f32.gmra.mrb[0].mxu0 %v3475
    %v3782 = vpop.f32.mrb[0].mxu0
    %v3783 = vadd.f32 %v3402, %v3782
    %v3784 = vpop.f32.mrb[0].mxu0
    %3785 = vmatprep.mubr.f32.mxu0 0.0
    %3786 = vmatmul.mubr.f32.gmra.mrb[0].mxu0 %v3478
    %v3787 = vpop.f32.mrb[0].mxu0
    %v3788 = vadd.f32 %v3402, %v3787
    %v3789 = vpop.f32.mrb[0].mxu0
    %3790 = vmatprep.mubr.f32.mxu0 0.0
    %3791 = vmatmul.mubr.f32.gmra.mrb[0].mxu0 %v3481
    %v3792 = vpop.f32.mrb[0].mxu0
    %v3793 = vadd.f32 %v3402, %v3792
    %v3794 = vpop.f32.mrb[0].mxu0
    %3795 = vmatprep.mubr.f32.mxu0 0.0
    %3796 = vmatmul.mubr.f32.gmra.mrb[0].mxu0 %v3484
    %v3797 = vpop.f32.mrb[0].mxu0
    %v3798 = vadd.f32 %v3402, %v3797
    %v3799 = vpop.f32.mrb[0].mxu0
    %3800 = vmatprep.mubr.f32.mxu0 0.0
    %3801 = vmatmul.mubr.f32.gmra.mrb[0].mxu0 %v3487
    %v3802 = vpop.f32.mrb[0].mxu0
    %v3803 = vadd.f32 %v3402, %v3802
    %v3804 = vpop.f32.mrb[0].mxu0
    %3805 = vmatprep.mubr.f32.mxu0 0.0
    %3806 = vmatmul.mubr.f32.gmra.mrb[0].mxu0 %v3490
    %v3807 = vpop.f32.mrb[0].mxu0
    %v3808 = vadd.f32 %v3402, %v3807
    %v3809 = vpop.f32.mrb[0].mxu0
    %3810 = vmatprep.mubr.f32.mxu0 0.0
    %3811 = vmatmul.mubr.f32.gmra.mrb[0].mxu0 %v3493
    %v3812 = vpop.f32.mrb[0].mxu0
    %v3813 = vadd.f32 %v3402, %v3812
    %v3814 = vpop.f32.mrb[0].mxu0
    %3815 = vmatprep.mubr.f32.mxu0 0.0
    %3816 = vmatmul.mubr.f32.gmra.mrb[0].mxu0 %v3496
    %v3817 = vpop.f32.mrb[0].mxu0
    %v3818 = vadd.f32 %v3402, %v3817
    %v3819 = vpop.f32.mrb[0].mxu0
    %3820 = vmatprep.mubr.f32.mxu0 0.0
    %3821 = vmatmul.mubr.f32.gmra.mrb[0].mxu0 %v3499
    %v3822 = vpop.f32.mrb[0].mxu0
    %v3823 = vadd.f32 %v3402, %v3822
    %v3824 = vpop.f32.mrb[0].mxu0
    %3825 = vmatprep.mubr.f32.mxu0 0.0
    %3826 = vmatmul.mubr.f32.gmra.mrb[0].mxu0 %v3502
    %v3827 = vpop.f32.mrb[0].mxu0
    %v3828 = vadd.f32 %v3402, %v3827
    %v3829 = vpop.f32.mrb[0].mxu0
    %3830 = vmatprep.mubr.f32.mxu0 0.0
    %3831 = vmatmul.mubr.f32.gmra.mrb[0].mxu0 %v3505
    %v3832 = vpop.f32.mrb[0].mxu0
    %v3833 = vadd.f32 %v3402, %v3832
    %v3834 = vpop.f32.mrb[0].mxu0
    %3835 = vmatprep.mubr.f32.mxu0 0.0
    %3836 = vmatmul.mubr.f32.gmra.mrb[0].mxu0 %v3508
    %v3837 = vpop.f32.mrb[0].mxu0
    %v3838 = vadd.f32 %v3402, %v3837
    %v3839 = vpop.f32.mrb[0].mxu0
    %3840 = vmatprep.mubr.f32.mxu0 0.0
    %3841 = vmatmul.mubr.f32.gmra.mrb[0].mxu0 %v3511
    %v3842 = vpop.f32.mrb[0].mxu0
    %v3843 = vadd.f32 %v3402, %v3842
    %v3844 = vpop.f32.mrb[0].mxu0
    %3845 = vmatprep.mubr.f32.mxu0 0.0
    %3846 = vmatmul.mubr.f32.gmra.mrb[0].mxu0 %v3514
    %v3847 = vpop.f32.mrb[0].mxu0
    %v3848 = vadd.f32 %v3402, %v3847
    %v3849 = vpop.f32.mrb[0].mxu0
    %3850 = vmatprep.mubr.f32.mxu0 0.0
    %3851 = vmatmul.mubr.f32.gmra.mrb[0].mxu0 %v3517
    %v3852 = vpop.f32.mrb[0].mxu0
    %v3853 = vadd.f32 %v3402, %v3852
    %v3854 = vpop.f32.mrb[0].mxu0
    %3855 = vmatprep.mubr.f32.mxu0 0.0
    %3856 = vmatmul.mubr.f32.gmra.mrb[0].mxu0 %v3520
    %v3857 = vpop.f32.mrb[0].mxu0
    %v3858 = vadd.f32 %v3402, %v3857
    %v3859 = vpop.f32.mrb[0].mxu0
    %3860 = vmatprep.mubr.f32.mxu0 0.0
    %3861 = vmatmul.mubr.f32.gmra.mrb[0].mxu0 %v3523
    %v3862 = vpop.f32.mrb[0].mxu0
    %v3863 = vadd.f32 %v3402, %v3862
    %v3864 = vpop.f32.mrb[0].mxu0
    %3865 = vmatprep.mubr.f32.mxu0 0.0
    %3866 = vmatmul.mubr.f32.gmra.mrb[0].mxu0 %v3526
    %v3867 = vpop.f32.mrb[0].mxu0
    %v3868 = vadd.f32 %v3402, %v3867
    %v3869 = vpop.f32.mrb[0].mxu0
    %3870 = vmatprep.mubr.f32.mxu0 0.0
    %3871 = vmatmul.mubr.f32.gmra.mrb[0].mxu0 %v3529
    %v3872 = vpop.f32.mrb[0].mxu0
    %v3873 = vadd.f32 %v3402, %v3872
    %v3874 = vpop.f32.mrb[0].mxu0
    %3875 = vmatprep.mubr.f32.mxu0 0.0
    %3876 = vmatmul.mubr.f32.gmra.mrb[0].mxu0 %v3532
    %v3877 = vpop.f32.mrb[0].mxu0
    %v3878 = vadd.f32 %v3402, %v3877
    %v3879 = vpop.f32.mrb[0].mxu0
    %3880 = vmatprep.mubr.f32.mxu0 0.0
    %3881 = vmatmul.mubr.f32.gmra.mrb[0].mxu0 %v3535
    %v3882 = vpop.f32.mrb[0].mxu0
    %v3883 = vadd.f32 %v3402, %v3882
    %v3884 = vpop.f32.mrb[0].mxu0
    %3885 = vmatprep.mubr.f32.mxu0 0.0
    %3886 = vmatmul.mubr.f32.gmra.mrb[0].mxu0 %v3538
    %v3887 = vpop.f32.mrb[0].mxu0
    %v3888 = vadd.f32 %v3402, %v3887
    %v3889 = vpop.f32.mrb[0].mxu0
    %3890 = vmatprep.mubr.f32.mxu0 0.0
    %3891 = vmatmul.mubr.f32.gmra.mrb[0].mxu0 %v3541
    %v3892 = vpop.f32.mrb[0].mxu0
    %v3893 = vadd.f32 %v3402, %v3892
    %v3894 = vpop.f32.mrb[0].mxu0
    %3895 = vmatprep.mubr.f32.mxu0 0.0
    %3896 = vmatmul.mubr.f32.gmra.mrb[0].mxu0 %v3544
    %v3897 = vpop.f32.mrb[0].mxu0
    %v3898 = vadd.f32 %v3402, %v3897
    %v3899 = vpop.f32.mrb[0].mxu0
    %3900 = vmatprep.mubr.f32.mxu0 0.0
    %3901 = vmatmul.mubr.f32.gmra.mrb[0].mxu0 %v3547
    %v3902 = vpop.f32.mrb[0].mxu0
    %v3903 = vadd.f32 %v3402, %v3902
    %v3904 = vpop.f32.mrb[0].mxu0
    %3905 = vmatprep.mubr.f32.mxu0 0.0
    %3906 = vmatmul.mubr.f32.gmra.mrb[0].mxu0 %v3550
    %v3907 = vpop.f32.mrb[0].mxu0
    %v3908 = vadd.f32 %v3402, %v3907
    %v3909 = vpop.f32.mrb[0].mxu0
    %3910 = vmatprep.mubr.f32.mxu0 0.0
    %3911 = vmatmul.mubr.f32.gmra.mrb[0].mxu0 %v3553
    %v3912 = vpop.f32.mrb[0].mxu0
    %v3913 = vadd.f32 %v3402, %v3912
    %v3914 = vpop.f32.mrb[0].mxu0
    %3915 = vmatprep.mubr.f32.mxu0 0.0
    %3916 = vmatmul.mubr.f32.gmra.mrb[0].mxu0 %v3556
    %v3917 = vpop.f32.mrb[0].mxu0
    %v3918 = vadd.f32 %v3402, %v3917
    %v3919 = vpop.f32.mrb[0].mxu0
    %3920 = vmatprep.mubr.f32.mxu0 0.0
    %3921 = vmatmul.mubr.f32.gmra.mrb[0].mxu0 %v3559
    %v3922 = vpop.f32.mrb[0].mxu0
    %v3923 = vadd.f32 %v3402, %v3922
    %v3924 = vpop.f32.mrb[0].mxu0
    %3925 = vmatprep.mubr.f32.mxu0 0.0
    %3926 = vmatmul.mubr.f32.gmra.mrb[0].mxu0 %v3562
    %v3927 = vpop.f32.mrb[0].mxu0
    %v3928 = vadd.f32 %v3402, %v3927
    %v3929 = vpop.f32.mrb[0].mxu0
    %3930 = vmatprep.mubr.f32.mxu0 0.0
    %3931 = vmatmul.mubr.f32.gmra.mrb[0].mxu0 %v3565
    %v3932 = vpop.f32.mrb[0].mxu0
    %v3933 = vadd.f32 %v3402, %v3932
    %v3934 = vpop.f32.mrb[0].mxu0
    %3935 = vmatprep.mubr.f32.mxu0 0.0
    %3936 = vmatmul.mubr.f32.gmra.mrb[0].mxu0 %v3568
    %v3937 = vpop.f32.mrb[0].mxu0
    %v3938 = vadd.f32 %v3402, %v3937
    %v3939 = vpop.f32.mrb[0].mxu0
    %3940 = vmatprep.mubr.f32.mxu0 0.0
    %3941 = vmatmul.mubr.f32.gmra.mrb[0].mxu0 %v3571
    %v3942 = vpop.f32.mrb[0].mxu0
    %v3943 = vadd.f32 %v3402, %v3942
    %v3944 = vpop.f32.mrb[0].mxu0
    %3945 = vmatprep.mubr.f32.mxu0 0.0
    %3946 = vmatmul.mubr.f32.gmra.mrb[0].mxu0 %v3574
    %v3947 = vpop.f32.mrb[0].mxu0
    %v3948 = vadd.f32 %v3402, %v3947
    %v3949 = vpop.f32.mrb[0].mxu0
    %3950 = vmatprep.mubr.f32.mxu0 0.0
    %3951 = vmatmul.mubr.f32.gmra.mrb[0].mxu0 %v3577
    %v3952 = vpop.f32.mrb[0].mxu0
    %v3953 = vadd.f32 %v3402, %v3952
    %v3954 = vpop.f32.mrb[0].mxu0
    %3955 = vmatprep.mubr.f32.mxu0 0.0
    %3956 = vmatmul.mubr.f32.gmra.mrb[0].mxu0 %v3580
    %v3957 = vpop.f32.mrb[0].mxu0
    %v3958 = vadd.f32 %v3402, %v3957
    %v3959 = vpop.f32.mrb[0].mxu0
    %3960 = vmatprep.mubr.f32.mxu0 0.0
    %3961 = vmatmul.mubr.f32.gmra.mrb[0].mxu0 %v3583
    %v3962 = vpop.f32.mrb[0].mxu0
    %v3963 = vadd.f32 %v3402, %v3962
    %v3964 = vpop.f32.mrb[0].mxu0
    %3965 = vmatprep.mubr.f32.mxu0 0.0
    %3966 = vmatmul.mubr.f32.gmra.mrb[0].mxu0 %v3586
    %v3967 = vpop.f32.mrb[0].mxu0
    %v3968 = vadd.f32 %v3402, %v3967
    %v3969 = vpop.f32.mrb[0].mxu0
    %3970 = vmatprep.mubr.f32.mxu0 0.0
    %3971 = vmatmul.mubr.f32.gmra.mrb[0].mxu0 %v3589
    %v3972 = vpop.f32.mrb[0].mxu0
    %v3973 = vadd.f32 %v3402, %v3972
    %v3974 = vpop.f32.mrb[0].mxu0
    %3975 = vmatprep.mubr.f32.mxu0 0.0
    %3976 = vmatmul.mubr.f32.gmra.mrb[0].mxu0 %v3592
    %v3977 = vpop.f32.mrb[0].mxu0
    %v3978 = vadd.f32 %v3402, %v3977
    %v3979 = vpop.f32.mrb[0].mxu0
    %3980 = vmatprep.mubr.f32.mxu0 0.0
    %3981 = vmatmul.mubr.f32.gmra.mrb[0].mxu0 %v3595
    %v3982 = vpop.f32.mrb[0].mxu0
    %v3983 = vadd.f32 %v3402, %v3982
    %v3984 = vpop.f32.mrb[0].mxu0
    %3985 = vdwg.mxu0
    %vm3986 = vcmp.gt.f32.partialorder %v3668, 0.0
    %vm3987 = vcmp.gt.f32.partialorder %v3673, 0.0
    %vm3988 = vcmp.gt.f32.partialorder %v3678, 0.0
    %vm3989 = vcmp.gt.f32.partialorder %v3683, 0.0
    %vm3990 = vcmp.gt.f32.partialorder %v3688, 0.0
    %vm3991 = vcmp.gt.f32.partialorder %v3693, 0.0
    %vm3992 = vcmp.gt.f32.partialorder %v3698, 0.0
    %vm3993 = vcmp.gt.f32.partialorder %v3703, 0.0
    %vm3994 = vcmp.gt.f32.partialorder %v3708, 0.0
    %vm3995 = vcmp.gt.f32.partialorder %v3713, 0.0
    %vm3996 = vcmp.gt.f32.partialorder %v3718, 0.0
    %vm3997 = vcmp.gt.f32.partialorder %v3723, 0.0
    %vm3998 = vcmp.gt.f32.partialorder %v3728, 0.0
    %vm3999 = vcmp.gt.f32.partialorder %v3733, 0.0
    %vm4000 = vcmp.gt.f32.partialorder %v3738, 0.0
    %vm4001 = vcmp.gt.f32.partialorder %v3743, 0.0
    %vm4002 = vcmp.gt.f32.partialorder %v3748, 0.0
    %vm4003 = vcmp.gt.f32.partialorder %v3753, 0.0
    %vm4004 = vcmp.gt.f32.partialorder %v3758, 0.0
    %vm4005 = vcmp.gt.f32.partialorder %v3763, 0.0
    %vm4006 = vcmp.gt.f32.partialorder %v3768, 0.0
    %vm4007 = vcmp.gt.f32.partialorder %v3773, 0.0
    %vm4008 = vcmp.gt.f32.partialorder %v3778, 0.0
    %vm4009 = vcmp.gt.f32.partialorder %v3783, 0.0
    %vm4010 = vcmp.gt.f32.partialorder %v3788, 0.0
    %vm4011 = vcmp.gt.f32.partialorder %v3793, 0.0
    %vm4012 = vcmp.gt.f32.partialorder %v3798, 0.0
    %vm4013 = vcmp.gt.f32.partialorder %v3803, 0.0
    %vm4014 = vcmp.gt.f32.partialorder %v3808, 0.0
    %vm4015 = vcmp.gt.f32.partialorder %v3813, 0.0
    %vm4016 = vcmp.gt.f32.partialorder %v3818, 0.0
    %vm4017 = vcmp.gt.f32.partialorder %v3823, 0.0
    %vm4018 = vcmp.gt.f32.partialorder %v3828, 0.0
    %vm4019 = vcmp.gt.f32.partialorder %v3833, 0.0
    %vm4020 = vcmp.gt.f32.partialorder %v3838, 0.0
    %vm4021 = vcmp.gt.f32.partialorder %v3843, 0.0
    %vm4022 = vcmp.gt.f32.partialorder %v3848, 0.0
    %vm4023 = vcmp.gt.f32.partialorder %v3853, 0.0
    %vm4024 = vcmp.gt.f32.partialorder %v3858, 0.0
    %vm4025 = vcmp.gt.f32.partialorder %v3863, 0.0
    %vm4026 = vcmp.gt.f32.partialorder %v3868, 0.0
    %vm4027 = vcmp.gt.f32.partialorder %v3873, 0.0
    %vm4028 = vcmp.gt.f32.partialorder %v3878, 0.0
    %vm4029 = vcmp.gt.f32.partialorder %v3883, 0.0
    %vm4030 = vcmp.gt.f32.partialorder %v3888, 0.0
    %vm4031 = vcmp.gt.f32.partialorder %v3893, 0.0
    %vm4032 = vcmp.gt.f32.partialorder %v3898, 0.0
    %vm4033 = vcmp.gt.f32.partialorder %v3903, 0.0
    %vm4034 = vcmp.gt.f32.partialorder %v3908, 0.0
    %vm4035 = vcmp.gt.f32.partialorder %v3913, 0.0
    %vm4036 = vcmp.gt.f32.partialorder %v3918, 0.0
    %vm4037 = vcmp.gt.f32.partialorder %v3923, 0.0
    %vm4038 = vcmp.gt.f32.partialorder %v3928, 0.0
    %vm4039 = vcmp.gt.f32.partialorder %v3933, 0.0
    %vm4040 = vcmp.gt.f32.partialorder %v3938, 0.0
    %vm4041 = vcmp.gt.f32.partialorder %v3943, 0.0
    %vm4042 = vcmp.gt.f32.partialorder %v3948, 0.0
    %vm4043 = vcmp.gt.f32.partialorder %v3953, 0.0
    %vm4044 = vcmp.gt.f32.partialorder %v3958, 0.0
    %vm4045 = vcmp.gt.f32.partialorder %v3963, 0.0
    %vm4046 = vcmp.gt.f32.partialorder %v3968, 0.0
    %vm4047 = vcmp.gt.f32.partialorder %v3973, 0.0
    %vm4048 = vcmp.gt.f32.partialorder %v3978, 0.0
    %vm4049 = vcmp.gt.f32.partialorder %v3983, 0.0
    %v4050 = vmul.f32 %v3668, 1.442695
    %v4051 = vpow.pop %v4050
    %v4052 = vmul.f32 %v3673, 1.442695
    %v4053 = vpow.pop %v4052
    %v4054 = vmul.f32 %v3678, 1.442695
    %v4055 = vpow.pop %v4054
    %v4056 = vmul.f32 %v3683, 1.442695
    %v4057 = vpow.pop %v4056
    %v4058 = vmul.f32 %v3688, 1.442695
    %v4059 = vpow.pop %v4058
    %v4060 = vmul.f32 %v3693, 1.442695
    %v4061 = vpow.pop %v4060
    %v4062 = vmul.f32 %v3698, 1.442695
    %v4063 = vpow.pop %v4062
    %v4064 = vmul.f32 %v3703, 1.442695
    %v4065 = vpow.pop %v4064
    %v4066 = vmul.f32 %v3708, 1.442695
    %v4067 = vpow.pop %v4066
    %v4068 = vmul.f32 %v3713, 1.442695
    %v4069 = vpow.pop %v4068
    %v4070 = vmul.f32 %v3718, 1.442695
    %v4071 = vpow.pop %v4070
    %v4072 = vmul.f32 %v3723, 1.442695
    %v4073 = vpow.pop %v4072
    %v4074 = vmul.f32 %v3728, 1.442695
    %v4075 = vpow.pop %v4074
    %v4076 = vmul.f32 %v3733, 1.442695
    %v4077 = vpow.pop %v4076
    %v4078 = vmul.f32 %v3738, 1.442695
    %v4079 = vpow.pop %v4078
    %v4080 = vmul.f32 %v3743, 1.442695
    %v4081 = vpow.pop %v4080
    %v4082 = vmul.f32 %v3748, 1.442695
    %v4083 = vpow.pop %v4082
    %v4084 = vmul.f32 %v3753, 1.442695
    %v4085 = vpow.pop %v4084
    %v4086 = vmul.f32 %v3758, 1.442695
    %v4087 = vpow.pop %v4086
    %v4088 = vmul.f32 %v3763, 1.442695
    %v4089 = vpow.pop %v4088
    %v4090 = vmul.f32 %v3768, 1.442695
    %v4091 = vpow.pop %v4090
    %v4092 = vmul.f32 %v3773, 1.442695
    %v4093 = vpow.pop %v4092
    %v4094 = vmul.f32 %v3778, 1.442695
    %v4095 = vpow.pop %v4094
    %v4096 = vmul.f32 %v3783, 1.442695
    %v4097 = vpow.pop %v4096
    %v4098 = vmul.f32 %v3788, 1.442695
    %v4099 = vpow.pop %v4098
    %v4100 = vmul.f32 %v3793, 1.442695
    %v4101 = vpow.pop %v4100
    %v4102 = vmul.f32 %v3798, 1.442695
    %v4103 = vpow.pop %v4102
    %v4104 = vmul.f32 %v3803, 1.442695
    %v4105 = vpow.pop %v4104
    %v4106 = vmul.f32 %v3808, 1.442695
    %v4107 = vpow.pop %v4106
    %v4108 = vmul.f32 %v3813, 1.442695
    %v4109 = vpow.pop %v4108
    %v4110 = vmul.f32 %v3818, 1.442695
    %v4111 = vpow.pop %v4110
    %v4112 = vmul.f32 %v3823, 1.442695
    %v4113 = vpow.pop %v4112
    %v4114 = vmul.f32 %v3828, 1.442695
    %v4115 = vpow.pop %v4114
    %v4116 = vmul.f32 %v3833, 1.442695
    %v4117 = vpow.pop %v4116
    %v4118 = vmul.f32 %v3838, 1.442695
    %v4119 = vpow.pop %v4118
    %v4120 = vmul.f32 %v3843, 1.442695
    %v4121 = vpow.pop %v4120
    %v4122 = vmul.f32 %v3848, 1.442695
    %v4123 = vpow.pop %v4122
    %v4124 = vmul.f32 %v3853, 1.442695
    %v4125 = vpow.pop %v4124
    %v4126 = vmul.f32 %v3858, 1.442695
    %v4127 = vpow.pop %v4126
    %v4128 = vmul.f32 %v3863, 1.442695
    %v4129 = vpow.pop %v4128
    %v4130 = vmul.f32 %v3868, 1.442695
    %v4131 = vpow.pop %v4130
    %v4132 = vmul.f32 %v3873, 1.442695
    %v4133 = vpow.pop %v4132
    %v4134 = vmul.f32 %v3878, 1.442695
    %v4135 = vpow.pop %v4134
    %v4136 = vmul.f32 %v3883, 1.442695
    %v4137 = vpow.pop %v4136
    %v4138 = vmul.f32 %v3888, 1.442695
    %v4139 = vpow.pop %v4138
    %v4140 = vmul.f32 %v3893, 1.442695
    %v4141 = vpow.pop %v4140
    %v4142 = vmul.f32 %v3898, 1.442695
    %v4143 = vpow.pop %v4142
    %v4144 = vmul.f32 %v3903, 1.442695
    %v4145 = vpow.pop %v4144
    %v4146 = vmul.f32 %v3908, 1.442695
    %v4147 = vpow.pop %v4146
    %v4148 = vmul.f32 %v3913, 1.442695
    %v4149 = vpow.pop %v4148
    %v4150 = vmul.f32 %v3918, 1.442695
    %v4151 = vpow.pop %v4150
    %v4152 = vmul.f32 %v3923, 1.442695
    %v4153 = vpow.pop %v4152
    %v4154 = vmul.f32 %v3928, 1.442695
    %v4155 = vpow.pop %v4154
    %v4156 = vmul.f32 %v3933, 1.442695
    %v4157 = vpow.pop %v4156
    %v4158 = vmul.f32 %v3938, 1.442695
    %v4159 = vpow.pop %v4158
    %v4160 = vmul.f32 %v3943, 1.442695
    %v4161 = vpow.pop %v4160
    %v4162 = vmul.f32 %v3948, 1.442695
    %v4163 = vpow.pop %v4162
    %v4164 = vmul.f32 %v3953, 1.442695
    %v4165 = vpow.pop %v4164
    %v4166 = vmul.f32 %v3958, 1.442695
    %v4167 = vpow.pop %v4166
    %v4168 = vmul.f32 %v3963, 1.442695
    %v4169 = vpow.pop %v4168
    %v4170 = vmul.f32 %v3968, 1.442695
    %v4171 = vpow.pop %v4170
    %v4172 = vmul.f32 %v3973, 1.442695
    %v4173 = vpow.pop %v4172
    %v4174 = vmul.f32 %v3978, 1.442695
    %v4175 = vpow.pop %v4174
    %v4176 = vmul.f32 %v3983, 1.442695
    %v4177 = vpow.pop %v4176
    %v4178 = vsub.f32 %v4051, 1.0
    %v4179 = vsub.f32 %v4053, 1.0
    %v4180 = vsub.f32 %v4055, 1.0
    %v4181 = vsub.f32 %v4057, 1.0
    %v4182 = vsub.f32 %v4059, 1.0
    %v4183 = vsub.f32 %v4061, 1.0
    %v4184 = vsub.f32 %v4063, 1.0
    %v4185 = vsub.f32 %v4065, 1.0
    %v4186 = vsub.f32 %v4067, 1.0
    %v4187 = vsub.f32 %v4069, 1.0
    %v4188 = vsub.f32 %v4071, 1.0
    %v4189 = vsub.f32 %v4073, 1.0
    %v4190 = vsub.f32 %v4075, 1.0
    %v4191 = vsub.f32 %v4077, 1.0
    %v4192 = vsub.f32 %v4079, 1.0
    %v4193 = vsub.f32 %v4081, 1.0
    %v4194 = vsub.f32 %v4083, 1.0
    %v4195 = vsub.f32 %v4085, 1.0
    %v4196 = vsub.f32 %v4087, 1.0
    %v4197 = vsub.f32 %v4089, 1.0
    %v4198 = vsub.f32 %v4091, 1.0
    %v4199 = vsub.f32 %v4093, 1.0
    %v4200 = vsub.f32 %v4095, 1.0
    %v4201 = vsub.f32 %v4097, 1.0
    %v4202 = vsub.f32 %v4099, 1.0
    %v4203 = vsub.f32 %v4101, 1.0
    %v4204 = vsub.f32 %v4103, 1.0
    %v4205 = vsub.f32 %v4105, 1.0
    %v4206 = vsub.f32 %v4107, 1.0
    %v4207 = vsub.f32 %v4109, 1.0
    %v4208 = vsub.f32 %v4111, 1.0
    %v4209 = vsub.f32 %v4113, 1.0
    %v4210 = vsub.f32 %v4115, 1.0
    %v4211 = vsub.f32 %v4117, 1.0
    %v4212 = vsub.f32 %v4119, 1.0
    %v4213 = vsub.f32 %v4121, 1.0
    %v4214 = vsub.f32 %v4123, 1.0
    %v4215 = vsub.f32 %v4125, 1.0
    %v4216 = vsub.f32 %v4127, 1.0
    %v4217 = vsub.f32 %v4129, 1.0
    %v4218 = vsub.f32 %v4131, 1.0
    %v4219 = vsub.f32 %v4133, 1.0
    %v4220 = vsub.f32 %v4135, 1.0
    %v4221 = vsub.f32 %v4137, 1.0
    %v4222 = vsub.f32 %v4139, 1.0
    %v4223 = vsub.f32 %v4141, 1.0
    %v4224 = vsub.f32 %v4143, 1.0
    %v4225 = vsub.f32 %v4145, 1.0
    %v4226 = vsub.f32 %v4147, 1.0
    %v4227 = vsub.f32 %v4149, 1.0
    %v4228 = vsub.f32 %v4151, 1.0
    %v4229 = vsub.f32 %v4153, 1.0
    %v4230 = vsub.f32 %v4155, 1.0
    %v4231 = vsub.f32 %v4157, 1.0
    %v4232 = vsub.f32 %v4159, 1.0
    %v4233 = vsub.f32 %v4161, 1.0
    %v4234 = vsub.f32 %v4163, 1.0
    %v4235 = vsub.f32 %v4165, 1.0
    %v4236 = vsub.f32 %v4167, 1.0
    %v4237 = vsub.f32 %v4169, 1.0
    %v4238 = vsub.f32 %v4171, 1.0
    %v4239 = vsub.f32 %v4173, 1.0
    %v4240 = vsub.f32 %v4175, 1.0
    %v4241 = vsub.f32 %v4177, 1.0
    %v4242 = vsel %vm3986, %v3668, %v4178
    %v4243 = vsel %vm3987, %v3673, %v4179
    %v4244 = vsel %vm3988, %v3678, %v4180
    %v4245 = vsel %vm3989, %v3683, %v4181
    %v4246 = vsel %vm3990, %v3688, %v4182
    %v4247 = vsel %vm3991, %v3693, %v4183
    %v4248 = vsel %vm3992, %v3698, %v4184
    %v4249 = vsel %vm3993, %v3703, %v4185
    %v4250 = vsel %vm3994, %v3708, %v4186
    %v4251 = vsel %vm3995, %v3713, %v4187
    %v4252 = vsel %vm3996, %v3718, %v4188
    %v4253 = vsel %vm3997, %v3723, %v4189
    %v4254 = vsel %vm3998, %v3728, %v4190
    %v4255 = vsel %vm3999, %v3733, %v4191
    %v4256 = vsel %vm4000, %v3738, %v4192
    %v4257 = vsel %vm4001, %v3743, %v4193
    %v4258 = vsel %vm4002, %v3748, %v4194
    %v4259 = vsel %vm4003, %v3753, %v4195
    %v4260 = vsel %vm4004, %v3758, %v4196
    %v4261 = vsel %vm4005, %v3763, %v4197
    %v4262 = vsel %vm4006, %v3768, %v4198
    %v4263 = vsel %vm4007, %v3773, %v4199
    %v4264 = vsel %vm4008, %v3778, %v4200
    %v4265 = vsel %vm4009, %v3783, %v4201
    %v4266 = vsel %vm4010, %v3788, %v4202
    %v4267 = vsel %vm4011, %v3793, %v4203
    %v4268 = vsel %vm4012, %v3798, %v4204
    %v4269 = vsel %vm4013, %v3803, %v4205
    %v4270 = vsel %vm4014, %v3808, %v4206
    %v4271 = vsel %vm4015, %v3813, %v4207
    %v4272 = vsel %vm4016, %v3818, %v4208
    %v4273 = vsel %vm4017, %v3823, %v4209
    %v4274 = vsel %vm4018, %v3828, %v4210
    %v4275 = vsel %vm4019, %v3833, %v4211
    %v4276 = vsel %vm4020, %v3838, %v4212
    %v4277 = vsel %vm4021, %v3843, %v4213
    %v4278 = vsel %vm4022, %v3848, %v4214
    %v4279 = vsel %vm4023, %v3853, %v4215
    %v4280 = vsel %vm4024, %v3858, %v4216
    %v4281 = vsel %vm4025, %v3863, %v4217
    %v4282 = vsel %vm4026, %v3868, %v4218
    %v4283 = vsel %vm4027, %v3873, %v4219
    %v4284 = vsel %vm4028, %v3878, %v4220
    %v4285 = vsel %vm4029, %v3883, %v4221
    %v4286 = vsel %vm4030, %v3888, %v4222
    %v4287 = vsel %vm4031, %v3893, %v4223
    %v4288 = vsel %vm4032, %v3898, %v4224
    %v4289 = vsel %vm4033, %v3903, %v4225
    %v4290 = vsel %vm4034, %v3908, %v4226
    %v4291 = vsel %vm4035, %v3913, %v4227
    %v4292 = vsel %vm4036, %v3918, %v4228
    %v4293 = vsel %vm4037, %v3923, %v4229
    %v4294 = vsel %vm4038, %v3928, %v4230
    %v4295 = vsel %vm4039, %v3933, %v4231
    %v4296 = vsel %vm4040, %v3938, %v4232
    %v4297 = vsel %vm4041, %v3943, %v4233
    %v4298 = vsel %vm4042, %v3948, %v4234
    %v4299 = vsel %vm4043, %v3953, %v4235
    %v4300 = vsel %vm4044, %v3958, %v4236
    %v4301 = vsel %vm4045, %v3963, %v4237
    %v4302 = vsel %vm4046, %v3968, %v4238
    %v4303 = vsel %vm4047, %v3973, %v4239
    %v4304 = vsel %vm4048, %v3978, %v4240
    %v4305 = vsel %vm4049, %v3983, %v4241
    %v4370 = vcombine.high %v4242, %v4242
    %v4372 = vunpack.c.l.s4 1983009808
    %v4373 = vunpack.c.0.s8 %v4372
    %v4374 = vlaneseq
    %v4375 = vshrl.u32 %v4374, 7
    %v4376 = vsub.s32 %v4373, %v4375
    %v4377 = vrot.slane %v4242, %v4376
    %v4379 = vunpack.c.l.s4 1983009808
    %v4380 = vunpack.c.0.s8 %v4379
    %v4381 = vlaneseq
    %v4382 = vshrl.u32 %v4381, 7
    %v4383 = vsub.s32 %v4380, %v4382
    %v4384 = vrot.slane %v4370, %v4383
    %v4385 = vcombine.high %v4377, %v4377
    %v4386 = vcombine.high %v4384, %v4384
    %v4387 = vcombine.high %v4243, %v4243
    %v4389 = vunpack.c.l.s4 1983009808
    %v4390 = vunpack.c.0.s8 %v4389
    %v4391 = vlaneseq
    %v4392 = vshrl.u32 %v4391, 7
    %v4393 = vsub.s32 %v4390, %v4392
    %v4394 = vrot.slane %v4243, %v4393
    %v4396 = vunpack.c.l.s4 1983009808
    %v4397 = vunpack.c.0.s8 %v4396
    %v4398 = vlaneseq
    %v4399 = vshrl.u32 %v4398, 7
    %v4400 = vsub.s32 %v4397, %v4399
    %v4401 = vrot.slane %v4387, %v4400
    %v4402 = vcombine.high %v4394, %v4394
    %v4403 = vcombine.high %v4401, %v4401
    %v4404 = vcombine.high %v4244, %v4244
    %v4406 = vunpack.c.l.s4 1983009808
    %v4407 = vunpack.c.0.s8 %v4406
    %v4408 = vlaneseq
    %v4409 = vshrl.u32 %v4408, 7
    %v4410 = vsub.s32 %v4407, %v4409
    %v4411 = vrot.slane %v4244, %v4410
    %v4413 = vunpack.c.l.s4 1983009808
    %v4414 = vunpack.c.0.s8 %v4413
    %v4415 = vlaneseq
    %v4416 = vshrl.u32 %v4415, 7
    %v4417 = vsub.s32 %v4414, %v4416
    %v4418 = vrot.slane %v4404, %v4417
    %v4419 = vcombine.high %v4411, %v4411
    %v4420 = vcombine.high %v4418, %v4418
    %v4421 = vcombine.high %v4245, %v4245
    %v4423 = vunpack.c.l.s4 1983009808
    %v4424 = vunpack.c.0.s8 %v4423
    %v4425 = vlaneseq
    %v4426 = vshrl.u32 %v4425, 7
    %v4427 = vsub.s32 %v4424, %v4426
    %v4428 = vrot.slane %v4245, %v4427
    %v4430 = vunpack.c.l.s4 1983009808
    %v4431 = vunpack.c.0.s8 %v4430
    %v4432 = vlaneseq
    %v4433 = vshrl.u32 %v4432, 7
    %v4434 = vsub.s32 %v4431, %v4433
    %v4435 = vrot.slane %v4421, %v4434
    %v4436 = vcombine.high %v4428, %v4428
    %v4437 = vcombine.high %v4435, %v4435
    %v4438 = vcombine.high %v4246, %v4246
    %v4440 = vunpack.c.l.s4 1983009808
    %v4441 = vunpack.c.0.s8 %v4440
    %v4442 = vlaneseq
    %v4443 = vshrl.u32 %v4442, 7
    %v4444 = vsub.s32 %v4441, %v4443
    %v4445 = vrot.slane %v4246, %v4444
    %v4447 = vunpack.c.l.s4 1983009808
    %v4448 = vunpack.c.0.s8 %v4447
    %v4449 = vlaneseq
    %v4450 = vshrl.u32 %v4449, 7
    %v4451 = vsub.s32 %v4448, %v4450
    %v4452 = vrot.slane %v4438, %v4451
    %v4453 = vcombine.high %v4445, %v4445
    %v4454 = vcombine.high %v4452, %v4452
    %v4455 = vcombine.high %v4247, %v4247
    %v4457 = vunpack.c.l.s4 1983009808
    %v4458 = vunpack.c.0.s8 %v4457
    %v4459 = vlaneseq
    %v4460 = vshrl.u32 %v4459, 7
    %v4461 = vsub.s32 %v4458, %v4460
    %v4462 = vrot.slane %v4247, %v4461
    %v4464 = vunpack.c.l.s4 1983009808
    %v4465 = vunpack.c.0.s8 %v4464
    %v4466 = vlaneseq
    %v4467 = vshrl.u32 %v4466, 7
    %v4468 = vsub.s32 %v4465, %v4467
    %v4469 = vrot.slane %v4455, %v4468
    %v4470 = vcombine.high %v4462, %v4462
    %v4471 = vcombine.high %v4469, %v4469
    %v4472 = vcombine.high %v4248, %v4248
    %v4474 = vunpack.c.l.s4 1983009808
    %v4475 = vunpack.c.0.s8 %v4474
    %v4476 = vlaneseq
    %v4477 = vshrl.u32 %v4476, 7
    %v4478 = vsub.s32 %v4475, %v4477
    %v4479 = vrot.slane %v4248, %v4478
    %v4481 = vunpack.c.l.s4 1983009808
    %v4482 = vunpack.c.0.s8 %v4481
    %v4483 = vlaneseq
    %v4484 = vshrl.u32 %v4483, 7
    %v4485 = vsub.s32 %v4482, %v4484
    %v4486 = vrot.slane %v4472, %v4485
    %v4487 = vcombine.high %v4479, %v4479
    %v4488 = vcombine.high %v4486, %v4486
    %v4489 = vcombine.high %v4249, %v4249
    %v4491 = vunpack.c.l.s4 1983009808
    %v4492 = vunpack.c.0.s8 %v4491
    %v4493 = vlaneseq
    %v4494 = vshrl.u32 %v4493, 7
    %v4495 = vsub.s32 %v4492, %v4494
    %v4496 = vrot.slane %v4249, %v4495
    %v4498 = vunpack.c.l.s4 1983009808
    %v4499 = vunpack.c.0.s8 %v4498
    %v4500 = vlaneseq
    %v4501 = vshrl.u32 %v4500, 7
    %v4502 = vsub.s32 %v4499, %v4501
    %v4503 = vrot.slane %v4489, %v4502
    %v4504 = vcombine.high %v4496, %v4496
    %v4505 = vcombine.high %v4503, %v4503
    %v4506 = vcombine.high %v4250, %v4250
    %v4508 = vunpack.c.l.s4 1983009808
    %v4509 = vunpack.c.0.s8 %v4508
    %v4510 = vlaneseq
    %v4511 = vshrl.u32 %v4510, 7
    %v4512 = vsub.s32 %v4509, %v4511
    %v4513 = vrot.slane %v4250, %v4512
    %v4515 = vunpack.c.l.s4 1983009808
    %v4516 = vunpack.c.0.s8 %v4515
    %v4517 = vlaneseq
    %v4518 = vshrl.u32 %v4517, 7
    %v4519 = vsub.s32 %v4516, %v4518
    %v4520 = vrot.slane %v4506, %v4519
    %v4521 = vcombine.high %v4513, %v4513
    %v4522 = vcombine.high %v4520, %v4520
    %v4523 = vcombine.high %v4251, %v4251
    %v4525 = vunpack.c.l.s4 1983009808
    %v4526 = vunpack.c.0.s8 %v4525
    %v4527 = vlaneseq
    %v4528 = vshrl.u32 %v4527, 7
    %v4529 = vsub.s32 %v4526, %v4528
    %v4530 = vrot.slane %v4251, %v4529
    %v4532 = vunpack.c.l.s4 1983009808
    %v4533 = vunpack.c.0.s8 %v4532
    %v4534 = vlaneseq
    %v4535 = vshrl.u32 %v4534, 7
    %v4536 = vsub.s32 %v4533, %v4535
    %v4537 = vrot.slane %v4523, %v4536
    %v4538 = vcombine.high %v4530, %v4530
    %v4539 = vcombine.high %v4537, %v4537
    %v4540 = vcombine.high %v4252, %v4252
    %v4542 = vunpack.c.l.s4 1983009808
    %v4543 = vunpack.c.0.s8 %v4542
    %v4544 = vlaneseq
    %v4545 = vshrl.u32 %v4544, 7
    %v4546 = vsub.s32 %v4543, %v4545
    %v4547 = vrot.slane %v4252, %v4546
    %v4549 = vunpack.c.l.s4 1983009808
    %v4550 = vunpack.c.0.s8 %v4549
    %v4551 = vlaneseq
    %v4552 = vshrl.u32 %v4551, 7
    %v4553 = vsub.s32 %v4550, %v4552
    %v4554 = vrot.slane %v4540, %v4553
    %v4555 = vcombine.high %v4547, %v4547
    %v4556 = vcombine.high %v4554, %v4554
    %v4557 = vcombine.high %v4253, %v4253
    %v4559 = vunpack.c.l.s4 1983009808
    %v4560 = vunpack.c.0.s8 %v4559
    %v4561 = vlaneseq
    %v4562 = vshrl.u32 %v4561, 7
    %v4563 = vsub.s32 %v4560, %v4562
    %v4564 = vrot.slane %v4253, %v4563
    %v4566 = vunpack.c.l.s4 1983009808
    %v4567 = vunpack.c.0.s8 %v4566
    %v4568 = vlaneseq
    %v4569 = vshrl.u32 %v4568, 7
    %v4570 = vsub.s32 %v4567, %v4569
    %v4571 = vrot.slane %v4557, %v4570
    %v4572 = vcombine.high %v4564, %v4564
    %v4573 = vcombine.high %v4571, %v4571
    %v4574 = vcombine.high %v4254, %v4254
    %v4576 = vunpack.c.l.s4 1983009808
    %v4577 = vunpack.c.0.s8 %v4576
    %v4578 = vlaneseq
    %v4579 = vshrl.u32 %v4578, 7
    %v4580 = vsub.s32 %v4577, %v4579
    %v4581 = vrot.slane %v4254, %v4580
    %v4583 = vunpack.c.l.s4 1983009808
    %v4584 = vunpack.c.0.s8 %v4583
    %v4585 = vlaneseq
    %v4586 = vshrl.u32 %v4585, 7
    %v4587 = vsub.s32 %v4584, %v4586
    %v4588 = vrot.slane %v4574, %v4587
    %v4589 = vcombine.high %v4581, %v4581
    %v4590 = vcombine.high %v4588, %v4588
    %v4591 = vcombine.high %v4255, %v4255
    %v4593 = vunpack.c.l.s4 1983009808
    %v4594 = vunpack.c.0.s8 %v4593
    %v4595 = vlaneseq
    %v4596 = vshrl.u32 %v4595, 7
    %v4597 = vsub.s32 %v4594, %v4596
    %v4598 = vrot.slane %v4255, %v4597
    %v4600 = vunpack.c.l.s4 1983009808
    %v4601 = vunpack.c.0.s8 %v4600
    %v4602 = vlaneseq
    %v4603 = vshrl.u32 %v4602, 7
    %v4604 = vsub.s32 %v4601, %v4603
    %v4605 = vrot.slane %v4591, %v4604
    %v4606 = vcombine.high %v4598, %v4598
    %v4607 = vcombine.high %v4605, %v4605
    %v4608 = vcombine.high %v4256, %v4256
    %v4610 = vunpack.c.l.s4 1983009808
    %v4611 = vunpack.c.0.s8 %v4610
    %v4612 = vlaneseq
    %v4613 = vshrl.u32 %v4612, 7
    %v4614 = vsub.s32 %v4611, %v4613
    %v4615 = vrot.slane %v4256, %v4614
    %v4617 = vunpack.c.l.s4 1983009808
    %v4618 = vunpack.c.0.s8 %v4617
    %v4619 = vlaneseq
    %v4620 = vshrl.u32 %v4619, 7
    %v4621 = vsub.s32 %v4618, %v4620
    %v4622 = vrot.slane %v4608, %v4621
    %v4623 = vcombine.high %v4615, %v4615
    %v4624 = vcombine.high %v4622, %v4622
    %v4625 = vcombine.high %v4257, %v4257
    %v4627 = vunpack.c.l.s4 1983009808
    %v4628 = vunpack.c.0.s8 %v4627
    %v4629 = vlaneseq
    %v4630 = vshrl.u32 %v4629, 7
    %v4631 = vsub.s32 %v4628, %v4630
    %v4632 = vrot.slane %v4257, %v4631
    %v4634 = vunpack.c.l.s4 1983009808
    %v4635 = vunpack.c.0.s8 %v4634
    %v4636 = vlaneseq
    %v4637 = vshrl.u32 %v4636, 7
    %v4638 = vsub.s32 %v4635, %v4637
    %v4639 = vrot.slane %v4625, %v4638
    %v4640 = vcombine.high %v4632, %v4632
    %v4641 = vcombine.high %v4639, %v4639
    %v4642 = vcombine.high %v4258, %v4258
    %v4644 = vunpack.c.l.s4 1983009808
    %v4645 = vunpack.c.0.s8 %v4644
    %v4646 = vlaneseq
    %v4647 = vshrl.u32 %v4646, 7
    %v4648 = vsub.s32 %v4645, %v4647
    %v4649 = vrot.slane %v4258, %v4648
    %v4651 = vunpack.c.l.s4 1983009808
    %v4652 = vunpack.c.0.s8 %v4651
    %v4653 = vlaneseq
    %v4654 = vshrl.u32 %v4653, 7
    %v4655 = vsub.s32 %v4652, %v4654
    %v4656 = vrot.slane %v4642, %v4655
    %v4657 = vcombine.high %v4649, %v4649
    %v4658 = vcombine.high %v4656, %v4656
    %v4659 = vcombine.high %v4259, %v4259
    %v4661 = vunpack.c.l.s4 1983009808
    %v4662 = vunpack.c.0.s8 %v4661
    %v4663 = vlaneseq
    %v4664 = vshrl.u32 %v4663, 7
    %v4665 = vsub.s32 %v4662, %v4664
    %v4666 = vrot.slane %v4259, %v4665
    %v4668 = vunpack.c.l.s4 1983009808
    %v4669 = vunpack.c.0.s8 %v4668
    %v4670 = vlaneseq
    %v4671 = vshrl.u32 %v4670, 7
    %v4672 = vsub.s32 %v4669, %v4671
    %v4673 = vrot.slane %v4659, %v4672
    %v4674 = vcombine.high %v4666, %v4666
    %v4675 = vcombine.high %v4673, %v4673
    %v4676 = vcombine.high %v4260, %v4260
    %v4678 = vunpack.c.l.s4 1983009808
    %v4679 = vunpack.c.0.s8 %v4678
    %v4680 = vlaneseq
    %v4681 = vshrl.u32 %v4680, 7
    %v4682 = vsub.s32 %v4679, %v4681
    %v4683 = vrot.slane %v4260, %v4682
    %v4685 = vunpack.c.l.s4 1983009808
    %v4686 = vunpack.c.0.s8 %v4685
    %v4687 = vlaneseq
    %v4688 = vshrl.u32 %v4687, 7
    %v4689 = vsub.s32 %v4686, %v4688
    %v4690 = vrot.slane %v4676, %v4689
    %v4691 = vcombine.high %v4683, %v4683
    %v4692 = vcombine.high %v4690, %v4690
    %v4693 = vcombine.high %v4261, %v4261
    %v4695 = vunpack.c.l.s4 1983009808
    %v4696 = vunpack.c.0.s8 %v4695
    %v4697 = vlaneseq
    %v4698 = vshrl.u32 %v4697, 7
    %v4699 = vsub.s32 %v4696, %v4698
    %v4700 = vrot.slane %v4261, %v4699
    %v4702 = vunpack.c.l.s4 1983009808
    %v4703 = vunpack.c.0.s8 %v4702
    %v4704 = vlaneseq
    %v4705 = vshrl.u32 %v4704, 7
    %v4706 = vsub.s32 %v4703, %v4705
    %v4707 = vrot.slane %v4693, %v4706
    %v4708 = vcombine.high %v4700, %v4700
    %v4709 = vcombine.high %v4707, %v4707
    %v4710 = vcombine.high %v4262, %v4262
    %v4712 = vunpack.c.l.s4 1983009808
    %v4713 = vunpack.c.0.s8 %v4712
    %v4714 = vlaneseq
    %v4715 = vshrl.u32 %v4714, 7
    %v4716 = vsub.s32 %v4713, %v4715
    %v4717 = vrot.slane %v4262, %v4716
    %v4719 = vunpack.c.l.s4 1983009808
    %v4720 = vunpack.c.0.s8 %v4719
    %v4721 = vlaneseq
    %v4722 = vshrl.u32 %v4721, 7
    %v4723 = vsub.s32 %v4720, %v4722
    %v4724 = vrot.slane %v4710, %v4723
    %v4725 = vcombine.high %v4717, %v4717
    %v4726 = vcombine.high %v4724, %v4724
    %v4727 = vcombine.high %v4263, %v4263
    %v4729 = vunpack.c.l.s4 1983009808
    %v4730 = vunpack.c.0.s8 %v4729
    %v4731 = vlaneseq
    %v4732 = vshrl.u32 %v4731, 7
    %v4733 = vsub.s32 %v4730, %v4732
    %v4734 = vrot.slane %v4263, %v4733
    %v4736 = vunpack.c.l.s4 1983009808
    %v4737 = vunpack.c.0.s8 %v4736
    %v4738 = vlaneseq
    %v4739 = vshrl.u32 %v4738, 7
    %v4740 = vsub.s32 %v4737, %v4739
    %v4741 = vrot.slane %v4727, %v4740
    %v4742 = vcombine.high %v4734, %v4734
    %v4743 = vcombine.high %v4741, %v4741
    %v4744 = vcombine.high %v4264, %v4264
    %v4746 = vunpack.c.l.s4 1983009808
    %v4747 = vunpack.c.0.s8 %v4746
    %v4748 = vlaneseq
    %v4749 = vshrl.u32 %v4748, 7
    %v4750 = vsub.s32 %v4747, %v4749
    %v4751 = vrot.slane %v4264, %v4750
    %v4753 = vunpack.c.l.s4 1983009808
    %v4754 = vunpack.c.0.s8 %v4753
    %v4755 = vlaneseq
    %v4756 = vshrl.u32 %v4755, 7
    %v4757 = vsub.s32 %v4754, %v4756
    %v4758 = vrot.slane %v4744, %v4757
    %v4759 = vcombine.high %v4751, %v4751
    %v4760 = vcombine.high %v4758, %v4758
    %v4761 = vcombine.high %v4265, %v4265
    %v4763 = vunpack.c.l.s4 1983009808
    %v4764 = vunpack.c.0.s8 %v4763
    %v4765 = vlaneseq
    %v4766 = vshrl.u32 %v4765, 7
    %v4767 = vsub.s32 %v4764, %v4766
    %v4768 = vrot.slane %v4265, %v4767
    %v4770 = vunpack.c.l.s4 1983009808
    %v4771 = vunpack.c.0.s8 %v4770
    %v4772 = vlaneseq
    %v4773 = vshrl.u32 %v4772, 7
    %v4774 = vsub.s32 %v4771, %v4773
    %v4775 = vrot.slane %v4761, %v4774
    %v4776 = vcombine.high %v4768, %v4768
    %v4777 = vcombine.high %v4775, %v4775
    %v4778 = vcombine.high %v4266, %v4266
    %v4780 = vunpack.c.l.s4 1983009808
    %v4781 = vunpack.c.0.s8 %v4780
    %v4782 = vlaneseq
    %v4783 = vshrl.u32 %v4782, 7
    %v4784 = vsub.s32 %v4781, %v4783
    %v4785 = vrot.slane %v4266, %v4784
    %v4787 = vunpack.c.l.s4 1983009808
    %v4788 = vunpack.c.0.s8 %v4787
    %v4789 = vlaneseq
    %v4790 = vshrl.u32 %v4789, 7
    %v4791 = vsub.s32 %v4788, %v4790
    %v4792 = vrot.slane %v4778, %v4791
    %v4793 = vcombine.high %v4785, %v4785
    %v4794 = vcombine.high %v4792, %v4792
    %v4795 = vcombine.high %v4267, %v4267
    %v4797 = vunpack.c.l.s4 1983009808
    %v4798 = vunpack.c.0.s8 %v4797
    %v4799 = vlaneseq
    %v4800 = vshrl.u32 %v4799, 7
    %v4801 = vsub.s32 %v4798, %v4800
    %v4802 = vrot.slane %v4267, %v4801
    %v4804 = vunpack.c.l.s4 1983009808
    %v4805 = vunpack.c.0.s8 %v4804
    %v4806 = vlaneseq
    %v4807 = vshrl.u32 %v4806, 7
    %v4808 = vsub.s32 %v4805, %v4807
    %v4809 = vrot.slane %v4795, %v4808
    %v4810 = vcombine.high %v4802, %v4802
    %v4811 = vcombine.high %v4809, %v4809
    %v4812 = vcombine.high %v4268, %v4268
    %v4814 = vunpack.c.l.s4 1983009808
    %v4815 = vunpack.c.0.s8 %v4814
    %v4816 = vlaneseq
    %v4817 = vshrl.u32 %v4816, 7
    %v4818 = vsub.s32 %v4815, %v4817
    %v4819 = vrot.slane %v4268, %v4818
    %v4821 = vunpack.c.l.s4 1983009808
    %v4822 = vunpack.c.0.s8 %v4821
    %v4823 = vlaneseq
    %v4824 = vshrl.u32 %v4823, 7
    %v4825 = vsub.s32 %v4822, %v4824
    %v4826 = vrot.slane %v4812, %v4825
    %v4827 = vcombine.high %v4819, %v4819
    %v4828 = vcombine.high %v4826, %v4826
    %v4829 = vcombine.high %v4269, %v4269
    %v4831 = vunpack.c.l.s4 1983009808
    %v4832 = vunpack.c.0.s8 %v4831
    %v4833 = vlaneseq
    %v4834 = vshrl.u32 %v4833, 7
    %v4835 = vsub.s32 %v4832, %v4834
    %v4836 = vrot.slane %v4269, %v4835
    %v4838 = vunpack.c.l.s4 1983009808
    %v4839 = vunpack.c.0.s8 %v4838
    %v4840 = vlaneseq
    %v4841 = vshrl.u32 %v4840, 7
    %v4842 = vsub.s32 %v4839, %v4841
    %v4843 = vrot.slane %v4829, %v4842
    %v4844 = vcombine.high %v4836, %v4836
    %v4845 = vcombine.high %v4843, %v4843
    %v4846 = vcombine.high %v4270, %v4270
    %v4848 = vunpack.c.l.s4 1983009808
    %v4849 = vunpack.c.0.s8 %v4848
    %v4850 = vlaneseq
    %v4851 = vshrl.u32 %v4850, 7
    %v4852 = vsub.s32 %v4849, %v4851
    %v4853 = vrot.slane %v4270, %v4852
    %v4855 = vunpack.c.l.s4 1983009808
    %v4856 = vunpack.c.0.s8 %v4855
    %v4857 = vlaneseq
    %v4858 = vshrl.u32 %v4857, 7
    %v4859 = vsub.s32 %v4856, %v4858
    %v4860 = vrot.slane %v4846, %v4859
    %v4861 = vcombine.high %v4853, %v4853
    %v4862 = vcombine.high %v4860, %v4860
    %v4863 = vcombine.high %v4271, %v4271
    %v4865 = vunpack.c.l.s4 1983009808
    %v4866 = vunpack.c.0.s8 %v4865
    %v4867 = vlaneseq
    %v4868 = vshrl.u32 %v4867, 7
    %v4869 = vsub.s32 %v4866, %v4868
    %v4870 = vrot.slane %v4271, %v4869
    %v4872 = vunpack.c.l.s4 1983009808
    %v4873 = vunpack.c.0.s8 %v4872
    %v4874 = vlaneseq
    %v4875 = vshrl.u32 %v4874, 7
    %v4876 = vsub.s32 %v4873, %v4875
    %v4877 = vrot.slane %v4863, %v4876
    %v4878 = vcombine.high %v4870, %v4870
    %v4879 = vcombine.high %v4877, %v4877
    %v4880 = vcombine.high %v4272, %v4272
    %v4882 = vunpack.c.l.s4 1983009808
    %v4883 = vunpack.c.0.s8 %v4882
    %v4884 = vlaneseq
    %v4885 = vshrl.u32 %v4884, 7
    %v4886 = vsub.s32 %v4883, %v4885
    %v4887 = vrot.slane %v4272, %v4886
    %v4889 = vunpack.c.l.s4 1983009808
    %v4890 = vunpack.c.0.s8 %v4889
    %v4891 = vlaneseq
    %v4892 = vshrl.u32 %v4891, 7
    %v4893 = vsub.s32 %v4890, %v4892
    %v4894 = vrot.slane %v4880, %v4893
    %v4895 = vcombine.high %v4887, %v4887
    %v4896 = vcombine.high %v4894, %v4894
    %v4897 = vcombine.high %v4273, %v4273
    %v4899 = vunpack.c.l.s4 1983009808
    %v4900 = vunpack.c.0.s8 %v4899
    %v4901 = vlaneseq
    %v4902 = vshrl.u32 %v4901, 7
    %v4903 = vsub.s32 %v4900, %v4902
    %v4904 = vrot.slane %v4273, %v4903
    %v4906 = vunpack.c.l.s4 1983009808
    %v4907 = vunpack.c.0.s8 %v4906
    %v4908 = vlaneseq
    %v4909 = vshrl.u32 %v4908, 7
    %v4910 = vsub.s32 %v4907, %v4909
    %v4911 = vrot.slane %v4897, %v4910
    %v4912 = vcombine.high %v4904, %v4904
    %v4913 = vcombine.high %v4911, %v4911
    %v4914 = vcombine.high %v4274, %v4274
    %v4916 = vunpack.c.l.s4 1983009808
    %v4917 = vunpack.c.0.s8 %v4916
    %v4918 = vlaneseq
    %v4919 = vshrl.u32 %v4918, 7
    %v4920 = vsub.s32 %v4917, %v4919
    %v4921 = vrot.slane %v4274, %v4920
    %v4923 = vunpack.c.l.s4 1983009808
    %v4924 = vunpack.c.0.s8 %v4923
    %v4925 = vlaneseq
    %v4926 = vshrl.u32 %v4925, 7
    %v4927 = vsub.s32 %v4924, %v4926
    %v4928 = vrot.slane %v4914, %v4927
    %v4929 = vcombine.high %v4921, %v4921
    %v4930 = vcombine.high %v4928, %v4928
    %v4931 = vcombine.high %v4275, %v4275
    %v4933 = vunpack.c.l.s4 1983009808
    %v4934 = vunpack.c.0.s8 %v4933
    %v4935 = vlaneseq
    %v4936 = vshrl.u32 %v4935, 7
    %v4937 = vsub.s32 %v4934, %v4936
    %v4938 = vrot.slane %v4275, %v4937
    %v4940 = vunpack.c.l.s4 1983009808
    %v4941 = vunpack.c.0.s8 %v4940
    %v4942 = vlaneseq
    %v4943 = vshrl.u32 %v4942, 7
    %v4944 = vsub.s32 %v4941, %v4943
    %v4945 = vrot.slane %v4931, %v4944
    %v4946 = vcombine.high %v4938, %v4938
    %v4947 = vcombine.high %v4945, %v4945
    %v4948 = vcombine.high %v4276, %v4276
    %v4950 = vunpack.c.l.s4 1983009808
    %v4951 = vunpack.c.0.s8 %v4950
    %v4952 = vlaneseq
    %v4953 = vshrl.u32 %v4952, 7
    %v4954 = vsub.s32 %v4951, %v4953
    %v4955 = vrot.slane %v4276, %v4954
    %v4957 = vunpack.c.l.s4 1983009808
    %v4958 = vunpack.c.0.s8 %v4957
    %v4959 = vlaneseq
    %v4960 = vshrl.u32 %v4959, 7
    %v4961 = vsub.s32 %v4958, %v4960
    %v4962 = vrot.slane %v4948, %v4961
    %v4963 = vcombine.high %v4955, %v4955
    %v4964 = vcombine.high %v4962, %v4962
    %v4965 = vcombine.high %v4277, %v4277
    %v4967 = vunpack.c.l.s4 1983009808
    %v4968 = vunpack.c.0.s8 %v4967
    %v4969 = vlaneseq
    %v4970 = vshrl.u32 %v4969, 7
    %v4971 = vsub.s32 %v4968, %v4970
    %v4972 = vrot.slane %v4277, %v4971
    %v4974 = vunpack.c.l.s4 1983009808
    %v4975 = vunpack.c.0.s8 %v4974
    %v4976 = vlaneseq
    %v4977 = vshrl.u32 %v4976, 7
    %v4978 = vsub.s32 %v4975, %v4977
    %v4979 = vrot.slane %v4965, %v4978
    %v4980 = vcombine.high %v4972, %v4972
    %v4981 = vcombine.high %v4979, %v4979
    %v4982 = vcombine.high %v4278, %v4278
    %v4984 = vunpack.c.l.s4 1983009808
    %v4985 = vunpack.c.0.s8 %v4984
    %v4986 = vlaneseq
    %v4987 = vshrl.u32 %v4986, 7
    %v4988 = vsub.s32 %v4985, %v4987
    %v4989 = vrot.slane %v4278, %v4988
    %v4991 = vunpack.c.l.s4 1983009808
    %v4992 = vunpack.c.0.s8 %v4991
    %v4993 = vlaneseq
    %v4994 = vshrl.u32 %v4993, 7
    %v4995 = vsub.s32 %v4992, %v4994
    %v4996 = vrot.slane %v4982, %v4995
    %v4997 = vcombine.high %v4989, %v4989
    %v4998 = vcombine.high %v4996, %v4996
    %v4999 = vcombine.high %v4279, %v4279
    %v5001 = vunpack.c.l.s4 1983009808
    %v5002 = vunpack.c.0.s8 %v5001
    %v5003 = vlaneseq
    %v5004 = vshrl.u32 %v5003, 7
    %v5005 = vsub.s32 %v5002, %v5004
    %v5006 = vrot.slane %v4279, %v5005
    %v5008 = vunpack.c.l.s4 1983009808
    %v5009 = vunpack.c.0.s8 %v5008
    %v5010 = vlaneseq
    %v5011 = vshrl.u32 %v5010, 7
    %v5012 = vsub.s32 %v5009, %v5011
    %v5013 = vrot.slane %v4999, %v5012
    %v5014 = vcombine.high %v5006, %v5006
    %v5015 = vcombine.high %v5013, %v5013
    %v5016 = vcombine.high %v4280, %v4280
    %v5018 = vunpack.c.l.s4 1983009808
    %v5019 = vunpack.c.0.s8 %v5018
    %v5020 = vlaneseq
    %v5021 = vshrl.u32 %v5020, 7
    %v5022 = vsub.s32 %v5019, %v5021
    %v5023 = vrot.slane %v4280, %v5022
    %v5025 = vunpack.c.l.s4 1983009808
    %v5026 = vunpack.c.0.s8 %v5025
    %v5027 = vlaneseq
    %v5028 = vshrl.u32 %v5027, 7
    %v5029 = vsub.s32 %v5026, %v5028
    %v5030 = vrot.slane %v5016, %v5029
    %v5031 = vcombine.high %v5023, %v5023
    %v5032 = vcombine.high %v5030, %v5030
    %v5033 = vcombine.high %v4281, %v4281
    %v5035 = vunpack.c.l.s4 1983009808
    %v5036 = vunpack.c.0.s8 %v5035
    %v5037 = vlaneseq
    %v5038 = vshrl.u32 %v5037, 7
    %v5039 = vsub.s32 %v5036, %v5038
    %v5040 = vrot.slane %v4281, %v5039
    %v5042 = vunpack.c.l.s4 1983009808
    %v5043 = vunpack.c.0.s8 %v5042
    %v5044 = vlaneseq
    %v5045 = vshrl.u32 %v5044, 7
    %v5046 = vsub.s32 %v5043, %v5045
    %v5047 = vrot.slane %v5033, %v5046
    %v5048 = vcombine.high %v5040, %v5040
    %v5049 = vcombine.high %v5047, %v5047
    %v5050 = vcombine.high %v4282, %v4282
    %v5052 = vunpack.c.l.s4 1983009808
    %v5053 = vunpack.c.0.s8 %v5052
    %v5054 = vlaneseq
    %v5055 = vshrl.u32 %v5054, 7
    %v5056 = vsub.s32 %v5053, %v5055
    %v5057 = vrot.slane %v4282, %v5056
    %v5059 = vunpack.c.l.s4 1983009808
    %v5060 = vunpack.c.0.s8 %v5059
    %v5061 = vlaneseq
    %v5062 = vshrl.u32 %v5061, 7
    %v5063 = vsub.s32 %v5060, %v5062
    %v5064 = vrot.slane %v5050, %v5063
    %v5065 = vcombine.high %v5057, %v5057
    %v5066 = vcombine.high %v5064, %v5064
    %v5067 = vcombine.high %v4283, %v4283
    %v5069 = vunpack.c.l.s4 1983009808
    %v5070 = vunpack.c.0.s8 %v5069
    %v5071 = vlaneseq
    %v5072 = vshrl.u32 %v5071, 7
    %v5073 = vsub.s32 %v5070, %v5072
    %v5074 = vrot.slane %v4283, %v5073
    %v5076 = vunpack.c.l.s4 1983009808
    %v5077 = vunpack.c.0.s8 %v5076
    %v5078 = vlaneseq
    %v5079 = vshrl.u32 %v5078, 7
    %v5080 = vsub.s32 %v5077, %v5079
    %v5081 = vrot.slane %v5067, %v5080
    %v5082 = vcombine.high %v5074, %v5074
    %v5083 = vcombine.high %v5081, %v5081
    %v5084 = vcombine.high %v4284, %v4284
    %v5086 = vunpack.c.l.s4 1983009808
    %v5087 = vunpack.c.0.s8 %v5086
    %v5088 = vlaneseq
    %v5089 = vshrl.u32 %v5088, 7
    %v5090 = vsub.s32 %v5087, %v5089
    %v5091 = vrot.slane %v4284, %v5090
    %v5093 = vunpack.c.l.s4 1983009808
    %v5094 = vunpack.c.0.s8 %v5093
    %v5095 = vlaneseq
    %v5096 = vshrl.u32 %v5095, 7
    %v5097 = vsub.s32 %v5094, %v5096
    %v5098 = vrot.slane %v5084, %v5097
    %v5099 = vcombine.high %v5091, %v5091
    %v5100 = vcombine.high %v5098, %v5098
    %v5101 = vcombine.high %v4285, %v4285
    %v5103 = vunpack.c.l.s4 1983009808
    %v5104 = vunpack.c.0.s8 %v5103
    %v5105 = vlaneseq
    %v5106 = vshrl.u32 %v5105, 7
    %v5107 = vsub.s32 %v5104, %v5106
    %v5108 = vrot.slane %v4285, %v5107
    %v5110 = vunpack.c.l.s4 1983009808
    %v5111 = vunpack.c.0.s8 %v5110
    %v5112 = vlaneseq
    %v5113 = vshrl.u32 %v5112, 7
    %v5114 = vsub.s32 %v5111, %v5113
    %v5115 = vrot.slane %v5101, %v5114
    %v5116 = vcombine.high %v5108, %v5108
    %v5117 = vcombine.high %v5115, %v5115
    %v5118 = vcombine.high %v4286, %v4286
    %v5120 = vunpack.c.l.s4 1983009808
    %v5121 = vunpack.c.0.s8 %v5120
    %v5122 = vlaneseq
    %v5123 = vshrl.u32 %v5122, 7
    %v5124 = vsub.s32 %v5121, %v5123
    %v5125 = vrot.slane %v4286, %v5124
    %v5127 = vunpack.c.l.s4 1983009808
    %v5128 = vunpack.c.0.s8 %v5127
    %v5129 = vlaneseq
    %v5130 = vshrl.u32 %v5129, 7
    %v5131 = vsub.s32 %v5128, %v5130
    %v5132 = vrot.slane %v5118, %v5131
    %v5133 = vcombine.high %v5125, %v5125
    %v5134 = vcombine.high %v5132, %v5132
    %v5135 = vcombine.high %v4287, %v4287
    %v5137 = vunpack.c.l.s4 1983009808
    %v5138 = vunpack.c.0.s8 %v5137
    %v5139 = vlaneseq
    %v5140 = vshrl.u32 %v5139, 7
    %v5141 = vsub.s32 %v5138, %v5140
    %v5142 = vrot.slane %v4287, %v5141
    %v5144 = vunpack.c.l.s4 1983009808
    %v5145 = vunpack.c.0.s8 %v5144
    %v5146 = vlaneseq
    %v5147 = vshrl.u32 %v5146, 7
    %v5148 = vsub.s32 %v5145, %v5147
    %v5149 = vrot.slane %v5135, %v5148
    %v5150 = vcombine.high %v5142, %v5142
    %v5151 = vcombine.high %v5149, %v5149
    %v5152 = vcombine.high %v4288, %v4288
    %v5154 = vunpack.c.l.s4 1983009808
    %v5155 = vunpack.c.0.s8 %v5154
    %v5156 = vlaneseq
    %v5157 = vshrl.u32 %v5156, 7
    %v5158 = vsub.s32 %v5155, %v5157
    %v5159 = vrot.slane %v4288, %v5158
    %v5161 = vunpack.c.l.s4 1983009808
    %v5162 = vunpack.c.0.s8 %v5161
    %v5163 = vlaneseq
    %v5164 = vshrl.u32 %v5163, 7
    %v5165 = vsub.s32 %v5162, %v5164
    %v5166 = vrot.slane %v5152, %v5165
    %v5167 = vcombine.high %v5159, %v5159
    %v5168 = vcombine.high %v5166, %v5166
    %v5169 = vcombine.high %v4289, %v4289
    %v5171 = vunpack.c.l.s4 1983009808
    %v5172 = vunpack.c.0.s8 %v5171
    %v5173 = vlaneseq
    %v5174 = vshrl.u32 %v5173, 7
    %v5175 = vsub.s32 %v5172, %v5174
    %v5176 = vrot.slane %v4289, %v5175
    %v5178 = vunpack.c.l.s4 1983009808
    %v5179 = vunpack.c.0.s8 %v5178
    %v5180 = vlaneseq
    %v5181 = vshrl.u32 %v5180, 7
    %v5182 = vsub.s32 %v5179, %v5181
    %v5183 = vrot.slane %v5169, %v5182
    %v5184 = vcombine.high %v5176, %v5176
    %v5185 = vcombine.high %v5183, %v5183
    %v5186 = vcombine.high %v4290, %v4290
    %v5188 = vunpack.c.l.s4 1983009808
    %v5189 = vunpack.c.0.s8 %v5188
    %v5190 = vlaneseq
    %v5191 = vshrl.u32 %v5190, 7
    %v5192 = vsub.s32 %v5189, %v5191
    %v5193 = vrot.slane %v4290, %v5192
    %v5195 = vunpack.c.l.s4 1983009808
    %v5196 = vunpack.c.0.s8 %v5195
    %v5197 = vlaneseq
    %v5198 = vshrl.u32 %v5197, 7
    %v5199 = vsub.s32 %v5196, %v5198
    %v5200 = vrot.slane %v5186, %v5199
    %v5201 = vcombine.high %v5193, %v5193
    %v5202 = vcombine.high %v5200, %v5200
    %v5203 = vcombine.high %v4291, %v4291
    %v5205 = vunpack.c.l.s4 1983009808
    %v5206 = vunpack.c.0.s8 %v5205
    %v5207 = vlaneseq
    %v5208 = vshrl.u32 %v5207, 7
    %v5209 = vsub.s32 %v5206, %v5208
    %v5210 = vrot.slane %v4291, %v5209
    %v5212 = vunpack.c.l.s4 1983009808
    %v5213 = vunpack.c.0.s8 %v5212
    %v5214 = vlaneseq
    %v5215 = vshrl.u32 %v5214, 7
    %v5216 = vsub.s32 %v5213, %v5215
    %v5217 = vrot.slane %v5203, %v5216
    %v5218 = vcombine.high %v5210, %v5210
    %v5219 = vcombine.high %v5217, %v5217
    %v5220 = vcombine.high %v4292, %v4292
    %v5222 = vunpack.c.l.s4 1983009808
    %v5223 = vunpack.c.0.s8 %v5222
    %v5224 = vlaneseq
    %v5225 = vshrl.u32 %v5224, 7
    %v5226 = vsub.s32 %v5223, %v5225
    %v5227 = vrot.slane %v4292, %v5226
    %v5229 = vunpack.c.l.s4 1983009808
    %v5230 = vunpack.c.0.s8 %v5229
    %v5231 = vlaneseq
    %v5232 = vshrl.u32 %v5231, 7
    %v5233 = vsub.s32 %v5230, %v5232
    %v5234 = vrot.slane %v5220, %v5233
    %v5235 = vcombine.high %v5227, %v5227
    %v5236 = vcombine.high %v5234, %v5234
    %v5237 = vcombine.high %v4293, %v4293
    %v5239 = vunpack.c.l.s4 1983009808
    %v5240 = vunpack.c.0.s8 %v5239
    %v5241 = vlaneseq
    %v5242 = vshrl.u32 %v5241, 7
    %v5243 = vsub.s32 %v5240, %v5242
    %v5244 = vrot.slane %v4293, %v5243
    %v5246 = vunpack.c.l.s4 1983009808
    %v5247 = vunpack.c.0.s8 %v5246
    %v5248 = vlaneseq
    %v5249 = vshrl.u32 %v5248, 7
    %v5250 = vsub.s32 %v5247, %v5249
    %v5251 = vrot.slane %v5237, %v5250
    %v5252 = vcombine.high %v5244, %v5244
    %v5253 = vcombine.high %v5251, %v5251
    %v5254 = vcombine.high %v4294, %v4294
    %v5256 = vunpack.c.l.s4 1983009808
    %v5257 = vunpack.c.0.s8 %v5256
    %v5258 = vlaneseq
    %v5259 = vshrl.u32 %v5258, 7
    %v5260 = vsub.s32 %v5257, %v5259
    %v5261 = vrot.slane %v4294, %v5260
    %v5263 = vunpack.c.l.s4 1983009808
    %v5264 = vunpack.c.0.s8 %v5263
    %v5265 = vlaneseq
    %v5266 = vshrl.u32 %v5265, 7
    %v5267 = vsub.s32 %v5264, %v5266
    %v5268 = vrot.slane %v5254, %v5267
    %v5269 = vcombine.high %v5261, %v5261
    %v5270 = vcombine.high %v5268, %v5268
    %v5271 = vcombine.high %v4295, %v4295
    %v5273 = vunpack.c.l.s4 1983009808
    %v5274 = vunpack.c.0.s8 %v5273
    %v5275 = vlaneseq
    %v5276 = vshrl.u32 %v5275, 7
    %v5277 = vsub.s32 %v5274, %v5276
    %v5278 = vrot.slane %v4295, %v5277
    %v5280 = vunpack.c.l.s4 1983009808
    %v5281 = vunpack.c.0.s8 %v5280
    %v5282 = vlaneseq
    %v5283 = vshrl.u32 %v5282, 7
    %v5284 = vsub.s32 %v5281, %v5283
    %v5285 = vrot.slane %v5271, %v5284
    %v5286 = vcombine.high %v5278, %v5278
    %v5287 = vcombine.high %v5285, %v5285
    %v5288 = vcombine.high %v4296, %v4296
    %v5290 = vunpack.c.l.s4 1983009808
    %v5291 = vunpack.c.0.s8 %v5290
    %v5292 = vlaneseq
    %v5293 = vshrl.u32 %v5292, 7
    %v5294 = vsub.s32 %v5291, %v5293
    %v5295 = vrot.slane %v4296, %v5294
    %v5297 = vunpack.c.l.s4 1983009808
    %v5298 = vunpack.c.0.s8 %v5297
    %v5299 = vlaneseq
    %v5300 = vshrl.u32 %v5299, 7
    %v5301 = vsub.s32 %v5298, %v5300
    %v5302 = vrot.slane %v5288, %v5301
    %v5303 = vcombine.high %v5295, %v5295
    %v5304 = vcombine.high %v5302, %v5302
    %v5305 = vcombine.high %v4297, %v4297
    %v5307 = vunpack.c.l.s4 1983009808
    %v5308 = vunpack.c.0.s8 %v5307
    %v5309 = vlaneseq
    %v5310 = vshrl.u32 %v5309, 7
    %v5311 = vsub.s32 %v5308, %v5310
    %v5312 = vrot.slane %v4297, %v5311
    %v5314 = vunpack.c.l.s4 1983009808
    %v5315 = vunpack.c.0.s8 %v5314
    %v5316 = vlaneseq
    %v5317 = vshrl.u32 %v5316, 7
    %v5318 = vsub.s32 %v5315, %v5317
    %v5319 = vrot.slane %v5305, %v5318
    %v5320 = vcombine.high %v5312, %v5312
    %v5321 = vcombine.high %v5319, %v5319
    %v5322 = vcombine.high %v4298, %v4298
    %v5324 = vunpack.c.l.s4 1983009808
    %v5325 = vunpack.c.0.s8 %v5324
    %v5326 = vlaneseq
    %v5327 = vshrl.u32 %v5326, 7
    %v5328 = vsub.s32 %v5325, %v5327
    %v5329 = vrot.slane %v4298, %v5328
    %v5331 = vunpack.c.l.s4 1983009808
    %v5332 = vunpack.c.0.s8 %v5331
    %v5333 = vlaneseq
    %v5334 = vshrl.u32 %v5333, 7
    %v5335 = vsub.s32 %v5332, %v5334
    %v5336 = vrot.slane %v5322, %v5335
    %v5337 = vcombine.high %v5329, %v5329
    %v5338 = vcombine.high %v5336, %v5336
    %v5339 = vcombine.high %v4299, %v4299
    %v5341 = vunpack.c.l.s4 1983009808
    %v5342 = vunpack.c.0.s8 %v5341
    %v5343 = vlaneseq
    %v5344 = vshrl.u32 %v5343, 7
    %v5345 = vsub.s32 %v5342, %v5344
    %v5346 = vrot.slane %v4299, %v5345
    %v5348 = vunpack.c.l.s4 1983009808
    %v5349 = vunpack.c.0.s8 %v5348
    %v5350 = vlaneseq
    %v5351 = vshrl.u32 %v5350, 7
    %v5352 = vsub.s32 %v5349, %v5351
    %v5353 = vrot.slane %v5339, %v5352
    %v5354 = vcombine.high %v5346, %v5346
    %v5355 = vcombine.high %v5353, %v5353
    %v5356 = vcombine.high %v4300, %v4300
    %v5358 = vunpack.c.l.s4 1983009808
    %v5359 = vunpack.c.0.s8 %v5358
    %v5360 = vlaneseq
    %v5361 = vshrl.u32 %v5360, 7
    %v5362 = vsub.s32 %v5359, %v5361
    %v5363 = vrot.slane %v4300, %v5362
    %v5365 = vunpack.c.l.s4 1983009808
    %v5366 = vunpack.c.0.s8 %v5365
    %v5367 = vlaneseq
    %v5368 = vshrl.u32 %v5367, 7
    %v5369 = vsub.s32 %v5366, %v5368
    %v5370 = vrot.slane %v5356, %v5369
    %v5371 = vcombine.high %v5363, %v5363
    %v5372 = vcombine.high %v5370, %v5370
    %v5373 = vcombine.high %v4301, %v4301
    %v5375 = vunpack.c.l.s4 1983009808
    %v5376 = vunpack.c.0.s8 %v5375
    %v5377 = vlaneseq
    %v5378 = vshrl.u32 %v5377, 7
    %v5379 = vsub.s32 %v5376, %v5378
    %v5380 = vrot.slane %v4301, %v5379
    %v5382 = vunpack.c.l.s4 1983009808
    %v5383 = vunpack.c.0.s8 %v5382
    %v5384 = vlaneseq
    %v5385 = vshrl.u32 %v5384, 7
    %v5386 = vsub.s32 %v5383, %v5385
    %v5387 = vrot.slane %v5373, %v5386
    %v5388 = vcombine.high %v5380, %v5380
    %v5389 = vcombine.high %v5387, %v5387
    %v5390 = vcombine.high %v4302, %v4302
    %v5392 = vunpack.c.l.s4 1983009808
    %v5393 = vunpack.c.0.s8 %v5392
    %v5394 = vlaneseq
    %v5395 = vshrl.u32 %v5394, 7
    %v5396 = vsub.s32 %v5393, %v5395
    %v5397 = vrot.slane %v4302, %v5396
    %v5399 = vunpack.c.l.s4 1983009808
    %v5400 = vunpack.c.0.s8 %v5399
    %v5401 = vlaneseq
    %v5402 = vshrl.u32 %v5401, 7
    %v5403 = vsub.s32 %v5400, %v5402
    %v5404 = vrot.slane %v5390, %v5403
    %v5405 = vcombine.high %v5397, %v5397
    %v5406 = vcombine.high %v5404, %v5404
    %v5407 = vcombine.high %v4303, %v4303
    %v5409 = vunpack.c.l.s4 1983009808
    %v5410 = vunpack.c.0.s8 %v5409
    %v5411 = vlaneseq
    %v5412 = vshrl.u32 %v5411, 7
    %v5413 = vsub.s32 %v5410, %v5412
    %v5414 = vrot.slane %v4303, %v5413
    %v5416 = vunpack.c.l.s4 1983009808
    %v5417 = vunpack.c.0.s8 %v5416
    %v5418 = vlaneseq
    %v5419 = vshrl.u32 %v5418, 7
    %v5420 = vsub.s32 %v5417, %v5419
    %v5421 = vrot.slane %v5407, %v5420
    %v5422 = vcombine.high %v5414, %v5414
    %v5423 = vcombine.high %v5421, %v5421
    %v5424 = vcombine.high %v4304, %v4304
    %v5426 = vunpack.c.l.s4 1983009808
    %v5427 = vunpack.c.0.s8 %v5426
    %v5428 = vlaneseq
    %v5429 = vshrl.u32 %v5428, 7
    %v5430 = vsub.s32 %v5427, %v5429
    %v5431 = vrot.slane %v4304, %v5430
    %v5433 = vunpack.c.l.s4 1983009808
    %v5434 = vunpack.c.0.s8 %v5433
    %v5435 = vlaneseq
    %v5436 = vshrl.u32 %v5435, 7
    %v5437 = vsub.s32 %v5434, %v5436
    %v5438 = vrot.slane %v5424, %v5437
    %v5439 = vcombine.high %v5431, %v5431
    %v5440 = vcombine.high %v5438, %v5438
    %v5441 = vcombine.high %v4305, %v4305
    %v5443 = vunpack.c.l.s4 1983009808
    %v5444 = vunpack.c.0.s8 %v5443
    %v5445 = vlaneseq
    %v5446 = vshrl.u32 %v5445, 7
    %v5447 = vsub.s32 %v5444, %v5446
    %v5448 = vrot.slane %v4305, %v5447
    %v5450 = vunpack.c.l.s4 1983009808
    %v5451 = vunpack.c.0.s8 %v5450
    %v5452 = vlaneseq
    %v5453 = vshrl.u32 %v5452, 7
    %v5454 = vsub.s32 %v5451, %v5453
    %v5455 = vrot.slane %v5441, %v5454
    %v5456 = vcombine.high %v5448, %v5448
    %v5457 = vcombine.high %v5455, %v5455
    %v5714 = vrot.slane %v4377, 7
    %v5715 = vrot.slane %v5714, 2
    %v5716 = vrot.slane %v4385, 7
    %v5717 = vrot.slane %v5716, 2
    %v5718 = vrot.slane %v4384, 7
    %v5719 = vrot.slane %v5718, 2
    %v5720 = vrot.slane %v4386, 7
    %v5721 = vrot.slane %v5720, 2
    %v5722 = vrot.slane %v4394, 7
    %v5723 = vrot.slane %v5722, 2
    %v5724 = vrot.slane %v4402, 7
    %v5725 = vrot.slane %v5724, 2
    %v5726 = vrot.slane %v4401, 7
    %v5727 = vrot.slane %v5726, 2
    %v5728 = vrot.slane %v4403, 7
    %v5729 = vrot.slane %v5728, 2
    %v5730 = vrot.slane %v4411, 7
    %v5731 = vrot.slane %v5730, 2
    %v5732 = vrot.slane %v4419, 7
    %v5733 = vrot.slane %v5732, 2
    %v5734 = vrot.slane %v4418, 7
    %v5735 = vrot.slane %v5734, 2
    %v5736 = vrot.slane %v4420, 7
    %v5737 = vrot.slane %v5736, 2
    %v5738 = vrot.slane %v4428, 7
    %v5739 = vrot.slane %v5738, 2
    %v5740 = vrot.slane %v4436, 7
    %v5741 = vrot.slane %v5740, 2
    %v5742 = vrot.slane %v4435, 7
    %v5743 = vrot.slane %v5742, 2
    %v5744 = vrot.slane %v4437, 7
    %v5745 = vrot.slane %v5744, 2
    %v5746 = vrot.slane %v4445, 7
    %v5747 = vrot.slane %v5746, 2
    %v5748 = vrot.slane %v4453, 7
    %v5749 = vrot.slane %v5748, 2
    %v5750 = vrot.slane %v4452, 7
    %v5751 = vrot.slane %v5750, 2
    %v5752 = vrot.slane %v4454, 7
    %v5753 = vrot.slane %v5752, 2
    %v5754 = vrot.slane %v4462, 7
    %v5755 = vrot.slane %v5754, 2
    %v5756 = vrot.slane %v4470, 7
    %v5757 = vrot.slane %v5756, 2
    %v5758 = vrot.slane %v4469, 7
    %v5759 = vrot.slane %v5758, 2
    %v5760 = vrot.slane %v4471, 7
    %v5761 = vrot.slane %v5760, 2
    %v5762 = vrot.slane %v4479, 7
    %v5763 = vrot.slane %v5762, 2
    %v5764 = vrot.slane %v4487, 7
    %v5765 = vrot.slane %v5764, 2
    %v5766 = vrot.slane %v4486, 7
    %v5767 = vrot.slane %v5766, 2
    %v5768 = vrot.slane %v4488, 7
    %v5769 = vrot.slane %v5768, 2
    %v5770 = vrot.slane %v4496, 7
    %v5771 = vrot.slane %v5770, 2
    %v5772 = vrot.slane %v4504, 7
    %v5773 = vrot.slane %v5772, 2
    %v5774 = vrot.slane %v4503, 7
    %v5775 = vrot.slane %v5774, 2
    %v5776 = vrot.slane %v4505, 7
    %v5777 = vrot.slane %v5776, 2
    %v5778 = vrot.slane %v4513, 7
    %v5779 = vrot.slane %v5778, 2
    %v5780 = vrot.slane %v4521, 7
    %v5781 = vrot.slane %v5780, 2
    %v5782 = vrot.slane %v4520, 7
    %v5783 = vrot.slane %v5782, 2
    %v5784 = vrot.slane %v4522, 7
    %v5785 = vrot.slane %v5784, 2
    %v5786 = vrot.slane %v4530, 7
    %v5787 = vrot.slane %v5786, 2
    %v5788 = vrot.slane %v4538, 7
    %v5789 = vrot.slane %v5788, 2
    %v5790 = vrot.slane %v4537, 7
    %v5791 = vrot.slane %v5790, 2
    %v5792 = vrot.slane %v4539, 7
    %v5793 = vrot.slane %v5792, 2
    %v5794 = vrot.slane %v4547, 7
    %v5795 = vrot.slane %v5794, 2
    %v5796 = vrot.slane %v4555, 7
    %v5797 = vrot.slane %v5796, 2
    %v5798 = vrot.slane %v4554, 7
    %v5799 = vrot.slane %v5798, 2
    %v5800 = vrot.slane %v4556, 7
    %v5801 = vrot.slane %v5800, 2
    %v5802 = vrot.slane %v4564, 7
    %v5803 = vrot.slane %v5802, 2
    %v5804 = vrot.slane %v4572, 7
    %v5805 = vrot.slane %v5804, 2
    %v5806 = vrot.slane %v4571, 7
    %v5807 = vrot.slane %v5806, 2
    %v5808 = vrot.slane %v4573, 7
    %v5809 = vrot.slane %v5808, 2
    %v5810 = vrot.slane %v4581, 7
    %v5811 = vrot.slane %v5810, 2
    %v5812 = vrot.slane %v4589, 7
    %v5813 = vrot.slane %v5812, 2
    %v5814 = vrot.slane %v4588, 7
    %v5815 = vrot.slane %v5814, 2
    %v5816 = vrot.slane %v4590, 7
    %v5817 = vrot.slane %v5816, 2
    %v5818 = vrot.slane %v4598, 7
    %v5819 = vrot.slane %v5818, 2
    %v5820 = vrot.slane %v4606, 7
    %v5821 = vrot.slane %v5820, 2
    %v5822 = vrot.slane %v4605, 7
    %v5823 = vrot.slane %v5822, 2
    %v5824 = vrot.slane %v4607, 7
    %v5825 = vrot.slane %v5824, 2
    %v5826 = vrot.slane %v4615, 7
    %v5827 = vrot.slane %v5826, 2
    %v5828 = vrot.slane %v4623, 7
    %v5829 = vrot.slane %v5828, 2
    %v5830 = vrot.slane %v4622, 7
    %v5831 = vrot.slane %v5830, 2
    %v5832 = vrot.slane %v4624, 7
    %v5833 = vrot.slane %v5832, 2
    %v5834 = vrot.slane %v4632, 7
    %v5835 = vrot.slane %v5834, 2
    %v5836 = vrot.slane %v4640, 7
    %v5837 = vrot.slane %v5836, 2
    %v5838 = vrot.slane %v4639, 7
    %v5839 = vrot.slane %v5838, 2
    %v5840 = vrot.slane %v4641, 7
    %v5841 = vrot.slane %v5840, 2
    %v5842 = vrot.slane %v4649, 7
    %v5843 = vrot.slane %v5842, 2
    %v5844 = vrot.slane %v4657, 7
    %v5845 = vrot.slane %v5844, 2
    %v5846 = vrot.slane %v4656, 7
    %v5847 = vrot.slane %v5846, 2
    %v5848 = vrot.slane %v4658, 7
    %v5849 = vrot.slane %v5848, 2
    %v5850 = vrot.slane %v4666, 7
    %v5851 = vrot.slane %v5850, 2
    %v5852 = vrot.slane %v4674, 7
    %v5853 = vrot.slane %v5852, 2
    %v5854 = vrot.slane %v4673, 7
    %v5855 = vrot.slane %v5854, 2
    %v5856 = vrot.slane %v4675, 7
    %v5857 = vrot.slane %v5856, 2
    %v5858 = vrot.slane %v4683, 7
    %v5859 = vrot.slane %v5858, 2
    %v5860 = vrot.slane %v4691, 7
    %v5861 = vrot.slane %v5860, 2
    %v5862 = vrot.slane %v4690, 7
    %v5863 = vrot.slane %v5862, 2
    %v5864 = vrot.slane %v4692, 7
    %v5865 = vrot.slane %v5864, 2
    %v5866 = vrot.slane %v4700, 7
    %v5867 = vrot.slane %v5866, 2
    %v5868 = vrot.slane %v4708, 7
    %v5869 = vrot.slane %v5868, 2
    %v5870 = vrot.slane %v4707, 7
    %v5871 = vrot.slane %v5870, 2
    %v5872 = vrot.slane %v4709, 7
    %v5873 = vrot.slane %v5872, 2
    %v5874 = vrot.slane %v4717, 7
    %v5875 = vrot.slane %v5874, 2
    %v5876 = vrot.slane %v4725, 7
    %v5877 = vrot.slane %v5876, 2
    %v5878 = vrot.slane %v4724, 7
    %v5879 = vrot.slane %v5878, 2
    %v5880 = vrot.slane %v4726, 7
    %v5881 = vrot.slane %v5880, 2
    %v5882 = vrot.slane %v4734, 7
    %v5883 = vrot.slane %v5882, 2
    %v5884 = vrot.slane %v4742, 7
    %v5885 = vrot.slane %v5884, 2
    %v5886 = vrot.slane %v4741, 7
    %v5887 = vrot.slane %v5886, 2
    %v5888 = vrot.slane %v4743, 7
    %v5889 = vrot.slane %v5888, 2
    %v5890 = vrot.slane %v4751, 7
    %v5891 = vrot.slane %v5890, 2
    %v5892 = vrot.slane %v4759, 7
    %v5893 = vrot.slane %v5892, 2
    %v5894 = vrot.slane %v4758, 7
    %v5895 = vrot.slane %v5894, 2
    %v5896 = vrot.slane %v4760, 7
    %v5897 = vrot.slane %v5896, 2
    %v5898 = vrot.slane %v4768, 7
    %v5899 = vrot.slane %v5898, 2
    %v5900 = vrot.slane %v4776, 7
    %v5901 = vrot.slane %v5900, 2
    %v5902 = vrot.slane %v4775, 7
    %v5903 = vrot.slane %v5902, 2
    %v5904 = vrot.slane %v4777, 7
    %v5905 = vrot.slane %v5904, 2
    %v5906 = vrot.slane %v4785, 7
    %v5907 = vrot.slane %v5906, 2
    %v5908 = vrot.slane %v4793, 7
    %v5909 = vrot.slane %v5908, 2
    %v5910 = vrot.slane %v4792, 7
    %v5911 = vrot.slane %v5910, 2
    %v5912 = vrot.slane %v4794, 7
    %v5913 = vrot.slane %v5912, 2
    %v5914 = vrot.slane %v4802, 7
    %v5915 = vrot.slane %v5914, 2
    %v5916 = vrot.slane %v4810, 7
    %v5917 = vrot.slane %v5916, 2
    %v5918 = vrot.slane %v4809, 7
    %v5919 = vrot.slane %v5918, 2
    %v5920 = vrot.slane %v4811, 7
    %v5921 = vrot.slane %v5920, 2
    %v5922 = vrot.slane %v4819, 7
    %v5923 = vrot.slane %v5922, 2
    %v5924 = vrot.slane %v4827, 7
    %v5925 = vrot.slane %v5924, 2
    %v5926 = vrot.slane %v4826, 7
    %v5927 = vrot.slane %v5926, 2
    %v5928 = vrot.slane %v4828, 7
    %v5929 = vrot.slane %v5928, 2
    %v5930 = vrot.slane %v4836, 7
    %v5931 = vrot.slane %v5930, 2
    %v5932 = vrot.slane %v4844, 7
    %v5933 = vrot.slane %v5932, 2
    %v5934 = vrot.slane %v4843, 7
    %v5935 = vrot.slane %v5934, 2
    %v5936 = vrot.slane %v4845, 7
    %v5937 = vrot.slane %v5936, 2
    %v5938 = vrot.slane %v4853, 7
    %v5939 = vrot.slane %v5938, 2
    %v5940 = vrot.slane %v4861, 7
    %v5941 = vrot.slane %v5940, 2
    %v5942 = vrot.slane %v4860, 7
    %v5943 = vrot.slane %v5942, 2
    %v5944 = vrot.slane %v4862, 7
    %v5945 = vrot.slane %v5944, 2
    %v5946 = vrot.slane %v4870, 7
    %v5947 = vrot.slane %v5946, 2
    %v5948 = vrot.slane %v4878, 7
    %v5949 = vrot.slane %v5948, 2
    %v5950 = vrot.slane %v4877, 7
    %v5951 = vrot.slane %v5950, 2
    %v5952 = vrot.slane %v4879, 7
    %v5953 = vrot.slane %v5952, 2
    %v5954 = vrot.slane %v4887, 7
    %v5955 = vrot.slane %v5954, 2
    %v5956 = vrot.slane %v4895, 7
    %v5957 = vrot.slane %v5956, 2
    %v5958 = vrot.slane %v4894, 7
    %v5959 = vrot.slane %v5958, 2
    %v5960 = vrot.slane %v4896, 7
    %v5961 = vrot.slane %v5960, 2
    %v5962 = vrot.slane %v4904, 7
    %v5963 = vrot.slane %v5962, 2
    %v5964 = vrot.slane %v4912, 7
    %v5965 = vrot.slane %v5964, 2
    %v5966 = vrot.slane %v4911, 7
    %v5967 = vrot.slane %v5966, 2
    %v5968 = vrot.slane %v4913, 7
    %v5969 = vrot.slane %v5968, 2
    %v5970 = vrot.slane %v4921, 7
    %v5971 = vrot.slane %v5970, 2
    %v5972 = vrot.slane %v4929, 7
    %v5973 = vrot.slane %v5972, 2
    %v5974 = vrot.slane %v4928, 7
    %v5975 = vrot.slane %v5974, 2
    %v5976 = vrot.slane %v4930, 7
    %v5977 = vrot.slane %v5976, 2
    %v5978 = vrot.slane %v4938, 7
    %v5979 = vrot.slane %v5978, 2
    %v5980 = vrot.slane %v4946, 7
    %v5981 = vrot.slane %v5980, 2
    %v5982 = vrot.slane %v4945, 7
    %v5983 = vrot.slane %v5982, 2
    %v5984 = vrot.slane %v4947, 7
    %v5985 = vrot.slane %v5984, 2
    %v5986 = vrot.slane %v4955, 7
    %v5987 = vrot.slane %v5986, 2
    %v5988 = vrot.slane %v4963, 7
    %v5989 = vrot.slane %v5988, 2
    %v5990 = vrot.slane %v4962, 7
    %v5991 = vrot.slane %v5990, 2
    %v5992 = vrot.slane %v4964, 7
    %v5993 = vrot.slane %v5992, 2
    %v5994 = vrot.slane %v4972, 7
    %v5995 = vrot.slane %v5994, 2
    %v5996 = vrot.slane %v4980, 7
    %v5997 = vrot.slane %v5996, 2
    %v5998 = vrot.slane %v4979, 7
    %v5999 = vrot.slane %v5998, 2
    %v6000 = vrot.slane %v4981, 7
    %v6001 = vrot.slane %v6000, 2
    %v6002 = vrot.slane %v4989, 7
    %v6003 = vrot.slane %v6002, 2
    %v6004 = vrot.slane %v4997, 7
    %v6005 = vrot.slane %v6004, 2
    %v6006 = vrot.slane %v4996, 7
    %v6007 = vrot.slane %v6006, 2
    %v6008 = vrot.slane %v4998, 7
    %v6009 = vrot.slane %v6008, 2
    %v6010 = vrot.slane %v5006, 7
    %v6011 = vrot.slane %v6010, 2
    %v6012 = vrot.slane %v5014, 7
    %v6013 = vrot.slane %v6012, 2
    %v6014 = vrot.slane %v5013, 7
    %v6015 = vrot.slane %v6014, 2
    %v6016 = vrot.slane %v5015, 7
    %v6017 = vrot.slane %v6016, 2
    %v6018 = vrot.slane %v5023, 7
    %v6019 = vrot.slane %v6018, 2
    %v6020 = vrot.slane %v5031, 7
    %v6021 = vrot.slane %v6020, 2
    %v6022 = vrot.slane %v5030, 7
    %v6023 = vrot.slane %v6022, 2
    %v6024 = vrot.slane %v5032, 7
    %v6025 = vrot.slane %v6024, 2
    %v6026 = vrot.slane %v5040, 7
    %v6027 = vrot.slane %v6026, 2
    %v6028 = vrot.slane %v5048, 7
    %v6029 = vrot.slane %v6028, 2
    %v6030 = vrot.slane %v5047, 7
    %v6031 = vrot.slane %v6030, 2
    %v6032 = vrot.slane %v5049, 7
    %v6033 = vrot.slane %v6032, 2
    %v6034 = vrot.slane %v5057, 7
    %v6035 = vrot.slane %v6034, 2
    %v6036 = vrot.slane %v5065, 7
    %v6037 = vrot.slane %v6036, 2
    %v6038 = vrot.slane %v5064, 7
    %v6039 = vrot.slane %v6038, 2
    %v6040 = vrot.slane %v5066, 7
    %v6041 = vrot.slane %v6040, 2
    %v6042 = vrot.slane %v5074, 7
    %v6043 = vrot.slane %v6042, 2
    %v6044 = vrot.slane %v5082, 7
    %v6045 = vrot.slane %v6044, 2
    %v6046 = vrot.slane %v5081, 7
    %v6047 = vrot.slane %v6046, 2
    %v6048 = vrot.slane %v5083, 7
    %v6049 = vrot.slane %v6048, 2
    %v6050 = vrot.slane %v5091, 7
    %v6051 = vrot.slane %v6050, 2
    %v6052 = vrot.slane %v5099, 7
    %v6053 = vrot.slane %v6052, 2
    %v6054 = vrot.slane %v5098, 7
    %v6055 = vrot.slane %v6054, 2
    %v6056 = vrot.slane %v5100, 7
    %v6057 = vrot.slane %v6056, 2
    %v6058 = vrot.slane %v5108, 7
    %v6059 = vrot.slane %v6058, 2
    %v6060 = vrot.slane %v5116, 7
    %v6061 = vrot.slane %v6060, 2
    %v6062 = vrot.slane %v5115, 7
    %v6063 = vrot.slane %v6062, 2
    %v6064 = vrot.slane %v5117, 7
    %v6065 = vrot.slane %v6064, 2
    %v6066 = vrot.slane %v5125, 7
    %v6067 = vrot.slane %v6066, 2
    %v6068 = vrot.slane %v5133, 7
    %v6069 = vrot.slane %v6068, 2
    %v6070 = vrot.slane %v5132, 7
    %v6071 = vrot.slane %v6070, 2
    %v6072 = vrot.slane %v5134, 7
    %v6073 = vrot.slane %v6072, 2
    %v6074 = vrot.slane %v5142, 7
    %v6075 = vrot.slane %v6074, 2
    %v6076 = vrot.slane %v5150, 7
    %v6077 = vrot.slane %v6076, 2
    %v6078 = vrot.slane %v5149, 7
    %v6079 = vrot.slane %v6078, 2
    %v6080 = vrot.slane %v5151, 7
    %v6081 = vrot.slane %v6080, 2
    %v6082 = vrot.slane %v5159, 7
    %v6083 = vrot.slane %v6082, 2
    %v6084 = vrot.slane %v5167, 7
    %v6085 = vrot.slane %v6084, 2
    %v6086 = vrot.slane %v5166, 7
    %v6087 = vrot.slane %v6086, 2
    %v6088 = vrot.slane %v5168, 7
    %v6089 = vrot.slane %v6088, 2
    %v6090 = vrot.slane %v5176, 7
    %v6091 = vrot.slane %v6090, 2
    %v6092 = vrot.slane %v5184, 7
    %v6093 = vrot.slane %v6092, 2
    %v6094 = vrot.slane %v5183, 7
    %v6095 = vrot.slane %v6094, 2
    %v6096 = vrot.slane %v5185, 7
    %v6097 = vrot.slane %v6096, 2
    %v6098 = vrot.slane %v5193, 7
    %v6099 = vrot.slane %v6098, 2
    %v6100 = vrot.slane %v5201, 7
    %v6101 = vrot.slane %v6100, 2
    %v6102 = vrot.slane %v5200, 7
    %v6103 = vrot.slane %v6102, 2
    %v6104 = vrot.slane %v5202, 7
    %v6105 = vrot.slane %v6104, 2
    %v6106 = vrot.slane %v5210, 7
    %v6107 = vrot.slane %v6106, 2
    %v6108 = vrot.slane %v5218, 7
    %v6109 = vrot.slane %v6108, 2
    %v6110 = vrot.slane %v5217, 7
    %v6111 = vrot.slane %v6110, 2
    %v6112 = vrot.slane %v5219, 7
    %v6113 = vrot.slane %v6112, 2
    %v6114 = vrot.slane %v5227, 7
    %v6115 = vrot.slane %v6114, 2
    %v6116 = vrot.slane %v5235, 7
    %v6117 = vrot.slane %v6116, 2
    %v6118 = vrot.slane %v5234, 7
    %v6119 = vrot.slane %v6118, 2
    %v6120 = vrot.slane %v5236, 7
    %v6121 = vrot.slane %v6120, 2
    %v6122 = vrot.slane %v5244, 7
    %v6123 = vrot.slane %v6122, 2
    %v6124 = vrot.slane %v5252, 7
    %v6125 = vrot.slane %v6124, 2
    %v6126 = vrot.slane %v5251, 7
    %v6127 = vrot.slane %v6126, 2
    %v6128 = vrot.slane %v5253, 7
    %v6129 = vrot.slane %v6128, 2
    %v6130 = vrot.slane %v5261, 7
    %v6131 = vrot.slane %v6130, 2
    %v6132 = vrot.slane %v5269, 7
    %v6133 = vrot.slane %v6132, 2
    %v6134 = vrot.slane %v5268, 7
    %v6135 = vrot.slane %v6134, 2
    %v6136 = vrot.slane %v5270, 7
    %v6137 = vrot.slane %v6136, 2
    %v6138 = vrot.slane %v5278, 7
    %v6139 = vrot.slane %v6138, 2
    %v6140 = vrot.slane %v5286, 7
    %v6141 = vrot.slane %v6140, 2
    %v6142 = vrot.slane %v5285, 7
    %v6143 = vrot.slane %v6142, 2
    %v6144 = vrot.slane %v5287, 7
    %v6145 = vrot.slane %v6144, 2
    %v6146 = vrot.slane %v5295, 7
    %v6147 = vrot.slane %v6146, 2
    %v6148 = vrot.slane %v5303, 7
    %v6149 = vrot.slane %v6148, 2
    %v6150 = vrot.slane %v5302, 7
    %v6151 = vrot.slane %v6150, 2
    %v6152 = vrot.slane %v5304, 7
    %v6153 = vrot.slane %v6152, 2
    %v6154 = vrot.slane %v5312, 7
    %v6155 = vrot.slane %v6154, 2
    %v6156 = vrot.slane %v5320, 7
    %v6157 = vrot.slane %v6156, 2
    %v6158 = vrot.slane %v5319, 7
    %v6159 = vrot.slane %v6158, 2
    %v6160 = vrot.slane %v5321, 7
    %v6161 = vrot.slane %v6160, 2
    %v6162 = vrot.slane %v5329, 7
    %v6163 = vrot.slane %v6162, 2
    %v6164 = vrot.slane %v5337, 7
    %v6165 = vrot.slane %v6164, 2
    %v6166 = vrot.slane %v5336, 7
    %v6167 = vrot.slane %v6166, 2
    %v6168 = vrot.slane %v5338, 7
    %v6169 = vrot.slane %v6168, 2
    %v6170 = vrot.slane %v5346, 7
    %v6171 = vrot.slane %v6170, 2
    %v6172 = vrot.slane %v5354, 7
    %v6173 = vrot.slane %v6172, 2
    %v6174 = vrot.slane %v5353, 7
    %v6175 = vrot.slane %v6174, 2
    %v6176 = vrot.slane %v5355, 7
    %v6177 = vrot.slane %v6176, 2
    %v6178 = vrot.slane %v5363, 7
    %v6179 = vrot.slane %v6178, 2
    %v6180 = vrot.slane %v5371, 7
    %v6181 = vrot.slane %v6180, 2
    %v6182 = vrot.slane %v5370, 7
    %v6183 = vrot.slane %v6182, 2
    %v6184 = vrot.slane %v5372, 7
    %v6185 = vrot.slane %v6184, 2
    %v6186 = vrot.slane %v5380, 7
    %v6187 = vrot.slane %v6186, 2
    %v6188 = vrot.slane %v5388, 7
    %v6189 = vrot.slane %v6188, 2
    %v6190 = vrot.slane %v5387, 7
    %v6191 = vrot.slane %v6190, 2
    %v6192 = vrot.slane %v5389, 7
    %v6193 = vrot.slane %v6192, 2
    %v6194 = vrot.slane %v5397, 7
    %v6195 = vrot.slane %v6194, 2
    %v6196 = vrot.slane %v5405, 7
    %v6197 = vrot.slane %v6196, 2
    %v6198 = vrot.slane %v5404, 7
    %v6199 = vrot.slane %v6198, 2
    %v6200 = vrot.slane %v5406, 7
    %v6201 = vrot.slane %v6200, 2
    %v6202 = vrot.slane %v5414, 7
    %v6203 = vrot.slane %v6202, 2
    %v6204 = vrot.slane %v5422, 7
    %v6205 = vrot.slane %v6204, 2
    %v6206 = vrot.slane %v5421, 7
    %v6207 = vrot.slane %v6206, 2
    %v6208 = vrot.slane %v5423, 7
    %v6209 = vrot.slane %v6208, 2
    %v6210 = vrot.slane %v5431, 7
    %v6211 = vrot.slane %v6210, 2
    %v6212 = vrot.slane %v5439, 7
    %v6213 = vrot.slane %v6212, 2
    %v6214 = vrot.slane %v5438, 7
    %v6215 = vrot.slane %v6214, 2
    %v6216 = vrot.slane %v5440, 7
    %v6217 = vrot.slane %v6216, 2
    %v6218 = vrot.slane %v5448, 7
    %v6219 = vrot.slane %v6218, 2
    %v6220 = vrot.slane %v5456, 7
    %v6221 = vrot.slane %v6220, 2
    %v6222 = vrot.slane %v5455, 7
    %v6223 = vrot.slane %v6222, 2
    %v6224 = vrot.slane %v5457, 7
    %v6225 = vrot.slane %v6224, 2
    %v6482 = vmax.f32 %v4377, %v5715
    %v6483 = vmax.f32 %v4385, %v5717
    %v6484 = vmax.f32 %v4384, %v5719
    %v6485 = vmax.f32 %v4386, %v5721
    %v6486 = vmax.f32 %v4394, %v5723
    %v6487 = vmax.f32 %v4402, %v5725
    %v6488 = vmax.f32 %v4401, %v5727
    %v6489 = vmax.f32 %v4403, %v5729
    %v6490 = vmax.f32 %v4411, %v5731
    %v6491 = vmax.f32 %v4419, %v5733
    %v6492 = vmax.f32 %v4418, %v5735
    %v6493 = vmax.f32 %v4420, %v5737
    %v6494 = vmax.f32 %v4428, %v5739
    %v6495 = vmax.f32 %v4436, %v5741
    %v6496 = vmax.f32 %v4435, %v5743
    %v6497 = vmax.f32 %v4437, %v5745
    %v6498 = vmax.f32 %v4445, %v5747
    %v6499 = vmax.f32 %v4453, %v5749
    %v6500 = vmax.f32 %v4452, %v5751
    %v6501 = vmax.f32 %v4454, %v5753
    %v6502 = vmax.f32 %v4462, %v5755
    %v6503 = vmax.f32 %v4470, %v5757
    %v6504 = vmax.f32 %v4469, %v5759
    %v6505 = vmax.f32 %v4471, %v5761
    %v6506 = vmax.f32 %v4479, %v5763
    %v6507 = vmax.f32 %v4487, %v5765
    %v6508 = vmax.f32 %v4486, %v5767
    %v6509 = vmax.f32 %v4488, %v5769
    %v6510 = vmax.f32 %v4496, %v5771
    %v6511 = vmax.f32 %v4504, %v5773
    %v6512 = vmax.f32 %v4503, %v5775
    %v6513 = vmax.f32 %v4505, %v5777
    %v6514 = vmax.f32 %v4513, %v5779
    %v6515 = vmax.f32 %v4521, %v5781
    %v6516 = vmax.f32 %v4520, %v5783
    %v6517 = vmax.f32 %v4522, %v5785
    %v6518 = vmax.f32 %v4530, %v5787
    %v6519 = vmax.f32 %v4538, %v5789
    %v6520 = vmax.f32 %v4537, %v5791
    %v6521 = vmax.f32 %v4539, %v5793
    %v6522 = vmax.f32 %v4547, %v5795
    %v6523 = vmax.f32 %v4555, %v5797
    %v6524 = vmax.f32 %v4554, %v5799
    %v6525 = vmax.f32 %v4556, %v5801
    %v6526 = vmax.f32 %v4564, %v5803
    %v6527 = vmax.f32 %v4572, %v5805
    %v6528 = vmax.f32 %v4571, %v5807
    %v6529 = vmax.f32 %v4573, %v5809
    %v6530 = vmax.f32 %v4581, %v5811
    %v6531 = vmax.f32 %v4589, %v5813
    %v6532 = vmax.f32 %v4588, %v5815
    %v6533 = vmax.f32 %v4590, %v5817
    %v6534 = vmax.f32 %v4598, %v5819
    %v6535 = vmax.f32 %v4606, %v5821
    %v6536 = vmax.f32 %v4605, %v5823
    %v6537 = vmax.f32 %v4607, %v5825
    %v6538 = vmax.f32 %v4615, %v5827
    %v6539 = vmax.f32 %v4623, %v5829
    %v6540 = vmax.f32 %v4622, %v5831
    %v6541 = vmax.f32 %v4624, %v5833
    %v6542 = vmax.f32 %v4632, %v5835
    %v6543 = vmax.f32 %v4640, %v5837
    %v6544 = vmax.f32 %v4639, %v5839
    %v6545 = vmax.f32 %v4641, %v5841
    %v6546 = vmax.f32 %v4649, %v5843
    %v6547 = vmax.f32 %v4657, %v5845
    %v6548 = vmax.f32 %v4656, %v5847
    %v6549 = vmax.f32 %v4658, %v5849
    %v6550 = vmax.f32 %v4666, %v5851
    %v6551 = vmax.f32 %v4674, %v5853
    %v6552 = vmax.f32 %v4673, %v5855
    %v6553 = vmax.f32 %v4675, %v5857
    %v6554 = vmax.f32 %v4683, %v5859
    %v6555 = vmax.f32 %v4691, %v5861
    %v6556 = vmax.f32 %v4690, %v5863
    %v6557 = vmax.f32 %v4692, %v5865
    %v6558 = vmax.f32 %v4700, %v5867
    %v6559 = vmax.f32 %v4708, %v5869
    %v6560 = vmax.f32 %v4707, %v5871
    %v6561 = vmax.f32 %v4709, %v5873
    %v6562 = vmax.f32 %v4717, %v5875
    %v6563 = vmax.f32 %v4725, %v5877
    %v6564 = vmax.f32 %v4724, %v5879
    %v6565 = vmax.f32 %v4726, %v5881
    %v6566 = vmax.f32 %v4734, %v5883
    %v6567 = vmax.f32 %v4742, %v5885
    %v6568 = vmax.f32 %v4741, %v5887
    %v6569 = vmax.f32 %v4743, %v5889
    %v6570 = vmax.f32 %v4751, %v5891
    %v6571 = vmax.f32 %v4759, %v5893
    %v6572 = vmax.f32 %v4758, %v5895
    %v6573 = vmax.f32 %v4760, %v5897
    %v6574 = vmax.f32 %v4768, %v5899
    %v6575 = vmax.f32 %v4776, %v5901
    %v6576 = vmax.f32 %v4775, %v5903
    %v6577 = vmax.f32 %v4777, %v5905
    %v6578 = vmax.f32 %v4785, %v5907
    %v6579 = vmax.f32 %v4793, %v5909
    %v6580 = vmax.f32 %v4792, %v5911
    %v6581 = vmax.f32 %v4794, %v5913
    %v6582 = vmax.f32 %v4802, %v5915
    %v6583 = vmax.f32 %v4810, %v5917
    %v6584 = vmax.f32 %v4809, %v5919
    %v6585 = vmax.f32 %v4811, %v5921
    %v6586 = vmax.f32 %v4819, %v5923
    %v6587 = vmax.f32 %v4827, %v5925
    %v6588 = vmax.f32 %v4826, %v5927
    %v6589 = vmax.f32 %v4828, %v5929
    %v6590 = vmax.f32 %v4836, %v5931
    %v6591 = vmax.f32 %v4844, %v5933
    %v6592 = vmax.f32 %v4843, %v5935
    %v6593 = vmax.f32 %v4845, %v5937
    %v6594 = vmax.f32 %v4853, %v5939
    %v6595 = vmax.f32 %v4861, %v5941
    %v6596 = vmax.f32 %v4860, %v5943
    %v6597 = vmax.f32 %v4862, %v5945
    %v6598 = vmax.f32 %v4870, %v5947
    %v6599 = vmax.f32 %v4878, %v5949
    %v6600 = vmax.f32 %v4877, %v5951
    %v6601 = vmax.f32 %v4879, %v5953
    %v6602 = vmax.f32 %v4887, %v5955
    %v6603 = vmax.f32 %v4895, %v5957
    %v6604 = vmax.f32 %v4894, %v5959
    %v6605 = vmax.f32 %v4896, %v5961
    %v6606 = vmax.f32 %v4904, %v5963
    %v6607 = vmax.f32 %v4912, %v5965
    %v6608 = vmax.f32 %v4911, %v5967
    %v6609 = vmax.f32 %v4913, %v5969
    %v6610 = vmax.f32 %v4921, %v5971
    %v6611 = vmax.f32 %v4929, %v5973
    %v6612 = vmax.f32 %v4928, %v5975
    %v6613 = vmax.f32 %v4930, %v5977
    %v6614 = vmax.f32 %v4938, %v5979
    %v6615 = vmax.f32 %v4946, %v5981
    %v6616 = vmax.f32 %v4945, %v5983
    %v6617 = vmax.f32 %v4947, %v5985
    %v6618 = vmax.f32 %v4955, %v5987
    %v6619 = vmax.f32 %v4963, %v5989
    %v6620 = vmax.f32 %v4962, %v5991
    %v6621 = vmax.f32 %v4964, %v5993
    %v6622 = vmax.f32 %v4972, %v5995
    %v6623 = vmax.f32 %v4980, %v5997
    %v6624 = vmax.f32 %v4979, %v5999
    %v6625 = vmax.f32 %v4981, %v6001
    %v6626 = vmax.f32 %v4989, %v6003
    %v6627 = vmax.f32 %v4997, %v6005
    %v6628 = vmax.f32 %v4996, %v6007
    %v6629 = vmax.f32 %v4998, %v6009
    %v6630 = vmax.f32 %v5006, %v6011
    %v6631 = vmax.f32 %v5014, %v6013
    %v6632 = vmax.f32 %v5013, %v6015
    %v6633 = vmax.f32 %v5015, %v6017
    %v6634 = vmax.f32 %v5023, %v6019
    %v6635 = vmax.f32 %v5031, %v6021
    %v6636 = vmax.f32 %v5030, %v6023
    %v6637 = vmax.f32 %v5032, %v6025
    %v6638 = vmax.f32 %v5040, %v6027
    %v6639 = vmax.f32 %v5048, %v6029
    %v6640 = vmax.f32 %v5047, %v6031
    %v6641 = vmax.f32 %v5049, %v6033
    %v6642 = vmax.f32 %v5057, %v6035
    %v6643 = vmax.f32 %v5065, %v6037
    %v6644 = vmax.f32 %v5064, %v6039
    %v6645 = vmax.f32 %v5066, %v6041
    %v6646 = vmax.f32 %v5074, %v6043
    %v6647 = vmax.f32 %v5082, %v6045
    %v6648 = vmax.f32 %v5081, %v6047
    %v6649 = vmax.f32 %v5083, %v6049
    %v6650 = vmax.f32 %v5091, %v6051
    %v6651 = vmax.f32 %v5099, %v6053
    %v6652 = vmax.f32 %v5098, %v6055
    %v6653 = vmax.f32 %v5100, %v6057
    %v6654 = vmax.f32 %v5108, %v6059
    %v6655 = vmax.f32 %v5116, %v6061
    %v6656 = vmax.f32 %v5115, %v6063
    %v6657 = vmax.f32 %v5117, %v6065
    %v6658 = vmax.f32 %v5125, %v6067
    %v6659 = vmax.f32 %v5133, %v6069
    %v6660 = vmax.f32 %v5132, %v6071
    %v6661 = vmax.f32 %v5134, %v6073
    %v6662 = vmax.f32 %v5142, %v6075
    %v6663 = vmax.f32 %v5150, %v6077
    %v6664 = vmax.f32 %v5149, %v6079
    %v6665 = vmax.f32 %v5151, %v6081
    %v6666 = vmax.f32 %v5159, %v6083
    %v6667 = vmax.f32 %v5167, %v6085
    %v6668 = vmax.f32 %v5166, %v6087
    %v6669 = vmax.f32 %v5168, %v6089
    %v6670 = vmax.f32 %v5176, %v6091
    %v6671 = vmax.f32 %v5184, %v6093
    %v6672 = vmax.f32 %v5183, %v6095
    %v6673 = vmax.f32 %v5185, %v6097
    %v6674 = vmax.f32 %v5193, %v6099
    %v6675 = vmax.f32 %v5201, %v6101
    %v6676 = vmax.f32 %v5200, %v6103
    %v6677 = vmax.f32 %v5202, %v6105
    %v6678 = vmax.f32 %v5210, %v6107
    %v6679 = vmax.f32 %v5218, %v6109
    %v6680 = vmax.f32 %v5217, %v6111
    %v6681 = vmax.f32 %v5219, %v6113
    %v6682 = vmax.f32 %v5227, %v6115
    %v6683 = vmax.f32 %v5235, %v6117
    %v6684 = vmax.f32 %v5234, %v6119
    %v6685 = vmax.f32 %v5236, %v6121
    %v6686 = vmax.f32 %v5244, %v6123
    %v6687 = vmax.f32 %v5252, %v6125
    %v6688 = vmax.f32 %v5251, %v6127
    %v6689 = vmax.f32 %v5253, %v6129
    %v6690 = vmax.f32 %v5261, %v6131
    %v6691 = vmax.f32 %v5269, %v6133
    %v6692 = vmax.f32 %v5268, %v6135
    %v6693 = vmax.f32 %v5270, %v6137
    %v6694 = vmax.f32 %v5278, %v6139
    %v6695 = vmax.f32 %v5286, %v6141
    %v6696 = vmax.f32 %v5285, %v6143
    %v6697 = vmax.f32 %v5287, %v6145
    %v6698 = vmax.f32 %v5295, %v6147
    %v6699 = vmax.f32 %v5303, %v6149
    %v6700 = vmax.f32 %v5302, %v6151
    %v6701 = vmax.f32 %v5304, %v6153
    %v6702 = vmax.f32 %v5312, %v6155
    %v6703 = vmax.f32 %v5320, %v6157
    %v6704 = vmax.f32 %v5319, %v6159
    %v6705 = vmax.f32 %v5321, %v6161
    %v6706 = vmax.f32 %v5329, %v6163
    %v6707 = vmax.f32 %v5337, %v6165
    %v6708 = vmax.f32 %v5336, %v6167
    %v6709 = vmax.f32 %v5338, %v6169
    %v6710 = vmax.f32 %v5346, %v6171
    %v6711 = vmax.f32 %v5354, %v6173
    %v6712 = vmax.f32 %v5353, %v6175
    %v6713 = vmax.f32 %v5355, %v6177
    %v6714 = vmax.f32 %v5363, %v6179
    %v6715 = vmax.f32 %v5371, %v6181
    %v6716 = vmax.f32 %v5370, %v6183
    %v6717 = vmax.f32 %v5372, %v6185
    %v6718 = vmax.f32 %v5380, %v6187
    %v6719 = vmax.f32 %v5388, %v6189
    %v6720 = vmax.f32 %v5387, %v6191
    %v6721 = vmax.f32 %v5389, %v6193
    %v6722 = vmax.f32 %v5397, %v6195
    %v6723 = vmax.f32 %v5405, %v6197
    %v6724 = vmax.f32 %v5404, %v6199
    %v6725 = vmax.f32 %v5406, %v6201
    %v6726 = vmax.f32 %v5414, %v6203
    %v6727 = vmax.f32 %v5422, %v6205
    %v6728 = vmax.f32 %v5421, %v6207
    %v6729 = vmax.f32 %v5423, %v6209
    %v6730 = vmax.f32 %v5431, %v6211
    %v6731 = vmax.f32 %v5439, %v6213
    %v6732 = vmax.f32 %v5438, %v6215
    %v6733 = vmax.f32 %v5440, %v6217
    %v6734 = vmax.f32 %v5448, %v6219
    %v6735 = vmax.f32 %v5456, %v6221
    %v6736 = vmax.f32 %v5455, %v6223
    %v6737 = vmax.f32 %v5457, %v6225
    %v6738 = vmax.f32 %v6482, %v6490
    %v6739 = vmax.f32 %v6483, %v6491
    %v6740 = vmax.f32 %v6484, %v6492
    %v6741 = vmax.f32 %v6485, %v6493
    %v6742 = vmax.f32 %v6486, %v6494
    %v6743 = vmax.f32 %v6487, %v6495
    %v6744 = vmax.f32 %v6488, %v6496
    %v6745 = vmax.f32 %v6489, %v6497
    %v6746 = vmax.f32 %v6498, %v6506
    %v6747 = vmax.f32 %v6499, %v6507
    %v6748 = vmax.f32 %v6500, %v6508
    %v6749 = vmax.f32 %v6501, %v6509
    %v6750 = vmax.f32 %v6502, %v6510
    %v6751 = vmax.f32 %v6503, %v6511
    %v6752 = vmax.f32 %v6504, %v6512
    %v6753 = vmax.f32 %v6505, %v6513
    %v6754 = vmax.f32 %v6514, %v6522
    %v6755 = vmax.f32 %v6515, %v6523
    %v6756 = vmax.f32 %v6516, %v6524
    %v6757 = vmax.f32 %v6517, %v6525
    %v6758 = vmax.f32 %v6518, %v6526
    %v6759 = vmax.f32 %v6519, %v6527
    %v6760 = vmax.f32 %v6520, %v6528
    %v6761 = vmax.f32 %v6521, %v6529
    %v6762 = vmax.f32 %v6530, %v6538
    %v6763 = vmax.f32 %v6531, %v6539
    %v6764 = vmax.f32 %v6532, %v6540
    %v6765 = vmax.f32 %v6533, %v6541
    %v6766 = vmax.f32 %v6534, %v6542
    %v6767 = vmax.f32 %v6535, %v6543
    %v6768 = vmax.f32 %v6536, %v6544
    %v6769 = vmax.f32 %v6537, %v6545
    %v6770 = vmax.f32 %v6546, %v6554
    %v6771 = vmax.f32 %v6547, %v6555
    %v6772 = vmax.f32 %v6548, %v6556
    %v6773 = vmax.f32 %v6549, %v6557
    %v6774 = vmax.f32 %v6550, %v6558
    %v6775 = vmax.f32 %v6551, %v6559
    %v6776 = vmax.f32 %v6552, %v6560
    %v6777 = vmax.f32 %v6553, %v6561
    %v6778 = vmax.f32 %v6562, %v6570
    %v6779 = vmax.f32 %v6563, %v6571
    %v6780 = vmax.f32 %v6564, %v6572
    %v6781 = vmax.f32 %v6565, %v6573
    %v6782 = vmax.f32 %v6566, %v6574
    %v6783 = vmax.f32 %v6567, %v6575
    %v6784 = vmax.f32 %v6568, %v6576
    %v6785 = vmax.f32 %v6569, %v6577
    %v6786 = vmax.f32 %v6578, %v6586
    %v6787 = vmax.f32 %v6579, %v6587
    %v6788 = vmax.f32 %v6580, %v6588
    %v6789 = vmax.f32 %v6581, %v6589
    %v6790 = vmax.f32 %v6582, %v6590
    %v6791 = vmax.f32 %v6583, %v6591
    %v6792 = vmax.f32 %v6584, %v6592
    %v6793 = vmax.f32 %v6585, %v6593
    %v6794 = vmax.f32 %v6594, %v6602
    %v6795 = vmax.f32 %v6595, %v6603
    %v6796 = vmax.f32 %v6596, %v6604
    %v6797 = vmax.f32 %v6597, %v6605
    %v6798 = vmax.f32 %v6598, %v6606
    %v6799 = vmax.f32 %v6599, %v6607
    %v6800 = vmax.f32 %v6600, %v6608
    %v6801 = vmax.f32 %v6601, %v6609
    %v6802 = vmax.f32 %v6610, %v6618
    %v6803 = vmax.f32 %v6611, %v6619
    %v6804 = vmax.f32 %v6612, %v6620
    %v6805 = vmax.f32 %v6613, %v6621
    %v6806 = vmax.f32 %v6614, %v6622
    %v6807 = vmax.f32 %v6615, %v6623
    %v6808 = vmax.f32 %v6616, %v6624
    %v6809 = vmax.f32 %v6617, %v6625
    %v6810 = vmax.f32 %v6626, %v6634
    %v6811 = vmax.f32 %v6627, %v6635
    %v6812 = vmax.f32 %v6628, %v6636
    %v6813 = vmax.f32 %v6629, %v6637
    %v6814 = vmax.f32 %v6630, %v6638
    %v6815 = vmax.f32 %v6631, %v6639
    %v6816 = vmax.f32 %v6632, %v6640
    %v6817 = vmax.f32 %v6633, %v6641
    %v6818 = vmax.f32 %v6642, %v6650
    %v6819 = vmax.f32 %v6643, %v6651
    %v6820 = vmax.f32 %v6644, %v6652
    %v6821 = vmax.f32 %v6645, %v6653
    %v6822 = vmax.f32 %v6646, %v6654
    %v6823 = vmax.f32 %v6647, %v6655
    %v6824 = vmax.f32 %v6648, %v6656
    %v6825 = vmax.f32 %v6649, %v6657
    %v6826 = vmax.f32 %v6658, %v6666
    %v6827 = vmax.f32 %v6659, %v6667
    %v6828 = vmax.f32 %v6660, %v6668
    %v6829 = vmax.f32 %v6661, %v6669
    %v6830 = vmax.f32 %v6662, %v6670
    %v6831 = vmax.f32 %v6663, %v6671
    %v6832 = vmax.f32 %v6664, %v6672
    %v6833 = vmax.f32 %v6665, %v6673
    %v6834 = vmax.f32 %v6674, %v6682
    %v6835 = vmax.f32 %v6675, %v6683
    %v6836 = vmax.f32 %v6676, %v6684
    %v6837 = vmax.f32 %v6677, %v6685
    %v6838 = vmax.f32 %v6678, %v6686
    %v6839 = vmax.f32 %v6679, %v6687
    %v6840 = vmax.f32 %v6680, %v6688
    %v6841 = vmax.f32 %v6681, %v6689
    %v6842 = vmax.f32 %v6690, %v6698
    %v6843 = vmax.f32 %v6691, %v6699
    %v6844 = vmax.f32 %v6692, %v6700
    %v6845 = vmax.f32 %v6693, %v6701
    %v6846 = vmax.f32 %v6694, %v6702
    %v6847 = vmax.f32 %v6695, %v6703
    %v6848 = vmax.f32 %v6696, %v6704
    %v6849 = vmax.f32 %v6697, %v6705
    %v6850 = vmax.f32 %v6706, %v6714
    %v6851 = vmax.f32 %v6707, %v6715
    %v6852 = vmax.f32 %v6708, %v6716
    %v6853 = vmax.f32 %v6709, %v6717
    %v6854 = vmax.f32 %v6710, %v6718
    %v6855 = vmax.f32 %v6711, %v6719
    %v6856 = vmax.f32 %v6712, %v6720
    %v6857 = vmax.f32 %v6713, %v6721
    %v6858 = vmax.f32 %v6722, %v6730
    %v6859 = vmax.f32 %v6723, %v6731
    %v6860 = vmax.f32 %v6724, %v6732
    %v6861 = vmax.f32 %v6725, %v6733
    %v6862 = vmax.f32 %v6726, %v6734
    %v6863 = vmax.f32 %v6727, %v6735
    %v6864 = vmax.f32 %v6728, %v6736
    %v6865 = vmax.f32 %v6729, %v6737
    %6866 = vst.msk [vmem:[#allocation3] sm:$0xff] %vm2937, 0.0
    %vm6867 = vcmask 58368
    %6868 = vst.msk [vmem:[#allocation3 + $0x8] sm:$0x3] %vm6867, 0.0
    %6869 = vst.msk [vmem:[#allocation3 + $0xa0] sm:$0xff] %vm2937, 0.0
    %6870 = vst.msk [vmem:[#allocation3 + $0xa8] sm:$0x3] %vm6867, 0.0
    %s6871 = scalar_lea.vmem [#allocation3], 144
    %6872 = vst.msk [vmem:[%s6871] sm:$0xff] %vm2937, 0.0
    %6873 = vst.msk [vmem:[%s6871 + $0x8] sm:$0x3] %vm6867, 0.0
    %6874 = vst.msk [vmem:[%s6871 + $0xa0] sm:$0xff] %vm2937, 0.0
    %6875 = vst.msk [vmem:[%s6871 + $0xa8] sm:$0x3] %vm6867, 0.0
    %s6876 = scalar_lea.vmem [#allocation3], 16
    %vm6877 = vcmask 57344
    %6878 = vst.msk [vmem:[%s6876] sm:$0x1] %vm6877, 0.0
    %6879 = vst.msk [vmem:[%s6876 + $0x10] sm:$0x1] %vm6877, 0.0
    %6880 = vst.msk [vmem:[%s6876 + $0x20] sm:$0x1] %vm6877, 0.0
    %6881 = vst.msk [vmem:[%s6876 + $0x30] sm:$0x1] %vm6877, 0.0
    %6882 = vst.msk [vmem:[%s6876 + $0x40] sm:$0x1] %vm6877, 0.0
    %6883 = vst.msk [vmem:[%s6876 + $0x50] sm:$0x1] %vm6877, 0.0
    %6884 = vst.msk [vmem:[%s6876 + $0x60] sm:$0x1] %vm6877, 0.0
    %6885 = vst.msk [vmem:[%s6876 + $0x70] sm:$0x1] %vm6877, 0.0
    %6886 = vst.msk [vmem:[%s6876 + $0xa0] sm:$0x1] %vm6877, 0.0
    %6887 = vst.msk [vmem:[%s6876 + $0xb0] sm:$0x1] %vm6877, 0.0
    %6888 = vst.msk [vmem:[%s6876 + $0xc0] sm:$0x1] %vm6877, 0.0
    %6889 = vst.msk [vmem:[%s6876 + $0xd0] sm:$0x1] %vm6877, 0.0
    %6890 = vst.msk [vmem:[%s6876 + $0xe0] sm:$0x1] %vm6877, 0.0
    %6891 = vst.msk [vmem:[%s6876 + $0xf0] sm:$0x1] %vm6877, 0.0
    %6892 = vst.msk [vmem:[%s6876 + $0x100] sm:$0x1] %vm6877, 0.0
    %6893 = vst.msk [vmem:[%s6876 + $0x110] sm:$0x1] %vm6877, 0.0
    %6894 = vst.msk [vmem:[%s6876 + $0x9] sm:$0x1] %vm6877, 0.0
    %6895 = vst.msk [vmem:[%s6876 + $0x19] sm:$0x1] %vm6877, 0.0
    %6896 = vst.msk [vmem:[%s6876 + $0x29] sm:$0x1] %vm6877, 0.0
    %6897 = vst.msk [vmem:[%s6876 + $0x39] sm:$0x1] %vm6877, 0.0
    %6898 = vst.msk [vmem:[%s6876 + $0x49] sm:$0x1] %vm6877, 0.0
    %6899 = vst.msk [vmem:[%s6876 + $0x59] sm:$0x1] %vm6877, 0.0
    %6900 = vst.msk [vmem:[%s6876 + $0x69] sm:$0x1] %vm6877, 0.0
    %6901 = vst.msk [vmem:[%s6876 + $0x79] sm:$0x1] %vm6877, 0.0
    %6902 = vst.msk [vmem:[%s6876 + $0xa9] sm:$0x1] %vm6877, 0.0
    %6903 = vst.msk [vmem:[%s6876 + $0xb9] sm:$0x1] %vm6877, 0.0
    %6904 = vst.msk [vmem:[%s6876 + $0xc9] sm:$0x1] %vm6877, 0.0
    %6905 = vst.msk [vmem:[%s6876 + $0xd9] sm:$0x1] %vm6877, 0.0
    %6906 = vst.msk [vmem:[%s6876 + $0xe9] sm:$0x1] %vm6877, 0.0
    %6907 = vst.msk [vmem:[%s6876 + $0xf9] sm:$0x1] %vm6877, 0.0
    %6908 = vst.msk [vmem:[%s6876 + $0x109] sm:$0x1] %vm6877, 0.0
    %6909 = vst.msk [vmem:[%s6876 + $0x119] sm:$0x1] %vm6877, 0.0
    %v7038 = vlaneseq
    %v7039 = vshrl.u32 %v7038, 7
    %v7040 = vsub.s32 0, %v7039
    %v7041 = vrot.slane %v6738, %v7040
    %v7042 = vlaneseq
    %v7043 = vshrl.u32 %v7042, 7
    %v7044 = vsub.s32 0, %v7043
    %v7045 = vrot.slane %v6739, %v7044
    %v7046 = vlaneseq
    %v7047 = vshrl.u32 %v7046, 7
    %v7048 = vsub.s32 0, %v7047
    %v7049 = vrot.slane %v6740, %v7048
    %v7050 = vlaneseq
    %v7051 = vshrl.u32 %v7050, 7
    %v7052 = vsub.s32 0, %v7051
    %v7053 = vrot.slane %v6741, %v7052
    %v7054 = vlaneseq
    %v7055 = vshrl.u32 %v7054, 7
    %v7056 = vsub.s32 0, %v7055
    %v7057 = vrot.slane %v6742, %v7056
    %v7058 = vlaneseq
    %v7059 = vshrl.u32 %v7058, 7
    %v7060 = vsub.s32 0, %v7059
    %v7061 = vrot.slane %v6743, %v7060
    %v7062 = vlaneseq
    %v7063 = vshrl.u32 %v7062, 7
    %v7064 = vsub.s32 0, %v7063
    %v7065 = vrot.slane %v6744, %v7064
    %v7066 = vlaneseq
    %v7067 = vshrl.u32 %v7066, 7
    %v7068 = vsub.s32 0, %v7067
    %v7069 = vrot.slane %v6745, %v7068
    %v7070 = vlaneseq
    %v7071 = vshrl.u32 %v7070, 7
    %v7072 = vsub.s32 0, %v7071
    %v7073 = vrot.slane %v6746, %v7072
    %v7074 = vlaneseq
    %v7075 = vshrl.u32 %v7074, 7
    %v7076 = vsub.s32 0, %v7075
    %v7077 = vrot.slane %v6747, %v7076
    %v7078 = vlaneseq
    %v7079 = vshrl.u32 %v7078, 7
    %v7080 = vsub.s32 0, %v7079
    %v7081 = vrot.slane %v6748, %v7080
    %v7082 = vlaneseq
    %v7083 = vshrl.u32 %v7082, 7
    %v7084 = vsub.s32 0, %v7083
    %v7085 = vrot.slane %v6749, %v7084
    %v7086 = vlaneseq
    %v7087 = vshrl.u32 %v7086, 7
    %v7088 = vsub.s32 0, %v7087
    %v7089 = vrot.slane %v6750, %v7088
    %v7090 = vlaneseq
    %v7091 = vshrl.u32 %v7090, 7
    %v7092 = vsub.s32 0, %v7091
    %v7093 = vrot.slane %v6751, %v7092
    %v7094 = vlaneseq
    %v7095 = vshrl.u32 %v7094, 7
    %v7096 = vsub.s32 0, %v7095
    %v7097 = vrot.slane %v6752, %v7096
    %v7098 = vlaneseq
    %v7099 = vshrl.u32 %v7098, 7
    %v7100 = vsub.s32 0, %v7099
    %v7101 = vrot.slane %v6753, %v7100
    %v7102 = vlaneseq
    %v7103 = vshrl.u32 %v7102, 7
    %v7104 = vsub.s32 0, %v7103
    %v7105 = vrot.slane %v6754, %v7104
    %v7106 = vlaneseq
    %v7107 = vshrl.u32 %v7106, 7
    %v7108 = vsub.s32 0, %v7107
    %v7109 = vrot.slane %v6755, %v7108
    %v7110 = vlaneseq
    %v7111 = vshrl.u32 %v7110, 7
    %v7112 = vsub.s32 0, %v7111
    %v7113 = vrot.slane %v6756, %v7112
    %v7114 = vlaneseq
    %v7115 = vshrl.u32 %v7114, 7
    %v7116 = vsub.s32 0, %v7115
    %v7117 = vrot.slane %v6757, %v7116
    %v7118 = vlaneseq
    %v7119 = vshrl.u32 %v7118, 7
    %v7120 = vsub.s32 0, %v7119
    %v7121 = vrot.slane %v6758, %v7120
    %v7122 = vlaneseq
    %v7123 = vshrl.u32 %v7122, 7
    %v7124 = vsub.s32 0, %v7123
    %v7125 = vrot.slane %v6759, %v7124
    %v7126 = vlaneseq
    %v7127 = vshrl.u32 %v7126, 7
    %v7128 = vsub.s32 0, %v7127
    %v7129 = vrot.slane %v6760, %v7128
    %v7130 = vlaneseq
    %v7131 = vshrl.u32 %v7130, 7
    %v7132 = vsub.s32 0, %v7131
    %v7133 = vrot.slane %v6761, %v7132
    %v7134 = vlaneseq
    %v7135 = vshrl.u32 %v7134, 7
    %v7136 = vsub.s32 0, %v7135
    %v7137 = vrot.slane %v6762, %v7136
    %v7138 = vlaneseq
    %v7139 = vshrl.u32 %v7138, 7
    %v7140 = vsub.s32 0, %v7139
    %v7141 = vrot.slane %v6763, %v7140
    %v7142 = vlaneseq
    %v7143 = vshrl.u32 %v7142, 7
    %v7144 = vsub.s32 0, %v7143
    %v7145 = vrot.slane %v6764, %v7144
    %v7146 = vlaneseq
    %v7147 = vshrl.u32 %v7146, 7
    %v7148 = vsub.s32 0, %v7147
    %v7149 = vrot.slane %v6765, %v7148
    %v7150 = vlaneseq
    %v7151 = vshrl.u32 %v7150, 7
    %v7152 = vsub.s32 0, %v7151
    %v7153 = vrot.slane %v6766, %v7152
    %v7154 = vlaneseq
    %v7155 = vshrl.u32 %v7154, 7
    %v7156 = vsub.s32 0, %v7155
    %v7157 = vrot.slane %v6767, %v7156
    %v7158 = vlaneseq
    %v7159 = vshrl.u32 %v7158, 7
    %v7160 = vsub.s32 0, %v7159
    %v7161 = vrot.slane %v6768, %v7160
    %v7162 = vlaneseq
    %v7163 = vshrl.u32 %v7162, 7
    %v7164 = vsub.s32 0, %v7163
    %v7165 = vrot.slane %v6769, %v7164
    %v7166 = vlaneseq
    %v7167 = vshrl.u32 %v7166, 7
    %v7168 = vsub.s32 0, %v7167
    %v7169 = vrot.slane %v6770, %v7168
    %v7170 = vlaneseq
    %v7171 = vshrl.u32 %v7170, 7
    %v7172 = vsub.s32 0, %v7171
    %v7173 = vrot.slane %v6771, %v7172
    %v7174 = vlaneseq
    %v7175 = vshrl.u32 %v7174, 7
    %v7176 = vsub.s32 0, %v7175
    %v7177 = vrot.slane %v6772, %v7176
    %v7178 = vlaneseq
    %v7179 = vshrl.u32 %v7178, 7
    %v7180 = vsub.s32 0, %v7179
    %v7181 = vrot.slane %v6773, %v7180
    %v7182 = vlaneseq
    %v7183 = vshrl.u32 %v7182, 7
    %v7184 = vsub.s32 0, %v7183
    %v7185 = vrot.slane %v6774, %v7184
    %v7186 = vlaneseq
    %v7187 = vshrl.u32 %v7186, 7
    %v7188 = vsub.s32 0, %v7187
    %v7189 = vrot.slane %v6775, %v7188
    %v7190 = vlaneseq
    %v7191 = vshrl.u32 %v7190, 7
    %v7192 = vsub.s32 0, %v7191
    %v7193 = vrot.slane %v6776, %v7192
    %v7194 = vlaneseq
    %v7195 = vshrl.u32 %v7194, 7
    %v7196 = vsub.s32 0, %v7195
    %v7197 = vrot.slane %v6777, %v7196
    %v7198 = vlaneseq
    %v7199 = vshrl.u32 %v7198, 7
    %v7200 = vsub.s32 0, %v7199
    %v7201 = vrot.slane %v6778, %v7200
    %v7202 = vlaneseq
    %v7203 = vshrl.u32 %v7202, 7
    %v7204 = vsub.s32 0, %v7203
    %v7205 = vrot.slane %v6779, %v7204
    %v7206 = vlaneseq
    %v7207 = vshrl.u32 %v7206, 7
    %v7208 = vsub.s32 0, %v7207
    %v7209 = vrot.slane %v6780, %v7208
    %v7210 = vlaneseq
    %v7211 = vshrl.u32 %v7210, 7
    %v7212 = vsub.s32 0, %v7211
    %v7213 = vrot.slane %v6781, %v7212
    %v7214 = vlaneseq
    %v7215 = vshrl.u32 %v7214, 7
    %v7216 = vsub.s32 0, %v7215
    %v7217 = vrot.slane %v6782, %v7216
    %v7218 = vlaneseq
    %v7219 = vshrl.u32 %v7218, 7
    %v7220 = vsub.s32 0, %v7219
    %v7221 = vrot.slane %v6783, %v7220
    %v7222 = vlaneseq
    %v7223 = vshrl.u32 %v7222, 7
    %v7224 = vsub.s32 0, %v7223
    %v7225 = vrot.slane %v6784, %v7224
    %v7226 = vlaneseq
    %v7227 = vshrl.u32 %v7226, 7
    %v7228 = vsub.s32 0, %v7227
    %v7229 = vrot.slane %v6785, %v7228
    %v7230 = vlaneseq
    %v7231 = vshrl.u32 %v7230, 7
    %v7232 = vsub.s32 0, %v7231
    %v7233 = vrot.slane %v6786, %v7232
    %v7234 = vlaneseq
    %v7235 = vshrl.u32 %v7234, 7
    %v7236 = vsub.s32 0, %v7235
    %v7237 = vrot.slane %v6787, %v7236
    %v7238 = vlaneseq
    %v7239 = vshrl.u32 %v7238, 7
    %v7240 = vsub.s32 0, %v7239
    %v7241 = vrot.slane %v6788, %v7240
    %v7242 = vlaneseq
    %v7243 = vshrl.u32 %v7242, 7
    %v7244 = vsub.s32 0, %v7243
    %v7245 = vrot.slane %v6789, %v7244
    %v7246 = vlaneseq
    %v7247 = vshrl.u32 %v7246, 7
    %v7248 = vsub.s32 0, %v7247
    %v7249 = vrot.slane %v6790, %v7248
    %v7250 = vlaneseq
    %v7251 = vshrl.u32 %v7250, 7
    %v7252 = vsub.s32 0, %v7251
    %v7253 = vrot.slane %v6791, %v7252
    %v7254 = vlaneseq
    %v7255 = vshrl.u32 %v7254, 7
    %v7256 = vsub.s32 0, %v7255
    %v7257 = vrot.slane %v6792, %v7256
    %v7258 = vlaneseq
    %v7259 = vshrl.u32 %v7258, 7
    %v7260 = vsub.s32 0, %v7259
    %v7261 = vrot.slane %v6793, %v7260
    %v7262 = vlaneseq
    %v7263 = vshrl.u32 %v7262, 7
    %v7264 = vsub.s32 0, %v7263
    %v7265 = vrot.slane %v6794, %v7264
    %v7266 = vlaneseq
    %v7267 = vshrl.u32 %v7266, 7
    %v7268 = vsub.s32 0, %v7267
    %v7269 = vrot.slane %v6795, %v7268
    %v7270 = vlaneseq
    %v7271 = vshrl.u32 %v7270, 7
    %v7272 = vsub.s32 0, %v7271
    %v7273 = vrot.slane %v6796, %v7272
    %v7274 = vlaneseq
    %v7275 = vshrl.u32 %v7274, 7
    %v7276 = vsub.s32 0, %v7275
    %v7277 = vrot.slane %v6797, %v7276
    %v7278 = vlaneseq
    %v7279 = vshrl.u32 %v7278, 7
    %v7280 = vsub.s32 0, %v7279
    %v7281 = vrot.slane %v6798, %v7280
    %v7282 = vlaneseq
    %v7283 = vshrl.u32 %v7282, 7
    %v7284 = vsub.s32 0, %v7283
    %v7285 = vrot.slane %v6799, %v7284
    %v7286 = vlaneseq
    %v7287 = vshrl.u32 %v7286, 7
    %v7288 = vsub.s32 0, %v7287
    %v7289 = vrot.slane %v6800, %v7288
    %v7290 = vlaneseq
    %v7291 = vshrl.u32 %v7290, 7
    %v7292 = vsub.s32 0, %v7291
    %v7293 = vrot.slane %v6801, %v7292
    %v7294 = vlaneseq
    %v7295 = vshrl.u32 %v7294, 7
    %v7296 = vsub.s32 0, %v7295
    %v7297 = vrot.slane %v6802, %v7296
    %v7298 = vlaneseq
    %v7299 = vshrl.u32 %v7298, 7
    %v7300 = vsub.s32 0, %v7299
    %v7301 = vrot.slane %v6803, %v7300
    %v7302 = vlaneseq
    %v7303 = vshrl.u32 %v7302, 7
    %v7304 = vsub.s32 0, %v7303
    %v7305 = vrot.slane %v6804, %v7304
    %v7306 = vlaneseq
    %v7307 = vshrl.u32 %v7306, 7
    %v7308 = vsub.s32 0, %v7307
    %v7309 = vrot.slane %v6805, %v7308
    %v7310 = vlaneseq
    %v7311 = vshrl.u32 %v7310, 7
    %v7312 = vsub.s32 0, %v7311
    %v7313 = vrot.slane %v6806, %v7312
    %v7314 = vlaneseq
    %v7315 = vshrl.u32 %v7314, 7
    %v7316 = vsub.s32 0, %v7315
    %v7317 = vrot.slane %v6807, %v7316
    %v7318 = vlaneseq
    %v7319 = vshrl.u32 %v7318, 7
    %v7320 = vsub.s32 0, %v7319
    %v7321 = vrot.slane %v6808, %v7320
    %v7322 = vlaneseq
    %v7323 = vshrl.u32 %v7322, 7
    %v7324 = vsub.s32 0, %v7323
    %v7325 = vrot.slane %v6809, %v7324
    %v7326 = vlaneseq
    %v7327 = vshrl.u32 %v7326, 7
    %v7328 = vsub.s32 0, %v7327
    %v7329 = vrot.slane %v6810, %v7328
    %v7330 = vlaneseq
    %v7331 = vshrl.u32 %v7330, 7
    %v7332 = vsub.s32 0, %v7331
    %v7333 = vrot.slane %v6811, %v7332
    %v7334 = vlaneseq
    %v7335 = vshrl.u32 %v7334, 7
    %v7336 = vsub.s32 0, %v7335
    %v7337 = vrot.slane %v6812, %v7336
    %v7338 = vlaneseq
    %v7339 = vshrl.u32 %v7338, 7
    %v7340 = vsub.s32 0, %v7339
    %v7341 = vrot.slane %v6813, %v7340
    %v7342 = vlaneseq
    %v7343 = vshrl.u32 %v7342, 7
    %v7344 = vsub.s32 0, %v7343
    %v7345 = vrot.slane %v6814, %v7344
    %v7346 = vlaneseq
    %v7347 = vshrl.u32 %v7346, 7
    %v7348 = vsub.s32 0, %v7347
    %v7349 = vrot.slane %v6815, %v7348
    %v7350 = vlaneseq
    %v7351 = vshrl.u32 %v7350, 7
    %v7352 = vsub.s32 0, %v7351
    %v7353 = vrot.slane %v6816, %v7352
    %v7354 = vlaneseq
    %v7355 = vshrl.u32 %v7354, 7
    %v7356 = vsub.s32 0, %v7355
    %v7357 = vrot.slane %v6817, %v7356
    %v7358 = vlaneseq
    %v7359 = vshrl.u32 %v7358, 7
    %v7360 = vsub.s32 0, %v7359
    %v7361 = vrot.slane %v6818, %v7360
    %v7362 = vlaneseq
    %v7363 = vshrl.u32 %v7362, 7
    %v7364 = vsub.s32 0, %v7363
    %v7365 = vrot.slane %v6819, %v7364
    %v7366 = vlaneseq
    %v7367 = vshrl.u32 %v7366, 7
    %v7368 = vsub.s32 0, %v7367
    %v7369 = vrot.slane %v6820, %v7368
    %v7370 = vlaneseq
    %v7371 = vshrl.u32 %v7370, 7
    %v7372 = vsub.s32 0, %v7371
    %v7373 = vrot.slane %v6821, %v7372
    %v7374 = vlaneseq
    %v7375 = vshrl.u32 %v7374, 7
    %v7376 = vsub.s32 0, %v7375
    %v7377 = vrot.slane %v6822, %v7376
    %v7378 = vlaneseq
    %v7379 = vshrl.u32 %v7378, 7
    %v7380 = vsub.s32 0, %v7379
    %v7381 = vrot.slane %v6823, %v7380
    %v7382 = vlaneseq
    %v7383 = vshrl.u32 %v7382, 7
    %v7384 = vsub.s32 0, %v7383
    %v7385 = vrot.slane %v6824, %v7384
    %v7386 = vlaneseq
    %v7387 = vshrl.u32 %v7386, 7
    %v7388 = vsub.s32 0, %v7387
    %v7389 = vrot.slane %v6825, %v7388
    %v7390 = vlaneseq
    %v7391 = vshrl.u32 %v7390, 7
    %v7392 = vsub.s32 0, %v7391
    %v7393 = vrot.slane %v6826, %v7392
    %v7394 = vlaneseq
    %v7395 = vshrl.u32 %v7394, 7
    %v7396 = vsub.s32 0, %v7395
    %v7397 = vrot.slane %v6827, %v7396
    %v7398 = vlaneseq
    %v7399 = vshrl.u32 %v7398, 7
    %v7400 = vsub.s32 0, %v7399
    %v7401 = vrot.slane %v6828, %v7400
    %v7402 = vlaneseq
    %v7403 = vshrl.u32 %v7402, 7
    %v7404 = vsub.s32 0, %v7403
    %v7405 = vrot.slane %v6829, %v7404
    %v7406 = vlaneseq
    %v7407 = vshrl.u32 %v7406, 7
    %v7408 = vsub.s32 0, %v7407
    %v7409 = vrot.slane %v6830, %v7408
    %v7410 = vlaneseq
    %v7411 = vshrl.u32 %v7410, 7
    %v7412 = vsub.s32 0, %v7411
    %v7413 = vrot.slane %v6831, %v7412
    %v7414 = vlaneseq
    %v7415 = vshrl.u32 %v7414, 7
    %v7416 = vsub.s32 0, %v7415
    %v7417 = vrot.slane %v6832, %v7416
    %v7418 = vlaneseq
    %v7419 = vshrl.u32 %v7418, 7
    %v7420 = vsub.s32 0, %v7419
    %v7421 = vrot.slane %v6833, %v7420
    %v7422 = vlaneseq
    %v7423 = vshrl.u32 %v7422, 7
    %v7424 = vsub.s32 0, %v7423
    %v7425 = vrot.slane %v6834, %v7424
    %v7426 = vlaneseq
    %v7427 = vshrl.u32 %v7426, 7
    %v7428 = vsub.s32 0, %v7427
    %v7429 = vrot.slane %v6835, %v7428
    %v7430 = vlaneseq
    %v7431 = vshrl.u32 %v7430, 7
    %v7432 = vsub.s32 0, %v7431
    %v7433 = vrot.slane %v6836, %v7432
    %v7434 = vlaneseq
    %v7435 = vshrl.u32 %v7434, 7
    %v7436 = vsub.s32 0, %v7435
    %v7437 = vrot.slane %v6837, %v7436
    %v7438 = vlaneseq
    %v7439 = vshrl.u32 %v7438, 7
    %v7440 = vsub.s32 0, %v7439
    %v7441 = vrot.slane %v6838, %v7440
    %v7442 = vlaneseq
    %v7443 = vshrl.u32 %v7442, 7
    %v7444 = vsub.s32 0, %v7443
    %v7445 = vrot.slane %v6839, %v7444
    %v7446 = vlaneseq
    %v7447 = vshrl.u32 %v7446, 7
    %v7448 = vsub.s32 0, %v7447
    %v7449 = vrot.slane %v6840, %v7448
    %v7450 = vlaneseq
    %v7451 = vshrl.u32 %v7450, 7
    %v7452 = vsub.s32 0, %v7451
    %v7453 = vrot.slane %v6841, %v7452
    %v7454 = vlaneseq
    %v7455 = vshrl.u32 %v7454, 7
    %v7456 = vsub.s32 0, %v7455
    %v7457 = vrot.slane %v6842, %v7456
    %v7458 = vlaneseq
    %v7459 = vshrl.u32 %v7458, 7
    %v7460 = vsub.s32 0, %v7459
    %v7461 = vrot.slane %v6843, %v7460
    %v7462 = vlaneseq
    %v7463 = vshrl.u32 %v7462, 7
    %v7464 = vsub.s32 0, %v7463
    %v7465 = vrot.slane %v6844, %v7464
    %v7466 = vlaneseq
    %v7467 = vshrl.u32 %v7466, 7
    %v7468 = vsub.s32 0, %v7467
    %v7469 = vrot.slane %v6845, %v7468
    %v7470 = vlaneseq
    %v7471 = vshrl.u32 %v7470, 7
    %v7472 = vsub.s32 0, %v7471
    %v7473 = vrot.slane %v6846, %v7472
    %v7474 = vlaneseq
    %v7475 = vshrl.u32 %v7474, 7
    %v7476 = vsub.s32 0, %v7475
    %v7477 = vrot.slane %v6847, %v7476
    %v7478 = vlaneseq
    %v7479 = vshrl.u32 %v7478, 7
    %v7480 = vsub.s32 0, %v7479
    %v7481 = vrot.slane %v6848, %v7480
    %v7482 = vlaneseq
    %v7483 = vshrl.u32 %v7482, 7
    %v7484 = vsub.s32 0, %v7483
    %v7485 = vrot.slane %v6849, %v7484
    %v7486 = vlaneseq
    %v7487 = vshrl.u32 %v7486, 7
    %v7488 = vsub.s32 0, %v7487
    %v7489 = vrot.slane %v6850, %v7488
    %v7490 = vlaneseq
    %v7491 = vshrl.u32 %v7490, 7
    %v7492 = vsub.s32 0, %v7491
    %v7493 = vrot.slane %v6851, %v7492
    %v7494 = vlaneseq
    %v7495 = vshrl.u32 %v7494, 7
    %v7496 = vsub.s32 0, %v7495
    %v7497 = vrot.slane %v6852, %v7496
    %v7498 = vlaneseq
    %v7499 = vshrl.u32 %v7498, 7
    %v7500 = vsub.s32 0, %v7499
    %v7501 = vrot.slane %v6853, %v7500
    %v7502 = vlaneseq
    %v7503 = vshrl.u32 %v7502, 7
    %v7504 = vsub.s32 0, %v7503
    %v7505 = vrot.slane %v6854, %v7504
    %v7506 = vlaneseq
    %v7507 = vshrl.u32 %v7506, 7
    %v7508 = vsub.s32 0, %v7507
    %v7509 = vrot.slane %v6855, %v7508
    %v7510 = vlaneseq
    %v7511 = vshrl.u32 %v7510, 7
    %v7512 = vsub.s32 0, %v7511
    %v7513 = vrot.slane %v6856, %v7512
    %v7514 = vlaneseq
    %v7515 = vshrl.u32 %v7514, 7
    %v7516 = vsub.s32 0, %v7515
    %v7517 = vrot.slane %v6857, %v7516
    %v7518 = vlaneseq
    %v7519 = vshrl.u32 %v7518, 7
    %v7520 = vsub.s32 0, %v7519
    %v7521 = vrot.slane %v6858, %v7520
    %v7522 = vlaneseq
    %v7523 = vshrl.u32 %v7522, 7
    %v7524 = vsub.s32 0, %v7523
    %v7525 = vrot.slane %v6859, %v7524
    %v7526 = vlaneseq
    %v7527 = vshrl.u32 %v7526, 7
    %v7528 = vsub.s32 0, %v7527
    %v7529 = vrot.slane %v6860, %v7528
    %v7530 = vlaneseq
    %v7531 = vshrl.u32 %v7530, 7
    %v7532 = vsub.s32 0, %v7531
    %v7533 = vrot.slane %v6861, %v7532
    %v7534 = vlaneseq
    %v7535 = vshrl.u32 %v7534, 7
    %v7536 = vsub.s32 0, %v7535
    %v7537 = vrot.slane %v6862, %v7536
    %v7538 = vlaneseq
    %v7539 = vshrl.u32 %v7538, 7
    %v7540 = vsub.s32 0, %v7539
    %v7541 = vrot.slane %v6863, %v7540
    %v7542 = vlaneseq
    %v7543 = vshrl.u32 %v7542, 7
    %v7544 = vsub.s32 0, %v7543
    %v7545 = vrot.slane %v6864, %v7544
    %v7546 = vlaneseq
    %v7547 = vshrl.u32 %v7546, 7
    %v7548 = vsub.s32 0, %v7547
    %v7549 = vrot.slane %v6865, %v7548
    %vm7550 = vcmask 1041409
    %v7551 = vsel %vm7550, %v7045, %v7041
    %vm7552 = vcmask 1042434
    %v7553 = vsel %vm7552, %v7049, %v7551
    %vm7554 = vcmask 1043459
    %v7555 = vsel %vm7554, %v7053, %v7553
    %vm7556 = vcmask 1044484
    %v7557 = vsel %vm7556, %v7057, %v7555
    %vm7558 = vcmask 1045509
    %v7559 = vsel %vm7558, %v7061, %v7557
    %vm7560 = vcmask 1046534
    %v7561 = vsel %vm7560, %v7065, %v7559
    %vm7562 = vcmask 1047559
    %v7563 = vsel %vm7562, %v7069, %v7561
    %v7564 = vsel %vm7550, %v7077, %v7073
    %v7565 = vsel %vm7552, %v7081, %v7564
    %v7566 = vsel %vm7554, %v7085, %v7565
    %v7567 = vsel %vm7556, %v7089, %v7566
    %v7568 = vsel %vm7558, %v7093, %v7567
    %v7569 = vsel %vm7560, %v7097, %v7568
    %v7570 = vsel %vm7562, %v7101, %v7569
    %v7571 = vsel %vm7550, %v7109, %v7105
    %v7572 = vsel %vm7552, %v7113, %v7571
    %v7573 = vsel %vm7554, %v7117, %v7572
    %v7574 = vsel %vm7556, %v7121, %v7573
    %v7575 = vsel %vm7558, %v7125, %v7574
    %v7576 = vsel %vm7560, %v7129, %v7575
    %v7577 = vsel %vm7562, %v7133, %v7576
    %v7578 = vsel %vm7550, %v7141, %v7137
    %v7579 = vsel %vm7552, %v7145, %v7578
    %v7580 = vsel %vm7554, %v7149, %v7579
    %v7581 = vsel %vm7556, %v7153, %v7580
    %v7582 = vsel %vm7558, %v7157, %v7581
    %v7583 = vsel %vm7560, %v7161, %v7582
    %v7584 = vsel %vm7562, %v7165, %v7583
    %v7585 = vsel %vm7550, %v7173, %v7169
    %v7586 = vsel %vm7552, %v7177, %v7585
    %v7587 = vsel %vm7554, %v7181, %v7586
    %v7588 = vsel %vm7556, %v7185, %v7587
    %v7589 = vsel %vm7558, %v7189, %v7588
    %v7590 = vsel %vm7560, %v7193, %v7589
    %v7591 = vsel %vm7562, %v7197, %v7590
    %v7592 = vsel %vm7550, %v7205, %v7201
    %v7593 = vsel %vm7552, %v7209, %v7592
    %v7594 = vsel %vm7554, %v7213, %v7593
    %v7595 = vsel %vm7556, %v7217, %v7594
    %v7596 = vsel %vm7558, %v7221, %v7595
    %v7597 = vsel %vm7560, %v7225, %v7596
    %v7598 = vsel %vm7562, %v7229, %v7597
    %v7599 = vsel %vm7550, %v7237, %v7233
    %v7600 = vsel %vm7552, %v7241, %v7599
    %v7601 = vsel %vm7554, %v7245, %v7600
    %v7602 = vsel %vm7556, %v7249, %v7601
    %v7603 = vsel %vm7558, %v7253, %v7602
    %v7604 = vsel %vm7560, %v7257, %v7603
    %v7605 = vsel %vm7562, %v7261, %v7604
    %v7606 = vsel %vm7550, %v7269, %v7265
    %v7607 = vsel %vm7552, %v7273, %v7606
    %v7608 = vsel %vm7554, %v7277, %v7607
    %v7609 = vsel %vm7556, %v7281, %v7608
    %v7610 = vsel %vm7558, %v7285, %v7609
    %v7611 = vsel %vm7560, %v7289, %v7610
    %v7612 = vsel %vm7562, %v7293, %v7611
    %v7613 = vsel %vm7550, %v7301, %v7297
    %v7614 = vsel %vm7552, %v7305, %v7613
    %v7615 = vsel %vm7554, %v7309, %v7614
    %v7616 = vsel %vm7556, %v7313, %v7615
    %v7617 = vsel %vm7558, %v7317, %v7616
    %v7618 = vsel %vm7560, %v7321, %v7617
    %v7619 = vsel %vm7562, %v7325, %v7618
    %v7620 = vsel %vm7550, %v7333, %v7329
    %v7621 = vsel %vm7552, %v7337, %v7620
    %v7622 = vsel %vm7554, %v7341, %v7621
    %v7623 = vsel %vm7556, %v7345, %v7622
    %v7624 = vsel %vm7558, %v7349, %v7623
    %v7625 = vsel %vm7560, %v7353, %v7624
    %v7626 = vsel %vm7562, %v7357, %v7625
    %v7627 = vsel %vm7550, %v7365, %v7361
    %v7628 = vsel %vm7552, %v7369, %v7627
    %v7629 = vsel %vm7554, %v7373, %v7628
    %v7630 = vsel %vm7556, %v7377, %v7629
    %v7631 = vsel %vm7558, %v7381, %v7630
    %v7632 = vsel %vm7560, %v7385, %v7631
    %v7633 = vsel %vm7562, %v7389, %v7632
    %v7634 = vsel %vm7550, %v7397, %v7393
    %v7635 = vsel %vm7552, %v7401, %v7634
    %v7636 = vsel %vm7554, %v7405, %v7635
    %v7637 = vsel %vm7556, %v7409, %v7636
    %v7638 = vsel %vm7558, %v7413, %v7637
    %v7639 = vsel %vm7560, %v7417, %v7638
    %v7640 = vsel %vm7562, %v7421, %v7639
    %v7641 = vsel %vm7550, %v7429, %v7425
    %v7642 = vsel %vm7552, %v7433, %v7641
    %v7643 = vsel %vm7554, %v7437, %v7642
    %v7644 = vsel %vm7556, %v7441, %v7643
    %v7645 = vsel %vm7558, %v7445, %v7644
    %v7646 = vsel %vm7560, %v7449, %v7645
    %v7647 = vsel %vm7562, %v7453, %v7646
    %v7648 = vsel %vm7550, %v7461, %v7457
    %v7649 = vsel %vm7552, %v7465, %v7648
    %v7650 = vsel %vm7554, %v7469, %v7649
    %v7651 = vsel %vm7556, %v7473, %v7650
    %v7652 = vsel %vm7558, %v7477, %v7651
    %v7653 = vsel %vm7560, %v7481, %v7652
    %v7654 = vsel %vm7562, %v7485, %v7653
    %v7655 = vsel %vm7550, %v7493, %v7489
    %v7656 = vsel %vm7552, %v7497, %v7655
    %v7657 = vsel %vm7554, %v7501, %v7656
    %v7658 = vsel %vm7556, %v7505, %v7657
    %v7659 = vsel %vm7558, %v7509, %v7658
    %v7660 = vsel %vm7560, %v7513, %v7659
    %v7661 = vsel %vm7562, %v7517, %v7660
    %v7662 = vsel %vm7550, %v7525, %v7521
    %v7663 = vsel %vm7552, %v7529, %v7662
    %v7664 = vsel %vm7554, %v7533, %v7663
    %v7665 = vsel %vm7556, %v7537, %v7664
    %v7666 = vsel %vm7558, %v7541, %v7665
    %v7667 = vsel %vm7560, %v7545, %v7666
    %v7668 = vsel %vm7562, %v7549, %v7667
    %7685 = vst.msk [vmem:[%s6876 + $0x1] sm:$0xff] %vm2937, %v7563
    %7686 = vst.msk [vmem:[%s6876 + $0x11] sm:$0xff] %vm2937, %v7570
    %7687 = vst.msk [vmem:[%s6876 + $0x21] sm:$0xff] %vm2937, %v7577
    %7688 = vst.msk [vmem:[%s6876 + $0x31] sm:$0xff] %vm2937, %v7584
    %7689 = vst.msk [vmem:[%s6876 + $0x41] sm:$0xff] %vm2937, %v7591
    %7690 = vst.msk [vmem:[%s6876 + $0x51] sm:$0xff] %vm2937, %v7598
    %7691 = vst.msk [vmem:[%s6876 + $0x61] sm:$0xff] %vm2937, %v7605
    %7692 = vst.msk [vmem:[%s6876 + $0x71] sm:$0xff] %vm2937, %v7612
    %7693 = vst.msk [vmem:[%s6876 + $0xa1] sm:$0xff] %vm2937, %v7619
    %7694 = vst.msk [vmem:[%s6876 + $0xb1] sm:$0xff] %vm2937, %v7626
    %7695 = vst.msk [vmem:[%s6876 + $0xc1] sm:$0xff] %vm2937, %v7633
    %7696 = vst.msk [vmem:[%s6876 + $0xd1] sm:$0xff] %vm2937, %v7640
    %7697 = vst.msk [vmem:[%s6876 + $0xe1] sm:$0xff] %vm2937, %v7647
    %7698 = vst.msk [vmem:[%s6876 + $0xf1] sm:$0xff] %vm2937, %v7654
    %7699 = vst.msk [vmem:[%s6876 + $0x101] sm:$0xff] %vm2937, %v7661
    %7700 = vst.msk [vmem:[%s6876 + $0x111] sm:$0xff] %vm2937, %v7668
    %v7701 = vld [vmem:[#allocation3] sm:$0xff]
    %v7702 = vld [vmem:[#allocation3 + $0x10] sm:$0xff]
    %v7703 = vld [vmem:[#allocation3 + $0x20] sm:$0xff]
    %v7704 = vld [vmem:[#allocation3 + $0x30] sm:$0xff]
    %v7705 = vld [vmem:[#allocation3 + $0x40] sm:$0xff]
    %v7706 = vld [vmem:[#allocation3 + $0x50] sm:$0xff]
    %v7707 = vld [vmem:[#allocation3 + $0x60] sm:$0xff]
    %v7708 = vld [vmem:[#allocation3 + $0x70] sm:$0xff]
    %v7709 = vld [vmem:[#allocation3 + $0xa0] sm:$0xff]
    %v7710 = vld [vmem:[#allocation3 + $0xb0] sm:$0xff]
    %v7711 = vld [vmem:[#allocation3 + $0xc0] sm:$0xff]
    %v7712 = vld [vmem:[#allocation3 + $0xd0] sm:$0xff]
    %v7713 = vld [vmem:[#allocation3 + $0xe0] sm:$0xff]
    %v7714 = vld [vmem:[#allocation3 + $0xf0] sm:$0xff]
    %v7715 = vld [vmem:[#allocation3 + $0x100] sm:$0xff]
    %v7716 = vld [vmem:[#allocation3 + $0x110] sm:$0xff]
    %v7717 = vld [vmem:[#allocation3 + $0x1] sm:$0xff]
    %v7718 = vld [vmem:[#allocation3 + $0x11] sm:$0xff]
    %v7719 = vld [vmem:[#allocation3 + $0x21] sm:$0xff]
    %v7720 = vld [vmem:[#allocation3 + $0x31] sm:$0xff]
    %v7721 = vld [vmem:[#allocation3 + $0x41] sm:$0xff]
    %v7722 = vld [vmem:[#allocation3 + $0x51] sm:$0xff]
    %v7723 = vld [vmem:[#allocation3 + $0x61] sm:$0xff]
    %v7724 = vld [vmem:[#allocation3 + $0x71] sm:$0xff]
    %v7725 = vld [vmem:[#allocation3 + $0xa1] sm:$0xff]
    %v7726 = vld [vmem:[#allocation3 + $0xb1] sm:$0xff]
    %v7727 = vld [vmem:[#allocation3 + $0xc1] sm:$0xff]
    %v7728 = vld [vmem:[#allocation3 + $0xd1] sm:$0xff]
    %v7729 = vld [vmem:[#allocation3 + $0xe1] sm:$0xff]
    %v7730 = vld [vmem:[#allocation3 + $0xf1] sm:$0xff]
    %v7731 = vld [vmem:[#allocation3 + $0x101] sm:$0xff]
    %v7732 = vld [vmem:[#allocation3 + $0x111] sm:$0xff]
    %v7733 = vld [vmem:[#allocation3 + $0x2] sm:$0xff]
    %v7734 = vld [vmem:[#allocation3 + $0x12] sm:$0xff]
    %v7735 = vld [vmem:[#allocation3 + $0x22] sm:$0xff]
    %v7736 = vld [vmem:[#allocation3 + $0x32] sm:$0xff]
    %v7737 = vld [vmem:[#allocation3 + $0x42] sm:$0xff]
    %v7738 = vld [vmem:[#allocation3 + $0x52] sm:$0xff]
    %v7739 = vld [vmem:[#allocation3 + $0x62] sm:$0xff]
    %v7740 = vld [vmem:[#allocation3 + $0x72] sm:$0xff]
    %v7741 = vld [vmem:[#allocation3 + $0xa2] sm:$0xff]
    %v7742 = vld [vmem:[#allocation3 + $0xb2] sm:$0xff]
    %v7743 = vld [vmem:[#allocation3 + $0xc2] sm:$0xff]
    %v7744 = vld [vmem:[#allocation3 + $0xd2] sm:$0xff]
    %v7745 = vld [vmem:[#allocation3 + $0xe2] sm:$0xff]
    %v7746 = vld [vmem:[#allocation3 + $0xf2] sm:$0xff]
    %v7747 = vld [vmem:[#allocation3 + $0x102] sm:$0xff]
    %v7748 = vld [vmem:[#allocation3 + $0x112] sm:$0xff]
    %v7749 = vld [vmem:[%s6876] sm:$0xff]
    %v7750 = vld [vmem:[%s6876 + $0x10] sm:$0xff]
    %v7751 = vld [vmem:[%s6876 + $0x20] sm:$0xff]
    %v7752 = vld [vmem:[%s6876 + $0x30] sm:$0xff]
    %v7753 = vld [vmem:[%s6876 + $0x40] sm:$0xff]
    %v7754 = vld [vmem:[%s6876 + $0x50] sm:$0xff]
    %v7755 = vld [vmem:[%s6876 + $0x60] sm:$0xff]
    %v7756 = vld [vmem:[%s6876 + $0x70] sm:$0xff]
    %v7757 = vld [vmem:[%s6876 + $0xa0] sm:$0xff]
    %v7758 = vld [vmem:[%s6876 + $0xb0] sm:$0xff]
    %v7759 = vld [vmem:[%s6876 + $0xc0] sm:$0xff]
    %v7760 = vld [vmem:[%s6876 + $0xd0] sm:$0xff]
    %v7761 = vld [vmem:[%s6876 + $0xe0] sm:$0xff]
    %v7762 = vld [vmem:[%s6876 + $0xf0] sm:$0xff]
    %v7763 = vld [vmem:[%s6876 + $0x100] sm:$0xff]
    %v7764 = vld [vmem:[%s6876 + $0x110] sm:$0xff]
    %v7765 = vld [vmem:[%s6876 + $0x1] sm:$0xff]
    %v7766 = vld [vmem:[%s6876 + $0x11] sm:$0xff]
    %v7767 = vld [vmem:[%s6876 + $0x21] sm:$0xff]
    %v7768 = vld [vmem:[%s6876 + $0x31] sm:$0xff]
    %v7769 = vld [vmem:[%s6876 + $0x41] sm:$0xff]
    %v7770 = vld [vmem:[%s6876 + $0x51] sm:$0xff]
    %v7771 = vld [vmem:[%s6876 + $0x61] sm:$0xff]
    %v7772 = vld [vmem:[%s6876 + $0x71] sm:$0xff]
    %v7773 = vld [vmem:[%s6876 + $0xa1] sm:$0xff]
    %v7774 = vld [vmem:[%s6876 + $0xb1] sm:$0xff]
    %v7775 = vld [vmem:[%s6876 + $0xc1] sm:$0xff]
    %v7776 = vld [vmem:[%s6876 + $0xd1] sm:$0xff]
    %v7777 = vld [vmem:[%s6876 + $0xe1] sm:$0xff]
    %v7778 = vld [vmem:[%s6876 + $0xf1] sm:$0xff]
    %v7779 = vld [vmem:[%s6876 + $0x101] sm:$0xff]
    %v7780 = vld [vmem:[%s6876 + $0x111] sm:$0xff]
    %v7781 = vld [vmem:[%s6876 + $0x2] sm:$0xff]
    %v7782 = vld [vmem:[%s6876 + $0x12] sm:$0xff]
    %v7783 = vld [vmem:[%s6876 + $0x22] sm:$0xff]
    %v7784 = vld [vmem:[%s6876 + $0x32] sm:$0xff]
    %v7785 = vld [vmem:[%s6876 + $0x42] sm:$0xff]
    %v7786 = vld [vmem:[%s6876 + $0x52] sm:$0xff]
    %v7787 = vld [vmem:[%s6876 + $0x62] sm:$0xff]
    %v7788 = vld [vmem:[%s6876 + $0x72] sm:$0xff]
    %v7789 = vld [vmem:[%s6876 + $0xa2] sm:$0xff]
    %v7790 = vld [vmem:[%s6876 + $0xb2] sm:$0xff]
    %v7791 = vld [vmem:[%s6876 + $0xc2] sm:$0xff]
    %v7792 = vld [vmem:[%s6876 + $0xd2] sm:$0xff]
    %v7793 = vld [vmem:[%s6876 + $0xe2] sm:$0xff]
    %v7794 = vld [vmem:[%s6876 + $0xf2] sm:$0xff]
    %v7795 = vld [vmem:[%s6876 + $0x102] sm:$0xff]
    %v7796 = vld [vmem:[%s6876 + $0x112] sm:$0xff]
    %s7797 = scalar_lea.vmem [#allocation3], 32
    %v7798 = vld [vmem:[%s7797] sm:$0xff]
    %v7799 = vld [vmem:[%s7797 + $0x10] sm:$0xff]
    %v7800 = vld [vmem:[%s7797 + $0x20] sm:$0xff]
    %v7801 = vld [vmem:[%s7797 + $0x30] sm:$0xff]
    %v7802 = vld [vmem:[%s7797 + $0x40] sm:$0xff]
    %v7803 = vld [vmem:[%s7797 + $0x50] sm:$0xff]
    %v7804 = vld [vmem:[%s7797 + $0x60] sm:$0xff]
    %v7805 = vld [vmem:[%s7797 + $0x70] sm:$0xff]
    %v7806 = vld [vmem:[%s7797 + $0xa0] sm:$0xff]
    %v7807 = vld [vmem:[%s7797 + $0xb0] sm:$0xff]
    %v7808 = vld [vmem:[%s7797 + $0xc0] sm:$0xff]
    %v7809 = vld [vmem:[%s7797 + $0xd0] sm:$0xff]
    %v7810 = vld [vmem:[%s7797 + $0xe0] sm:$0xff]
    %v7811 = vld [vmem:[%s7797 + $0xf0] sm:$0xff]
    %v7812 = vld [vmem:[%s7797 + $0x100] sm:$0xff]
    %v7813 = vld [vmem:[%s7797 + $0x110] sm:$0xff]
    %v7814 = vld [vmem:[%s7797 + $0x1] sm:$0xff]
    %v7815 = vld [vmem:[%s7797 + $0x11] sm:$0xff]
    %v7816 = vld [vmem:[%s7797 + $0x21] sm:$0xff]
    %v7817 = vld [vmem:[%s7797 + $0x31] sm:$0xff]
    %v7818 = vld [vmem:[%s7797 + $0x41] sm:$0xff]
    %v7819 = vld [vmem:[%s7797 + $0x51] sm:$0xff]
    %v7820 = vld [vmem:[%s7797 + $0x61] sm:$0xff]
    %v7821 = vld [vmem:[%s7797 + $0x71] sm:$0xff]
    %v7822 = vld [vmem:[%s7797 + $0xa1] sm:$0xff]
    %v7823 = vld [vmem:[%s7797 + $0xb1] sm:$0xff]
    %v7824 = vld [vmem:[%s7797 + $0xc1] sm:$0xff]
    %v7825 = vld [vmem:[%s7797 + $0xd1] sm:$0xff]
    %v7826 = vld [vmem:[%s7797 + $0xe1] sm:$0xff]
    %v7827 = vld [vmem:[%s7797 + $0xf1] sm:$0xff]
    %v7828 = vld [vmem:[%s7797 + $0x101] sm:$0xff]
    %v7829 = vld [vmem:[%s7797 + $0x111] sm:$0xff]
    %v7830 = vld [vmem:[%s7797 + $0x2] sm:$0xff]
    %v7831 = vld [vmem:[%s7797 + $0x12] sm:$0xff]
    %v7832 = vld [vmem:[%s7797 + $0x22] sm:$0xff]
    %v7833 = vld [vmem:[%s7797 + $0x32] sm:$0xff]
    %v7834 = vld [vmem:[%s7797 + $0x42] sm:$0xff]
    %v7835 = vld [vmem:[%s7797 + $0x52] sm:$0xff]
    %v7836 = vld [vmem:[%s7797 + $0x62] sm:$0xff]
    %v7837 = vld [vmem:[%s7797 + $0x72] sm:$0xff]
    %v7838 = vld [vmem:[%s7797 + $0xa2] sm:$0xff]
    %v7839 = vld [vmem:[%s7797 + $0xb2] sm:$0xff]
    %v7840 = vld [vmem:[%s7797 + $0xc2] sm:$0xff]
    %v7841 = vld [vmem:[%s7797 + $0xd2] sm:$0xff]
    %v7842 = vld [vmem:[%s7797 + $0xe2] sm:$0xff]
    %v7843 = vld [vmem:[%s7797 + $0xf2] sm:$0xff]
    %v7844 = vld [vmem:[%s7797 + $0x102] sm:$0xff]
    %v7845 = vld [vmem:[%s7797 + $0x112] sm:$0xff]
    %7862 = vrot.lane.b32.xlu0 %v7717, 8
    %v7863 = vpop.permute.xlu0 %7862
    %7864 = vrot.lane.b32.xlu0 %v7718, 8
    %v7865 = vpop.permute.xlu0 %7864
    %7866 = vrot.lane.b32.xlu0 %v7719, 8
    %v7867 = vpop.permute.xlu0 %7866
    %7868 = vrot.lane.b32.xlu0 %v7720, 8
    %v7869 = vpop.permute.xlu0 %7868
    %7870 = vrot.lane.b32.xlu0 %v7721, 8
    %v7871 = vpop.permute.xlu0 %7870
    %7872 = vrot.lane.b32.xlu0 %v7722, 8
    %v7873 = vpop.permute.xlu0 %7872
    %7874 = vrot.lane.b32.xlu0 %v7723, 8
    %v7875 = vpop.permute.xlu0 %7874
    %7876 = vrot.lane.b32.xlu0 %v7724, 8
    %v7877 = vpop.permute.xlu0 %7876
    %7878 = vrot.lane.b32.xlu0 %v7725, 8
    %v7879 = vpop.permute.xlu0 %7878
    %7880 = vrot.lane.b32.xlu0 %v7726, 8
    %v7881 = vpop.permute.xlu0 %7880
    %7882 = vrot.lane.b32.xlu0 %v7727, 8
    %v7883 = vpop.permute.xlu0 %7882
    %7884 = vrot.lane.b32.xlu0 %v7728, 8
    %v7885 = vpop.permute.xlu0 %7884
    %7886 = vrot.lane.b32.xlu0 %v7729, 8
    %v7887 = vpop.permute.xlu0 %7886
    %7888 = vrot.lane.b32.xlu0 %v7730, 8
    %v7889 = vpop.permute.xlu0 %7888
    %7890 = vrot.lane.b32.xlu0 %v7731, 8
    %v7891 = vpop.permute.xlu0 %7890
    %7892 = vrot.lane.b32.xlu0 %v7732, 8
    %v7893 = vpop.permute.xlu0 %7892
    %7926 = vrot.lane.b32.xlu0 %v7733, 16
    %v7927 = vpop.permute.xlu0 %7926
    %7928 = vrot.lane.b32.xlu0 %v7734, 16
    %v7929 = vpop.permute.xlu0 %7928
    %7930 = vrot.lane.b32.xlu0 %v7735, 16
    %v7931 = vpop.permute.xlu0 %7930
    %7932 = vrot.lane.b32.xlu0 %v7736, 16
    %v7933 = vpop.permute.xlu0 %7932
    %7934 = vrot.lane.b32.xlu0 %v7737, 16
    %v7935 = vpop.permute.xlu0 %7934
    %7936 = vrot.lane.b32.xlu0 %v7738, 16
    %v7937 = vpop.permute.xlu0 %7936
    %7938 = vrot.lane.b32.xlu0 %v7739, 16
    %v7939 = vpop.permute.xlu0 %7938
    %7940 = vrot.lane.b32.xlu0 %v7740, 16
    %v7941 = vpop.permute.xlu0 %7940
    %7942 = vrot.lane.b32.xlu0 %v7741, 16
    %v7943 = vpop.permute.xlu0 %7942
    %7944 = vrot.lane.b32.xlu0 %v7742, 16
    %v7945 = vpop.permute.xlu0 %7944
    %7946 = vrot.lane.b32.xlu0 %v7743, 16
    %v7947 = vpop.permute.xlu0 %7946
    %7948 = vrot.lane.b32.xlu0 %v7744, 16
    %v7949 = vpop.permute.xlu0 %7948
    %7950 = vrot.lane.b32.xlu0 %v7745, 16
    %v7951 = vpop.permute.xlu0 %7950
    %7952 = vrot.lane.b32.xlu0 %v7746, 16
    %v7953 = vpop.permute.xlu0 %7952
    %7954 = vrot.lane.b32.xlu0 %v7747, 16
    %v7955 = vpop.permute.xlu0 %7954
    %7956 = vrot.lane.b32.xlu0 %v7748, 16
    %v7957 = vpop.permute.xlu0 %7956
    %7990 = vrot.lane.b32.xlu0 %v7749, 24
    %v7991 = vpop.permute.xlu0 %7990
    %7992 = vrot.lane.b32.xlu0 %v7750, 24
    %v7993 = vpop.permute.xlu0 %7992
    %7994 = vrot.lane.b32.xlu0 %v7751, 24
    %v7995 = vpop.permute.xlu0 %7994
    %7996 = vrot.lane.b32.xlu0 %v7752, 24
    %v7997 = vpop.permute.xlu0 %7996
    %7998 = vrot.lane.b32.xlu0 %v7753, 24
    %v7999 = vpop.permute.xlu0 %7998
    %8000 = vrot.lane.b32.xlu0 %v7754, 24
    %v8001 = vpop.permute.xlu0 %8000
    %8002 = vrot.lane.b32.xlu0 %v7755, 24
    %v8003 = vpop.permute.xlu0 %8002
    %8004 = vrot.lane.b32.xlu0 %v7756, 24
    %v8005 = vpop.permute.xlu0 %8004
    %8006 = vrot.lane.b32.xlu0 %v7757, 24
    %v8007 = vpop.permute.xlu0 %8006
    %8008 = vrot.lane.b32.xlu0 %v7758, 24
    %v8009 = vpop.permute.xlu0 %8008
    %8010 = vrot.lane.b32.xlu0 %v7759, 24
    %v8011 = vpop.permute.xlu0 %8010
    %8012 = vrot.lane.b32.xlu0 %v7760, 24
    %v8013 = vpop.permute.xlu0 %8012
    %8014 = vrot.lane.b32.xlu0 %v7761, 24
    %v8015 = vpop.permute.xlu0 %8014
    %8016 = vrot.lane.b32.xlu0 %v7762, 24
    %v8017 = vpop.permute.xlu0 %8016
    %8018 = vrot.lane.b32.xlu0 %v7763, 24
    %v8019 = vpop.permute.xlu0 %8018
    %8020 = vrot.lane.b32.xlu0 %v7764, 24
    %v8021 = vpop.permute.xlu0 %8020
    %8054 = vrot.lane.b32.xlu0 %v7765, 32
    %v8055 = vpop.permute.xlu0 %8054
    %8056 = vrot.lane.b32.xlu0 %v7766, 32
    %v8057 = vpop.permute.xlu0 %8056
    %8058 = vrot.lane.b32.xlu0 %v7767, 32
    %v8059 = vpop.permute.xlu0 %8058
    %8060 = vrot.lane.b32.xlu0 %v7768, 32
    %v8061 = vpop.permute.xlu0 %8060
    %8062 = vrot.lane.b32.xlu0 %v7769, 32
    %v8063 = vpop.permute.xlu0 %8062
    %8064 = vrot.lane.b32.xlu0 %v7770, 32
    %v8065 = vpop.permute.xlu0 %8064
    %8066 = vrot.lane.b32.xlu0 %v7771, 32
    %v8067 = vpop.permute.xlu0 %8066
    %8068 = vrot.lane.b32.xlu0 %v7772, 32
    %v8069 = vpop.permute.xlu0 %8068
    %8070 = vrot.lane.b32.xlu0 %v7773, 32
    %v8071 = vpop.permute.xlu0 %8070
    %8072 = vrot.lane.b32.xlu0 %v7774, 32
    %v8073 = vpop.permute.xlu0 %8072
    %8074 = vrot.lane.b32.xlu0 %v7775, 32
    %v8075 = vpop.permute.xlu0 %8074
    %8076 = vrot.lane.b32.xlu0 %v7776, 32
    %v8077 = vpop.permute.xlu0 %8076
    %8078 = vrot.lane.b32.xlu0 %v7777, 32
    %v8079 = vpop.permute.xlu0 %8078
    %8080 = vrot.lane.b32.xlu0 %v7778, 32
    %v8081 = vpop.permute.xlu0 %8080
    %8082 = vrot.lane.b32.xlu0 %v7779, 32
    %v8083 = vpop.permute.xlu0 %8082
    %8084 = vrot.lane.b32.xlu0 %v7780, 32
    %v8085 = vpop.permute.xlu0 %8084
    %8118 = vrot.lane.b32.xlu0 %v7781, 40
    %v8119 = vpop.permute.xlu0 %8118
    %8120 = vrot.lane.b32.xlu0 %v7782, 40
    %v8121 = vpop.permute.xlu0 %8120
    %8122 = vrot.lane.b32.xlu0 %v7783, 40
    %v8123 = vpop.permute.xlu0 %8122
    %8124 = vrot.lane.b32.xlu0 %v7784, 40
    %v8125 = vpop.permute.xlu0 %8124
    %8126 = vrot.lane.b32.xlu0 %v7785, 40
    %v8127 = vpop.permute.xlu0 %8126
    %8128 = vrot.lane.b32.xlu0 %v7786, 40
    %v8129 = vpop.permute.xlu0 %8128
    %8130 = vrot.lane.b32.xlu0 %v7787, 40
    %v8131 = vpop.permute.xlu0 %8130
    %8132 = vrot.lane.b32.xlu0 %v7788, 40
    %v8133 = vpop.permute.xlu0 %8132
    %8134 = vrot.lane.b32.xlu0 %v7789, 40
    %v8135 = vpop.permute.xlu0 %8134
    %8136 = vrot.lane.b32.xlu0 %v7790, 40
    %v8137 = vpop.permute.xlu0 %8136
    %8138 = vrot.lane.b32.xlu0 %v7791, 40
    %v8139 = vpop.permute.xlu0 %8138
    %8140 = vrot.lane.b32.xlu0 %v7792, 40
    %v8141 = vpop.permute.xlu0 %8140
    %8142 = vrot.lane.b32.xlu0 %v7793, 40
    %v8143 = vpop.permute.xlu0 %8142
    %8144 = vrot.lane.b32.xlu0 %v7794, 40
    %v8145 = vpop.permute.xlu0 %8144
    %8146 = vrot.lane.b32.xlu0 %v7795, 40
    %v8147 = vpop.permute.xlu0 %8146
    %8148 = vrot.lane.b32.xlu0 %v7796, 40
    %v8149 = vpop.permute.xlu0 %8148
    %8182 = vrot.lane.b32.xlu0 %v7798, 48
    %v8183 = vpop.permute.xlu0 %8182
    %8184 = vrot.lane.b32.xlu0 %v7799, 48
    %v8185 = vpop.permute.xlu0 %8184
    %8186 = vrot.lane.b32.xlu0 %v7800, 48
    %v8187 = vpop.permute.xlu0 %8186
    %8188 = vrot.lane.b32.xlu0 %v7801, 48
    %v8189 = vpop.permute.xlu0 %8188
    %8190 = vrot.lane.b32.xlu0 %v7802, 48
    %v8191 = vpop.permute.xlu0 %8190
    %8192 = vrot.lane.b32.xlu0 %v7803, 48
    %v8193 = vpop.permute.xlu0 %8192
    %8194 = vrot.lane.b32.xlu0 %v7804, 48
    %v8195 = vpop.permute.xlu0 %8194
    %8196 = vrot.lane.b32.xlu0 %v7805, 48
    %v8197 = vpop.permute.xlu0 %8196
    %8198 = vrot.lane.b32.xlu0 %v7806, 48
    %v8199 = vpop.permute.xlu0 %8198
    %8200 = vrot.lane.b32.xlu0 %v7807, 48
    %v8201 = vpop.permute.xlu0 %8200
    %8202 = vrot.lane.b32.xlu0 %v7808, 48
    %v8203 = vpop.permute.xlu0 %8202
    %8204 = vrot.lane.b32.xlu0 %v7809, 48
    %v8205 = vpop.permute.xlu0 %8204
    %8206 = vrot.lane.b32.xlu0 %v7810, 48
    %v8207 = vpop.permute.xlu0 %8206
    %8208 = vrot.lane.b32.xlu0 %v7811, 48
    %v8209 = vpop.permute.xlu0 %8208
    %8210 = vrot.lane.b32.xlu0 %v7812, 48
    %v8211 = vpop.permute.xlu0 %8210
    %8212 = vrot.lane.b32.xlu0 %v7813, 48
    %v8213 = vpop.permute.xlu0 %8212
    %8246 = vrot.lane.b32.xlu0 %v7814, 56
    %v8247 = vpop.permute.xlu0 %8246
    %8248 = vrot.lane.b32.xlu0 %v7815, 56
    %v8249 = vpop.permute.xlu0 %8248
    %8250 = vrot.lane.b32.xlu0 %v7816, 56
    %v8251 = vpop.permute.xlu0 %8250
    %8252 = vrot.lane.b32.xlu0 %v7817, 56
    %v8253 = vpop.permute.xlu0 %8252
    %8254 = vrot.lane.b32.xlu0 %v7818, 56
    %v8255 = vpop.permute.xlu0 %8254
    %8256 = vrot.lane.b32.xlu0 %v7819, 56
    %v8257 = vpop.permute.xlu0 %8256
    %8258 = vrot.lane.b32.xlu0 %v7820, 56
    %v8259 = vpop.permute.xlu0 %8258
    %8260 = vrot.lane.b32.xlu0 %v7821, 56
    %v8261 = vpop.permute.xlu0 %8260
    %8262 = vrot.lane.b32.xlu0 %v7822, 56
    %v8263 = vpop.permute.xlu0 %8262
    %8264 = vrot.lane.b32.xlu0 %v7823, 56
    %v8265 = vpop.permute.xlu0 %8264
    %8266 = vrot.lane.b32.xlu0 %v7824, 56
    %v8267 = vpop.permute.xlu0 %8266
    %8268 = vrot.lane.b32.xlu0 %v7825, 56
    %v8269 = vpop.permute.xlu0 %8268
    %8270 = vrot.lane.b32.xlu0 %v7826, 56
    %v8271 = vpop.permute.xlu0 %8270
    %8272 = vrot.lane.b32.xlu0 %v7827, 56
    %v8273 = vpop.permute.xlu0 %8272
    %8274 = vrot.lane.b32.xlu0 %v7828, 56
    %v8275 = vpop.permute.xlu0 %8274
    %8276 = vrot.lane.b32.xlu0 %v7829, 56
    %v8277 = vpop.permute.xlu0 %8276
    %8310 = vrot.lane.b32.xlu0 %v7830, 64
    %v8311 = vpop.permute.xlu0 %8310
    %8312 = vrot.lane.b32.xlu0 %v7831, 64
    %v8313 = vpop.permute.xlu0 %8312
    %8314 = vrot.lane.b32.xlu0 %v7832, 64
    %v8315 = vpop.permute.xlu0 %8314
    %8316 = vrot.lane.b32.xlu0 %v7833, 64
    %v8317 = vpop.permute.xlu0 %8316
    %8318 = vrot.lane.b32.xlu0 %v7834, 64
    %v8319 = vpop.permute.xlu0 %8318
    %8320 = vrot.lane.b32.xlu0 %v7835, 64
    %v8321 = vpop.permute.xlu0 %8320
    %8322 = vrot.lane.b32.xlu0 %v7836, 64
    %v8323 = vpop.permute.xlu0 %8322
    %8324 = vrot.lane.b32.xlu0 %v7837, 64
    %v8325 = vpop.permute.xlu0 %8324
    %8326 = vrot.lane.b32.xlu0 %v7838, 64
    %v8327 = vpop.permute.xlu0 %8326
    %8328 = vrot.lane.b32.xlu0 %v7839, 64
    %v8329 = vpop.permute.xlu0 %8328
    %8330 = vrot.lane.b32.xlu0 %v7840, 64
    %v8331 = vpop.permute.xlu0 %8330
    %8332 = vrot.lane.b32.xlu0 %v7841, 64
    %v8333 = vpop.permute.xlu0 %8332
    %8334 = vrot.lane.b32.xlu0 %v7842, 64
    %v8335 = vpop.permute.xlu0 %8334
    %8336 = vrot.lane.b32.xlu0 %v7843, 64
    %v8337 = vpop.permute.xlu0 %8336
    %8338 = vrot.lane.b32.xlu0 %v7844, 64
    %v8339 = vpop.permute.xlu0 %8338
    %8340 = vrot.lane.b32.xlu0 %v7845, 64
    %v8341 = vpop.permute.xlu0 %8340
    %v8358 = vsel %vm2937, %v7701, %v7863
    %v8359 = vsel %vm2937, %v7702, %v7865
    %v8360 = vsel %vm2937, %v7703, %v7867
    %v8361 = vsel %vm2937, %v7704, %v7869
    %v8362 = vsel %vm2937, %v7705, %v7871
    %v8363 = vsel %vm2937, %v7706, %v7873
    %v8364 = vsel %vm2937, %v7707, %v7875
    %v8365 = vsel %vm2937, %v7708, %v7877
    %v8366 = vsel %vm2937, %v7709, %v7879
    %v8367 = vsel %vm2937, %v7710, %v7881
    %v8368 = vsel %vm2937, %v7711, %v7883
    %v8369 = vsel %vm2937, %v7712, %v7885
    %v8370 = vsel %vm2937, %v7713, %v7887
    %v8371 = vsel %vm2937, %v7714, %v7889
    %v8372 = vsel %vm2937, %v7715, %v7891
    %v8373 = vsel %vm2937, %v7716, %v7893
    %v8374 = vsel %vm3067, %v8358, %v7927
    %v8375 = vsel %vm3067, %v8359, %v7929
    %v8376 = vsel %vm3067, %v8360, %v7931
    %v8377 = vsel %vm3067, %v8361, %v7933
    %v8378 = vsel %vm3067, %v8362, %v7935
    %v8379 = vsel %vm3067, %v8363, %v7937
    %v8380 = vsel %vm3067, %v8364, %v7939
    %v8381 = vsel %vm3067, %v8365, %v7941
    %v8382 = vsel %vm3067, %v8366, %v7943
    %v8383 = vsel %vm3067, %v8367, %v7945
    %v8384 = vsel %vm3067, %v8368, %v7947
    %v8385 = vsel %vm3067, %v8369, %v7949
    %v8386 = vsel %vm3067, %v8370, %v7951
    %v8387 = vsel %vm3067, %v8371, %v7953
    %v8388 = vsel %vm3067, %v8372, %v7955
    %v8389 = vsel %vm3067, %v8373, %v7957
    %v8390 = vsel %vm3197, %v8374, %v7991
    %v8391 = vsel %vm3197, %v8375, %v7993
    %v8392 = vsel %vm3197, %v8376, %v7995
    %v8393 = vsel %vm3197, %v8377, %v7997
    %v8394 = vsel %vm3197, %v8378, %v7999
    %v8395 = vsel %vm3197, %v8379, %v8001
    %v8396 = vsel %vm3197, %v8380, %v8003
    %v8397 = vsel %vm3197, %v8381, %v8005
    %v8398 = vsel %vm3197, %v8382, %v8007
    %v8399 = vsel %vm3197, %v8383, %v8009
    %v8400 = vsel %vm3197, %v8384, %v8011
    %v8401 = vsel %vm3197, %v8385, %v8013
    %v8402 = vsel %vm3197, %v8386, %v8015
    %v8403 = vsel %vm3197, %v8387, %v8017
    %v8404 = vsel %vm3197, %v8388, %v8019
    %v8405 = vsel %vm3197, %v8389, %v8021
    %v8406 = vsel %vm3327, %v8390, %v8055
    %v8407 = vsel %vm3327, %v8391, %v8057
    %v8408 = vsel %vm3327, %v8392, %v8059
    %v8409 = vsel %vm3327, %v8393, %v8061
    %v8410 = vsel %vm3327, %v8394, %v8063
    %v8411 = vsel %vm3327, %v8395, %v8065
    %v8412 = vsel %vm3327, %v8396, %v8067
    %v8413 = vsel %vm3327, %v8397, %v8069
    %v8414 = vsel %vm3327, %v8398, %v8071
    %v8415 = vsel %vm3327, %v8399, %v8073
    %v8416 = vsel %vm3327, %v8400, %v8075
    %v8417 = vsel %vm3327, %v8401, %v8077
    %v8418 = vsel %vm3327, %v8402, %v8079
    %v8419 = vsel %vm3327, %v8403, %v8081
    %v8420 = vsel %vm3327, %v8404, %v8083
    %v8421 = vsel %vm3327, %v8405, %v8085
    %vm8422 = vcmask 326656
    %v8423 = vsel %vm8422, %v8406, %v8119
    %v8424 = vsel %vm8422, %v8407, %v8121
    %v8425 = vsel %vm8422, %v8408, %v8123
    %v8426 = vsel %vm8422, %v8409, %v8125
    %v8427 = vsel %vm8422, %v8410, %v8127
    %v8428 = vsel %vm8422, %v8411, %v8129
    %v8429 = vsel %vm8422, %v8412, %v8131
    %v8430 = vsel %vm8422, %v8413, %v8133
    %v8431 = vsel %vm8422, %v8414, %v8135
    %v8432 = vsel %vm8422, %v8415, %v8137
    %v8433 = vsel %vm8422, %v8416, %v8139
    %v8434 = vsel %vm8422, %v8417, %v8141
    %v8435 = vsel %vm8422, %v8418, %v8143
    %v8436 = vsel %vm8422, %v8419, %v8145
    %v8437 = vsel %vm8422, %v8420, %v8147
    %v8438 = vsel %vm8422, %v8421, %v8149
    %vm8439 = vcmask 392192
    %v8440 = vsel %vm8439, %v8423, %v8183
    %v8441 = vsel %vm8439, %v8424, %v8185
    %v8442 = vsel %vm8439, %v8425, %v8187
    %v8443 = vsel %vm8439, %v8426, %v8189
    %v8444 = vsel %vm8439, %v8427, %v8191
    %v8445 = vsel %vm8439, %v8428, %v8193
    %v8446 = vsel %vm8439, %v8429, %v8195
    %v8447 = vsel %vm8439, %v8430, %v8197
    %v8448 = vsel %vm8439, %v8431, %v8199
    %v8449 = vsel %vm8439, %v8432, %v8201
    %v8450 = vsel %vm8439, %v8433, %v8203
    %v8451 = vsel %vm8439, %v8434, %v8205
    %v8452 = vsel %vm8439, %v8435, %v8207
    %v8453 = vsel %vm8439, %v8436, %v8209
    %v8454 = vsel %vm8439, %v8437, %v8211
    %v8455 = vsel %vm8439, %v8438, %v8213
    %vm8456 = vcmask 457728
    %v8457 = vsel %vm8456, %v8440, %v8247
    %v8458 = vsel %vm8456, %v8441, %v8249
    %v8459 = vsel %vm8456, %v8442, %v8251
    %v8460 = vsel %vm8456, %v8443, %v8253
    %v8461 = vsel %vm8456, %v8444, %v8255
    %v8462 = vsel %vm8456, %v8445, %v8257
    %v8463 = vsel %vm8456, %v8446, %v8259
    %v8464 = vsel %vm8456, %v8447, %v8261
    %v8465 = vsel %vm8456, %v8448, %v8263
    %v8466 = vsel %vm8456, %v8449, %v8265
    %v8467 = vsel %vm8456, %v8450, %v8267
    %v8468 = vsel %vm8456, %v8451, %v8269
    %v8469 = vsel %vm8456, %v8452, %v8271
    %v8470 = vsel %vm8456, %v8453, %v8273
    %v8471 = vsel %vm8456, %v8454, %v8275
    %v8472 = vsel %vm8456, %v8455, %v8277
    %vm8473 = vcmask 523264
    %v8474 = vsel %vm8473, %v8457, %v8311
    %v8475 = vsel %vm8473, %v8458, %v8313
    %v8476 = vsel %vm8473, %v8459, %v8315
    %v8477 = vsel %vm8473, %v8460, %v8317
    %v8478 = vsel %vm8473, %v8461, %v8319
    %v8479 = vsel %vm8473, %v8462, %v8321
    %v8480 = vsel %vm8473, %v8463, %v8323
    %v8481 = vsel %vm8473, %v8464, %v8325
    %v8482 = vsel %vm8473, %v8465, %v8327
    %v8483 = vsel %vm8473, %v8466, %v8329
    %v8484 = vsel %vm8473, %v8467, %v8331
    %v8485 = vsel %vm8473, %v8468, %v8333
    %v8486 = vsel %vm8473, %v8469, %v8335
    %v8487 = vsel %vm8473, %v8470, %v8337
    %v8488 = vsel %vm8473, %v8471, %v8339
    %v8489 = vsel %vm8473, %v8472, %v8341
    %v8490 = vld [vmem:[%s3] sm:$0xff]
    %v8491 = vld [vmem:[%s3 + $0x8] sm:$0xff]
    %v8492 = vld [vmem:[%s3 + $0x10] sm:$0xff]
    %v8493 = vld [vmem:[%s3 + $0x18] sm:$0xff]
    %v8494 = vld [vmem:[%s3 + $0x20] sm:$0xff]
    %v8495 = vld [vmem:[%s3 + $0x28] sm:$0xff]
    %v8496 = vld [vmem:[%s3 + $0x30] sm:$0xff]
    %v8497 = vld [vmem:[%s3 + $0x38] sm:$0xff]
    %v8498 = vld [vmem:[%s3 + $0x40] sm:$0xff]
    %v8499 = vld [vmem:[%s4] sm:$0x1]
    %v8501 = vlaneseq
    %v8502 = vshrl.u32 %v8501, 7
    %v8503 = vsub.s32 0, %v8502
    %v8504 = vrot.slane %v8499, %v8503
    %vm8506 = vcmask 588800
    %v8508 = vsel %vm8506, %v8474, 0
    %v8511 = vsel %vm8506, %v8475, 0
    %v8514 = vsel %vm8506, %v8476, 0
    %v8517 = vsel %vm8506, %v8477, 0
    %v8520 = vsel %vm8506, %v8478, 0
    %v8523 = vsel %vm8506, %v8479, 0
    %v8526 = vsel %vm8506, %v8480, 0
    %v8529 = vsel %vm8506, %v8481, 0
    %v8532 = vsel %vm8506, %v8482, 0
    %v8535 = vsel %vm8506, %v8483, 0
    %v8538 = vsel %vm8506, %v8484, 0
    %v8541 = vsel %vm8506, %v8485, 0
    %v8544 = vsel %vm8506, %v8486, 0
    %v8547 = vsel %vm8506, %v8487, 0
    %v8550 = vsel %vm8506, %v8488, 0
    %v8553 = vsel %vm8506, %v8489, 0
    %8555 = vmatprep.subr.mxu0 0.0
    %8556 = vmatpush1.msra.mxu0 %v8490
    %8557 = vmatprep.subr.mxu0 0.0
    %8558 = vmatpush1.msra.mxu0 %v8491
    %8559 = vmatprep.subr.mxu0 0.0
    %8560 = vmatpush1.msra.mxu0 %v8492
    %8561 = vmatprep.subr.mxu0 0.0
    %8562 = vmatpush1.msra.mxu0 %v8493
    %8563 = vmatprep.subr.mxu0 0.0
    %8564 = vmatpush1.msra.mxu0 %v8494
    %8565 = vmatprep.subr.mxu0 0.0
    %8566 = vmatpush1.msra.mxu0 %v8495
    %8567 = vmatprep.subr.mxu0 0.0
    %8568 = vmatpush1.msra.mxu0 %v8496
    %8569 = vmatprep.subr.mxu0 0.0
    %8570 = vmatpush1.msra.mxu0 %v8497
    %8571 = vmatprep.subr.mxu0 0.0
    %8572 = vmatpush1.msra.mxu0 %v8498
    %8573 = vmatprep.subr.mxu0 0.0
    %8574 = vmatpush1.msra.mxu0 0.0
    %8575 = vmatprep.subr.mxu0 0.0
    %8576 = vmatpush1.msra.mxu0 0.0
    %8577 = vmatprep.subr.mxu0 0.0
    %8578 = vmatpush1.msra.mxu0 0.0
    %8579 = vmatprep.subr.mxu0 0.0
    %8580 = vmatpush1.msra.mxu0 0.0
    %8581 = vmatprep.subr.mxu0 0.0
    %8582 = vmatpush1.msra.mxu0 0.0
    %8583 = vmatprep.subr.mxu0 0.0
    %8584 = vmatpush1.msra.mxu0 0.0
    %8585 = vmatprep.subr.mxu0 0.0
    %8586 = vmatpush1.msra.mxu0 0.0
    %8587 = vmatprep.subr.mxu0 0.0
    %8588 = vmatpush1.msra.mxu0 0.0
    %8589 = vmatprep.subr.mxu0 0.0
    %8590 = vmatpush1.msra.mxu0 0.0
    %8591 = vmatprep.subr.mxu0 0.0
    %8592 = vmatpush1.msra.mxu0 0.0
    %8593 = vmatprep.subr.mxu0 0.0
    %8594 = vmatpush1.msra.mxu0 0.0
    %8595 = vmatprep.subr.mxu0 0.0
    %8596 = vmatpush1.msra.mxu0 0.0
    %8597 = vmatprep.subr.mxu0 0.0
    %8598 = vmatpush1.msra.mxu0 0.0
    %8599 = vmatprep.subr.mxu0 0.0
    %8600 = vmatpush1.msra.mxu0 0.0
    %8601 = vmatprep.subr.mxu0 0.0
    %8602 = vmatpush1.msra.mxu0 0.0
    %8603 = vmatprep.subr.mxu0 0.0
    %8604 = vmatpush1.msra.mxu0 0.0
    %8605 = vmatprep.subr.mxu0 0.0
    %8606 = vmatpush1.msra.mxu0 0.0
    %8607 = vmatprep.subr.mxu0 0.0
    %8608 = vmatpush1.msra.mxu0 0.0
    %8609 = vmatprep.subr.mxu0 0.0
    %8610 = vmatpush1.msra.mxu0 0.0
    %8611 = vmatprep.subr.mxu0 0.0
    %8612 = vmatpush1.msra.mxu0 0.0
    %8613 = vmatprep.subr.mxu0 0.0
    %8614 = vmatpush1.msra.mxu0 0.0
    %8615 = vmatprep.subr.mxu0 0.0
    %8616 = vmatpush1.msra.mxu0 0.0
    %8617 = vmatprep.subr.mxu0 0.0
    %8618 = vmatpush1.msra.mxu0 0.0
    %8619 = vmatprep.mubr.f32.mxu0 0.0
    %8620 = vmatmul.mubr.f32.gmra.mrb[0].mxu0 %v8508
    %v8621 = vpop.f32.mrb[0].mxu0
    %v8622 = vadd.f32 %v8504, %v8621
    %v8623 = vpop.f32.mrb[0].mxu0
    %8624 = vmatprep.mubr.f32.mxu0 0.0
    %8625 = vmatmul.mubr.f32.gmra.mrb[0].mxu0 %v8511
    %v8626 = vpop.f32.mrb[0].mxu0
    %v8627 = vadd.f32 %v8504, %v8626
    %v8628 = vpop.f32.mrb[0].mxu0
    %8629 = vmatprep.mubr.f32.mxu0 0.0
    %8630 = vmatmul.mubr.f32.gmra.mrb[0].mxu0 %v8514
    %v8631 = vpop.f32.mrb[0].mxu0
    %v8632 = vadd.f32 %v8504, %v8631
    %v8633 = vpop.f32.mrb[0].mxu0
    %8634 = vmatprep.mubr.f32.mxu0 0.0
    %8635 = vmatmul.mubr.f32.gmra.mrb[0].mxu0 %v8517
    %v8636 = vpop.f32.mrb[0].mxu0
    %v8637 = vadd.f32 %v8504, %v8636
    %v8638 = vpop.f32.mrb[0].mxu0
    %8639 = vmatprep.mubr.f32.mxu0 0.0
    %8640 = vmatmul.mubr.f32.gmra.mrb[0].mxu0 %v8520
    %v8641 = vpop.f32.mrb[0].mxu0
    %v8642 = vadd.f32 %v8504, %v8641
    %v8643 = vpop.f32.mrb[0].mxu0
    %8644 = vmatprep.mubr.f32.mxu0 0.0
    %8645 = vmatmul.mubr.f32.gmra.mrb[0].mxu0 %v8523
    %v8646 = vpop.f32.mrb[0].mxu0
    %v8647 = vadd.f32 %v8504, %v8646
    %v8648 = vpop.f32.mrb[0].mxu0
    %8649 = vmatprep.mubr.f32.mxu0 0.0
    %8650 = vmatmul.mubr.f32.gmra.mrb[0].mxu0 %v8526
    %v8651 = vpop.f32.mrb[0].mxu0
    %v8652 = vadd.f32 %v8504, %v8651
    %v8653 = vpop.f32.mrb[0].mxu0
    %8654 = vmatprep.mubr.f32.mxu0 0.0
    %8655 = vmatmul.mubr.f32.gmra.mrb[0].mxu0 %v8529
    %v8656 = vpop.f32.mrb[0].mxu0
    %v8657 = vadd.f32 %v8504, %v8656
    %v8658 = vpop.f32.mrb[0].mxu0
    %8659 = vmatprep.mubr.f32.mxu0 0.0
    %8660 = vmatmul.mubr.f32.gmra.mrb[0].mxu0 %v8532
    %v8661 = vpop.f32.mrb[0].mxu0
    %v8662 = vadd.f32 %v8504, %v8661
    %v8663 = vpop.f32.mrb[0].mxu0
    %8664 = vmatprep.mubr.f32.mxu0 0.0
    %8665 = vmatmul.mubr.f32.gmra.mrb[0].mxu0 %v8535
    %v8666 = vpop.f32.mrb[0].mxu0
    %v8667 = vadd.f32 %v8504, %v8666
    %v8668 = vpop.f32.mrb[0].mxu0
    %8669 = vmatprep.mubr.f32.mxu0 0.0
    %8670 = vmatmul.mubr.f32.gmra.mrb[0].mxu0 %v8538
    %v8671 = vpop.f32.mrb[0].mxu0
    %v8672 = vadd.f32 %v8504, %v8671
    %v8673 = vpop.f32.mrb[0].mxu0
    %8674 = vmatprep.mubr.f32.mxu0 0.0
    %8675 = vmatmul.mubr.f32.gmra.mrb[0].mxu0 %v8541
    %v8676 = vpop.f32.mrb[0].mxu0
    %v8677 = vadd.f32 %v8504, %v8676
    %v8678 = vpop.f32.mrb[0].mxu0
    %8679 = vmatprep.mubr.f32.mxu0 0.0
    %8680 = vmatmul.mubr.f32.gmra.mrb[0].mxu0 %v8544
    %v8681 = vpop.f32.mrb[0].mxu0
    %v8682 = vadd.f32 %v8504, %v8681
    %v8683 = vpop.f32.mrb[0].mxu0
    %8684 = vmatprep.mubr.f32.mxu0 0.0
    %8685 = vmatmul.mubr.f32.gmra.mrb[0].mxu0 %v8547
    %v8686 = vpop.f32.mrb[0].mxu0
    %v8687 = vadd.f32 %v8504, %v8686
    %v8688 = vpop.f32.mrb[0].mxu0
    %8689 = vmatprep.mubr.f32.mxu0 0.0
    %8690 = vmatmul.mubr.f32.gmra.mrb[0].mxu0 %v8550
    %v8691 = vpop.f32.mrb[0].mxu0
    %v8692 = vadd.f32 %v8504, %v8691
    %v8693 = vpop.f32.mrb[0].mxu0
    %8694 = vmatprep.mubr.f32.mxu0 0.0
    %8695 = vmatmul.mubr.f32.gmra.mrb[0].mxu0 %v8553
    %v8696 = vpop.f32.mrb[0].mxu0
    %v8697 = vadd.f32 %v8504, %v8696
    %v8698 = vpop.f32.mrb[0].mxu0
    %8699 = vdwg.mxu0
    %vm8700 = vcmp.gt.f32.partialorder %v8622, 0.0
    %vm8701 = vcmp.gt.f32.partialorder %v8627, 0.0
    %vm8702 = vcmp.gt.f32.partialorder %v8632, 0.0
    %vm8703 = vcmp.gt.f32.partialorder %v8637, 0.0
    %vm8704 = vcmp.gt.f32.partialorder %v8642, 0.0
    %vm8705 = vcmp.gt.f32.partialorder %v8647, 0.0
    %vm8706 = vcmp.gt.f32.partialorder %v8652, 0.0
    %vm8707 = vcmp.gt.f32.partialorder %v8657, 0.0
    %vm8708 = vcmp.gt.f32.partialorder %v8662, 0.0
    %vm8709 = vcmp.gt.f32.partialorder %v8667, 0.0
    %vm8710 = vcmp.gt.f32.partialorder %v8672, 0.0
    %vm8711 = vcmp.gt.f32.partialorder %v8677, 0.0
    %vm8712 = vcmp.gt.f32.partialorder %v8682, 0.0
    %vm8713 = vcmp.gt.f32.partialorder %v8687, 0.0
    %vm8714 = vcmp.gt.f32.partialorder %v8692, 0.0
    %vm8715 = vcmp.gt.f32.partialorder %v8697, 0.0
    %v8716 = vmul.f32 %v8622, 1.442695
    %v8717 = vpow.pop %v8716
    %v8718 = vmul.f32 %v8627, 1.442695
    %v8719 = vpow.pop %v8718
    %v8720 = vmul.f32 %v8632, 1.442695
    %v8721 = vpow.pop %v8720
    %v8722 = vmul.f32 %v8637, 1.442695
    %v8723 = vpow.pop %v8722
    %v8724 = vmul.f32 %v8642, 1.442695
    %v8725 = vpow.pop %v8724
    %v8726 = vmul.f32 %v8647, 1.442695
    %v8727 = vpow.pop %v8726
    %v8728 = vmul.f32 %v8652, 1.442695
    %v8729 = vpow.pop %v8728
    %v8730 = vmul.f32 %v8657, 1.442695
    %v8731 = vpow.pop %v8730
    %v8732 = vmul.f32 %v8662, 1.442695
    %v8733 = vpow.pop %v8732
    %v8734 = vmul.f32 %v8667, 1.442695
    %v8735 = vpow.pop %v8734
    %v8736 = vmul.f32 %v8672, 1.442695
    %v8737 = vpow.pop %v8736
    %v8738 = vmul.f32 %v8677, 1.442695
    %v8739 = vpow.pop %v8738
    %v8740 = vmul.f32 %v8682, 1.442695
    %v8741 = vpow.pop %v8740
    %v8742 = vmul.f32 %v8687, 1.442695
    %v8743 = vpow.pop %v8742
    %v8744 = vmul.f32 %v8692, 1.442695
    %v8745 = vpow.pop %v8744
    %v8746 = vmul.f32 %v8697, 1.442695
    %v8747 = vpow.pop %v8746
    %v8748 = vsub.f32 %v8717, 1.0
    %v8749 = vsub.f32 %v8719, 1.0
    %v8750 = vsub.f32 %v8721, 1.0
    %v8751 = vsub.f32 %v8723, 1.0
    %v8752 = vsub.f32 %v8725, 1.0
    %v8753 = vsub.f32 %v8727, 1.0
    %v8754 = vsub.f32 %v8729, 1.0
    %v8755 = vsub.f32 %v8731, 1.0
    %v8756 = vsub.f32 %v8733, 1.0
    %v8757 = vsub.f32 %v8735, 1.0
    %v8758 = vsub.f32 %v8737, 1.0
    %v8759 = vsub.f32 %v8739, 1.0
    %v8760 = vsub.f32 %v8741, 1.0
    %v8761 = vsub.f32 %v8743, 1.0
    %v8762 = vsub.f32 %v8745, 1.0
    %v8763 = vsub.f32 %v8747, 1.0
    %v8764 = vsel %vm8700, %v8622, %v8748
    %v8765 = vsel %vm8701, %v8627, %v8749
    %v8766 = vsel %vm8702, %v8632, %v8750
    %v8767 = vsel %vm8703, %v8637, %v8751
    %v8768 = vsel %vm8704, %v8642, %v8752
    %v8769 = vsel %vm8705, %v8647, %v8753
    %v8770 = vsel %vm8706, %v8652, %v8754
    %v8771 = vsel %vm8707, %v8657, %v8755
    %v8772 = vsel %vm8708, %v8662, %v8756
    %v8773 = vsel %vm8709, %v8667, %v8757
    %v8774 = vsel %vm8710, %v8672, %v8758
    %v8775 = vsel %vm8711, %v8677, %v8759
    %v8776 = vsel %vm8712, %v8682, %v8760
    %v8777 = vsel %vm8713, %v8687, %v8761
    %v8778 = vsel %vm8714, %v8692, %v8762
    %v8779 = vsel %vm8715, %v8697, %v8763
    %v8796 = vcombine.high %v8764, %v8764
    %v8798 = vunpack.c.l.s4 1983009808
    %v8799 = vunpack.c.0.s8 %v8798
    %v8800 = vlaneseq
    %v8801 = vshrl.u32 %v8800, 7
    %v8802 = vsub.s32 %v8799, %v8801
    %v8803 = vrot.slane %v8764, %v8802
    %v8805 = vunpack.c.l.s4 1983009808
    %v8806 = vunpack.c.0.s8 %v8805
    %v8807 = vlaneseq
    %v8808 = vshrl.u32 %v8807, 7
    %v8809 = vsub.s32 %v8806, %v8808
    %v8810 = vrot.slane %v8796, %v8809
    %v8811 = vcombine.high %v8803, %v8803
    %v8812 = vcombine.high %v8810, %v8810
    %v8813 = vcombine.high %v8765, %v8765
    %v8815 = vunpack.c.l.s4 1983009808
    %v8816 = vunpack.c.0.s8 %v8815
    %v8817 = vlaneseq
    %v8818 = vshrl.u32 %v8817, 7
    %v8819 = vsub.s32 %v8816, %v8818
    %v8820 = vrot.slane %v8765, %v8819
    %v8822 = vunpack.c.l.s4 1983009808
    %v8823 = vunpack.c.0.s8 %v8822
    %v8824 = vlaneseq
    %v8825 = vshrl.u32 %v8824, 7
    %v8826 = vsub.s32 %v8823, %v8825
    %v8827 = vrot.slane %v8813, %v8826
    %v8828 = vcombine.high %v8820, %v8820
    %v8829 = vcombine.high %v8827, %v8827
    %v8830 = vcombine.high %v8766, %v8766
    %v8832 = vunpack.c.l.s4 1983009808
    %v8833 = vunpack.c.0.s8 %v8832
    %v8834 = vlaneseq
    %v8835 = vshrl.u32 %v8834, 7
    %v8836 = vsub.s32 %v8833, %v8835
    %v8837 = vrot.slane %v8766, %v8836
    %v8839 = vunpack.c.l.s4 1983009808
    %v8840 = vunpack.c.0.s8 %v8839
    %v8841 = vlaneseq
    %v8842 = vshrl.u32 %v8841, 7
    %v8843 = vsub.s32 %v8840, %v8842
    %v8844 = vrot.slane %v8830, %v8843
    %v8845 = vcombine.high %v8837, %v8837
    %v8846 = vcombine.high %v8844, %v8844
    %v8847 = vcombine.high %v8767, %v8767
    %v8849 = vunpack.c.l.s4 1983009808
    %v8850 = vunpack.c.0.s8 %v8849
    %v8851 = vlaneseq
    %v8852 = vshrl.u32 %v8851, 7
    %v8853 = vsub.s32 %v8850, %v8852
    %v8854 = vrot.slane %v8767, %v8853
    %v8856 = vunpack.c.l.s4 1983009808
    %v8857 = vunpack.c.0.s8 %v8856
    %v8858 = vlaneseq
    %v8859 = vshrl.u32 %v8858, 7
    %v8860 = vsub.s32 %v8857, %v8859
    %v8861 = vrot.slane %v8847, %v8860
    %v8862 = vcombine.high %v8854, %v8854
    %v8863 = vcombine.high %v8861, %v8861
    %v8864 = vcombine.high %v8768, %v8768
    %v8866 = vunpack.c.l.s4 1983009808
    %v8867 = vunpack.c.0.s8 %v8866
    %v8868 = vlaneseq
    %v8869 = vshrl.u32 %v8868, 7
    %v8870 = vsub.s32 %v8867, %v8869
    %v8871 = vrot.slane %v8768, %v8870
    %v8873 = vunpack.c.l.s4 1983009808
    %v8874 = vunpack.c.0.s8 %v8873
    %v8875 = vlaneseq
    %v8876 = vshrl.u32 %v8875, 7
    %v8877 = vsub.s32 %v8874, %v8876
    %v8878 = vrot.slane %v8864, %v8877
    %v8879 = vcombine.high %v8871, %v8871
    %v8880 = vcombine.high %v8878, %v8878
    %v8881 = vcombine.high %v8769, %v8769
    %v8883 = vunpack.c.l.s4 1983009808
    %v8884 = vunpack.c.0.s8 %v8883
    %v8885 = vlaneseq
    %v8886 = vshrl.u32 %v8885, 7
    %v8887 = vsub.s32 %v8884, %v8886
    %v8888 = vrot.slane %v8769, %v8887
    %v8890 = vunpack.c.l.s4 1983009808
    %v8891 = vunpack.c.0.s8 %v8890
    %v8892 = vlaneseq
    %v8893 = vshrl.u32 %v8892, 7
    %v8894 = vsub.s32 %v8891, %v8893
    %v8895 = vrot.slane %v8881, %v8894
    %v8896 = vcombine.high %v8888, %v8888
    %v8897 = vcombine.high %v8895, %v8895
    %v8898 = vcombine.high %v8770, %v8770
    %v8900 = vunpack.c.l.s4 1983009808
    %v8901 = vunpack.c.0.s8 %v8900
    %v8902 = vlaneseq
    %v8903 = vshrl.u32 %v8902, 7
    %v8904 = vsub.s32 %v8901, %v8903
    %v8905 = vrot.slane %v8770, %v8904
    %v8907 = vunpack.c.l.s4 1983009808
    %v8908 = vunpack.c.0.s8 %v8907
    %v8909 = vlaneseq
    %v8910 = vshrl.u32 %v8909, 7
    %v8911 = vsub.s32 %v8908, %v8910
    %v8912 = vrot.slane %v8898, %v8911
    %v8913 = vcombine.high %v8905, %v8905
    %v8914 = vcombine.high %v8912, %v8912
    %v8915 = vcombine.high %v8771, %v8771
    %v8917 = vunpack.c.l.s4 1983009808
    %v8918 = vunpack.c.0.s8 %v8917
    %v8919 = vlaneseq
    %v8920 = vshrl.u32 %v8919, 7
    %v8921 = vsub.s32 %v8918, %v8920
    %v8922 = vrot.slane %v8771, %v8921
    %v8924 = vunpack.c.l.s4 1983009808
    %v8925 = vunpack.c.0.s8 %v8924
    %v8926 = vlaneseq
    %v8927 = vshrl.u32 %v8926, 7
    %v8928 = vsub.s32 %v8925, %v8927
    %v8929 = vrot.slane %v8915, %v8928
    %v8930 = vcombine.high %v8922, %v8922
    %v8931 = vcombine.high %v8929, %v8929
    %v8932 = vcombine.high %v8772, %v8772
    %v8934 = vunpack.c.l.s4 1983009808
    %v8935 = vunpack.c.0.s8 %v8934
    %v8936 = vlaneseq
    %v8937 = vshrl.u32 %v8936, 7
    %v8938 = vsub.s32 %v8935, %v8937
    %v8939 = vrot.slane %v8772, %v8938
    %v8941 = vunpack.c.l.s4 1983009808
    %v8942 = vunpack.c.0.s8 %v8941
    %v8943 = vlaneseq
    %v8944 = vshrl.u32 %v8943, 7
    %v8945 = vsub.s32 %v8942, %v8944
    %v8946 = vrot.slane %v8932, %v8945
    %v8947 = vcombine.high %v8939, %v8939
    %v8948 = vcombine.high %v8946, %v8946
    %v8949 = vcombine.high %v8773, %v8773
    %v8951 = vunpack.c.l.s4 1983009808
    %v8952 = vunpack.c.0.s8 %v8951
    %v8953 = vlaneseq
    %v8954 = vshrl.u32 %v8953, 7
    %v8955 = vsub.s32 %v8952, %v8954
    %v8956 = vrot.slane %v8773, %v8955
    %v8958 = vunpack.c.l.s4 1983009808
    %v8959 = vunpack.c.0.s8 %v8958
    %v8960 = vlaneseq
    %v8961 = vshrl.u32 %v8960, 7
    %v8962 = vsub.s32 %v8959, %v8961
    %v8963 = vrot.slane %v8949, %v8962
    %v8964 = vcombine.high %v8956, %v8956
    %v8965 = vcombine.high %v8963, %v8963
    %v8966 = vcombine.high %v8774, %v8774
    %v8968 = vunpack.c.l.s4 1983009808
    %v8969 = vunpack.c.0.s8 %v8968
    %v8970 = vlaneseq
    %v8971 = vshrl.u32 %v8970, 7
    %v8972 = vsub.s32 %v8969, %v8971
    %v8973 = vrot.slane %v8774, %v8972
    %v8975 = vunpack.c.l.s4 1983009808
    %v8976 = vunpack.c.0.s8 %v8975
    %v8977 = vlaneseq
    %v8978 = vshrl.u32 %v8977, 7
    %v8979 = vsub.s32 %v8976, %v8978
    %v8980 = vrot.slane %v8966, %v8979
    %v8981 = vcombine.high %v8973, %v8973
    %v8982 = vcombine.high %v8980, %v8980
    %v8983 = vcombine.high %v8775, %v8775
    %v8985 = vunpack.c.l.s4 1983009808
    %v8986 = vunpack.c.0.s8 %v8985
    %v8987 = vlaneseq
    %v8988 = vshrl.u32 %v8987, 7
    %v8989 = vsub.s32 %v8986, %v8988
    %v8990 = vrot.slane %v8775, %v8989
    %v8992 = vunpack.c.l.s4 1983009808
    %v8993 = vunpack.c.0.s8 %v8992
    %v8994 = vlaneseq
    %v8995 = vshrl.u32 %v8994, 7
    %v8996 = vsub.s32 %v8993, %v8995
    %v8997 = vrot.slane %v8983, %v8996
    %v8998 = vcombine.high %v8990, %v8990
    %v8999 = vcombine.high %v8997, %v8997
    %v9000 = vcombine.high %v8776, %v8776
    %v9002 = vunpack.c.l.s4 1983009808
    %v9003 = vunpack.c.0.s8 %v9002
    %v9004 = vlaneseq
    %v9005 = vshrl.u32 %v9004, 7
    %v9006 = vsub.s32 %v9003, %v9005
    %v9007 = vrot.slane %v8776, %v9006
    %v9009 = vunpack.c.l.s4 1983009808
    %v9010 = vunpack.c.0.s8 %v9009
    %v9011 = vlaneseq
    %v9012 = vshrl.u32 %v9011, 7
    %v9013 = vsub.s32 %v9010, %v9012
    %v9014 = vrot.slane %v9000, %v9013
    %v9015 = vcombine.high %v9007, %v9007
    %v9016 = vcombine.high %v9014, %v9014
    %v9017 = vcombine.high %v8777, %v8777
    %v9019 = vunpack.c.l.s4 1983009808
    %v9020 = vunpack.c.0.s8 %v9019
    %v9021 = vlaneseq
    %v9022 = vshrl.u32 %v9021, 7
    %v9023 = vsub.s32 %v9020, %v9022
    %v9024 = vrot.slane %v8777, %v9023
    %v9026 = vunpack.c.l.s4 1983009808
    %v9027 = vunpack.c.0.s8 %v9026
    %v9028 = vlaneseq
    %v9029 = vshrl.u32 %v9028, 7
    %v9030 = vsub.s32 %v9027, %v9029
    %v9031 = vrot.slane %v9017, %v9030
    %v9032 = vcombine.high %v9024, %v9024
    %v9033 = vcombine.high %v9031, %v9031
    %v9034 = vcombine.high %v8778, %v8778
    %v9036 = vunpack.c.l.s4 1983009808
    %v9037 = vunpack.c.0.s8 %v9036
    %v9038 = vlaneseq
    %v9039 = vshrl.u32 %v9038, 7
    %v9040 = vsub.s32 %v9037, %v9039
    %v9041 = vrot.slane %v8778, %v9040
    %v9043 = vunpack.c.l.s4 1983009808
    %v9044 = vunpack.c.0.s8 %v9043
    %v9045 = vlaneseq
    %v9046 = vshrl.u32 %v9045, 7
    %v9047 = vsub.s32 %v9044, %v9046
    %v9048 = vrot.slane %v9034, %v9047
    %v9049 = vcombine.high %v9041, %v9041
    %v9050 = vcombine.high %v9048, %v9048
    %v9051 = vcombine.high %v8779, %v8779
    %v9053 = vunpack.c.l.s4 1983009808
    %v9054 = vunpack.c.0.s8 %v9053
    %v9055 = vlaneseq
    %v9056 = vshrl.u32 %v9055, 7
    %v9057 = vsub.s32 %v9054, %v9056
    %v9058 = vrot.slane %v8779, %v9057
    %v9060 = vunpack.c.l.s4 1983009808
    %v9061 = vunpack.c.0.s8 %v9060
    %v9062 = vlaneseq
    %v9063 = vshrl.u32 %v9062, 7
    %v9064 = vsub.s32 %v9061, %v9063
    %v9065 = vrot.slane %v9051, %v9064
    %v9066 = vcombine.high %v9058, %v9058
    %v9067 = vcombine.high %v9065, %v9065
    %v9132 = vrot.slane %v8803, 7
    %v9133 = vrot.slane %v9132, 2
    %v9134 = vrot.slane %v8811, 7
    %v9135 = vrot.slane %v9134, 2
    %v9136 = vrot.slane %v8810, 7
    %v9137 = vrot.slane %v9136, 2
    %v9138 = vrot.slane %v8812, 7
    %v9139 = vrot.slane %v9138, 2
    %v9140 = vrot.slane %v8820, 7
    %v9141 = vrot.slane %v9140, 2
    %v9142 = vrot.slane %v8828, 7
    %v9143 = vrot.slane %v9142, 2
    %v9144 = vrot.slane %v8827, 7
    %v9145 = vrot.slane %v9144, 2
    %v9146 = vrot.slane %v8829, 7
    %v9147 = vrot.slane %v9146, 2
    %v9148 = vrot.slane %v8837, 7
    %v9149 = vrot.slane %v9148, 2
    %v9150 = vrot.slane %v8845, 7
    %v9151 = vrot.slane %v9150, 2
    %v9152 = vrot.slane %v8844, 7
    %v9153 = vrot.slane %v9152, 2
    %v9154 = vrot.slane %v8846, 7
    %v9155 = vrot.slane %v9154, 2
    %v9156 = vrot.slane %v8854, 7
    %v9157 = vrot.slane %v9156, 2
    %v9158 = vrot.slane %v8862, 7
    %v9159 = vrot.slane %v9158, 2
    %v9160 = vrot.slane %v8861, 7
    %v9161 = vrot.slane %v9160, 2
    %v9162 = vrot.slane %v8863, 7
    %v9163 = vrot.slane %v9162, 2
    %v9164 = vrot.slane %v8871, 7
    %v9165 = vrot.slane %v9164, 2
    %v9166 = vrot.slane %v8879, 7
    %v9167 = vrot.slane %v9166, 2
    %v9168 = vrot.slane %v8878, 7
    %v9169 = vrot.slane %v9168, 2
    %v9170 = vrot.slane %v8880, 7
    %v9171 = vrot.slane %v9170, 2
    %v9172 = vrot.slane %v8888, 7
    %v9173 = vrot.slane %v9172, 2
    %v9174 = vrot.slane %v8896, 7
    %v9175 = vrot.slane %v9174, 2
    %v9176 = vrot.slane %v8895, 7
    %v9177 = vrot.slane %v9176, 2
    %v9178 = vrot.slane %v8897, 7
    %v9179 = vrot.slane %v9178, 2
    %v9180 = vrot.slane %v8905, 7
    %v9181 = vrot.slane %v9180, 2
    %v9182 = vrot.slane %v8913, 7
    %v9183 = vrot.slane %v9182, 2
    %v9184 = vrot.slane %v8912, 7
    %v9185 = vrot.slane %v9184, 2
    %v9186 = vrot.slane %v8914, 7
    %v9187 = vrot.slane %v9186, 2
    %v9188 = vrot.slane %v8922, 7
    %v9189 = vrot.slane %v9188, 2
    %v9190 = vrot.slane %v8930, 7
    %v9191 = vrot.slane %v9190, 2
    %v9192 = vrot.slane %v8929, 7
    %v9193 = vrot.slane %v9192, 2
    %v9194 = vrot.slane %v8931, 7
    %v9195 = vrot.slane %v9194, 2
    %v9196 = vrot.slane %v8939, 7
    %v9197 = vrot.slane %v9196, 2
    %v9198 = vrot.slane %v8947, 7
    %v9199 = vrot.slane %v9198, 2
    %v9200 = vrot.slane %v8946, 7
    %v9201 = vrot.slane %v9200, 2
    %v9202 = vrot.slane %v8948, 7
    %v9203 = vrot.slane %v9202, 2
    %v9204 = vrot.slane %v8956, 7
    %v9205 = vrot.slane %v9204, 2
    %v9206 = vrot.slane %v8964, 7
    %v9207 = vrot.slane %v9206, 2
    %v9208 = vrot.slane %v8963, 7
    %v9209 = vrot.slane %v9208, 2
    %v9210 = vrot.slane %v8965, 7
    %v9211 = vrot.slane %v9210, 2
    %v9212 = vrot.slane %v8973, 7
    %v9213 = vrot.slane %v9212, 2
    %v9214 = vrot.slane %v8981, 7
    %v9215 = vrot.slane %v9214, 2
    %v9216 = vrot.slane %v8980, 7
    %v9217 = vrot.slane %v9216, 2
    %v9218 = vrot.slane %v8982, 7
    %v9219 = vrot.slane %v9218, 2
    %v9220 = vrot.slane %v8990, 7
    %v9221 = vrot.slane %v9220, 2
    %v9222 = vrot.slane %v8998, 7
    %v9223 = vrot.slane %v9222, 2
    %v9224 = vrot.slane %v8997, 7
    %v9225 = vrot.slane %v9224, 2
    %v9226 = vrot.slane %v8999, 7
    %v9227 = vrot.slane %v9226, 2
    %v9228 = vrot.slane %v9007, 7
    %v9229 = vrot.slane %v9228, 2
    %v9230 = vrot.slane %v9015, 7
    %v9231 = vrot.slane %v9230, 2
    %v9232 = vrot.slane %v9014, 7
    %v9233 = vrot.slane %v9232, 2
    %v9234 = vrot.slane %v9016, 7
    %v9235 = vrot.slane %v9234, 2
    %v9236 = vrot.slane %v9024, 7
    %v9237 = vrot.slane %v9236, 2
    %v9238 = vrot.slane %v9032, 7
    %v9239 = vrot.slane %v9238, 2
    %v9240 = vrot.slane %v9031, 7
    %v9241 = vrot.slane %v9240, 2
    %v9242 = vrot.slane %v9033, 7
    %v9243 = vrot.slane %v9242, 2
    %v9244 = vrot.slane %v9041, 7
    %v9245 = vrot.slane %v9244, 2
    %v9246 = vrot.slane %v9049, 7
    %v9247 = vrot.slane %v9246, 2
    %v9248 = vrot.slane %v9048, 7
    %v9249 = vrot.slane %v9248, 2
    %v9250 = vrot.slane %v9050, 7
    %v9251 = vrot.slane %v9250, 2
    %v9252 = vrot.slane %v9058, 7
    %v9253 = vrot.slane %v9252, 2
    %v9254 = vrot.slane %v9066, 7
    %v9255 = vrot.slane %v9254, 2
    %v9256 = vrot.slane %v9065, 7
    %v9257 = vrot.slane %v9256, 2
    %v9258 = vrot.slane %v9067, 7
    %v9259 = vrot.slane %v9258, 2
    %v9324 = vmax.f32 %v8803, %v9133
    %v9325 = vmax.f32 %v8811, %v9135
    %v9326 = vmax.f32 %v8810, %v9137
    %v9327 = vmax.f32 %v8812, %v9139
    %v9328 = vmax.f32 %v8820, %v9141
    %v9329 = vmax.f32 %v8828, %v9143
    %v9330 = vmax.f32 %v8827, %v9145
    %v9331 = vmax.f32 %v8829, %v9147
    %v9332 = vmax.f32 %v8837, %v9149
    %v9333 = vmax.f32 %v8845, %v9151
    %v9334 = vmax.f32 %v8844, %v9153
    %v9335 = vmax.f32 %v8846, %v9155
    %v9336 = vmax.f32 %v8854, %v9157
    %v9337 = vmax.f32 %v8862, %v9159
    %v9338 = vmax.f32 %v8861, %v9161
    %v9339 = vmax.f32 %v8863, %v9163
    %v9340 = vmax.f32 %v8871, %v9165
    %v9341 = vmax.f32 %v8879, %v9167
    %v9342 = vmax.f32 %v8878, %v9169
    %v9343 = vmax.f32 %v8880, %v9171
    %v9344 = vmax.f32 %v8888, %v9173
    %v9345 = vmax.f32 %v8896, %v9175
    %v9346 = vmax.f32 %v8895, %v9177
    %v9347 = vmax.f32 %v8897, %v9179
    %v9348 = vmax.f32 %v8905, %v9181
    %v9349 = vmax.f32 %v8913, %v9183
    %v9350 = vmax.f32 %v8912, %v9185
    %v9351 = vmax.f32 %v8914, %v9187
    %v9352 = vmax.f32 %v8922, %v9189
    %v9353 = vmax.f32 %v8930, %v9191
    %v9354 = vmax.f32 %v8929, %v9193
    %v9355 = vmax.f32 %v8931, %v9195
    %v9356 = vmax.f32 %v8939, %v9197
    %v9357 = vmax.f32 %v8947, %v9199
    %v9358 = vmax.f32 %v8946, %v9201
    %v9359 = vmax.f32 %v8948, %v9203
    %v9360 = vmax.f32 %v8956, %v9205
    %v9361 = vmax.f32 %v8964, %v9207
    %v9362 = vmax.f32 %v8963, %v9209
    %v9363 = vmax.f32 %v8965, %v9211
    %v9364 = vmax.f32 %v8973, %v9213
    %v9365 = vmax.f32 %v8981, %v9215
    %v9366 = vmax.f32 %v8980, %v9217
    %v9367 = vmax.f32 %v8982, %v9219
    %v9368 = vmax.f32 %v8990, %v9221
    %v9369 = vmax.f32 %v8998, %v9223
    %v9370 = vmax.f32 %v8997, %v9225
    %v9371 = vmax.f32 %v8999, %v9227
    %v9372 = vmax.f32 %v9007, %v9229
    %v9373 = vmax.f32 %v9015, %v9231
    %v9374 = vmax.f32 %v9014, %v9233
    %v9375 = vmax.f32 %v9016, %v9235
    %v9376 = vmax.f32 %v9024, %v9237
    %v9377 = vmax.f32 %v9032, %v9239
    %v9378 = vmax.f32 %v9031, %v9241
    %v9379 = vmax.f32 %v9033, %v9243
    %v9380 = vmax.f32 %v9041, %v9245
    %v9381 = vmax.f32 %v9049, %v9247
    %v9382 = vmax.f32 %v9048, %v9249
    %v9383 = vmax.f32 %v9050, %v9251
    %v9384 = vmax.f32 %v9058, %v9253
    %v9385 = vmax.f32 %v9066, %v9255
    %v9386 = vmax.f32 %v9065, %v9257
    %v9387 = vmax.f32 %v9067, %v9259
    %v9388 = vmax.f32 %v9324, %v9328
    %v9389 = vmax.f32 %v9325, %v9329
    %v9390 = vmax.f32 %v9326, %v9330
    %v9391 = vmax.f32 %v9327, %v9331
    %v9392 = vmax.f32 %v9332, %v9336
    %v9393 = vmax.f32 %v9333, %v9337
    %v9394 = vmax.f32 %v9334, %v9338
    %v9395 = vmax.f32 %v9335, %v9339
    %v9396 = vmax.f32 %v9340, %v9344
    %v9397 = vmax.f32 %v9341, %v9345
    %v9398 = vmax.f32 %v9342, %v9346
    %v9399 = vmax.f32 %v9343, %v9347
    %v9400 = vmax.f32 %v9348, %v9352
    %v9401 = vmax.f32 %v9349, %v9353
    %v9402 = vmax.f32 %v9350, %v9354
    %v9403 = vmax.f32 %v9351, %v9355
    %v9404 = vmax.f32 %v9356, %v9360
    %v9405 = vmax.f32 %v9357, %v9361
    %v9406 = vmax.f32 %v9358, %v9362
    %v9407 = vmax.f32 %v9359, %v9363
    %v9408 = vmax.f32 %v9364, %v9368
    %v9409 = vmax.f32 %v9365, %v9369
    %v9410 = vmax.f32 %v9366, %v9370
    %v9411 = vmax.f32 %v9367, %v9371
    %v9412 = vmax.f32 %v9372, %v9376
    %v9413 = vmax.f32 %v9373, %v9377
    %v9414 = vmax.f32 %v9374, %v9378
    %v9415 = vmax.f32 %v9375, %v9379
    %v9416 = vmax.f32 %v9380, %v9384
    %v9417 = vmax.f32 %v9381, %v9385
    %v9418 = vmax.f32 %v9382, %v9386
    %v9419 = vmax.f32 %v9383, %v9387
    %v9428 = vlaneseq
    %v9429 = vshrl.u32 %v9428, 7
    %v9430 = vsub.s32 0, %v9429
    %v9431 = vrot.slane %v9388, %v9430
    %v9432 = vlaneseq
    %v9433 = vshrl.u32 %v9432, 7
    %v9434 = vsub.s32 0, %v9433
    %v9435 = vrot.slane %v9389, %v9434
    %v9436 = vlaneseq
    %v9437 = vshrl.u32 %v9436, 7
    %v9438 = vsub.s32 0, %v9437
    %v9439 = vrot.slane %v9392, %v9438
    %v9440 = vlaneseq
    %v9441 = vshrl.u32 %v9440, 7
    %v9442 = vsub.s32 0, %v9441
    %v9443 = vrot.slane %v9393, %v9442
    %v9444 = vlaneseq
    %v9445 = vshrl.u32 %v9444, 7
    %v9446 = vsub.s32 0, %v9445
    %v9447 = vrot.slane %v9404, %v9446
    %v9448 = vlaneseq
    %v9449 = vshrl.u32 %v9448, 7
    %v9450 = vsub.s32 0, %v9449
    %v9451 = vrot.slane %v9405, %v9450
    %v9452 = vlaneseq
    %v9453 = vshrl.u32 %v9452, 7
    %v9454 = vsub.s32 0, %v9453
    %v9455 = vrot.slane %v9408, %v9454
    %v9456 = vlaneseq
    %v9457 = vshrl.u32 %v9456, 7
    %v9458 = vsub.s32 0, %v9457
    %v9459 = vrot.slane %v9409, %v9458
    %v9460 = vsel %vm7550, %v9435, %v9431
    %v9461 = vsel %vm7550, %v9443, %v9439
    %v9462 = vsel %vm7550, %v9451, %v9447
    %v9463 = vsel %vm7550, %v9459, %v9455
    %v9472 = vlaneseq
    %v9473 = vshrl.u32 %v9472, 7
    %v9474 = vsub.s32 0, %v9473
    %v9475 = vrot.slane %v9390, %v9474
    %v9476 = vlaneseq
    %v9477 = vshrl.u32 %v9476, 7
    %v9478 = vsub.s32 0, %v9477
    %v9479 = vrot.slane %v9394, %v9478
    %v9480 = vlaneseq
    %v9481 = vshrl.u32 %v9480, 7
    %v9482 = vsub.s32 0, %v9481
    %v9483 = vrot.slane %v9406, %v9482
    %v9484 = vlaneseq
    %v9485 = vshrl.u32 %v9484, 7
    %v9486 = vsub.s32 0, %v9485
    %v9487 = vrot.slane %v9410, %v9486
    %v9488 = vsel %vm7550, %v9475, %v9435
    %v9489 = vsel %vm7550, %v9479, %v9443
    %v9490 = vsel %vm7550, %v9483, %v9451
    %v9491 = vsel %vm7550, %v9487, %v9459
    %9492 = vrot.lane.b32.xlu0 %v9488, 16
    %v9493 = vpop.permute.xlu0 %9492
    %9494 = vrot.lane.b32.xlu0 %v9489, 16
    %v9495 = vpop.permute.xlu0 %9494
    %9496 = vrot.lane.b32.xlu0 %v9490, 16
    %v9497 = vpop.permute.xlu0 %9496
    %9498 = vrot.lane.b32.xlu0 %v9491, 16
    %v9499 = vpop.permute.xlu0 %9498
    %v9508 = vlaneseq
    %v9509 = vshrl.u32 %v9508, 7
    %v9510 = vsub.s32 0, %v9509
    %v9511 = vrot.slane %v9391, %v9510
    %v9512 = vlaneseq
    %v9513 = vshrl.u32 %v9512, 7
    %v9514 = vsub.s32 0, %v9513
    %v9515 = vrot.slane %v9395, %v9514
    %v9516 = vlaneseq
    %v9517 = vshrl.u32 %v9516, 7
    %v9518 = vsub.s32 0, %v9517
    %v9519 = vrot.slane %v9407, %v9518
    %v9520 = vlaneseq
    %v9521 = vshrl.u32 %v9520, 7
    %v9522 = vsub.s32 0, %v9521
    %v9523 = vrot.slane %v9411, %v9522
    %v9524 = vsel %vm7550, %v9511, %v9475
    %v9525 = vsel %vm7550, %v9515, %v9479
    %v9526 = vsel %vm7550, %v9519, %v9483
    %v9527 = vsel %vm7550, %v9523, %v9487
    %9528 = vrot.lane.b32.xlu0 %v9524, 32
    %v9529 = vpop.permute.xlu0 %9528
    %9530 = vrot.lane.b32.xlu0 %v9525, 32
    %v9531 = vpop.permute.xlu0 %9530
    %9532 = vrot.lane.b32.xlu0 %v9526, 32
    %v9533 = vpop.permute.xlu0 %9532
    %9534 = vrot.lane.b32.xlu0 %v9527, 32
    %v9535 = vpop.permute.xlu0 %9534
    %v9544 = vlaneseq
    %v9545 = vshrl.u32 %v9544, 7
    %v9546 = vsub.s32 0, %v9545
    %v9547 = vrot.slane %v9396, %v9546
    %v9548 = vlaneseq
    %v9549 = vshrl.u32 %v9548, 7
    %v9550 = vsub.s32 0, %v9549
    %v9551 = vrot.slane %v9397, %v9550
    %v9552 = vlaneseq
    %v9553 = vshrl.u32 %v9552, 7
    %v9554 = vsub.s32 0, %v9553
    %v9555 = vrot.slane %v9412, %v9554
    %v9556 = vlaneseq
    %v9557 = vshrl.u32 %v9556, 7
    %v9558 = vsub.s32 0, %v9557
    %v9559 = vrot.slane %v9413, %v9558
    %v9560 = vsel %vm7550, %v9551, %v9547
    %v9561 = vsel %vm7550, %v9559, %v9555
    %9562 = vrot.lane.b32.xlu0 %v9461, 48
    %v9563 = vpop.permute.xlu0 %9562
    %9564 = vrot.lane.b32.xlu0 %v9560, 48
    %v9565 = vpop.permute.xlu0 %9564
    %9566 = vrot.lane.b32.xlu0 %v9463, 48
    %v9567 = vpop.permute.xlu0 %9566
    %9568 = vrot.lane.b32.xlu0 %v9561, 48
    %v9569 = vpop.permute.xlu0 %9568
    %v9576 = vlaneseq
    %v9577 = vshrl.u32 %v9576, 7
    %v9578 = vsub.s32 0, %v9577
    %v9579 = vrot.slane %v9398, %v9578
    %v9580 = vlaneseq
    %v9581 = vshrl.u32 %v9580, 7
    %v9582 = vsub.s32 0, %v9581
    %v9583 = vrot.slane %v9414, %v9582
    %v9584 = vsel %vm7550, %v9579, %v9551
    %v9585 = vsel %vm7550, %v9583, %v9559
    %9586 = vrot.lane.b32.xlu0 %v9489, 64
    %v9587 = vpop.permute.xlu0 %9586
    %9588 = vrot.lane.b32.xlu0 %v9584, 64
    %v9589 = vpop.permute.xlu0 %9588
    %9590 = vrot.lane.b32.xlu0 %v9491, 64
    %v9591 = vpop.permute.xlu0 %9590
    %9592 = vrot.lane.b32.xlu0 %v9585, 64
    %v9593 = vpop.permute.xlu0 %9592
    %v9600 = vlaneseq
    %v9601 = vshrl.u32 %v9600, 7
    %v9602 = vsub.s32 0, %v9601
    %v9603 = vrot.slane %v9399, %v9602
    %v9604 = vlaneseq
    %v9605 = vshrl.u32 %v9604, 7
    %v9606 = vsub.s32 0, %v9605
    %v9607 = vrot.slane %v9415, %v9606
    %v9608 = vsel %vm7550, %v9603, %v9579
    %v9609 = vsel %vm7550, %v9607, %v9583
    %9610 = vrot.lane.b32.xlu0 %v9525, 80
    %v9611 = vpop.permute.xlu0 %9610
    %9612 = vrot.lane.b32.xlu0 %v9608, 80
    %v9613 = vpop.permute.xlu0 %9612
    %9614 = vrot.lane.b32.xlu0 %v9527, 80
    %v9615 = vpop.permute.xlu0 %9614
    %9616 = vrot.lane.b32.xlu0 %v9609, 80
    %v9617 = vpop.permute.xlu0 %9616
    %v9626 = vlaneseq
    %v9627 = vshrl.u32 %v9626, 7
    %v9628 = vsub.s32 0, %v9627
    %v9629 = vrot.slane %v9400, %v9628
    %v9630 = vlaneseq
    %v9631 = vshrl.u32 %v9630, 7
    %v9632 = vsub.s32 0, %v9631
    %v9633 = vrot.slane %v9401, %v9632
    %v9634 = vlaneseq
    %v9635 = vshrl.u32 %v9634, 7
    %v9636 = vsub.s32 0, %v9635
    %v9637 = vrot.slane %v9416, %v9636
    %v9638 = vlaneseq
    %v9639 = vshrl.u32 %v9638, 7
    %v9640 = vsub.s32 0, %v9639
    %v9641 = vrot.slane %v9417, %v9640
    %v9642 = vsel %vm7550, %v9633, %v9629
    %v9643 = vsel %vm7550, %v9641, %v9637
    %9644 = vrot.lane.b32.xlu0 %v9560, 96
    %v9645 = vpop.permute.xlu0 %9644
    %9646 = vrot.lane.b32.xlu0 %v9642, 96
    %v9647 = vpop.permute.xlu0 %9646
    %9648 = vrot.lane.b32.xlu0 %v9561, 96
    %v9649 = vpop.permute.xlu0 %9648
    %9650 = vrot.lane.b32.xlu0 %v9643, 96
    %v9651 = vpop.permute.xlu0 %9650
    %v9658 = vlaneseq
    %v9659 = vshrl.u32 %v9658, 7
    %v9660 = vsub.s32 0, %v9659
    %v9661 = vrot.slane %v9402, %v9660
    %v9662 = vlaneseq
    %v9663 = vshrl.u32 %v9662, 7
    %v9664 = vsub.s32 0, %v9663
    %v9665 = vrot.slane %v9418, %v9664
    %v9666 = vsel %vm7550, %v9661, %v9633
    %v9667 = vsel %vm7550, %v9665, %v9641
    %9668 = vrot.lane.b32.xlu0 %v9584, 112
    %v9669 = vpop.permute.xlu0 %9668
    %9670 = vrot.lane.b32.xlu0 %v9666, 112
    %v9671 = vpop.permute.xlu0 %9670
    %9672 = vrot.lane.b32.xlu0 %v9585, 112
    %v9673 = vpop.permute.xlu0 %9672
    %9674 = vrot.lane.b32.xlu0 %v9667, 112
    %v9675 = vpop.permute.xlu0 %9674
    %v9682 = vlaneseq
    %v9683 = vshrl.u32 %v9682, 7
    %v9684 = vsub.s32 0, %v9683
    %v9685 = vrot.slane %v9403, %v9684
    %v9686 = vlaneseq
    %v9687 = vshrl.u32 %v9686, 7
    %v9688 = vsub.s32 0, %v9687
    %v9689 = vrot.slane %v9419, %v9688
    %v9690 = vsel %vm7550, %v9685, %v9661
    %v9691 = vsel %vm7550, %v9689, %v9665
    %v9692 = vsel %vm3067, %v9460, %v9493
    %v9693 = vsel %vm3067, %v9461, %v9495
    %v9694 = vsel %vm3067, %v9462, %v9497
    %v9695 = vsel %vm3067, %v9463, %v9499
    %v9696 = vsel %vm3327, %v9692, %v9529
    %v9697 = vsel %vm3327, %v9693, %v9531
    %v9698 = vsel %vm3327, %v9694, %v9533
    %v9699 = vsel %vm3327, %v9695, %v9535
    %v9700 = vsel %vm8439, %v9696, %v9563
    %v9701 = vsel %vm8439, %v9697, %v9565
    %v9702 = vsel %vm8439, %v9698, %v9567
    %v9703 = vsel %vm8439, %v9699, %v9569
    %v9704 = vsel %vm8473, %v9700, %v9587
    %v9705 = vsel %vm8473, %v9701, %v9589
    %v9706 = vsel %vm8473, %v9702, %v9591
    %v9707 = vsel %vm8473, %v9703, %v9593
    %vm9708 = vcmask 654336
    %v9709 = vsel %vm9708, %v9704, %v9611
    %v9710 = vsel %vm9708, %v9705, %v9613
    %v9711 = vsel %vm9708, %v9706, %v9615
    %v9712 = vsel %vm9708, %v9707, %v9617
    %vm9713 = vcmask 785408
    %v9714 = vsel %vm9713, %v9709, %v9645
    %v9715 = vsel %vm9713, %v9710, %v9647
    %v9716 = vsel %vm9713, %v9711, %v9649
    %v9717 = vsel %vm9713, %v9712, %v9651
    %vm9718 = vcmask 916480
    %v9719 = vsel %vm9718, %v9714, %v9669
    %v9720 = vsel %vm9718, %v9715, %v9671
    %v9721 = vsel %vm9718, %v9716, %v9673
    %v9722 = vsel %vm9718, %v9717, %v9675
    %v9727 = vcombine.low %v9719, %v9608
    %v9729 = vunpack.c.l.s4 1983009808
    %v9730 = vunpack.c.0.s8 %v9729
    %v9731 = vlaneseq
    %v9732 = vshrl.u32 %v9731, 7
    %v9733 = vsub.s32 %v9730, %v9732
    %v9734 = vrot.slane %v9727, %v9733
    %v9735 = vcombine.low %v9720, %v9690
    %v9737 = vunpack.c.l.s4 1983009808
    %v9738 = vunpack.c.0.s8 %v9737
    %v9739 = vlaneseq
    %v9740 = vshrl.u32 %v9739, 7
    %v9741 = vsub.s32 %v9738, %v9740
    %v9742 = vrot.slane %v9735, %v9741
    %v9743 = vcombine.low %v9721, %v9609
    %v9745 = vunpack.c.l.s4 1983009808
    %v9746 = vunpack.c.0.s8 %v9745
    %v9747 = vlaneseq
    %v9748 = vshrl.u32 %v9747, 7
    %v9749 = vsub.s32 %v9746, %v9748
    %v9750 = vrot.slane %v9743, %v9749
    %v9751 = vcombine.low %v9722, %v9691
    %v9753 = vunpack.c.l.s4 1983009808
    %v9754 = vunpack.c.0.s8 %v9753
    %v9755 = vlaneseq
    %v9756 = vshrl.u32 %v9755, 7
    %v9757 = vsub.s32 %v9754, %v9756
    %v9758 = vrot.slane %v9751, %v9757
    %v9759 = vld [vmem:[%s5] sm:$0xff]
    %v9760 = vld [vmem:[%s5 + $0x8] sm:$0xff]
    %v9761 = vld [vmem:[%s5 + $0x10] sm:$0xff]
    %v9762 = vld [vmem:[%s5 + $0x18] sm:$0xff]
    %v9763 = vld [vmem:[%s5 + $0x20] sm:$0xff]
    %v9764 = vld [vmem:[%s5 + $0x28] sm:$0xff]
    %v9765 = vld [vmem:[%s5 + $0x30] sm:$0xff]
    %v9766 = vld [vmem:[%s5 + $0x38] sm:$0xff]
    %v9767 = vld [vmem:[%s5 + $0x40] sm:$0xff]
    %v9768 = vld [vmem:[%s5 + $0x48] sm:$0xff]
    %v9769 = vld [vmem:[%s5 + $0x50] sm:$0xff]
    %v9770 = vld [vmem:[%s5 + $0x58] sm:$0xff]
    %v9771 = vld [vmem:[%s5 + $0x60] sm:$0xff]
    %v9772 = vld [vmem:[%s5 + $0x68] sm:$0xff]
    %v9773 = vld [vmem:[%s5 + $0x70] sm:$0xff]
    %v9774 = vld [vmem:[%s5 + $0x78] sm:$0xff]
    %v9775 = vld [vmem:[%s5 + $0x80] sm:$0xff]
    %v9776 = vld [vmem:[%s5 + $0x88] sm:$0xff]
    %v9777 = vld [vmem:[%s6] sm:$0x1]
    %v9779 = vlaneseq
    %v9780 = vshrl.u32 %v9779, 7
    %v9781 = vsub.s32 0, %v9780
    %v9782 = vrot.slane %v9777, %v9781
    %v9784 = vcombine.low %v9734, %v9742
    %v9785 = vcombine.low %v9750, %v9758
    %v9787 = vunpack.c.l.s4 1983009808
    %v9788 = vunpack.c.0.s8 %v9787
    %v9789 = vlaneseq
    %v9790 = vshrl.u32 %v9789, 7
    %v9791 = vsub.s32 %v9788, %v9790
    %v9792 = vrot.slane %v9784, %v9791
    %v9794 = vunpack.c.l.s4 1983009808
    %v9795 = vunpack.c.0.s8 %v9794
    %v9796 = vlaneseq
    %v9797 = vshrl.u32 %v9796, 7
    %v9798 = vsub.s32 %v9795, %v9797
    %v9799 = vrot.slane %v9785, %v9798
    %v9800 = vcombine.low %v9792, %v9799
    %v9801 = vcombine.high %v9792, %v9799
    %v9803 = vsel %vm3067, %v9801, 0
    %9805 = vmatprep.subr.mxu0 0.0
    %9806 = vmatpush1.msra.mxu0 %v9759
    %9807 = vmatprep.subr.mxu0 0.0
    %9808 = vmatpush1.msra.mxu0 %v9760
    %9809 = vmatprep.subr.mxu0 0.0
    %9810 = vmatpush1.msra.mxu0 %v9761
    %9811 = vmatprep.subr.mxu0 0.0
    %9812 = vmatpush1.msra.mxu0 %v9762
    %9813 = vmatprep.subr.mxu0 0.0
    %9814 = vmatpush1.msra.mxu0 %v9763
    %9815 = vmatprep.subr.mxu0 0.0
    %9816 = vmatpush1.msra.mxu0 %v9764
    %9817 = vmatprep.subr.mxu0 0.0
    %9818 = vmatpush1.msra.mxu0 %v9765
    %9819 = vmatprep.subr.mxu0 0.0
    %9820 = vmatpush1.msra.mxu0 %v9766
    %9821 = vmatprep.subr.mxu0 0.0
    %9822 = vmatpush1.msra.mxu0 %v9767
    %9823 = vmatprep.subr.mxu0 0.0
    %9824 = vmatpush1.msra.mxu0 %v9768
    %9825 = vmatprep.subr.mxu0 0.0
    %9826 = vmatpush1.msra.mxu0 %v9769
    %9827 = vmatprep.subr.mxu0 0.0
    %9828 = vmatpush1.msra.mxu0 %v9770
    %9829 = vmatprep.subr.mxu0 0.0
    %9830 = vmatpush1.msra.mxu0 %v9771
    %9831 = vmatprep.subr.mxu0 0.0
    %9832 = vmatpush1.msra.mxu0 %v9772
    %9833 = vmatprep.subr.mxu0 0.0
    %9834 = vmatpush1.msra.mxu0 %v9773
    %9835 = vmatprep.subr.mxu0 0.0
    %9836 = vmatpush1.msra.mxu0 %v9774
    %9837 = vmatprep.subr.mxu0 0.0
    %9838 = vmatpush1.msra.mxu0 %v9775
    %9839 = vmatprep.subr.mxu0 0.0
    %9840 = vmatpush1.msra.mxu0 %v9776
    %9841 = vmatprep.subr.mxu0 0.0
    %9842 = vmatpush1.msra.mxu0 0.0
    %9843 = vmatprep.subr.mxu0 0.0
    %9844 = vmatpush1.msra.mxu0 0.0
    %9845 = vmatprep.subr.mxu0 0.0
    %9846 = vmatpush1.msra.mxu0 0.0
    %9847 = vmatprep.subr.mxu0 0.0
    %9848 = vmatpush1.msra.mxu0 0.0
    %9849 = vmatprep.subr.mxu0 0.0
    %9850 = vmatpush1.msra.mxu0 0.0
    %9851 = vmatprep.subr.mxu0 0.0
    %9852 = vmatpush1.msra.mxu0 0.0
    %9853 = vmatprep.subr.mxu0 0.0
    %9854 = vmatpush1.msra.mxu0 0.0
    %9855 = vmatprep.subr.mxu0 0.0
    %9856 = vmatpush1.msra.mxu0 0.0
    %9857 = vmatprep.subr.mxu0 0.0
    %9858 = vmatpush1.msra.mxu0 0.0
    %9859 = vmatprep.subr.mxu0 0.0
    %9860 = vmatpush1.msra.mxu0 0.0
    %9861 = vmatprep.subr.mxu0 0.0
    %9862 = vmatpush1.msra.mxu0 0.0
    %9863 = vmatprep.subr.mxu0 0.0
    %9864 = vmatpush1.msra.mxu0 0.0
    %9865 = vmatprep.subr.mxu0 0.0
    %9866 = vmatpush1.msra.mxu0 0.0
    %9867 = vmatprep.subr.mxu0 0.0
    %9868 = vmatpush1.msra.mxu0 0.0
    %9869 = vmatprep.mubr.f32.mxu0 %v9803
    %9870 = vmatmul.mubr.f32.gmra.mrb[0].mxu0 %v9800
    %v9871 = vpop.f32.mrb[0].mxu0
    %v9872 = vadd.f32 %v9782, %v9871
    %v9873 = vpop.f32.mrb[0].mxu0
    %9874 = vdwg.mxu0
    %vm9875 = vcmp.gt.f32.partialorder %v9872, 0.0
    %v9876 = vmul.f32 %v9872, 1.442695
    %v9877 = vpow.pop %v9876
    %v9878 = vsub.f32 %v9877, 1.0
    %v9879 = vsel %vm9875, %v9872, %v9878
    %v9880 = vld [vmem:[%s7] sm:$0xff]
    %v9881 = vld [vmem:[%s7 + $0x8] sm:$0xff]
    %v9882 = vld [vmem:[%s7 + $0x10] sm:$0xff]
    %v9883 = vld [vmem:[%s7 + $0x18] sm:$0xff]
    %v9884 = vld [vmem:[%s8] sm:$0x1]
    %v9886 = vlaneseq
    %v9887 = vshrl.u32 %v9886, 7
    %v9888 = vsub.s32 0, %v9887
    %v9889 = vrot.slane %v9884, %v9888
    %v9892 = vsel %vm3327, %v9879, 0
    %9894 = vmatprep.subr.mxu0 0.0
    %9895 = vmatpush1.msra.mxu0 %v9880
    %9896 = vmatprep.subr.mxu0 0.0
    %9897 = vmatpush1.msra.mxu0 %v9881
    %9898 = vmatprep.subr.mxu0 0.0
    %9899 = vmatpush1.msra.mxu0 %v9882
    %9900 = vmatprep.subr.mxu0 0.0
    %9901 = vmatpush1.msra.mxu0 %v9883
    %9902 = vmatprep.subr.mxu0 0.0
    %9903 = vmatpush1.msra.mxu0 0.0
    %9904 = vmatprep.subr.mxu0 0.0
    %9905 = vmatpush1.msra.mxu0 0.0
    %9906 = vmatprep.subr.mxu0 0.0
    %9907 = vmatpush1.msra.mxu0 0.0
    %9908 = vmatprep.subr.mxu0 0.0
    %9909 = vmatpush1.msra.mxu0 0.0
    %9910 = vmatprep.subr.mxu0 0.0
    %9911 = vmatpush1.msra.mxu0 0.0
    %9912 = vmatprep.subr.mxu0 0.0
    %9913 = vmatpush1.msra.mxu0 0.0
    %9914 = vmatprep.subr.mxu0 0.0
    %9915 = vmatpush1.msra.mxu0 0.0
    %9916 = vmatprep.subr.mxu0 0.0
    %9917 = vmatpush1.msra.mxu0 0.0
    %9918 = vmatprep.subr.mxu0 0.0
    %9919 = vmatpush1.msra.mxu0 0.0
    %9920 = vmatprep.subr.mxu0 0.0
    %9921 = vmatpush1.msra.mxu0 0.0
    %9922 = vmatprep.subr.mxu0 0.0
    %9923 = vmatpush1.msra.mxu0 0.0
    %9924 = vmatprep.subr.mxu0 0.0
    %9925 = vmatpush1.msra.mxu0 0.0
    %9926 = vmatprep.subr.mxu0 0.0
    %9927 = vmatpush1.msra.mxu0 0.0
    %9928 = vmatprep.subr.mxu0 0.0
    %9929 = vmatpush1.msra.mxu0 0.0
    %9930 = vmatprep.subr.mxu0 0.0
    %9931 = vmatpush1.msra.mxu0 0.0
    %9932 = vmatprep.subr.mxu0 0.0
    %9933 = vmatpush1.msra.mxu0 0.0
    %9934 = vmatprep.subr.mxu0 0.0
    %9935 = vmatpush1.msra.mxu0 0.0
    %9936 = vmatprep.subr.mxu0 0.0
    %9937 = vmatpush1.msra.mxu0 0.0
    %9938 = vmatprep.subr.mxu0 0.0
    %9939 = vmatpush1.msra.mxu0 0.0
    %9940 = vmatprep.subr.mxu0 0.0
    %9941 = vmatpush1.msra.mxu0 0.0
    %9942 = vmatprep.subr.mxu0 0.0
    %9943 = vmatpush1.msra.mxu0 0.0
    %9944 = vmatprep.subr.mxu0 0.0
    %9945 = vmatpush1.msra.mxu0 0.0
    %9946 = vmatprep.subr.mxu0 0.0
    %9947 = vmatpush1.msra.mxu0 0.0
    %9948 = vmatprep.subr.mxu0 0.0
    %9949 = vmatpush1.msra.mxu0 0.0
    %9950 = vmatprep.subr.mxu0 0.0
    %9951 = vmatpush1.msra.mxu0 0.0
    %9952 = vmatprep.subr.mxu0 0.0
    %9953 = vmatpush1.msra.mxu0 0.0
    %9954 = vmatprep.subr.mxu0 0.0
    %9955 = vmatpush1.msra.mxu0 0.0
    %9956 = vmatprep.subr.mxu0 0.0
    %9957 = vmatpush1.msra.mxu0 0.0
    %9958 = vmatprep.mubr.f32.mxu0 0.0
    %9959 = vmatmul.mubr.f32.gmra.mrb[0].mxu0 %v9892
    %v9960 = vpop.f32.mrb[0].mxu0
    %v9961 = vadd.f32 %v9889, %v9960
    %v9962 = vpop.f32.mrb[0].mxu0
    %9963 = vdwg.mxu0
    %vm9964 = vcmp.gt.f32.partialorder %v9961, 0.0
    %v9965 = vmul.f32 %v9961, 1.442695
    %v9966 = vpow.pop %v9965
    %v9967 = vsub.f32 %v9966, 1.0
    %v9968 = vsel %vm9964, %v9961, %v9967
    %v9969 = vld [vmem:[%s9] sm:$0xff]
    %v9970 = vld [vmem:[%s9 + $0x8] sm:$0xff]
    %v9971 = vld [vmem:[%s9 + $0x10] sm:$0xff]
    %v9972 = vld [vmem:[%s9 + $0x18] sm:$0xff]
    %v9973 = vld [vmem:[%s10] sm:$0x1]
    %v9975 = vlaneseq
    %v9976 = vshrl.u32 %v9975, 7
    %v9977 = vsub.s32 0, %v9976
    %v9978 = vrot.slane %v9973, %v9977
    %v9981 = vsel %vm3327, %v9968, 0
    %9983 = vmatprep.subr.mxu0 0.0
    %9984 = vmatpush1.msra.mxu0 %v9969
    %9985 = vmatprep.subr.mxu0 0.0
    %9986 = vmatpush1.msra.mxu0 %v9970
    %9987 = vmatprep.subr.mxu0 0.0
    %9988 = vmatpush1.msra.mxu0 %v9971
    %9989 = vmatprep.subr.mxu0 0.0
    %9990 = vmatpush1.msra.mxu0 %v9972
    %9991 = vmatprep.subr.mxu0 0.0
    %9992 = vmatpush1.msra.mxu0 0.0
    %9993 = vmatprep.subr.mxu0 0.0
    %9994 = vmatpush1.msra.mxu0 0.0
    %9995 = vmatprep.subr.mxu0 0.0
    %9996 = vmatpush1.msra.mxu0 0.0
    %9997 = vmatprep.subr.mxu0 0.0
    %9998 = vmatpush1.msra.mxu0 0.0
    %9999 = vmatprep.subr.mxu0 0.0
    %10000 = vmatpush1.msra.mxu0 0.0
    %10001 = vmatprep.subr.mxu0 0.0
    %10002 = vmatpush1.msra.mxu0 0.0
    %10003 = vmatprep.subr.mxu0 0.0
    %10004 = vmatpush1.msra.mxu0 0.0
    %10005 = vmatprep.subr.mxu0 0.0
    %10006 = vmatpush1.msra.mxu0 0.0
    %10007 = vmatprep.subr.mxu0 0.0
    %10008 = vmatpush1.msra.mxu0 0.0
    %10009 = vmatprep.subr.mxu0 0.0
    %10010 = vmatpush1.msra.mxu0 0.0
    %10011 = vmatprep.subr.mxu0 0.0
    %10012 = vmatpush1.msra.mxu0 0.0
    %10013 = vmatprep.subr.mxu0 0.0
    %10014 = vmatpush1.msra.mxu0 0.0
    %10015 = vmatprep.subr.mxu0 0.0
    %10016 = vmatpush1.msra.mxu0 0.0
    %10017 = vmatprep.subr.mxu0 0.0
    %10018 = vmatpush1.msra.mxu0 0.0
    %10019 = vmatprep.subr.mxu0 0.0
    %10020 = vmatpush1.msra.mxu0 0.0
    %10021 = vmatprep.subr.mxu0 0.0
    %10022 = vmatpush1.msra.mxu0 0.0
    %10023 = vmatprep.subr.mxu0 0.0
    %10024 = vmatpush1.msra.mxu0 0.0
    %10025 = vmatprep.subr.mxu0 0.0
    %10026 = vmatpush1.msra.mxu0 0.0
    %10027 = vmatprep.subr.mxu0 0.0
    %10028 = vmatpush1.msra.mxu0 0.0
    %10029 = vmatprep.subr.mxu0 0.0
    %10030 = vmatpush1.msra.mxu0 0.0
    %10031 = vmatprep.subr.mxu0 0.0
    %10032 = vmatpush1.msra.mxu0 0.0
    %10033 = vmatprep.subr.mxu0 0.0
    %10034 = vmatpush1.msra.mxu0 0.0
    %10035 = vmatprep.subr.mxu0 0.0
    %10036 = vmatpush1.msra.mxu0 0.0
    %10037 = vmatprep.subr.mxu0 0.0
    %10038 = vmatpush1.msra.mxu0 0.0
    %10039 = vmatprep.subr.mxu0 0.0
    %10040 = vmatpush1.msra.mxu0 0.0
    %10041 = vmatprep.subr.mxu0 0.0
    %10042 = vmatpush1.msra.mxu0 0.0
    %10043 = vmatprep.subr.mxu0 0.0
    %10044 = vmatpush1.msra.mxu0 0.0
    %10045 = vmatprep.subr.mxu0 0.0
    %10046 = vmatpush1.msra.mxu0 0.0
    %10047 = vmatprep.mubr.f32.mxu0 0.0
    %10048 = vmatmul.mubr.f32.gmra.mrb[0].mxu0 %v9981
    %v10049 = vpop.f32.mrb[0].mxu0
    %v10050 = vadd.f32 %v9978, %v10049
    %v10051 = vpop.f32.mrb[0].mxu0
    %10052 = vdwg.mxu0
    %10053 = vst.msk [vmem:[#allocation4] sm:$0xff] %vm2937, %v10050
    // Predicated region
    $region46: #{net_forward.1} parent=1 // pred_check
      _
    $region47: #{net_forward.1} parent=1 // pred_check_branch
      %10055 = sbr.rel (0) target = $region49
    $region48: #{net_forward.1} parent=1 // pred_region
      %s10057 = ssub.s32 128, 128
      %10058 = vsyncadd [#allocation5], %s10057
      %s10060 = sshll.u32 [#allocation4], 4
      %s10061 = int_to_ptr.vmem [resolvable:$true] %s10060
      %10063 = dma.vmem_to_hbm [thread:$0]  %s10061, 128, %s11, [#allocation5]
    $region49: #{net_forward.1} parent=1 // pred_fallthru
      _
    // Predicated region
    $region50: #{net_forward.1} parent=1 // pred_check
      _
    $region51: #{net_forward.1} parent=1 // pred_check_branch
      %10065 = sbr.rel (0) target = $region53
    $region52: #{net_forward.1} parent=1 // pred_region
      %10066 = dma.done [#allocation5], 128
    $region53: #{net_forward.1} parent=1 // pred_fallthru
      _
    %10067 = vsyncpa [#allocation5], 1

</llo_original>
